<compile_context>
chip_gen: v5e
topology: v5e:2x2
jax: 0.10.0
libtpu: 0.0.40
codegen_flags: <defaults>
</compile_context>

<pallas_src>
import functools

import jax
import jax.numpy as jnp
from jax.experimental import pallas as pl
from jax.experimental.pallas import tpu as pltpu

EPS = 1e-5

# New conv-stage peak is ~4 MiB; 32 MiB leaves generous slack while staying at
# half of v7x's 64 MiB per-TC physical VMEM (v5e/v6e have 128 MiB).
_VMEM_CONV = 32 * 1024 * 1024
_VMEM_FC = 16 * 1024 * 1024

_K_FC1 = 32 * 21 * 21        # 14112
_TK_FC1 = 7168               # fc1 K tile (multiple of 128) -> 2 grid steps
_K_FC1_PAD = 2 * _TK_FC1     # 14336 (zero-padded; pad rows/cols are zeros)


# ----------------------------------------------------------------------------
# Kernel 1: fused conv (transposed im2col matmul) + BatchNorm2d (train) + ReLU
#           + MaxPool2x2, gridded over the four 2x2 pool-window slots.
# ----------------------------------------------------------------------------
def _conv_stage_kernel(a_ref, w_ref, g_ref, beta_ref, o_ref,
                       vmax_ref, vmin_ref, s1_ref, s2_ref, *, inv_n):
    # a_ref:    (1, 9*Cin, Qpad) bf16  im2col block of the current pool slot;
    #           columns (b, i, j) over the POOLED grid, rows (dy, dx, cin);
    #           pad columns (>= Q valid) are exactly zero.
    # w_ref:    (Cout, 9*Cin)   bf16  conv weight, transposed im2col layout
    #           (conv bias omitted: cancelled by the BN mean subtraction).
    # g_ref, beta_ref: (Cout, 1) f32  BatchNorm affine parameters.
    # o_ref:    (Cout, Qpad)    bf16  pooled output (lane-dense), written on the
    #           last grid step only.
    # scratch:  vmax/vmin (Cout, Qpad) f32 running max/min of pre-BN h over the
    #           four slots; s1/s2 (Cout, 1) f32 batch-stat accumulators.
    s = pl.program_id(0)

    # Single MXU matmul per slot, f32 accumulation.
    h = jnp.dot(w_ref[...], a_ref[0], preferred_element_type=jnp.float32)

    @pl.when(s == 0)
    def _():
        vmax_ref[...] = h
        vmin_ref[...] = h
        s1_ref[...] = jnp.zeros_like(s1_ref)
        s2_ref[...] = jnp.zeros_like(s2_ref)

    @pl.when(s > 0)
    def _():
        vmax_ref[...] = jnp.maximum(vmax_ref[...], h)
        vmin_ref[...] = jnp.minimum(vmin_ref[...], h)

    # Batch statistics over ALL pre-pool pixels (pad columns of h are exactly 0
    # and inv_n counts only the valid ones, so the stats are exact).
    s1_ref[...] += jnp.sum(h, axis=1, keepdims=True)
    s2_ref[...] += jnp.sum(h * h, axis=1, keepdims=True)

    @pl.when(s == pl.num_programs(0) - 1)
    def _():
        mean = s1_ref[...] * inv_n
        var = jnp.maximum(s2_ref[...] * inv_n - mean * mean, 0.0)  # f32 clamp
        scale = g_ref[...] * jax.lax.rsqrt(var + EPS)              # (Cout, 1)
        shift = beta_ref[...] - mean * scale
        # max over the 2x2 window of (scale*h + shift):
        #   scale >= 0 -> scale*max(h) + shift ; scale < 0 -> scale*min(h) + shift
        pooled = jnp.where(scale >= 0.0, vmax_ref[...], vmin_ref[...])
        o_ref[...] = jnp.maximum(pooled * scale + shift, 0.0).astype(o_ref.dtype)


def conv_stage(a_blocks, wt, gamma, beta, n_valid):
    # a_blocks: (4, 9*Cin, Qpad) bf16;  wt: (Cout, 9*Cin) bf16;
    # gamma/beta: (Cout, 1) f32;  n_valid = Q (valid pooled pixels per slot).
    _, kdim, qpad = a_blocks.shape
    cout = wt.shape[0]
    kernel = functools.partial(_conv_stage_kernel,
                               inv_n=1.0 / float(4 * n_valid))
    return pl.pallas_call(
        kernel,
        out_shape=jax.ShapeDtypeStruct((cout, qpad), jnp.bfloat16),
        grid=(4,),
        in_specs=[
            pl.BlockSpec((1, kdim, qpad), lambda s: (s, 0, 0)),   # slot s block
            pl.BlockSpec((cout, kdim), lambda s: (0, 0)),         # weight
            pl.BlockSpec((cout, 1), lambda s: (0, 0)),            # gamma
            pl.BlockSpec((cout, 1), lambda s: (0, 0)),            # beta
        ],
        out_specs=pl.BlockSpec((cout, qpad), lambda s: (0, 0)),
        scratch_shapes=[
            pltpu.VMEM((cout, qpad), jnp.float32),   # running max of pre-BN h
            pltpu.VMEM((cout, qpad), jnp.float32),   # running min of pre-BN h
            pltpu.VMEM((cout, 1), jnp.float32),      # sum
            pltpu.VMEM((cout, 1), jnp.float32),      # sum of squares
        ],
        compiler_params=pltpu.CompilerParams(
            dimension_semantics=("arbitrary",),      # slot axis is a reduction
            vmem_limit_bytes=_VMEM_CONV),
    )(a_blocks, wt, gamma, beta)


# ----------------------------------------------------------------------------
# Kernel 2: FC head.  fc1 is K-tiled over a 2-step grid (bf16 weight streaming
# overlaps the accumulation); BN1d + ReLU + fc2 + BN1d + ReLU + fc3 on the
# last step.
# ----------------------------------------------------------------------------
def _fc_head_kernel(x_ref, w1_ref, g1_ref, be1_ref, w2_ref, g2_ref, be2_ref,
                    w3_ref, b3_ref, o_ref, acc_ref):
    k = pl.program_id(0)

    @pl.when(k == 0)
    def _():
        acc_ref[...] = jnp.zeros_like(acc_ref)

    acc_ref[...] += jnp.dot(x_ref[...], w1_ref[...],
                            preferred_element_type=jnp.float32)

    @pl.when(k == pl.num_programs(0) - 1)
    def _():
        def bn_relu(h, g, be):
            # batch=B statistics: exact two-pass form (tiny arrays), f32 math.
            m = jnp.mean(h, axis=0, keepdims=True)
            v = jnp.mean(jnp.square(h - m), axis=0, keepdims=True)  # biased var
            return jnp.maximum((h - m) * jax.lax.rsqrt(v + EPS) * g + be, 0.0)

        h = bn_relu(acc_ref[...], g1_ref[...], be1_ref[...])
        h = bn_relu(jnp.dot(h, w2_ref[...], preferred_element_type=jnp.float32),
                    g2_ref[...], be2_ref[...])
        o_ref[...] = jnp.dot(h, w3_ref[...],
                             preferred_element_type=jnp.float32) + b3_ref[...]


def fc_head(x, w1, g1, be1, w2, g2, be2, w3, b3):
    bsz, kp = x.shape
    act = w3.shape[1]
    nk = kp // _TK_FC1
    return pl.pallas_call(
        _fc_head_kernel,
        out_shape=jax.ShapeDtypeStruct((bsz, act), jnp.float32),
        grid=(nk,),
        in_specs=[
            pl.BlockSpec((bsz, _TK_FC1), lambda k: (0, k)),   # x K-chunk (bf16)
            pl.BlockSpec((_TK_FC1, 64), lambda k: (k, 0)),    # fw1 K-chunk (bf16)
            pl.BlockSpec((1, 64), lambda k: (0, 0)),          # g1
            pl.BlockSpec((1, 64), lambda k: (0, 0)),          # be1
            pl.BlockSpec((64, 64), lambda k: (0, 0)),         # fw2
            pl.BlockSpec((1, 64), lambda k: (0, 0)),          # g2
            pl.BlockSpec((1, 64), lambda k: (0, 0)),          # be2
            pl.BlockSpec((64, act), lambda k: (0, 0)),        # fw3
            pl.BlockSpec((1, act), lambda k: (0, 0)),         # b3
        ],
        out_specs=pl.BlockSpec((bsz, act), lambda k: (0, 0)),
        scratch_shapes=[pltpu.VMEM((bsz, 64), jnp.float32)],
        compiler_params=pltpu.CompilerParams(
            dimension_semantics=("arbitrary",),
            vmem_limit_bytes=_VMEM_FC),
    )(x, w1, g1, be1, w2, g2, be2, w3, b3)


# ----------------------------------------------------------------------------
# JAX glue: build the four transposed pool-window im2col blocks directly from
# channel-major data with stride-2 slices (no 6-axis transpose, no extra
# HBM round trip of the im2col blocks).
# ----------------------------------------------------------------------------
def _im2col_pool_blocks_t(x):
    # x: (C, B, H, W) bf16 with H, W even.  Returns (4, 9*C, Qpad) bf16:
    # block s = wy*2 + wx holds the 3x3 patch of conv-output pixel
    # (b, 2i+wy, 2j+wx) in column q = b*(H/2)*(W/2) + i*(W/2) + j, rows ordered
    # (dy, dx, cin).  Columns >= Q are zero padding up to a multiple of 128.
    c, b, h, w = x.shape
    hh, wh = h // 2, w // 2
    q = b * hh * wh
    qpad = ((q + 127) // 128) * 128
    xp = jnp.pad(x, ((0, 0), (0, 0), (1, 1), (1, 1)))
    slots = []
    for wy in range(2):
        for wx in range(2):
            taps = [xp[:, :,
                       wy + dy: wy + dy + h - 1: 2,
                       wx + dx: wx + dx + w - 1: 2]
                    for dy in range(3) for dx in range(3)]      # 9 x (C,B,hh,wh)
            slots.append(jnp.stack(taps, axis=0).reshape(9 * c, q))
    a = jnp.stack(slots, axis=0)                                # (4, 9C, Q)
    return jnp.pad(a, ((0, 0), (0, 0), (0, qpad - q)))


@jax.jit
def dqn_forward(x_nchw, params):
    bsz = x_nchw.shape[0]
    # Channel-major (C, B, H, W); leading-axis transpose only (cheap), bf16 stream.
    x = jnp.transpose(x_nchw, (1, 0, 2, 3)).astype(jnp.bfloat16)

    # conv1 -> BN -> ReLU -> maxpool(2,2), fused
    q1 = bsz * 42 * 42
    a1 = _im2col_pool_blocks_t(x)                                # (4, 108, Qpad1)
    y1 = conv_stage(a1, params["w1t"], params["g1"], params["be1"],
                    n_valid=q1)                                  # (16, Qpad1) bf16

    # conv2 -> BN -> ReLU -> maxpool(2,2), fused (conv1 output is already
    # channel-major, so no transpose is needed here)
    q2 = bsz * 21 * 21
    a2 = _im2col_pool_blocks_t(y1[:, :q1].reshape(16, bsz, 42, 42))
    y2 = conv_stage(a2, params["w2t"], params["g2"], params["be2"],
                    n_valid=q2)                                  # (32, Qpad2) bf16

    # Reproduce PyTorch's per-sample NCHW flatten (c*441 + i*21 + j): the conv
    # output is (C, B, 21*21), so a small leading-axis transpose suffices and
    # fc1's weight keeps its native row order.
    flat = jnp.transpose(y2[:, :q2].reshape(32, bsz, 21 * 21), (1, 0, 2))
    flat = flat.reshape(bsz, _K_FC1)
    flat = jnp.pad(flat, ((0, 0), (0, _K_FC1_PAD - _K_FC1)))     # K -> 14336, bf16

    return fc_head(flat,
                   params["fw1"], params["fg1"], params["fbe1"],
                   params["fw2"], params["fg2"], params["fbe2"],
                   params["fw3"], params["fb3"])


# ----------------------------------------------------------------------------
# Deterministic parameter init (shapes from DQN.__init__); PyTorch-style layouts
# are generated and converted once into the layouts the kernels expect.
# ----------------------------------------------------------------------------
def init_params(key, action_size=4):
    ks = jax.random.split(key, 6)

    def u(k, shape, fan_in):
        bound = float(fan_in) ** -0.5
        return jax.random.uniform(k, shape, jnp.float32, -bound, bound)

    conv1_w = u(ks[0], (16, 12, 3, 3), 12 * 9)           # PyTorch (Cout, Cin, kh, kw)
    conv2_w = u(ks[1], (32, 16, 3, 3), 16 * 9)
    fc1_w = u(ks[2], (64, 32 * 21 * 21), 32 * 21 * 21)   # PyTorch (out, in)
    fc2_w = u(ks[3], (64, 64), 64)
    fc3_w = u(ks[4], (action_size, 64), 64)
    fc3_b = u(ks[5], (action_size,), 64)
    # conv1/conv2/fc1/fc2 biases omitted: each is immediately followed by a
    # BatchNorm in training mode, whose mean subtraction cancels a per-channel
    # constant exactly, so they have no effect on the forward output.

    col_ones = lambda c: jnp.ones((c, 1), jnp.float32)
    col_zeros = lambda c: jnp.zeros((c, 1), jnp.float32)
    row_ones = lambda c: jnp.ones((1, c), jnp.float32)
    row_zeros = lambda c: jnp.zeros((1, c), jnp.float32)

    # conv weights (Cout,Cin,kh,kw) -> transposed im2col layout (Cout, kh*kw*Cin)
    w1t = jnp.transpose(conv1_w, (0, 2, 3, 1)).reshape(16, 9 * 12).astype(jnp.bfloat16)
    w2t = jnp.transpose(conv2_w, (0, 2, 3, 1)).reshape(32, 9 * 16).astype(jnp.bfloat16)

    # fc1: PyTorch row order already matches our (b, c, i, j) flatten; just
    # transpose to (in, out), zero-pad K 14112 -> 14336, stream as bf16.
    fw1 = jnp.pad(fc1_w.T, ((0, _K_FC1_PAD - _K_FC1), (0, 0))).astype(jnp.bfloat16)

    return {
        "w1t": w1t, "g1": col_ones(16), "be1": col_zeros(16),
        "w2t": w2t, "g2": col_ones(32), "be2": col_zeros(32),
        "fw1": fw1, "fg1": row_ones(64), "fbe1": row_zeros(64),
        "fw2": fc2_w.T, "fg2": row_ones(64), "fbe2": row_zeros(64),
        "fw3": fc3_w.T, "fb3": fc3_b.reshape(1, action_size),
    }


if __name__ == "__main__":
    key = jax.random.PRNGKey(0)
    kp, kx = jax.random.split(key)
    action_size = 4
    params = init_params(kp, action_size=action_size)
    # 84x84 spatial is forced by fc1's hard-coded 32*21*21 input size; batch=2
    # (BatchNorm1d in training mode requires batch > 1, matching PyTorch).
    x = jax.random.normal(kx, (2, 12, 84, 84), jnp.float32)
    q = dqn_forward(x, params)
    jax.block_until_ready(q)
    assert q.shape == (2, action_size) and q.dtype == jnp.float32
    print("KERNEL_OK")
</pallas_src>

<mosaic_0001>
module attributes {stable_mosaic.version = 11 : i64} {
  func.func @_conv_stage_kernel(%arg0: i32, %arg1: memref<1x108x3584xbf16, #tpu.memory_space<vmem>>, %arg2: memref<16x108xbf16, #tpu.memory_space<vmem>>, %arg3: memref<16x1xf32, #tpu.memory_space<vmem>>, %arg4: memref<16x1xf32, #tpu.memory_space<vmem>>, %arg5: memref<16x3584xbf16, #tpu.memory_space<vmem>>, %arg6: memref<16x3584xf32, #tpu.memory_space<vmem>>, %arg7: memref<16x3584xf32, #tpu.memory_space<vmem>>, %arg8: memref<16x1xf32, #tpu.memory_space<vmem>>, %arg9: memref<16x1xf32, #tpu.memory_space<vmem>>) attributes {dimension_semantics = [#tpu.dimension_semantics<arbitrary>], iteration_bounds = array<i64: 4>, scalar_prefetch = 0 : i64, scratch_operands = 4 : i64, tpu.core_type = #tpu.core_type<tc>, window_params = [{transform_indices = @transform_0, window_bounds = array<i64: 1, 108, 3584>}, {pipeline_mode = #tpu.pipeline_mode<synchronous>, transform_indices = @transform_1, window_bounds = array<i64: 16, 108>}, {pipeline_mode = #tpu.pipeline_mode<synchronous>, transform_indices = @transform_2, window_bounds = array<i64: 16, 1>}, {pipeline_mode = #tpu.pipeline_mode<synchronous>, transform_indices = @transform_3, window_bounds = array<i64: 16, 1>}, {pipeline_mode = #tpu.pipeline_mode<synchronous>, transform_indices = @transform_4, window_bounds = array<i64: 16, 3584>}]} {
    %c0 = arith.constant 0 : index
    %c0_0 = arith.constant 0 : index
    %0 = vector.load %arg2[%c0, %c0_0] : memref<16x108xbf16, #tpu.memory_space<vmem>>, vector<16x108xbf16>
    %c0_1 = arith.constant 0 : index
    %c0_2 = arith.constant 0 : index
    %c0_3 = arith.constant 0 : index
    %1 = vector.load %arg1[%c0_1, %c0_2, %c0_3] : memref<1x108x3584xbf16, #tpu.memory_space<vmem>>, vector<1x108x3584xbf16>
    %2 = vector.shape_cast %1 : vector<1x108x3584xbf16> to vector<108x3584xbf16>
    %cst = arith.constant dense<0.000000e+00> : vector<16x3584xf32>
    %3 = tpu.matmul %0, %2, %cst {dimension_numbers = #tpu.dot_dimension_numbers<[1], [0], [0], [1], [0, 0, 1, 1], [], []>} : vector<16x108xbf16>, vector<108x3584xbf16>, vector<16x3584xf32> -> vector<16x3584xf32>
    %c0_i32 = arith.constant 0 : i32
    %4 = arith.cmpi eq, %arg0, %c0_i32 : i32
    %5 = arith.extui %4 : i1 to i32
    %c0_i32_4 = arith.constant 0 : i32
    %6 = arith.cmpi ne, %5, %c0_i32_4 : i32
    scf.if %6 {
      %c0_18 = arith.constant 0 : index
      %c0_19 = arith.constant 0 : index
      %24 = vector.load %arg6[%c0_18, %c0_19] : memref<16x3584xf32, #tpu.memory_space<vmem>>, vector<16x3584xf32>
      tpu.vector_store %arg6[%c0_18, %c0_19], %3 {strides = array<i32>} : memref<16x3584xf32, #tpu.memory_space<vmem>>, vector<16x3584xf32>,
      %c0_20 = arith.constant 0 : index
      %c0_21 = arith.constant 0 : index
      %25 = vector.load %arg7[%c0_20, %c0_21] : memref<16x3584xf32, #tpu.memory_space<vmem>>, vector<16x3584xf32>
      tpu.vector_store %arg7[%c0_20, %c0_21], %3 {strides = array<i32>} : memref<16x3584xf32, #tpu.memory_space<vmem>>, vector<16x3584xf32>,
      %cst_22 = arith.constant 0.000000e+00 : f32
      %26 = vector.broadcast %cst_22 : f32 to vector<16x1xf32>
      %c0_23 = arith.constant 0 : index
      %c0_24 = arith.constant 0 : index
      %27 = vector.load %arg8[%c0_23, %c0_24] : memref<16x1xf32, #tpu.memory_space<vmem>>, vector<16x1xf32>
      tpu.vector_store %arg8[%c0_23, %c0_24], %26 {strides = array<i32>} : memref<16x1xf32, #tpu.memory_space<vmem>>, vector<16x1xf32>,
      %cst_25 = arith.constant 0.000000e+00 : f32
      %28 = vector.broadcast %cst_25 : f32 to vector<16x1xf32>
      %c0_26 = arith.constant 0 : index
      %c0_27 = arith.constant 0 : index
      %29 = vector.load %arg9[%c0_26, %c0_27] : memref<16x1xf32, #tpu.memory_space<vmem>>, vector<16x1xf32>
      tpu.vector_store %arg9[%c0_26, %c0_27], %28 {strides = array<i32>} : memref<16x1xf32, #tpu.memory_space<vmem>>, vector<16x1xf32>,
    } else {
    }
    %c0_i32_5 = arith.constant 0 : i32
    %7 = arith.cmpi sgt, %arg0, %c0_i32_5 : i32
    %8 = arith.extui %7 : i1 to i32
    %c0_i32_6 = arith.constant 0 : i32
    %9 = arith.cmpi ne, %8, %c0_i32_6 : i32
    scf.if %9 {
      %c0_18 = arith.constant 0 : index
      %c0_19 = arith.constant 0 : index
      %24 = vector.load %arg6[%c0_18, %c0_19] : memref<16x3584xf32, #tpu.memory_space<vmem>>, vector<16x3584xf32>
      %25 = arith.maximumf %24, %3 : vector<16x3584xf32>
      %c0_20 = arith.constant 0 : index
      %c0_21 = arith.constant 0 : index
      %26 = vector.load %arg6[%c0_20, %c0_21] : memref<16x3584xf32, #tpu.memory_space<vmem>>, vector<16x3584xf32>
      tpu.vector_store %arg6[%c0_20, %c0_21], %25 {strides = array<i32>} : memref<16x3584xf32, #tpu.memory_space<vmem>>, vector<16x3584xf32>,
      %c0_22 = arith.constant 0 : index
      %c0_23 = arith.constant 0 : index
      %27 = vector.load %arg7[%c0_22, %c0_23] : memref<16x3584xf32, #tpu.memory_space<vmem>>, vector<16x3584xf32>
      %28 = arith.minimumf %27, %3 : vector<16x3584xf32>
      %c0_24 = arith.constant 0 : index
      %c0_25 = arith.constant 0 : index
      %29 = vector.load %arg7[%c0_24, %c0_25] : memref<16x3584xf32, #tpu.memory_space<vmem>>, vector<16x3584xf32>
      tpu.vector_store %arg7[%c0_24, %c0_25], %28 {strides = array<i32>} : memref<16x3584xf32, #tpu.memory_space<vmem>>, vector<16x3584xf32>,
    } else {
    }
    %c0_7 = arith.constant 0 : index
    %c0_8 = arith.constant 0 : index
    %10 = vector.load %arg8[%c0_7, %c0_8] : memref<16x1xf32, #tpu.memory_space<vmem>>, vector<16x1xf32>
    %cst_9 = arith.constant dense<0.000000e+00> : vector<16xf32>
    %11 = vector.multi_reduction <add>, %3, %cst_9 [1] : vector<16x3584xf32> to vector<16xf32>
    %12 = vector.shape_cast %11 : vector<16xf32> to vector<16x1xf32>
    %13 = arith.addf %10, %12 : vector<16x1xf32>
    %c0_10 = arith.constant 0 : index
    %c0_11 = arith.constant 0 : index
    %14 = vector.load %arg8[%c0_10, %c0_11] : memref<16x1xf32, #tpu.memory_space<vmem>>, vector<16x1xf32>
    tpu.vector_store %arg8[%c0_10, %c0_11], %13 {strides = array<i32>} : memref<16x1xf32, #tpu.memory_space<vmem>>, vector<16x1xf32>,
    %c0_12 = arith.constant 0 : index
    %c0_13 = arith.constant 0 : index
    %15 = vector.load %arg9[%c0_12, %c0_13] : memref<16x1xf32, #tpu.memory_space<vmem>>, vector<16x1xf32>
    %16 = arith.mulf %3, %3 : vector<16x3584xf32>
    %cst_14 = arith.constant dense<0.000000e+00> : vector<16xf32>
    %17 = vector.multi_reduction <add>, %16, %cst_14 [1] : vector<16x3584xf32> to vector<16xf32>
    %18 = vector.shape_cast %17 : vector<16xf32> to vector<16x1xf32>
    %19 = arith.addf %15, %18 : vector<16x1xf32>
    %c0_15 = arith.constant 0 : index
    %c0_16 = arith.constant 0 : index
    %20 = vector.load %arg9[%c0_15, %c0_16] : memref<16x1xf32, #tpu.memory_space<vmem>>, vector<16x1xf32>
    tpu.vector_store %arg9[%c0_15, %c0_16], %19 {strides = array<i32>} : memref<16x1xf32, #tpu.memory_space<vmem>>, vector<16x1xf32>,
    %c3_i32 = arith.constant 3 : i32
    %21 = arith.cmpi eq, %arg0, %c3_i32 : i32
    %22 = arith.extui %21 : i1 to i32
    %c0_i32_17 = arith.constant 0 : i32
    %23 = arith.cmpi ne, %22, %c0_i32_17 : i32
    scf.if %23 {
      %c0_18 = arith.constant 0 : index
      %c0_19 = arith.constant 0 : index
      %24 = vector.load %arg8[%c0_18, %c0_19] : memref<16x1xf32, #tpu.memory_space<vmem>>, vector<16x1xf32>
      %cst_20 = arith.constant 7.08616789E-5 : f32
      %25 = vector.broadcast %cst_20 : f32 to vector<16x1xf32>
      %26 = arith.mulf %24, %25 : vector<16x1xf32>
      %c0_21 = arith.constant 0 : index
      %c0_22 = arith.constant 0 : index
      %27 = vector.load %arg9[%c0_21, %c0_22] : memref<16x1xf32, #tpu.memory_space<vmem>>, vector<16x1xf32>
      %cst_23 = arith.constant 7.08616789E-5 : f32
      %28 = vector.broadcast %cst_23 : f32 to vector<16x1xf32>
      %29 = arith.mulf %27, %28 : vector<16x1xf32>
      %30 = arith.mulf %26, %26 : vector<16x1xf32>
      %31 = arith.subf %29, %30 : vector<16x1xf32>
      %cst_24 = arith.constant 0.000000e+00 : f32
      %32 = vector.broadcast %cst_24 : f32 to vector<16x1xf32>
      %33 = arith.maximumf %31, %32 : vector<16x1xf32>
      %c0_25 = arith.constant 0 : index
      %c0_26 = arith.constant 0 : index
      %34 = vector.load %arg3[%c0_25, %c0_26] : memref<16x1xf32, #tpu.memory_space<vmem>>, vector<16x1xf32>
      %cst_27 = arith.constant 9.99999974E-6 : f32
      %35 = vector.broadcast %cst_27 : f32 to vector<16x1xf32>
      %36 = arith.addf %33, %35 : vector<16x1xf32>
      %37 = math.rsqrt %36 : vector<16x1xf32>
      %38 = arith.mulf %34, %37 : vector<16x1xf32>
      %c0_28 = arith.constant 0 : index
      %c0_29 = arith.constant 0 : index
      %39 = vector.load %arg4[%c0_28, %c0_29] : memref<16x1xf32, #tpu.memory_space<vmem>>, vector<16x1xf32>
      %40 = arith.mulf %26, %38 : vector<16x1xf32>
      %41 = arith.subf %39, %40 : vector<16x1xf32>
      %cst_30 = arith.constant 0.000000e+00 : f32
      %42 = vector.broadcast %cst_30 : f32 to vector<16x1xf32>
      %43 = arith.cmpf oge, %38, %42 : vector<16x1xf32>
      %c0_31 = arith.constant 0 : index
      %c0_32 = arith.constant 0 : index
      %44 = vector.load %arg6[%c0_31, %c0_32] : memref<16x3584xf32, #tpu.memory_space<vmem>>, vector<16x3584xf32>
      %c0_33 = arith.constant 0 : index
      %c0_34 = arith.constant 0 : index
      %45 = vector.load %arg7[%c0_33, %c0_34] : memref<16x3584xf32, #tpu.memory_space<vmem>>, vector<16x3584xf32>
      %46 = vector.shape_cast %43 : vector<16x1xi1> to vector<16x1xi1>
      %47 = vector.broadcast %46 : vector<16x1xi1> to vector<16x3584xi1>
      %48 = arith.select %47, %44, %45 : vector<16x3584xi1>, vector<16x3584xf32>
      %49 = vector.broadcast %38 : vector<16x1xf32> to vector<16x3584xf32>
      %50 = arith.mulf %48, %49 : vector<16x3584xf32>
      %51 = vector.broadcast %41 : vector<16x1xf32> to vector<16x3584xf32>
      %52 = arith.addf %50, %51 : vector<16x3584xf32>
      %cst_35 = arith.constant 0.000000e+00 : f32
      %53 = vector.broadcast %cst_35 : f32 to vector<16x3584xf32>
      %54 = arith.maximumf %52, %53 : vector<16x3584xf32>
      %55 = arith.truncf %54 : vector<16x3584xf32> to vector<16x3584xbf16>
      %c0_36 = arith.constant 0 : index
      %c0_37 = arith.constant 0 : index
      %56 = vector.load %arg5[%c0_36, %c0_37] : memref<16x3584xbf16, #tpu.memory_space<vmem>>, vector<16x3584xbf16>
      tpu.vector_store %arg5[%c0_36, %c0_37], %55 {strides = array<i32>} : memref<16x3584xbf16, #tpu.memory_space<vmem>>, vector<16x3584xbf16>,
    } else {
    }
    return
  }
  func.func @transform_0(%arg0: i32) -> (i32, i32, i32) {
    %c0_i32 = arith.constant 0 : i32
    %c0_i32_0 = arith.constant 0 : i32
    %c0_i32_1 = arith.constant 0 : i32
    return %arg0, %c0_i32, %c0_i32_0 : i32, i32, i32
  }
  func.func @transform_1(%arg0: i32) -> (i32, i32) {
    %c0_i32 = arith.constant 0 : i32
    %c0_i32_0 = arith.constant 0 : i32
    %c0_i32_1 = arith.constant 0 : i32
    return %c0_i32, %c0_i32_0 : i32, i32
  }
  func.func @transform_2(%arg0: i32) -> (i32, i32) {
    %c0_i32 = arith.constant 0 : i32
    %c0_i32_0 = arith.constant 0 : i32
    %c0_i32_1 = arith.constant 0 : i32
    return %c0_i32, %c0_i32_0 : i32, i32
  }
  func.func @transform_3(%arg0: i32) -> (i32, i32) {
    %c0_i32 = arith.constant 0 : i32
    %c0_i32_0 = arith.constant 0 : i32
    %c0_i32_1 = arith.constant 0 : i32
    return %c0_i32, %c0_i32_0 : i32, i32
  }
  func.func @transform_4(%arg0: i32) -> (i32, i32) {
    %c0_i32 = arith.constant 0 : i32
    %c0_i32_0 = arith.constant 0 : i32
    %c0_i32_1 = arith.constant 0 : i32
    return %c0_i32, %c0_i32_0 : i32, i32
  }
}

module attributes {stable_mosaic.version = 11 : i64} {
  func.func @_conv_stage_kernel(%arg0: i32, %arg1: memref<1x144x896xbf16, #tpu.memory_space<vmem>>, %arg2: memref<32x144xbf16, #tpu.memory_space<vmem>>, %arg3: memref<32x1xf32, #tpu.memory_space<vmem>>, %arg4: memref<32x1xf32, #tpu.memory_space<vmem>>, %arg5: memref<32x896xbf16, #tpu.memory_space<vmem>>, %arg6: memref<32x896xf32, #tpu.memory_space<vmem>>, %arg7: memref<32x896xf32, #tpu.memory_space<vmem>>, %arg8: memref<32x1xf32, #tpu.memory_space<vmem>>, %arg9: memref<32x1xf32, #tpu.memory_space<vmem>>) attributes {dimension_semantics = [#tpu.dimension_semantics<arbitrary>], iteration_bounds = array<i64: 4>, scalar_prefetch = 0 : i64, scratch_operands = 4 : i64, tpu.core_type = #tpu.core_type<tc>, window_params = [{transform_indices = @transform_0, window_bounds = array<i64: 1, 144, 896>}, {pipeline_mode = #tpu.pipeline_mode<synchronous>, transform_indices = @transform_1, window_bounds = array<i64: 32, 144>}, {pipeline_mode = #tpu.pipeline_mode<synchronous>, transform_indices = @transform_2, window_bounds = array<i64: 32, 1>}, {pipeline_mode = #tpu.pipeline_mode<synchronous>, transform_indices = @transform_3, window_bounds = array<i64: 32, 1>}, {pipeline_mode = #tpu.pipeline_mode<synchronous>, transform_indices = @transform_4, window_bounds = array<i64: 32, 896>}]} {
    %c0 = arith.constant 0 : index
    %c0_0 = arith.constant 0 : index
    %0 = vector.load %arg2[%c0, %c0_0] : memref<32x144xbf16, #tpu.memory_space<vmem>>, vector<32x144xbf16>
    %c0_1 = arith.constant 0 : index
    %c0_2 = arith.constant 0 : index
    %c0_3 = arith.constant 0 : index
    %1 = vector.load %arg1[%c0_1, %c0_2, %c0_3] : memref<1x144x896xbf16, #tpu.memory_space<vmem>>, vector<1x144x896xbf16>
    %2 = vector.shape_cast %1 : vector<1x144x896xbf16> to vector<144x896xbf16>
    %cst = arith.constant dense<0.000000e+00> : vector<32x896xf32>
    %3 = tpu.matmul %0, %2, %cst {dimension_numbers = #tpu.dot_dimension_numbers<[1], [0], [0], [1], [0, 0, 1, 1], [], []>} : vector<32x144xbf16>, vector<144x896xbf16>, vector<32x896xf32> -> vector<32x896xf32>
    %c0_i32 = arith.constant 0 : i32
    %4 = arith.cmpi eq, %arg0, %c0_i32 : i32
    %5 = arith.extui %4 : i1 to i32
    %c0_i32_4 = arith.constant 0 : i32
    %6 = arith.cmpi ne, %5, %c0_i32_4 : i32
    scf.if %6 {
      %c0_18 = arith.constant 0 : index
      %c0_19 = arith.constant 0 : index
      %24 = vector.load %arg6[%c0_18, %c0_19] : memref<32x896xf32, #tpu.memory_space<vmem>>, vector<32x896xf32>
      tpu.vector_store %arg6[%c0_18, %c0_19], %3 {strides = array<i32>} : memref<32x896xf32, #tpu.memory_space<vmem>>, vector<32x896xf32>,
      %c0_20 = arith.constant 0 : index
      %c0_21 = arith.constant 0 : index
      %25 = vector.load %arg7[%c0_20, %c0_21] : memref<32x896xf32, #tpu.memory_space<vmem>>, vector<32x896xf32>
      tpu.vector_store %arg7[%c0_20, %c0_21], %3 {strides = array<i32>} : memref<32x896xf32, #tpu.memory_space<vmem>>, vector<32x896xf32>,
      %cst_22 = arith.constant 0.000000e+00 : f32
      %26 = vector.broadcast %cst_22 : f32 to vector<32x1xf32>
      %c0_23 = arith.constant 0 : index
      %c0_24 = arith.constant 0 : index
      %27 = vector.load %arg8[%c0_23, %c0_24] : memref<32x1xf32, #tpu.memory_space<vmem>>, vector<32x1xf32>
      tpu.vector_store %arg8[%c0_23, %c0_24], %26 {strides = array<i32>} : memref<32x1xf32, #tpu.memory_space<vmem>>, vector<32x1xf32>,
      %cst_25 = arith.constant 0.000000e+00 : f32
      %28 = vector.broadcast %cst_25 : f32 to vector<32x1xf32>
      %c0_26 = arith.constant 0 : index
      %c0_27 = arith.constant 0 : index
      %29 = vector.load %arg9[%c0_26, %c0_27] : memref<32x1xf32, #tpu.memory_space<vmem>>, vector<32x1xf32>
      tpu.vector_store %arg9[%c0_26, %c0_27], %28 {strides = array<i32>} : memref<32x1xf32, #tpu.memory_space<vmem>>, vector<32x1xf32>,
    } else {
    }
    %c0_i32_5 = arith.constant 0 : i32
    %7 = arith.cmpi sgt, %arg0, %c0_i32_5 : i32
    %8 = arith.extui %7 : i1 to i32
    %c0_i32_6 = arith.constant 0 : i32
    %9 = arith.cmpi ne, %8, %c0_i32_6 : i32
    scf.if %9 {
      %c0_18 = arith.constant 0 : index
      %c0_19 = arith.constant 0 : index
      %24 = vector.load %arg6[%c0_18, %c0_19] : memref<32x896xf32, #tpu.memory_space<vmem>>, vector<32x896xf32>
      %25 = arith.maximumf %24, %3 : vector<32x896xf32>
      %c0_20 = arith.constant 0 : index
      %c0_21 = arith.constant 0 : index
      %26 = vector.load %arg6[%c0_20, %c0_21] : memref<32x896xf32, #tpu.memory_space<vmem>>, vector<32x896xf32>
      tpu.vector_store %arg6[%c0_20, %c0_21], %25 {strides = array<i32>} : memref<32x896xf32, #tpu.memory_space<vmem>>, vector<32x896xf32>,
      %c0_22 = arith.constant 0 : index
      %c0_23 = arith.constant 0 : index
      %27 = vector.load %arg7[%c0_22, %c0_23] : memref<32x896xf32, #tpu.memory_space<vmem>>, vector<32x896xf32>
      %28 = arith.minimumf %27, %3 : vector<32x896xf32>
      %c0_24 = arith.constant 0 : index
      %c0_25 = arith.constant 0 : index
      %29 = vector.load %arg7[%c0_24, %c0_25] : memref<32x896xf32, #tpu.memory_space<vmem>>, vector<32x896xf32>
      tpu.vector_store %arg7[%c0_24, %c0_25], %28 {strides = array<i32>} : memref<32x896xf32, #tpu.memory_space<vmem>>, vector<32x896xf32>,
    } else {
    }
    %c0_7 = arith.constant 0 : index
    %c0_8 = arith.constant 0 : index
    %10 = vector.load %arg8[%c0_7, %c0_8] : memref<32x1xf32, #tpu.memory_space<vmem>>, vector<32x1xf32>
    %cst_9 = arith.constant dense<0.000000e+00> : vector<32xf32>
    %11 = vector.multi_reduction <add>, %3, %cst_9 [1] : vector<32x896xf32> to vector<32xf32>
    %12 = vector.shape_cast %11 : vector<32xf32> to vector<32x1xf32>
    %13 = arith.addf %10, %12 : vector<32x1xf32>
    %c0_10 = arith.constant 0 : index
    %c0_11 = arith.constant 0 : index
    %14 = vector.load %arg8[%c0_10, %c0_11] : memref<32x1xf32, #tpu.memory_space<vmem>>, vector<32x1xf32>
    tpu.vector_store %arg8[%c0_10, %c0_11], %13 {strides = array<i32>} : memref<32x1xf32, #tpu.memory_space<vmem>>, vector<32x1xf32>,
    %c0_12 = arith.constant 0 : index
    %c0_13 = arith.constant 0 : index
    %15 = vector.load %arg9[%c0_12, %c0_13] : memref<32x1xf32, #tpu.memory_space<vmem>>, vector<32x1xf32>
    %16 = arith.mulf %3, %3 : vector<32x896xf32>
    %cst_14 = arith.constant dense<0.000000e+00> : vector<32xf32>
    %17 = vector.multi_reduction <add>, %16, %cst_14 [1] : vector<32x896xf32> to vector<32xf32>
    %18 = vector.shape_cast %17 : vector<32xf32> to vector<32x1xf32>
    %19 = arith.addf %15, %18 : vector<32x1xf32>
    %c0_15 = arith.constant 0 : index
    %c0_16 = arith.constant 0 : index
    %20 = vector.load %arg9[%c0_15, %c0_16] : memref<32x1xf32, #tpu.memory_space<vmem>>, vector<32x1xf32>
    tpu.vector_store %arg9[%c0_15, %c0_16], %19 {strides = array<i32>} : memref<32x1xf32, #tpu.memory_space<vmem>>, vector<32x1xf32>,
    %c3_i32 = arith.constant 3 : i32
    %21 = arith.cmpi eq, %arg0, %c3_i32 : i32
    %22 = arith.extui %21 : i1 to i32
    %c0_i32_17 = arith.constant 0 : i32
    %23 = arith.cmpi ne, %22, %c0_i32_17 : i32
    scf.if %23 {
      %c0_18 = arith.constant 0 : index
      %c0_19 = arith.constant 0 : index
      %24 = vector.load %arg8[%c0_18, %c0_19] : memref<32x1xf32, #tpu.memory_space<vmem>>, vector<32x1xf32>
      %cst_20 = arith.constant 2.83446716E-4 : f32
      %25 = vector.broadcast %cst_20 : f32 to vector<32x1xf32>
      %26 = arith.mulf %24, %25 : vector<32x1xf32>
      %c0_21 = arith.constant 0 : index
      %c0_22 = arith.constant 0 : index
      %27 = vector.load %arg9[%c0_21, %c0_22] : memref<32x1xf32, #tpu.memory_space<vmem>>, vector<32x1xf32>
      %cst_23 = arith.constant 2.83446716E-4 : f32
      %28 = vector.broadcast %cst_23 : f32 to vector<32x1xf32>
      %29 = arith.mulf %27, %28 : vector<32x1xf32>
      %30 = arith.mulf %26, %26 : vector<32x1xf32>
      %31 = arith.subf %29, %30 : vector<32x1xf32>
      %cst_24 = arith.constant 0.000000e+00 : f32
      %32 = vector.broadcast %cst_24 : f32 to vector<32x1xf32>
      %33 = arith.maximumf %31, %32 : vector<32x1xf32>
      %c0_25 = arith.constant 0 : index
      %c0_26 = arith.constant 0 : index
      %34 = vector.load %arg3[%c0_25, %c0_26] : memref<32x1xf32, #tpu.memory_space<vmem>>, vector<32x1xf32>
      %cst_27 = arith.constant 9.99999974E-6 : f32
      %35 = vector.broadcast %cst_27 : f32 to vector<32x1xf32>
      %36 = arith.addf %33, %35 : vector<32x1xf32>
      %37 = math.rsqrt %36 : vector<32x1xf32>
      %38 = arith.mulf %34, %37 : vector<32x1xf32>
      %c0_28 = arith.constant 0 : index
      %c0_29 = arith.constant 0 : index
      %39 = vector.load %arg4[%c0_28, %c0_29] : memref<32x1xf32, #tpu.memory_space<vmem>>, vector<32x1xf32>
      %40 = arith.mulf %26, %38 : vector<32x1xf32>
      %41 = arith.subf %39, %40 : vector<32x1xf32>
      %cst_30 = arith.constant 0.000000e+00 : f32
      %42 = vector.broadcast %cst_30 : f32 to vector<32x1xf32>
      %43 = arith.cmpf oge, %38, %42 : vector<32x1xf32>
      %c0_31 = arith.constant 0 : index
      %c0_32 = arith.constant 0 : index
      %44 = vector.load %arg6[%c0_31, %c0_32] : memref<32x896xf32, #tpu.memory_space<vmem>>, vector<32x896xf32>
      %c0_33 = arith.constant 0 : index
      %c0_34 = arith.constant 0 : index
      %45 = vector.load %arg7[%c0_33, %c0_34] : memref<32x896xf32, #tpu.memory_space<vmem>>, vector<32x896xf32>
      %46 = vector.shape_cast %43 : vector<32x1xi1> to vector<32x1xi1>
      %47 = vector.broadcast %46 : vector<32x1xi1> to vector<32x896xi1>
      %48 = arith.select %47, %44, %45 : vector<32x896xi1>, vector<32x896xf32>
      %49 = vector.broadcast %38 : vector<32x1xf32> to vector<32x896xf32>
      %50 = arith.mulf %48, %49 : vector<32x896xf32>
      %51 = vector.broadcast %41 : vector<32x1xf32> to vector<32x896xf32>
      %52 = arith.addf %50, %51 : vector<32x896xf32>
      %cst_35 = arith.constant 0.000000e+00 : f32
      %53 = vector.broadcast %cst_35 : f32 to vector<32x896xf32>
      %54 = arith.maximumf %52, %53 : vector<32x896xf32>
      %55 = arith.truncf %54 : vector<32x896xf32> to vector<32x896xbf16>
      %c0_36 = arith.constant 0 : index
      %c0_37 = arith.constant 0 : index
      %56 = vector.load %arg5[%c0_36, %c0_37] : memref<32x896xbf16, #tpu.memory_space<vmem>>, vector<32x896xbf16>
      tpu.vector_store %arg5[%c0_36, %c0_37], %55 {strides = array<i32>} : memref<32x896xbf16, #tpu.memory_space<vmem>>, vector<32x896xbf16>,
    } else {
    }
    return
  }
  func.func @transform_0(%arg0: i32) -> (i32, i32, i32) {
    %c0_i32 = arith.constant 0 : i32
    %c0_i32_0 = arith.constant 0 : i32
    %c0_i32_1 = arith.constant 0 : i32
    return %arg0, %c0_i32, %c0_i32_0 : i32, i32, i32
  }
  func.func @transform_1(%arg0: i32) -> (i32, i32) {
    %c0_i32 = arith.constant 0 : i32
    %c0_i32_0 = arith.constant 0 : i32
    %c0_i32_1 = arith.constant 0 : i32
    return %c0_i32, %c0_i32_0 : i32, i32
  }
  func.func @transform_2(%arg0: i32) -> (i32, i32) {
    %c0_i32 = arith.constant 0 : i32
    %c0_i32_0 = arith.constant 0 : i32
    %c0_i32_1 = arith.constant 0 : i32
    return %c0_i32, %c0_i32_0 : i32, i32
  }
  func.func @transform_3(%arg0: i32) -> (i32, i32) {
    %c0_i32 = arith.constant 0 : i32
    %c0_i32_0 = arith.constant 0 : i32
    %c0_i32_1 = arith.constant 0 : i32
    return %c0_i32, %c0_i32_0 : i32, i32
  }
  func.func @transform_4(%arg0: i32) -> (i32, i32) {
    %c0_i32 = arith.constant 0 : i32
    %c0_i32_0 = arith.constant 0 : i32
    %c0_i32_1 = arith.constant 0 : i32
    return %c0_i32, %c0_i32_0 : i32, i32
  }
}

module attributes {stable_mosaic.version = 11 : i64} {
  func.func @_fc_head_kernel(%arg0: i32, %arg1: memref<2x7168xbf16, #tpu.memory_space<vmem>>, %arg2: memref<7168x64xbf16, #tpu.memory_space<vmem>>, %arg3: memref<1x64xf32, #tpu.memory_space<vmem>>, %arg4: memref<1x64xf32, #tpu.memory_space<vmem>>, %arg5: memref<64x64xf32, #tpu.memory_space<vmem>>, %arg6: memref<1x64xf32, #tpu.memory_space<vmem>>, %arg7: memref<1x64xf32, #tpu.memory_space<vmem>>, %arg8: memref<64x4xf32, #tpu.memory_space<vmem>>, %arg9: memref<1x4xf32, #tpu.memory_space<vmem>>, %arg10: memref<2x4xf32, #tpu.memory_space<vmem>>, %arg11: memref<2x64xf32, #tpu.memory_space<vmem>>) attributes {dimension_semantics = [#tpu.dimension_semantics<arbitrary>], iteration_bounds = array<i64: 2>, scalar_prefetch = 0 : i64, scratch_operands = 1 : i64, tpu.core_type = #tpu.core_type<tc>, window_params = [{transform_indices = @transform_0, window_bounds = array<i64: 2, 7168>}, {transform_indices = @transform_1, window_bounds = array<i64: 7168, 64>}, {pipeline_mode = #tpu.pipeline_mode<synchronous>, transform_indices = @transform_2, window_bounds = array<i64: 1, 64>}, {pipeline_mode = #tpu.pipeline_mode<synchronous>, transform_indices = @transform_3, window_bounds = array<i64: 1, 64>}, {pipeline_mode = #tpu.pipeline_mode<synchronous>, transform_indices = @transform_4, window_bounds = array<i64: 64, 64>}, {pipeline_mode = #tpu.pipeline_mode<synchronous>, transform_indices = @transform_5, window_bounds = array<i64: 1, 64>}, {pipeline_mode = #tpu.pipeline_mode<synchronous>, transform_indices = @transform_6, window_bounds = array<i64: 1, 64>}, {pipeline_mode = #tpu.pipeline_mode<synchronous>, transform_indices = @transform_7, window_bounds = array<i64: 64, 4>}, {pipeline_mode = #tpu.pipeline_mode<synchronous>, transform_indices = @transform_8, window_bounds = array<i64: 1, 4>}, {pipeline_mode = #tpu.pipeline_mode<synchronous>, transform_indices = @transform_9, window_bounds = array<i64: 2, 4>}]} {
    %c0_i32 = arith.constant 0 : i32
    %0 = arith.cmpi eq, %arg0, %c0_i32 : i32
    %1 = arith.extui %0 : i1 to i32
    %c0_i32_0 = arith.constant 0 : i32
    %2 = arith.cmpi ne, %1, %c0_i32_0 : i32
    scf.if %2 {
      %cst_9 = arith.constant 0.000000e+00 : f32
      %12 = vector.broadcast %cst_9 : f32 to vector<2x64xf32>
      %c0_10 = arith.constant 0 : index
      %c0_11 = arith.constant 0 : index
      %13 = vector.load %arg11[%c0_10, %c0_11] : memref<2x64xf32, #tpu.memory_space<vmem>>, vector<2x64xf32>
      tpu.vector_store %arg11[%c0_10, %c0_11], %12 {strides = array<i32>} : memref<2x64xf32, #tpu.memory_space<vmem>>, vector<2x64xf32>,
    } else {
    }
    %c0 = arith.constant 0 : index
    %c0_1 = arith.constant 0 : index
    %3 = vector.load %arg11[%c0, %c0_1] : memref<2x64xf32, #tpu.memory_space<vmem>>, vector<2x64xf32>
    %c0_2 = arith.constant 0 : index
    %c0_3 = arith.constant 0 : index
    %4 = vector.load %arg1[%c0_2, %c0_3] : memref<2x7168xbf16, #tpu.memory_space<vmem>>, vector<2x7168xbf16>
    %c0_4 = arith.constant 0 : index
    %c0_5 = arith.constant 0 : index
    %5 = vector.load %arg2[%c0_4, %c0_5] : memref<7168x64xbf16, #tpu.memory_space<vmem>>, vector<7168x64xbf16>
    %cst = arith.constant dense<0.000000e+00> : vector<2x64xf32>
    %6 = tpu.matmul %4, %5, %cst {dimension_numbers = #tpu.dot_dimension_numbers<[1], [0], [0], [1], [0, 0, 1, 1], [], []>} : vector<2x7168xbf16>, vector<7168x64xbf16>, vector<2x64xf32> -> vector<2x64xf32>
    %7 = arith.addf %3, %6 : vector<2x64xf32>
    %c0_6 = arith.constant 0 : index
    %c0_7 = arith.constant 0 : index
    %8 = vector.load %arg11[%c0_6, %c0_7] : memref<2x64xf32, #tpu.memory_space<vmem>>, vector<2x64xf32>
    tpu.vector_store %arg11[%c0_6, %c0_7], %7 {strides = array<i32>} : memref<2x64xf32, #tpu.memory_space<vmem>>, vector<2x64xf32>,
    %c1_i32 = arith.constant 1 : i32
    %9 = arith.cmpi eq, %arg0, %c1_i32 : i32
    %10 = arith.extui %9 : i1 to i32
    %c0_i32_8 = arith.constant 0 : i32
    %11 = arith.cmpi ne, %10, %c0_i32_8 : i32
    scf.if %11 {
      %c0_9 = arith.constant 0 : index
      %c0_10 = arith.constant 0 : index
      %12 = vector.load %arg11[%c0_9, %c0_10] : memref<2x64xf32, #tpu.memory_space<vmem>>, vector<2x64xf32>
      %c0_11 = arith.constant 0 : index
      %c0_12 = arith.constant 0 : index
      %13 = vector.load %arg3[%c0_11, %c0_12] : memref<1x64xf32, #tpu.memory_space<vmem>>, vector<1x64xf32>
      %c0_13 = arith.constant 0 : index
      %c0_14 = arith.constant 0 : index
      %14 = vector.load %arg4[%c0_13, %c0_14] : memref<1x64xf32, #tpu.memory_space<vmem>>, vector<1x64xf32>
      %cst_15 = arith.constant dense<0.000000e+00> : vector<64xf32>
      %15 = vector.multi_reduction <add>, %12, %cst_15 [0] : vector<2x64xf32> to vector<64xf32>
      %16 = vector.shape_cast %15 : vector<64xf32> to vector<1x64xf32>
      %cst_16 = arith.constant 2.000000e+00 : f32
      %17 = vector.broadcast %cst_16 : f32 to vector<1x64xf32>
      %18 = arith.divf %16, %17 : vector<1x64xf32>
      %19 = vector.broadcast %18 : vector<1x64xf32> to vector<2x64xf32>
      %20 = arith.subf %12, %19 : vector<2x64xf32>
      %21 = arith.mulf %20, %20 : vector<2x64xf32>
      %cst_17 = arith.constant dense<0.000000e+00> : vector<64xf32>
      %22 = vector.multi_reduction <add>, %21, %cst_17 [0] : vector<2x64xf32> to vector<64xf32>
      %23 = vector.shape_cast %22 : vector<64xf32> to vector<1x64xf32>
      %cst_18 = arith.constant 2.000000e+00 : f32
      %24 = vector.broadcast %cst_18 : f32 to vector<1x64xf32>
      %25 = arith.divf %23, %24 : vector<1x64xf32>
      %26 = vector.broadcast %18 : vector<1x64xf32> to vector<2x64xf32>
      %27 = arith.subf %12, %26 : vector<2x64xf32>
      %cst_19 = arith.constant 9.99999974E-6 : f32
      %28 = vector.broadcast %cst_19 : f32 to vector<1x64xf32>
      %29 = arith.addf %25, %28 : vector<1x64xf32>
      %30 = math.rsqrt %29 : vector<1x64xf32>
      %31 = vector.broadcast %30 : vector<1x64xf32> to vector<2x64xf32>
      %32 = arith.mulf %27, %31 : vector<2x64xf32>
      %33 = vector.broadcast %13 : vector<1x64xf32> to vector<2x64xf32>
      %34 = arith.mulf %32, %33 : vector<2x64xf32>
      %35 = vector.broadcast %14 : vector<1x64xf32> to vector<2x64xf32>
      %36 = arith.addf %34, %35 : vector<2x64xf32>
      %cst_20 = arith.constant 0.000000e+00 : f32
      %37 = vector.broadcast %cst_20 : f32 to vector<2x64xf32>
      %38 = arith.maximumf %36, %37 : vector<2x64xf32>
      %c0_21 = arith.constant 0 : index
      %c0_22 = arith.constant 0 : index
      %39 = vector.load %arg5[%c0_21, %c0_22] : memref<64x64xf32, #tpu.memory_space<vmem>>, vector<64x64xf32>
      %cst_23 = arith.constant dense<0.000000e+00> : vector<2x64xf32>
      %40 = tpu.matmul %38, %39, %cst_23 {dimension_numbers = #tpu.dot_dimension_numbers<[1], [0], [0], [1], [0, 0, 1, 1], [], []>} : vector<2x64xf32>, vector<64x64xf32>, vector<2x64xf32> -> vector<2x64xf32>
      %c0_24 = arith.constant 0 : index
      %c0_25 = arith.constant 0 : index
      %41 = vector.load %arg6[%c0_24, %c0_25] : memref<1x64xf32, #tpu.memory_space<vmem>>, vector<1x64xf32>
      %c0_26 = arith.constant 0 : index
      %c0_27 = arith.constant 0 : index
      %42 = vector.load %arg7[%c0_26, %c0_27] : memref<1x64xf32, #tpu.memory_space<vmem>>, vector<1x64xf32>
      %cst_28 = arith.constant dense<0.000000e+00> : vector<64xf32>
      %43 = vector.multi_reduction <add>, %40, %cst_28 [0] : vector<2x64xf32> to vector<64xf32>
      %44 = vector.shape_cast %43 : vector<64xf32> to vector<1x64xf32>
      %cst_29 = arith.constant 2.000000e+00 : f32
      %45 = vector.broadcast %cst_29 : f32 to vector<1x64xf32>
      %46 = arith.divf %44, %45 : vector<1x64xf32>
      %47 = vector.broadcast %46 : vector<1x64xf32> to vector<2x64xf32>
      %48 = arith.subf %40, %47 : vector<2x64xf32>
      %49 = arith.mulf %48, %48 : vector<2x64xf32>
      %cst_30 = arith.constant dense<0.000000e+00> : vector<64xf32>
      %50 = vector.multi_reduction <add>, %49, %cst_30 [0] : vector<2x64xf32> to vector<64xf32>
      %51 = vector.shape_cast %50 : vector<64xf32> to vector<1x64xf32>
      %cst_31 = arith.constant 2.000000e+00 : f32
      %52 = vector.broadcast %cst_31 : f32 to vector<1x64xf32>
      %53 = arith.divf %51, %52 : vector<1x64xf32>
      %54 = vector.broadcast %46 : vector<1x64xf32> to vector<2x64xf32>
      %55 = arith.subf %40, %54 : vector<2x64xf32>
      %cst_32 = arith.constant 9.99999974E-6 : f32
      %56 = vector.broadcast %cst_32 : f32 to vector<1x64xf32>
      %57 = arith.addf %53, %56 : vector<1x64xf32>
      %58 = math.rsqrt %57 : vector<1x64xf32>
      %59 = vector.broadcast %58 : vector<1x64xf32> to vector<2x64xf32>
      %60 = arith.mulf %55, %59 : vector<2x64xf32>
      %61 = vector.broadcast %41 : vector<1x64xf32> to vector<2x64xf32>
      %62 = arith.mulf %60, %61 : vector<2x64xf32>
      %63 = vector.broadcast %42 : vector<1x64xf32> to vector<2x64xf32>
      %64 = arith.addf %62, %63 : vector<2x64xf32>
      %cst_33 = arith.constant 0.000000e+00 : f32
      %65 = vector.broadcast %cst_33 : f32 to vector<2x64xf32>
      %66 = arith.maximumf %64, %65 : vector<2x64xf32>
      %c0_34 = arith.constant 0 : index
      %c0_35 = arith.constant 0 : index
      %67 = vector.load %arg8[%c0_34, %c0_35] : memref<64x4xf32, #tpu.memory_space<vmem>>, vector<64x4xf32>
      %cst_36 = arith.constant dense<0.000000e+00> : vector<2x4xf32>
      %68 = tpu.matmul %66, %67, %cst_36 {dimension_numbers = #tpu.dot_dimension_numbers<[1], [0], [0], [1], [0, 0, 1, 1], [], []>} : vector<2x64xf32>, vector<64x4xf32>, vector<2x4xf32> -> vector<2x4xf32>
      %c0_37 = arith.constant 0 : index
      %c0_38 = arith.constant 0 : index
      %69 = vector.load %arg9[%c0_37, %c0_38] : memref<1x4xf32, #tpu.memory_space<vmem>>, vector<1x4xf32>
      %70 = vector.broadcast %69 : vector<1x4xf32> to vector<2x4xf32>
      %71 = arith.addf %68, %70 : vector<2x4xf32>
      %c0_39 = arith.constant 0 : index
      %c0_40 = arith.constant 0 : index
      %72 = vector.load %arg10[%c0_39, %c0_40] : memref<2x4xf32, #tpu.memory_space<vmem>>, vector<2x4xf32>
      tpu.vector_store %arg10[%c0_39, %c0_40], %71 {strides = array<i32>} : memref<2x4xf32, #tpu.memory_space<vmem>>, vector<2x4xf32>,
    } else {
    }
    return
  }
  func.func @transform_0(%arg0: i32) -> (i32, i32) {
    %c0_i32 = arith.constant 0 : i32
    %c0_i32_0 = arith.constant 0 : i32
    return %c0_i32, %arg0 : i32, i32
  }
  func.func @transform_1(%arg0: i32) -> (i32, i32) {
    %c0_i32 = arith.constant 0 : i32
    %c0_i32_0 = arith.constant 0 : i32
    return %arg0, %c0_i32 : i32, i32
  }
  func.func @transform_2(%arg0: i32) -> (i32, i32) {
    %c0_i32 = arith.constant 0 : i32
    %c0_i32_0 = arith.constant 0 : i32
    %c0_i32_1 = arith.constant 0 : i32
    return %c0_i32, %c0_i32_0 : i32, i32
  }
  func.func @transform_3(%arg0: i32) -> (i32, i32) {
    %c0_i32 = arith.constant 0 : i32
    %c0_i32_0 = arith.constant 0 : i32
    %c0_i32_1 = arith.constant 0 : i32
    return %c0_i32, %c0_i32_0 : i32, i32
  }
  func.func @transform_4(%arg0: i32) -> (i32, i32) {
    %c0_i32 = arith.constant 0 : i32
    %c0_i32_0 = arith.constant 0 : i32
    %c0_i32_1 = arith.constant 0 : i32
    return %c0_i32, %c0_i32_0 : i32, i32
  }
  func.func @transform_5(%arg0: i32) -> (i32, i32) {
    %c0_i32 = arith.constant 0 : i32
    %c0_i32_0 = arith.constant 0 : i32
    %c0_i32_1 = arith.constant 0 : i32
    return %c0_i32, %c0_i32_0 : i32, i32
  }
  func.func @transform_6(%arg0: i32) -> (i32, i32) {
    %c0_i32 = arith.constant 0 : i32
    %c0_i32_0 = arith.constant 0 : i32
    %c0_i32_1 = arith.constant 0 : i32
    return %c0_i32, %c0_i32_0 : i32, i32
  }
  func.func @transform_7(%arg0: i32) -> (i32, i32) {
    %c0_i32 = arith.constant 0 : i32
    %c0_i32_0 = arith.constant 0 : i32
    %c0_i32_1 = arith.constant 0 : i32
    return %c0_i32, %c0_i32_0 : i32, i32
  }
  func.func @transform_8(%arg0: i32) -> (i32, i32) {
    %c0_i32 = arith.constant 0 : i32
    %c0_i32_0 = arith.constant 0 : i32
    %c0_i32_1 = arith.constant 0 : i32
    return %c0_i32, %c0_i32_0 : i32, i32
  }
  func.func @transform_9(%arg0: i32) -> (i32, i32) {
    %c0_i32 = arith.constant 0 : i32
    %c0_i32_0 = arith.constant 0 : i32
    %c0_i32_1 = arith.constant 0 : i32
    return %c0_i32, %c0_i32_0 : i32, i32
  }
}

</mosaic_0001>

<llo_original>
// kernel: dqn_forward.3
$region0: #{dqn_forward.3}
  #allocation0 [shape = 'u32[]', space=smem, size = 0x4, offset = 0x4, fixed_abs, tag = 'smem constant byte address 0x4 - core index']
  #allocation1 [shape = 'u32[72,128]{1,0:T(1,128)}', space=vmem, size = 0x9000, scoped, tag = 'internal scratch']
  #allocation2 [shape = 'f32[16,3584]{1,0:T(8,128)}', space=vmem, size = 0x38000, scoped, tag = 'scratch operand']
  #allocation3 [shape = 'f32[16,3584]{1,0:T(8,128)}', space=vmem, size = 0x38000, scoped, tag = 'scratch operand']
  #allocation4 [shape = 'f32[16,1]{1,0:T(8,128)}', space=vmem, size = 0x2000, scoped, tag = 'scratch operand']
  #allocation5 [shape = 'f32[16,1]{1,0:T(8,128)}', space=vmem, size = 0x2000, scoped, tag = 'scratch operand']
  %s0 = inlined_call_operand.vmem [shape: bf16[4,108,3584], index: 0, kind: input, shape index: {}]
  %s1 = inlined_call_operand.vmem [shape: bf16[16,108], index: 1, kind: input, shape index: {}]
  %s2 = inlined_call_operand.vmem [shape: f32[16,1], index: 2, kind: input, shape index: {}]
  %s3 = inlined_call_operand.vmem [shape: f32[16,1], index: 3, kind: input, shape index: {}]
  %s4 = inlined_call_operand.vmem [shape: bf16[16,3584], index: 4, kind: output, shape index: {}]
  %s5 = sld [smem:[#allocation0]]
  $region61: #{dqn_forward.3} parent=0
    _
  %s7 = ssub.s32 1, %s5
  %s8 = scalar_select 0, %s7, %s5
  loop: start=0, step=1, limit=6
  $region2: #{dqn_forward.3} parent=0 // loop_pre_header
    _
  $region3: #{dqn_forward.3} parent=0 // loop_header
    %s10 = sphi 0, %s14
    %p11 = scmp.ge.s32.totalorder %s10, 6
    %s20 = sphi 0, %s22
    %s23 = sphi 0, %s20
    %s24 = sphi 0, %s23
    %s40 = sphi 0, %s24
    %s44 = sphi 0, %s44
    %s46 = sphi 0, %s44
    %s47 = sphi 0, %s46
    %s61 = sphi 0, %s47
    %s65 = sphi 0, %s65
    %s67 = sphi 0, %s65
    %s68 = sphi 0, %s67
    %s82 = sphi 0, %s68
    %s86 = sphi 0, %s86
    %s88 = sphi 0, %s86
    %s89 = sphi 0, %s88
    %s103 = sphi 0, %s89
    %s107 = sphi 0, %s107
    %s109 = sphi 0, %s107
    %s110 = sphi 0, %s109
    %s124 = sphi 0, %s110
  $region4: #{dqn_forward.3} parent=0 // loop_header_branch
    %13 = sbr.rel (%p11) target = $region8
  $region5: #{dqn_forward.3} parent=0 // loop_body
    %s15 = ssub.s32 %s10, 1
    %s16 = ssub.s32 %s10, 2
    %s17 = sadd.s32 %s10, 1
    %s18 = ssub.s32 %s10, %s17
    %p19 = scmp.eq.s32.totalorder %s18, 0
    %s21 = sadd.s32 %s20, 1
    %s22 = scalar_select %p19, %s20, %s21
    %p25 = pneg %p19
    %p26 = scmp.eq.s32.totalorder %s10, 3
    %p27 = por %p25, %p26
    %p28 = scmp.ne.s32.totalorder %s20, %s23
    %p29 = scmp.eq.s32.totalorder %s10, 0
    %p30 = por %p28, %p29
    %p31 = scmp.ne.s32.totalorder %s20, %s23
    %p32 = scmp.eq.s32.totalorder %s15, 3
    %p33 = por %p31, %p32
    %p34 = scmp.ne.s32.totalorder %s23, %s24
    %p35 = scmp.eq.s32.totalorder %s15, 0
    %p36 = por %p34, %p35
    %p37 = scmp.ne.s32.totalorder %s23, %s24
    %p38 = scmp.eq.s32.totalorder %s16, 3
    %p39 = por %p37, %p38
    %p41 = scmp.ne.s32.totalorder %s24, %s40
    %p42 = scmp.eq.s32.totalorder %s16, 0
    %p43 = por %p41, %p42
    %s45 = sadd.s32 %s44, 1
    %p48 = scmp.eq.s32.totalorder %s10, 3
    %p49 = scmp.ne.s32.totalorder %s44, %s46
    %p50 = scmp.eq.s32.totalorder %s10, 0
    %p51 = por %p49, %p50
    %p52 = scmp.ne.s32.totalorder %s44, %s46
    %p53 = scmp.eq.s32.totalorder %s15, 3
    %p54 = por %p52, %p53
    %p55 = scmp.ne.s32.totalorder %s46, %s47
    %p56 = scmp.eq.s32.totalorder %s15, 0
    %p57 = por %p55, %p56
    %p58 = scmp.ne.s32.totalorder %s46, %s47
    %p59 = scmp.eq.s32.totalorder %s16, 3
    %p60 = por %p58, %p59
    %p62 = scmp.ne.s32.totalorder %s47, %s61
    %p63 = scmp.eq.s32.totalorder %s16, 0
    %p64 = por %p62, %p63
    %s66 = sadd.s32 %s65, 1
    %p69 = scmp.eq.s32.totalorder %s10, 3
    %p70 = scmp.ne.s32.totalorder %s65, %s67
    %p71 = scmp.eq.s32.totalorder %s10, 0
    %p72 = por %p70, %p71
    %p73 = scmp.ne.s32.totalorder %s65, %s67
    %p74 = scmp.eq.s32.totalorder %s15, 3
    %p75 = por %p73, %p74
    %p76 = scmp.ne.s32.totalorder %s67, %s68
    %p77 = scmp.eq.s32.totalorder %s15, 0
    %p78 = por %p76, %p77
    %p79 = scmp.ne.s32.totalorder %s67, %s68
    %p80 = scmp.eq.s32.totalorder %s16, 3
    %p81 = por %p79, %p80
    %p83 = scmp.ne.s32.totalorder %s68, %s82
    %p84 = scmp.eq.s32.totalorder %s16, 0
    %p85 = por %p83, %p84
    %s87 = sadd.s32 %s86, 1
    %p90 = scmp.eq.s32.totalorder %s10, 3
    %p91 = scmp.ne.s32.totalorder %s86, %s88
    %p92 = scmp.eq.s32.totalorder %s10, 0
    %p93 = por %p91, %p92
    %p94 = scmp.ne.s32.totalorder %s86, %s88
    %p95 = scmp.eq.s32.totalorder %s15, 3
    %p96 = por %p94, %p95
    %p97 = scmp.ne.s32.totalorder %s88, %s89
    %p98 = scmp.eq.s32.totalorder %s15, 0
    %p99 = por %p97, %p98
    %p100 = scmp.ne.s32.totalorder %s88, %s89
    %p101 = scmp.eq.s32.totalorder %s16, 3
    %p102 = por %p100, %p101
    %p104 = scmp.ne.s32.totalorder %s89, %s103
    %p105 = scmp.eq.s32.totalorder %s16, 0
    %p106 = por %p104, %p105
    %s108 = sadd.s32 %s107, 1
    %p111 = scmp.eq.s32.totalorder %s10, 3
    %p112 = scmp.ne.s32.totalorder %s107, %s109
    %p113 = scmp.eq.s32.totalorder %s10, 0
    %p114 = por %p112, %p113
    %p115 = scmp.ne.s32.totalorder %s107, %s109
    %p116 = scmp.eq.s32.totalorder %s15, 3
    %p117 = por %p115, %p116
    %p118 = scmp.ne.s32.totalorder %s109, %s110
    %p119 = scmp.eq.s32.totalorder %s15, 0
    %p120 = por %p118, %p119
    %p121 = scmp.ne.s32.totalorder %s109, %s110
    %p122 = scmp.eq.s32.totalorder %s16, 3
    %p123 = por %p121, %p122
    %p125 = scmp.ne.s32.totalorder %s110, %s124
    %p126 = scmp.eq.s32.totalorder %s16, 0
    %p127 = por %p125, %p126
    %p128 = scmp.le.s32.totalorder 1, %s10
    %p129 = scmp.lt.s32.totalorder %s10, 5
    %p130 = pnand %p128, %p129
    %p131 = pneg %p130
    // Predicated region
    $region9: #{dqn_forward.3} parent=5 // pred_check
      _
    $region10: #{dqn_forward.3} parent=5 // pred_check_branch
      %133 = sbr.rel (%p130) target = $region12
    $region11: #{dqn_forward.3} parent=5 // pred_region
      %s134 = ssub.s32 %s10, 1
      // Predicated region
      $region13: #{dqn_forward.3} parent=11 // pred_check
        %p135 = pneg %p57
      $region14: #{dqn_forward.3} parent=11 // pred_check_branch
        %137 = sbr.rel (%p135) target = $region16
      $region15: #{dqn_forward.3} parent=11 // pred_region
        _
      $region16: #{dqn_forward.3} parent=11 // pred_fallthru
        _
      // Predicated region
      $region17: #{dqn_forward.3} parent=11 // pred_check
        %p138 = pneg %p78
      $region18: #{dqn_forward.3} parent=11 // pred_check_branch
        %140 = sbr.rel (%p138) target = $region20
      $region19: #{dqn_forward.3} parent=11 // pred_region
        _
      $region20: #{dqn_forward.3} parent=11 // pred_fallthru
        _
      // Predicated region
      $region21: #{dqn_forward.3} parent=11 // pred_check
        %p141 = pneg %p99
      $region22: #{dqn_forward.3} parent=11 // pred_check_branch
        %143 = sbr.rel (%p141) target = $region24
      $region23: #{dqn_forward.3} parent=11 // pred_region
        _
      $region24: #{dqn_forward.3} parent=11 // pred_fallthru
        _
    $region12: #{dqn_forward.3} parent=5 // pred_fallthru
      _
    %p144 = scmp.lt.s32.totalorder %s10, 4
    // Predicated region
    $region25: #{dqn_forward.3} parent=5 // pred_check
      %p145 = pneg %p144
    $region26: #{dqn_forward.3} parent=5 // pred_check_branch
      %147 = sbr.rel (%p145) target = $region28
    $region27: #{dqn_forward.3} parent=5 // pred_region
      // Predicated region
      $region29: #{dqn_forward.3} parent=27 // pred_check
        %p148 = pneg %p30
      $region30: #{dqn_forward.3} parent=27 // pred_check_branch
        %150 = sbr.rel (%p148) target = $region32
      $region31: #{dqn_forward.3} parent=27 // pred_region
        %p151 = scmp.lt.s32.totalorder %s10, 3
        %s152 = scalar_select %p151, %s10, 3
        %s153 = smul.addr %s152, 392
        %s154 = smul.addr %s153, 4
        %s155 = scalar_lea.vmem %s0, %s154
      $region32: #{dqn_forward.3} parent=27 // pred_fallthru
        _
    $region28: #{dqn_forward.3} parent=5 // pred_fallthru
      _
    %p156 = scmp.le.s32.totalorder 1, %s10
    %p157 = scmp.lt.s32.totalorder %s10, 5
    %p158 = pnand %p156, %p157
    %p159 = pneg %p158
    // Predicated region
    $region33: #{dqn_forward.3} parent=5 // pred_check
      _
    $region34: #{dqn_forward.3} parent=5 // pred_check_branch
      %161 = sbr.rel (%p158) target = $region36
    $region35: #{dqn_forward.3} parent=5 // pred_region
      %s162 = ssub.s32 %s10, 1
      %p163 = scmp.lt.s32.totalorder %s15, 3
      %s164 = scalar_select %p163, %s15, 3
      %s165 = smul.addr %s164, 392
      %s166 = smul.addr %s165, 4
      %s167 = scalar_lea.vmem %s0, %s166
      %p168 = pneg %p36
      %p169 = pneg %p33
      %p170 = pneg %p57
      %p171 = pneg %p54
      %p172 = pneg %p78
      %p173 = pneg %p75
      %p174 = pneg %p99
      %p175 = pneg %p96
      %p176 = pneg %p120
      %p177 = pneg %p117
      %p178 = scmp.lt.s32.totalorder %s15, 3
      %s179 = scalar_select %p178, %s15, 3
      %s180 = smul.addr %s179, 392
      %s181 = smul.addr %s180, 4
      %s182 = scalar_lea.vmem %s0, %s181
      %v184 = vld [vmem:[%s1] sm:$0xf]
      %v185 = vld [vmem:[%s1 + $0x4] sm:$0xf]
      %v186 = vld [vmem:[%s182] sm:$0xff]
      %v187 = vld [vmem:[%s182 + $0x8] sm:$0xff]
      %v188 = vld [vmem:[%s182 + $0x10] sm:$0xff]
      %v189 = vld [vmem:[%s182 + $0x18] sm:$0xff]
      %v190 = vld [vmem:[%s182 + $0x20] sm:$0xff]
      %v191 = vld [vmem:[%s182 + $0x28] sm:$0xff]
      %v192 = vld [vmem:[%s182 + $0x30] sm:$0xff]
      %v193 = vld [vmem:[%s182 + $0x38] sm:$0xff]
      %v194 = vld [vmem:[%s182 + $0x40] sm:$0xff]
      %v195 = vld [vmem:[%s182 + $0x48] sm:$0xff]
      %v196 = vld [vmem:[%s182 + $0x50] sm:$0xff]
      %v197 = vld [vmem:[%s182 + $0x58] sm:$0xff]
      %v198 = vld [vmem:[%s182 + $0x60] sm:$0xff]
      %v199 = vld [vmem:[%s182 + $0x68] sm:$0xff]
      %v200 = vld [vmem:[%s182 + $0x70] sm:$0xff]
      %v201 = vld [vmem:[%s182 + $0x78] sm:$0xff]
      %v202 = vld [vmem:[%s182 + $0x80] sm:$0xff]
      %v203 = vld [vmem:[%s182 + $0x88] sm:$0xff]
      %v204 = vld [vmem:[%s182 + $0x90] sm:$0xff]
      %v205 = vld [vmem:[%s182 + $0x98] sm:$0xff]
      %v206 = vld [vmem:[%s182 + $0xa0] sm:$0xff]
      %v207 = vld [vmem:[%s182 + $0xa8] sm:$0xff]
      %v208 = vld [vmem:[%s182 + $0xb0] sm:$0xff]
      %v209 = vld [vmem:[%s182 + $0xb8] sm:$0xff]
      %v210 = vld [vmem:[%s182 + $0xc0] sm:$0xff]
      %v211 = vld [vmem:[%s182 + $0xc8] sm:$0xff]
      %v212 = vld [vmem:[%s182 + $0xd0] sm:$0xff]
      %v213 = vld [vmem:[%s182 + $0xd8] sm:$0xff]
      %v214 = vld [vmem:[%s182 + $0xe0] sm:$0xff]
      %v215 = vld [vmem:[%s182 + $0xe8] sm:$0xff]
      %v216 = vld [vmem:[%s182 + $0xf0] sm:$0xff]
      %v217 = vld [vmem:[%s182 + $0xf8] sm:$0xff]
      %v218 = vld [vmem:[%s182 + $0x100] sm:$0xff]
      %v219 = vld [vmem:[%s182 + $0x108] sm:$0xff]
      %v220 = vld [vmem:[%s182 + $0x110] sm:$0xff]
      %v221 = vld [vmem:[%s182 + $0x118] sm:$0xff]
      %v222 = vld [vmem:[%s182 + $0x120] sm:$0xff]
      %v223 = vld [vmem:[%s182 + $0x128] sm:$0xff]
      %v224 = vld [vmem:[%s182 + $0x130] sm:$0xff]
      %v225 = vld [vmem:[%s182 + $0x138] sm:$0xff]
      %v226 = vld [vmem:[%s182 + $0x140] sm:$0xff]
      %v227 = vld [vmem:[%s182 + $0x148] sm:$0xff]
      %v228 = vld [vmem:[%s182 + $0x150] sm:$0xff]
      %v229 = vld [vmem:[%s182 + $0x158] sm:$0xff]
      %v230 = vld [vmem:[%s182 + $0x160] sm:$0xff]
      %v231 = vld [vmem:[%s182 + $0x168] sm:$0xff]
      %v232 = vld [vmem:[%s182 + $0x170] sm:$0xff]
      %v233 = vld [vmem:[%s182 + $0x178] sm:$0xff]
      %v234 = vld [vmem:[%s182 + $0x180] sm:$0xff]
      %v235 = vld [vmem:[%s182 + $0x188] sm:$0xff]
      %v236 = vld [vmem:[%s182 + $0x190] sm:$0xff]
      %v237 = vld [vmem:[%s182 + $0x198] sm:$0xff]
      %v238 = vld [vmem:[%s182 + $0x1a0] sm:$0xff]
      %v239 = vld [vmem:[%s182 + $0x1a8] sm:$0xff]
      %v240 = vld [vmem:[%s182 + $0x1b0] sm:$0xff]
      %v241 = vld [vmem:[%s182 + $0x1b8] sm:$0xff]
      %v242 = vld [vmem:[%s182 + $0x1c0] sm:$0xff]
      %v243 = vld [vmem:[%s182 + $0x1c8] sm:$0xff]
      %v244 = vld [vmem:[%s182 + $0x1d0] sm:$0xff]
      %v245 = vld [vmem:[%s182 + $0x1d8] sm:$0xff]
      %v246 = vld [vmem:[%s182 + $0x1e0] sm:$0xff]
      %v247 = vld [vmem:[%s182 + $0x1e8] sm:$0xff]
      %v248 = vld [vmem:[%s182 + $0x1f0] sm:$0xff]
      %v249 = vld [vmem:[%s182 + $0x1f8] sm:$0xff]
      %v250 = vld [vmem:[%s182 + $0x200] sm:$0xff]
      %v251 = vld [vmem:[%s182 + $0x208] sm:$0xff]
      %v252 = vld [vmem:[%s182 + $0x210] sm:$0xff]
      %v253 = vld [vmem:[%s182 + $0x218] sm:$0xff]
      %v254 = vld [vmem:[%s182 + $0x220] sm:$0xff]
      %v255 = vld [vmem:[%s182 + $0x228] sm:$0xff]
      %v256 = vld [vmem:[%s182 + $0x230] sm:$0xff]
      %v257 = vld [vmem:[%s182 + $0x238] sm:$0xff]
      %v258 = vld [vmem:[%s182 + $0x240] sm:$0xff]
      %v259 = vld [vmem:[%s182 + $0x248] sm:$0xff]
      %v260 = vld [vmem:[%s182 + $0x250] sm:$0xff]
      %v261 = vld [vmem:[%s182 + $0x258] sm:$0xff]
      %v262 = vld [vmem:[%s182 + $0x260] sm:$0xff]
      %v263 = vld [vmem:[%s182 + $0x268] sm:$0xff]
      %v264 = vld [vmem:[%s182 + $0x270] sm:$0xff]
      %v265 = vld [vmem:[%s182 + $0x278] sm:$0xff]
      %v266 = vld [vmem:[%s182 + $0x280] sm:$0xff]
      %v267 = vld [vmem:[%s182 + $0x288] sm:$0xff]
      %v268 = vld [vmem:[%s182 + $0x290] sm:$0xff]
      %v269 = vld [vmem:[%s182 + $0x298] sm:$0xff]
      %v270 = vld [vmem:[%s182 + $0x2a0] sm:$0xff]
      %v271 = vld [vmem:[%s182 + $0x2a8] sm:$0xff]
      %v272 = vld [vmem:[%s182 + $0x2b0] sm:$0xff]
      %v273 = vld [vmem:[%s182 + $0x2b8] sm:$0xff]
      %v274 = vld [vmem:[%s182 + $0x2c0] sm:$0xff]
      %v275 = vld [vmem:[%s182 + $0x2c8] sm:$0xff]
      %v276 = vld [vmem:[%s182 + $0x2d0] sm:$0xff]
      %v277 = vld [vmem:[%s182 + $0x2d8] sm:$0xff]
      %v278 = vld [vmem:[%s182 + $0x2e0] sm:$0xff]
      %v279 = vld [vmem:[%s182 + $0x2e8] sm:$0xff]
      %v280 = vld [vmem:[%s182 + $0x2f0] sm:$0xff]
      %v281 = vld [vmem:[%s182 + $0x2f8] sm:$0xff]
      %v282 = vld [vmem:[%s182 + $0x300] sm:$0xff]
      %v283 = vld [vmem:[%s182 + $0x308] sm:$0xff]
      %v284 = vld [vmem:[%s182 + $0x310] sm:$0xff]
      %v285 = vld [vmem:[%s182 + $0x318] sm:$0xff]
      %v286 = vld [vmem:[%s182 + $0x320] sm:$0xff]
      %v287 = vld [vmem:[%s182 + $0x328] sm:$0xff]
      %v288 = vld [vmem:[%s182 + $0x330] sm:$0xff]
      %v289 = vld [vmem:[%s182 + $0x338] sm:$0xff]
      %v290 = vld [vmem:[%s182 + $0x340] sm:$0xff]
      %v291 = vld [vmem:[%s182 + $0x348] sm:$0xff]
      %v292 = vld [vmem:[%s182 + $0x350] sm:$0xff]
      %v293 = vld [vmem:[%s182 + $0x358] sm:$0xff]
      %v294 = vld [vmem:[%s182 + $0x360] sm:$0xff]
      %v295 = vld [vmem:[%s182 + $0x368] sm:$0xff]
      %v296 = vld [vmem:[%s182 + $0x370] sm:$0xff]
      %v297 = vld [vmem:[%s182 + $0x378] sm:$0xff]
      %v298 = vld [vmem:[%s182 + $0x380] sm:$0xff]
      %v299 = vld [vmem:[%s182 + $0x388] sm:$0xff]
      %v300 = vld [vmem:[%s182 + $0x390] sm:$0xff]
      %v301 = vld [vmem:[%s182 + $0x398] sm:$0xff]
      %v302 = vld [vmem:[%s182 + $0x3a0] sm:$0xff]
      %v303 = vld [vmem:[%s182 + $0x3a8] sm:$0xff]
      %v304 = vld [vmem:[%s182 + $0x3b0] sm:$0xff]
      %v305 = vld [vmem:[%s182 + $0x3b8] sm:$0xff]
      %v306 = vld [vmem:[%s182 + $0x3c0] sm:$0xff]
      %v307 = vld [vmem:[%s182 + $0x3c8] sm:$0xff]
      %v308 = vld [vmem:[%s182 + $0x3d0] sm:$0xff]
      %v309 = vld [vmem:[%s182 + $0x3d8] sm:$0xff]
      %v310 = vld [vmem:[%s182 + $0x3e0] sm:$0xff]
      %v311 = vld [vmem:[%s182 + $0x3e8] sm:$0xff]
      %v312 = vld [vmem:[%s182 + $0x3f0] sm:$0xff]
      %v313 = vld [vmem:[%s182 + $0x3f8] sm:$0xff]
      %v314 = vld [vmem:[%s182 + $0x400] sm:$0xff]
      %v315 = vld [vmem:[%s182 + $0x408] sm:$0xff]
      %v316 = vld [vmem:[%s182 + $0x410] sm:$0xff]
      %v317 = vld [vmem:[%s182 + $0x418] sm:$0xff]
      %v318 = vld [vmem:[%s182 + $0x420] sm:$0xff]
      %v319 = vld [vmem:[%s182 + $0x428] sm:$0xff]
      %v320 = vld [vmem:[%s182 + $0x430] sm:$0xff]
      %v321 = vld [vmem:[%s182 + $0x438] sm:$0xff]
      %v322 = vld [vmem:[%s182 + $0x440] sm:$0xff]
      %v323 = vld [vmem:[%s182 + $0x448] sm:$0xff]
      %v324 = vld [vmem:[%s182 + $0x450] sm:$0xff]
      %v325 = vld [vmem:[%s182 + $0x458] sm:$0xff]
      %v326 = vld [vmem:[%s182 + $0x460] sm:$0xff]
      %v327 = vld [vmem:[%s182 + $0x468] sm:$0xff]
      %v328 = vld [vmem:[%s182 + $0x470] sm:$0xff]
      %v329 = vld [vmem:[%s182 + $0x478] sm:$0xff]
      %v330 = vld [vmem:[%s182 + $0x480] sm:$0xff]
      %v331 = vld [vmem:[%s182 + $0x488] sm:$0xff]
      %v332 = vld [vmem:[%s182 + $0x490] sm:$0xff]
      %v333 = vld [vmem:[%s182 + $0x498] sm:$0xff]
      %v334 = vld [vmem:[%s182 + $0x4a0] sm:$0xff]
      %v335 = vld [vmem:[%s182 + $0x4a8] sm:$0xff]
      %v336 = vld [vmem:[%s182 + $0x4b0] sm:$0xff]
      %v337 = vld [vmem:[%s182 + $0x4b8] sm:$0xff]
      %v338 = vld [vmem:[%s182 + $0x4c0] sm:$0xff]
      %v339 = vld [vmem:[%s182 + $0x4c8] sm:$0xff]
      %v340 = vld [vmem:[%s182 + $0x4d0] sm:$0xff]
      %v341 = vld [vmem:[%s182 + $0x4d8] sm:$0xff]
      %v342 = vld [vmem:[%s182 + $0x4e0] sm:$0xff]
      %v343 = vld [vmem:[%s182 + $0x4e8] sm:$0xff]
      %v344 = vld [vmem:[%s182 + $0x4f0] sm:$0xff]
      %v345 = vld [vmem:[%s182 + $0x4f8] sm:$0xff]
      %v346 = vld [vmem:[%s182 + $0x500] sm:$0xff]
      %v347 = vld [vmem:[%s182 + $0x508] sm:$0xff]
      %v348 = vld [vmem:[%s182 + $0x510] sm:$0xff]
      %v349 = vld [vmem:[%s182 + $0x518] sm:$0xff]
      %v350 = vld [vmem:[%s182 + $0x520] sm:$0xff]
      %v351 = vld [vmem:[%s182 + $0x528] sm:$0xff]
      %v352 = vld [vmem:[%s182 + $0x530] sm:$0xff]
      %v353 = vld [vmem:[%s182 + $0x538] sm:$0xff]
      %v354 = vld [vmem:[%s182 + $0x540] sm:$0xff]
      %v355 = vld [vmem:[%s182 + $0x548] sm:$0xff]
      %v356 = vld [vmem:[%s182 + $0x550] sm:$0xff]
      %v357 = vld [vmem:[%s182 + $0x558] sm:$0xff]
      %v358 = vld [vmem:[%s182 + $0x560] sm:$0xff]
      %v359 = vld [vmem:[%s182 + $0x568] sm:$0xff]
      %v360 = vld [vmem:[%s182 + $0x570] sm:$0xff]
      %v361 = vld [vmem:[%s182 + $0x578] sm:$0xff]
      %v362 = vld [vmem:[%s182 + $0x580] sm:$0xff]
      %v363 = vld [vmem:[%s182 + $0x588] sm:$0xff]
      %v364 = vld [vmem:[%s182 + $0x590] sm:$0xff]
      %v365 = vld [vmem:[%s182 + $0x598] sm:$0xff]
      %v366 = vld [vmem:[%s182 + $0x5a0] sm:$0xff]
      %v367 = vld [vmem:[%s182 + $0x5a8] sm:$0xff]
      %v368 = vld [vmem:[%s182 + $0x5b0] sm:$0x33]
      %v369 = vld [vmem:[%s182 + $0x5b8] sm:$0x33]
      %v370 = vld [vmem:[%s182 + $0x5c0] sm:$0x33]
      %v371 = vld [vmem:[%s182 + $0x5c8] sm:$0x33]
      %v372 = vld [vmem:[%s182 + $0x5d0] sm:$0x33]
      %v373 = vld [vmem:[%s182 + $0x5d8] sm:$0x33]
      %v374 = vld [vmem:[%s182 + $0x5e0] sm:$0x33]
      %v375 = vld [vmem:[%s182 + $0x5e8] sm:$0x33]
      %v376 = vld [vmem:[%s182 + $0x5f0] sm:$0x33]
      %v377 = vld [vmem:[%s182 + $0x5f8] sm:$0x33]
      %v378 = vld [vmem:[%s182 + $0x600] sm:$0x33]
      %v379 = vld [vmem:[%s182 + $0x608] sm:$0x33]
      %v380 = vld [vmem:[%s182 + $0x610] sm:$0x33]
      %v381 = vld [vmem:[%s182 + $0x618] sm:$0x33]
      %v384 = vunpack.c.l.b16 %v184
      %v385 = vunpack.c.l.b16 %v185
      %v386 = vpack.c.b16 %v385, %v384
      %v583 = vunpack.c.l.b16 %v186
      %v584 = vunpack.c.h.b16 %v186
      %v585 = vunpack.c.l.b16 %v187
      %v586 = vunpack.c.h.b16 %v187
      %v587 = vunpack.c.l.b16 %v188
      %v588 = vunpack.c.h.b16 %v188
      %v589 = vunpack.c.l.b16 %v189
      %v590 = vunpack.c.h.b16 %v189
      %v591 = vunpack.c.l.b16 %v190
      %v592 = vunpack.c.h.b16 %v190
      %v593 = vunpack.c.l.b16 %v191
      %v594 = vunpack.c.h.b16 %v191
      %v595 = vunpack.c.l.b16 %v192
      %v596 = vunpack.c.h.b16 %v192
      %v597 = vunpack.c.l.b16 %v193
      %v598 = vunpack.c.h.b16 %v193
      %v599 = vunpack.c.l.b16 %v194
      %v600 = vunpack.c.h.b16 %v194
      %v601 = vunpack.c.l.b16 %v195
      %v602 = vunpack.c.h.b16 %v195
      %v603 = vunpack.c.l.b16 %v196
      %v604 = vunpack.c.h.b16 %v196
      %v605 = vunpack.c.l.b16 %v197
      %v606 = vunpack.c.h.b16 %v197
      %v607 = vunpack.c.l.b16 %v198
      %v608 = vunpack.c.h.b16 %v198
      %v609 = vunpack.c.l.b16 %v199
      %v610 = vunpack.c.h.b16 %v199
      %v611 = vunpack.c.l.b16 %v200
      %v612 = vunpack.c.h.b16 %v200
      %v613 = vunpack.c.l.b16 %v201
      %v614 = vunpack.c.h.b16 %v201
      %v615 = vunpack.c.l.b16 %v202
      %v616 = vunpack.c.h.b16 %v202
      %v617 = vunpack.c.l.b16 %v203
      %v618 = vunpack.c.h.b16 %v203
      %v619 = vunpack.c.l.b16 %v204
      %v620 = vunpack.c.h.b16 %v204
      %v621 = vunpack.c.l.b16 %v205
      %v622 = vunpack.c.h.b16 %v205
      %v623 = vunpack.c.l.b16 %v206
      %v624 = vunpack.c.h.b16 %v206
      %v625 = vunpack.c.l.b16 %v207
      %v626 = vunpack.c.h.b16 %v207
      %v627 = vunpack.c.l.b16 %v208
      %v628 = vunpack.c.h.b16 %v208
      %v629 = vunpack.c.l.b16 %v209
      %v630 = vunpack.c.h.b16 %v209
      %v631 = vunpack.c.l.b16 %v210
      %v632 = vunpack.c.h.b16 %v210
      %v633 = vunpack.c.l.b16 %v211
      %v634 = vunpack.c.h.b16 %v211
      %v635 = vunpack.c.l.b16 %v212
      %v636 = vunpack.c.h.b16 %v212
      %v637 = vunpack.c.l.b16 %v213
      %v638 = vunpack.c.h.b16 %v213
      %v639 = vunpack.c.l.b16 %v214
      %v640 = vunpack.c.h.b16 %v214
      %v641 = vunpack.c.l.b16 %v215
      %v642 = vunpack.c.h.b16 %v215
      %v643 = vunpack.c.l.b16 %v216
      %v644 = vunpack.c.h.b16 %v216
      %v645 = vunpack.c.l.b16 %v217
      %v646 = vunpack.c.h.b16 %v217
      %v647 = vunpack.c.l.b16 %v218
      %v648 = vunpack.c.h.b16 %v218
      %v649 = vunpack.c.l.b16 %v219
      %v650 = vunpack.c.h.b16 %v219
      %v651 = vunpack.c.l.b16 %v220
      %v652 = vunpack.c.h.b16 %v220
      %v653 = vunpack.c.l.b16 %v221
      %v654 = vunpack.c.h.b16 %v221
      %v655 = vunpack.c.l.b16 %v222
      %v656 = vunpack.c.h.b16 %v222
      %v657 = vunpack.c.l.b16 %v223
      %v658 = vunpack.c.h.b16 %v223
      %v659 = vunpack.c.l.b16 %v224
      %v660 = vunpack.c.h.b16 %v224
      %v661 = vunpack.c.l.b16 %v225
      %v662 = vunpack.c.h.b16 %v225
      %v663 = vunpack.c.l.b16 %v226
      %v664 = vunpack.c.h.b16 %v226
      %v665 = vunpack.c.l.b16 %v227
      %v666 = vunpack.c.h.b16 %v227
      %v667 = vunpack.c.l.b16 %v228
      %v668 = vunpack.c.h.b16 %v228
      %v669 = vunpack.c.l.b16 %v229
      %v670 = vunpack.c.h.b16 %v229
      %v671 = vunpack.c.l.b16 %v230
      %v672 = vunpack.c.h.b16 %v230
      %v673 = vunpack.c.l.b16 %v231
      %v674 = vunpack.c.h.b16 %v231
      %v675 = vunpack.c.l.b16 %v232
      %v676 = vunpack.c.h.b16 %v232
      %v677 = vunpack.c.l.b16 %v233
      %v678 = vunpack.c.h.b16 %v233
      %v679 = vunpack.c.l.b16 %v234
      %v680 = vunpack.c.h.b16 %v234
      %v681 = vunpack.c.l.b16 %v235
      %v682 = vunpack.c.h.b16 %v235
      %v683 = vunpack.c.l.b16 %v236
      %v684 = vunpack.c.h.b16 %v236
      %v685 = vunpack.c.l.b16 %v237
      %v686 = vunpack.c.h.b16 %v237
      %v687 = vunpack.c.l.b16 %v238
      %v688 = vunpack.c.h.b16 %v238
      %v689 = vunpack.c.l.b16 %v239
      %v690 = vunpack.c.h.b16 %v239
      %v691 = vunpack.c.l.b16 %v240
      %v692 = vunpack.c.h.b16 %v240
      %v693 = vunpack.c.l.b16 %v241
      %v694 = vunpack.c.h.b16 %v241
      %v695 = vunpack.c.l.b16 %v242
      %v696 = vunpack.c.h.b16 %v242
      %v697 = vunpack.c.l.b16 %v243
      %v698 = vunpack.c.h.b16 %v243
      %v699 = vunpack.c.l.b16 %v244
      %v700 = vunpack.c.h.b16 %v244
      %v701 = vunpack.c.l.b16 %v245
      %v702 = vunpack.c.h.b16 %v245
      %v703 = vunpack.c.l.b16 %v246
      %v704 = vunpack.c.h.b16 %v246
      %v705 = vunpack.c.l.b16 %v247
      %v706 = vunpack.c.h.b16 %v247
      %v707 = vunpack.c.l.b16 %v248
      %v708 = vunpack.c.h.b16 %v248
      %v709 = vunpack.c.l.b16 %v249
      %v710 = vunpack.c.h.b16 %v249
      %v711 = vunpack.c.l.b16 %v250
      %v712 = vunpack.c.h.b16 %v250
      %v713 = vunpack.c.l.b16 %v251
      %v714 = vunpack.c.h.b16 %v251
      %v715 = vunpack.c.l.b16 %v252
      %v716 = vunpack.c.h.b16 %v252
      %v717 = vunpack.c.l.b16 %v253
      %v718 = vunpack.c.h.b16 %v253
      %v719 = vunpack.c.l.b16 %v254
      %v720 = vunpack.c.h.b16 %v254
      %v721 = vunpack.c.l.b16 %v255
      %v722 = vunpack.c.h.b16 %v255
      %v723 = vunpack.c.l.b16 %v256
      %v724 = vunpack.c.h.b16 %v256
      %v725 = vunpack.c.l.b16 %v257
      %v726 = vunpack.c.h.b16 %v257
      %v727 = vunpack.c.l.b16 %v258
      %v728 = vunpack.c.h.b16 %v258
      %v729 = vunpack.c.l.b16 %v259
      %v730 = vunpack.c.h.b16 %v259
      %v731 = vunpack.c.l.b16 %v260
      %v732 = vunpack.c.h.b16 %v260
      %v733 = vunpack.c.l.b16 %v261
      %v734 = vunpack.c.h.b16 %v261
      %v735 = vunpack.c.l.b16 %v262
      %v736 = vunpack.c.h.b16 %v262
      %v737 = vunpack.c.l.b16 %v263
      %v738 = vunpack.c.h.b16 %v263
      %v739 = vunpack.c.l.b16 %v264
      %v740 = vunpack.c.h.b16 %v264
      %v741 = vunpack.c.l.b16 %v265
      %v742 = vunpack.c.h.b16 %v265
      %v743 = vunpack.c.l.b16 %v266
      %v744 = vunpack.c.h.b16 %v266
      %v745 = vunpack.c.l.b16 %v267
      %v746 = vunpack.c.h.b16 %v267
      %v747 = vunpack.c.l.b16 %v268
      %v748 = vunpack.c.h.b16 %v268
      %v749 = vunpack.c.l.b16 %v269
      %v750 = vunpack.c.h.b16 %v269
      %v751 = vunpack.c.l.b16 %v270
      %v752 = vunpack.c.h.b16 %v270
      %v753 = vunpack.c.l.b16 %v271
      %v754 = vunpack.c.h.b16 %v271
      %v755 = vunpack.c.l.b16 %v272
      %v756 = vunpack.c.h.b16 %v272
      %v757 = vunpack.c.l.b16 %v273
      %v758 = vunpack.c.h.b16 %v273
      %v759 = vunpack.c.l.b16 %v274
      %v760 = vunpack.c.h.b16 %v274
      %v761 = vunpack.c.l.b16 %v275
      %v762 = vunpack.c.h.b16 %v275
      %v763 = vunpack.c.l.b16 %v276
      %v764 = vunpack.c.h.b16 %v276
      %v765 = vunpack.c.l.b16 %v277
      %v766 = vunpack.c.h.b16 %v277
      %v767 = vunpack.c.l.b16 %v278
      %v768 = vunpack.c.h.b16 %v278
      %v769 = vunpack.c.l.b16 %v279
      %v770 = vunpack.c.h.b16 %v279
      %v771 = vunpack.c.l.b16 %v280
      %v772 = vunpack.c.h.b16 %v280
      %v773 = vunpack.c.l.b16 %v281
      %v774 = vunpack.c.h.b16 %v281
      %v775 = vunpack.c.l.b16 %v282
      %v776 = vunpack.c.h.b16 %v282
      %v777 = vunpack.c.l.b16 %v283
      %v778 = vunpack.c.h.b16 %v283
      %v779 = vunpack.c.l.b16 %v284
      %v780 = vunpack.c.h.b16 %v284
      %v781 = vunpack.c.l.b16 %v285
      %v782 = vunpack.c.h.b16 %v285
      %v783 = vunpack.c.l.b16 %v286
      %v784 = vunpack.c.h.b16 %v286
      %v785 = vunpack.c.l.b16 %v287
      %v786 = vunpack.c.h.b16 %v287
      %v787 = vunpack.c.l.b16 %v288
      %v788 = vunpack.c.h.b16 %v288
      %v789 = vunpack.c.l.b16 %v289
      %v790 = vunpack.c.h.b16 %v289
      %v791 = vunpack.c.l.b16 %v290
      %v792 = vunpack.c.h.b16 %v290
      %v793 = vunpack.c.l.b16 %v291
      %v794 = vunpack.c.h.b16 %v291
      %v795 = vunpack.c.l.b16 %v292
      %v796 = vunpack.c.h.b16 %v292
      %v797 = vunpack.c.l.b16 %v293
      %v798 = vunpack.c.h.b16 %v293
      %v799 = vunpack.c.l.b16 %v294
      %v800 = vunpack.c.h.b16 %v294
      %v801 = vunpack.c.l.b16 %v295
      %v802 = vunpack.c.h.b16 %v295
      %v803 = vunpack.c.l.b16 %v296
      %v804 = vunpack.c.h.b16 %v296
      %v805 = vunpack.c.l.b16 %v297
      %v806 = vunpack.c.h.b16 %v297
      %v807 = vunpack.c.l.b16 %v298
      %v808 = vunpack.c.h.b16 %v298
      %v809 = vunpack.c.l.b16 %v299
      %v810 = vunpack.c.h.b16 %v299
      %v811 = vunpack.c.l.b16 %v300
      %v812 = vunpack.c.h.b16 %v300
      %v813 = vunpack.c.l.b16 %v301
      %v814 = vunpack.c.h.b16 %v301
      %v815 = vunpack.c.l.b16 %v302
      %v816 = vunpack.c.h.b16 %v302
      %v817 = vunpack.c.l.b16 %v303
      %v818 = vunpack.c.h.b16 %v303
      %v819 = vunpack.c.l.b16 %v304
      %v820 = vunpack.c.h.b16 %v304
      %v821 = vunpack.c.l.b16 %v305
      %v822 = vunpack.c.h.b16 %v305
      %v823 = vunpack.c.l.b16 %v306
      %v824 = vunpack.c.h.b16 %v306
      %v825 = vunpack.c.l.b16 %v307
      %v826 = vunpack.c.h.b16 %v307
      %v827 = vunpack.c.l.b16 %v308
      %v828 = vunpack.c.h.b16 %v308
      %v829 = vunpack.c.l.b16 %v309
      %v830 = vunpack.c.h.b16 %v309
      %v831 = vunpack.c.l.b16 %v310
      %v832 = vunpack.c.h.b16 %v310
      %v833 = vunpack.c.l.b16 %v311
      %v834 = vunpack.c.h.b16 %v311
      %v835 = vunpack.c.l.b16 %v312
      %v836 = vunpack.c.h.b16 %v312
      %v837 = vunpack.c.l.b16 %v313
      %v838 = vunpack.c.h.b16 %v313
      %v839 = vunpack.c.l.b16 %v314
      %v840 = vunpack.c.h.b16 %v314
      %v841 = vunpack.c.l.b16 %v315
      %v842 = vunpack.c.h.b16 %v315
      %v843 = vunpack.c.l.b16 %v316
      %v844 = vunpack.c.h.b16 %v316
      %v845 = vunpack.c.l.b16 %v317
      %v846 = vunpack.c.h.b16 %v317
      %v847 = vunpack.c.l.b16 %v318
      %v848 = vunpack.c.h.b16 %v318
      %v849 = vunpack.c.l.b16 %v319
      %v850 = vunpack.c.h.b16 %v319
      %v851 = vunpack.c.l.b16 %v320
      %v852 = vunpack.c.h.b16 %v320
      %v853 = vunpack.c.l.b16 %v321
      %v854 = vunpack.c.h.b16 %v321
      %v855 = vunpack.c.l.b16 %v322
      %v856 = vunpack.c.h.b16 %v322
      %v857 = vunpack.c.l.b16 %v323
      %v858 = vunpack.c.h.b16 %v323
      %v859 = vunpack.c.l.b16 %v324
      %v860 = vunpack.c.h.b16 %v324
      %v861 = vunpack.c.l.b16 %v325
      %v862 = vunpack.c.h.b16 %v325
      %v863 = vunpack.c.l.b16 %v326
      %v864 = vunpack.c.h.b16 %v326
      %v865 = vunpack.c.l.b16 %v327
      %v866 = vunpack.c.h.b16 %v327
      %v867 = vunpack.c.l.b16 %v328
      %v868 = vunpack.c.h.b16 %v328
      %v869 = vunpack.c.l.b16 %v329
      %v870 = vunpack.c.h.b16 %v329
      %v871 = vunpack.c.l.b16 %v330
      %v872 = vunpack.c.h.b16 %v330
      %v873 = vunpack.c.l.b16 %v331
      %v874 = vunpack.c.h.b16 %v331
      %v875 = vunpack.c.l.b16 %v332
      %v876 = vunpack.c.h.b16 %v332
      %v877 = vunpack.c.l.b16 %v333
      %v878 = vunpack.c.h.b16 %v333
      %v879 = vunpack.c.l.b16 %v334
      %v880 = vunpack.c.h.b16 %v334
      %v881 = vunpack.c.l.b16 %v335
      %v882 = vunpack.c.h.b16 %v335
      %v883 = vunpack.c.l.b16 %v336
      %v884 = vunpack.c.h.b16 %v336
      %v885 = vunpack.c.l.b16 %v337
      %v886 = vunpack.c.h.b16 %v337
      %v887 = vunpack.c.l.b16 %v338
      %v888 = vunpack.c.h.b16 %v338
      %v889 = vunpack.c.l.b16 %v339
      %v890 = vunpack.c.h.b16 %v339
      %v891 = vunpack.c.l.b16 %v340
      %v892 = vunpack.c.h.b16 %v340
      %v893 = vunpack.c.l.b16 %v341
      %v894 = vunpack.c.h.b16 %v341
      %v895 = vunpack.c.l.b16 %v342
      %v896 = vunpack.c.h.b16 %v342
      %v897 = vunpack.c.l.b16 %v343
      %v898 = vunpack.c.h.b16 %v343
      %v899 = vunpack.c.l.b16 %v344
      %v900 = vunpack.c.h.b16 %v344
      %v901 = vunpack.c.l.b16 %v345
      %v902 = vunpack.c.h.b16 %v345
      %v903 = vunpack.c.l.b16 %v346
      %v904 = vunpack.c.h.b16 %v346
      %v905 = vunpack.c.l.b16 %v347
      %v906 = vunpack.c.h.b16 %v347
      %v907 = vunpack.c.l.b16 %v348
      %v908 = vunpack.c.h.b16 %v348
      %v909 = vunpack.c.l.b16 %v349
      %v910 = vunpack.c.h.b16 %v349
      %v911 = vunpack.c.l.b16 %v350
      %v912 = vunpack.c.h.b16 %v350
      %v913 = vunpack.c.l.b16 %v351
      %v914 = vunpack.c.h.b16 %v351
      %v915 = vunpack.c.l.b16 %v352
      %v916 = vunpack.c.h.b16 %v352
      %v917 = vunpack.c.l.b16 %v353
      %v918 = vunpack.c.h.b16 %v353
      %v919 = vunpack.c.l.b16 %v354
      %v920 = vunpack.c.h.b16 %v354
      %v921 = vunpack.c.l.b16 %v355
      %v922 = vunpack.c.h.b16 %v355
      %v923 = vunpack.c.l.b16 %v356
      %v924 = vunpack.c.h.b16 %v356
      %v925 = vunpack.c.l.b16 %v357
      %v926 = vunpack.c.h.b16 %v357
      %v927 = vunpack.c.l.b16 %v358
      %v928 = vunpack.c.h.b16 %v358
      %v929 = vunpack.c.l.b16 %v359
      %v930 = vunpack.c.h.b16 %v359
      %v931 = vunpack.c.l.b16 %v360
      %v932 = vunpack.c.h.b16 %v360
      %v933 = vunpack.c.l.b16 %v361
      %v934 = vunpack.c.h.b16 %v361
      %v935 = vunpack.c.l.b16 %v362
      %v936 = vunpack.c.h.b16 %v362
      %v937 = vunpack.c.l.b16 %v363
      %v938 = vunpack.c.h.b16 %v363
      %v939 = vunpack.c.l.b16 %v364
      %v940 = vunpack.c.h.b16 %v364
      %v941 = vunpack.c.l.b16 %v365
      %v942 = vunpack.c.h.b16 %v365
      %v943 = vunpack.c.l.b16 %v366
      %v944 = vunpack.c.h.b16 %v366
      %v945 = vunpack.c.l.b16 %v367
      %v946 = vunpack.c.h.b16 %v367
      %v947 = vunpack.c.l.b16 %v368
      %v948 = vunpack.c.h.b16 %v368
      %v949 = vunpack.c.l.b16 %v369
      %v950 = vunpack.c.h.b16 %v369
      %v951 = vunpack.c.l.b16 %v370
      %v952 = vunpack.c.h.b16 %v370
      %v953 = vunpack.c.l.b16 %v371
      %v954 = vunpack.c.h.b16 %v371
      %v955 = vunpack.c.l.b16 %v372
      %v956 = vunpack.c.h.b16 %v372
      %v957 = vunpack.c.l.b16 %v373
      %v958 = vunpack.c.h.b16 %v373
      %v959 = vunpack.c.l.b16 %v374
      %v960 = vunpack.c.h.b16 %v374
      %v961 = vunpack.c.l.b16 %v375
      %v962 = vunpack.c.h.b16 %v375
      %v963 = vunpack.c.l.b16 %v376
      %v964 = vunpack.c.h.b16 %v376
      %v965 = vunpack.c.l.b16 %v377
      %v966 = vunpack.c.h.b16 %v377
      %v967 = vunpack.c.l.b16 %v378
      %v968 = vunpack.c.h.b16 %v378
      %v969 = vunpack.c.l.b16 %v379
      %v970 = vunpack.c.h.b16 %v379
      %v971 = vunpack.c.l.b16 %v380
      %v972 = vunpack.c.h.b16 %v380
      %v973 = vunpack.c.l.b16 %v381
      %v974 = vunpack.c.h.b16 %v381
      %v975 = vpack.c.b16 %v611, %v583
      %v976 = vpack.c.b16 %v612, %v584
      %v977 = vpack.c.b16 %v613, %v585
      %v978 = vpack.c.b16 %v614, %v586
      %v979 = vpack.c.b16 %v615, %v587
      %v980 = vpack.c.b16 %v616, %v588
      %v981 = vpack.c.b16 %v617, %v589
      %v982 = vpack.c.b16 %v618, %v590
      %v983 = vpack.c.b16 %v619, %v591
      %v984 = vpack.c.b16 %v620, %v592
      %v985 = vpack.c.b16 %v621, %v593
      %v986 = vpack.c.b16 %v622, %v594
      %v987 = vpack.c.b16 %v623, %v595
      %v988 = vpack.c.b16 %v624, %v596
      %v989 = vpack.c.b16 %v625, %v597
      %v990 = vpack.c.b16 %v626, %v598
      %v991 = vpack.c.b16 %v627, %v599
      %v992 = vpack.c.b16 %v628, %v600
      %v993 = vpack.c.b16 %v629, %v601
      %v994 = vpack.c.b16 %v630, %v602
      %v995 = vpack.c.b16 %v631, %v603
      %v996 = vpack.c.b16 %v632, %v604
      %v997 = vpack.c.b16 %v633, %v605
      %v998 = vpack.c.b16 %v634, %v606
      %v999 = vpack.c.b16 %v635, %v607
      %v1000 = vpack.c.b16 %v636, %v608
      %v1001 = vpack.c.b16 %v637, %v609
      %v1002 = vpack.c.b16 %v638, %v610
      %v1003 = vpack.c.b16 %v667, %v639
      %v1004 = vpack.c.b16 %v668, %v640
      %v1005 = vpack.c.b16 %v669, %v641
      %v1006 = vpack.c.b16 %v670, %v642
      %v1007 = vpack.c.b16 %v671, %v643
      %v1008 = vpack.c.b16 %v672, %v644
      %v1009 = vpack.c.b16 %v673, %v645
      %v1010 = vpack.c.b16 %v674, %v646
      %v1011 = vpack.c.b16 %v675, %v647
      %v1012 = vpack.c.b16 %v676, %v648
      %v1013 = vpack.c.b16 %v677, %v649
      %v1014 = vpack.c.b16 %v678, %v650
      %v1015 = vpack.c.b16 %v679, %v651
      %v1016 = vpack.c.b16 %v680, %v652
      %v1017 = vpack.c.b16 %v681, %v653
      %v1018 = vpack.c.b16 %v682, %v654
      %v1019 = vpack.c.b16 %v683, %v655
      %v1020 = vpack.c.b16 %v684, %v656
      %v1021 = vpack.c.b16 %v685, %v657
      %v1022 = vpack.c.b16 %v686, %v658
      %v1023 = vpack.c.b16 %v687, %v659
      %v1024 = vpack.c.b16 %v688, %v660
      %v1025 = vpack.c.b16 %v689, %v661
      %v1026 = vpack.c.b16 %v690, %v662
      %v1027 = vpack.c.b16 %v691, %v663
      %v1028 = vpack.c.b16 %v692, %v664
      %v1029 = vpack.c.b16 %v693, %v665
      %v1030 = vpack.c.b16 %v694, %v666
      %v1031 = vpack.c.b16 %v723, %v695
      %v1032 = vpack.c.b16 %v724, %v696
      %v1033 = vpack.c.b16 %v725, %v697
      %v1034 = vpack.c.b16 %v726, %v698
      %v1035 = vpack.c.b16 %v727, %v699
      %v1036 = vpack.c.b16 %v728, %v700
      %v1037 = vpack.c.b16 %v729, %v701
      %v1038 = vpack.c.b16 %v730, %v702
      %v1039 = vpack.c.b16 %v731, %v703
      %v1040 = vpack.c.b16 %v732, %v704
      %v1041 = vpack.c.b16 %v733, %v705
      %v1042 = vpack.c.b16 %v734, %v706
      %v1043 = vpack.c.b16 %v735, %v707
      %v1044 = vpack.c.b16 %v736, %v708
      %v1045 = vpack.c.b16 %v737, %v709
      %v1046 = vpack.c.b16 %v738, %v710
      %v1047 = vpack.c.b16 %v739, %v711
      %v1048 = vpack.c.b16 %v740, %v712
      %v1049 = vpack.c.b16 %v741, %v713
      %v1050 = vpack.c.b16 %v742, %v714
      %v1051 = vpack.c.b16 %v743, %v715
      %v1052 = vpack.c.b16 %v744, %v716
      %v1053 = vpack.c.b16 %v745, %v717
      %v1054 = vpack.c.b16 %v746, %v718
      %v1055 = vpack.c.b16 %v747, %v719
      %v1056 = vpack.c.b16 %v748, %v720
      %v1057 = vpack.c.b16 %v749, %v721
      %v1058 = vpack.c.b16 %v750, %v722
      %v1059 = vpack.c.b16 %v779, %v751
      %v1060 = vpack.c.b16 %v780, %v752
      %v1061 = vpack.c.b16 %v781, %v753
      %v1062 = vpack.c.b16 %v782, %v754
      %v1063 = vpack.c.b16 %v783, %v755
      %v1064 = vpack.c.b16 %v784, %v756
      %v1065 = vpack.c.b16 %v785, %v757
      %v1066 = vpack.c.b16 %v786, %v758
      %v1067 = vpack.c.b16 %v787, %v759
      %v1068 = vpack.c.b16 %v788, %v760
      %v1069 = vpack.c.b16 %v789, %v761
      %v1070 = vpack.c.b16 %v790, %v762
      %v1071 = vpack.c.b16 %v791, %v763
      %v1072 = vpack.c.b16 %v792, %v764
      %v1073 = vpack.c.b16 %v793, %v765
      %v1074 = vpack.c.b16 %v794, %v766
      %v1075 = vpack.c.b16 %v795, %v767
      %v1076 = vpack.c.b16 %v796, %v768
      %v1077 = vpack.c.b16 %v797, %v769
      %v1078 = vpack.c.b16 %v798, %v770
      %v1079 = vpack.c.b16 %v799, %v771
      %v1080 = vpack.c.b16 %v800, %v772
      %v1081 = vpack.c.b16 %v801, %v773
      %v1082 = vpack.c.b16 %v802, %v774
      %v1083 = vpack.c.b16 %v803, %v775
      %v1084 = vpack.c.b16 %v804, %v776
      %v1085 = vpack.c.b16 %v805, %v777
      %v1086 = vpack.c.b16 %v806, %v778
      %v1087 = vpack.c.b16 %v835, %v807
      %v1088 = vpack.c.b16 %v836, %v808
      %v1089 = vpack.c.b16 %v837, %v809
      %v1090 = vpack.c.b16 %v838, %v810
      %v1091 = vpack.c.b16 %v839, %v811
      %v1092 = vpack.c.b16 %v840, %v812
      %v1093 = vpack.c.b16 %v841, %v813
      %v1094 = vpack.c.b16 %v842, %v814
      %v1095 = vpack.c.b16 %v843, %v815
      %v1096 = vpack.c.b16 %v844, %v816
      %v1097 = vpack.c.b16 %v845, %v817
      %v1098 = vpack.c.b16 %v846, %v818
      %v1099 = vpack.c.b16 %v847, %v819
      %v1100 = vpack.c.b16 %v848, %v820
      %v1101 = vpack.c.b16 %v849, %v821
      %v1102 = vpack.c.b16 %v850, %v822
      %v1103 = vpack.c.b16 %v851, %v823
      %v1104 = vpack.c.b16 %v852, %v824
      %v1105 = vpack.c.b16 %v853, %v825
      %v1106 = vpack.c.b16 %v854, %v826
      %v1107 = vpack.c.b16 %v855, %v827
      %v1108 = vpack.c.b16 %v856, %v828
      %v1109 = vpack.c.b16 %v857, %v829
      %v1110 = vpack.c.b16 %v858, %v830
      %v1111 = vpack.c.b16 %v859, %v831
      %v1112 = vpack.c.b16 %v860, %v832
      %v1113 = vpack.c.b16 %v861, %v833
      %v1114 = vpack.c.b16 %v862, %v834
      %v1115 = vpack.c.b16 %v891, %v863
      %v1116 = vpack.c.b16 %v892, %v864
      %v1117 = vpack.c.b16 %v893, %v865
      %v1118 = vpack.c.b16 %v894, %v866
      %v1119 = vpack.c.b16 %v895, %v867
      %v1120 = vpack.c.b16 %v896, %v868
      %v1121 = vpack.c.b16 %v897, %v869
      %v1122 = vpack.c.b16 %v898, %v870
      %v1123 = vpack.c.b16 %v899, %v871
      %v1124 = vpack.c.b16 %v900, %v872
      %v1125 = vpack.c.b16 %v901, %v873
      %v1126 = vpack.c.b16 %v902, %v874
      %v1127 = vpack.c.b16 %v903, %v875
      %v1128 = vpack.c.b16 %v904, %v876
      %v1129 = vpack.c.b16 %v905, %v877
      %v1130 = vpack.c.b16 %v906, %v878
      %v1131 = vpack.c.b16 %v907, %v879
      %v1132 = vpack.c.b16 %v908, %v880
      %v1133 = vpack.c.b16 %v909, %v881
      %v1134 = vpack.c.b16 %v910, %v882
      %v1135 = vpack.c.b16 %v911, %v883
      %v1136 = vpack.c.b16 %v912, %v884
      %v1137 = vpack.c.b16 %v913, %v885
      %v1138 = vpack.c.b16 %v914, %v886
      %v1139 = vpack.c.b16 %v915, %v887
      %v1140 = vpack.c.b16 %v916, %v888
      %v1141 = vpack.c.b16 %v917, %v889
      %v1142 = vpack.c.b16 %v918, %v890
      %v1143 = vpack.c.b16 %v947, %v919
      %v1144 = vpack.c.b16 %v948, %v920
      %v1145 = vpack.c.b16 %v949, %v921
      %v1146 = vpack.c.b16 %v950, %v922
      %v1147 = vpack.c.b16 %v951, %v923
      %v1148 = vpack.c.b16 %v952, %v924
      %v1149 = vpack.c.b16 %v953, %v925
      %v1150 = vpack.c.b16 %v954, %v926
      %v1151 = vpack.c.b16 %v955, %v927
      %v1152 = vpack.c.b16 %v956, %v928
      %v1153 = vpack.c.b16 %v957, %v929
      %v1154 = vpack.c.b16 %v958, %v930
      %v1155 = vpack.c.b16 %v959, %v931
      %v1156 = vpack.c.b16 %v960, %v932
      %v1157 = vpack.c.b16 %v961, %v933
      %v1158 = vpack.c.b16 %v962, %v934
      %v1159 = vpack.c.b16 %v963, %v935
      %v1160 = vpack.c.b16 %v964, %v936
      %v1161 = vpack.c.b16 %v965, %v937
      %v1162 = vpack.c.b16 %v966, %v938
      %v1163 = vpack.c.b16 %v967, %v939
      %v1164 = vpack.c.b16 %v968, %v940
      %v1165 = vpack.c.b16 %v969, %v941
      %v1166 = vpack.c.b16 %v970, %v942
      %v1167 = vpack.c.b16 %v971, %v943
      %v1168 = vpack.c.b16 %v972, %v944
      %v1169 = vpack.c.b16 %v973, %v945
      %v1170 = vpack.c.b16 %v974, %v946
      %vm1339 = vcmask 883712
      %v1341 = vsel %vm1339, %v386, 0
      %vm1343 = vcmask 1045504
      %v1345 = vsel %vm1343, %v1143, 0
      %v1348 = vsel %vm1343, %v1144, 0
      %v1351 = vsel %vm1343, %v1145, 0
      %v1354 = vsel %vm1343, %v1146, 0
      %v1357 = vsel %vm1343, %v1147, 0
      %v1360 = vsel %vm1343, %v1148, 0
      %v1363 = vsel %vm1343, %v1149, 0
      %v1366 = vsel %vm1343, %v1150, 0
      %v1369 = vsel %vm1343, %v1151, 0
      %v1372 = vsel %vm1343, %v1152, 0
      %v1375 = vsel %vm1343, %v1153, 0
      %v1378 = vsel %vm1343, %v1154, 0
      %v1381 = vsel %vm1343, %v1155, 0
      %v1384 = vsel %vm1343, %v1156, 0
      %v1387 = vsel %vm1343, %v1157, 0
      %v1390 = vsel %vm1343, %v1158, 0
      %v1393 = vsel %vm1343, %v1159, 0
      %v1396 = vsel %vm1343, %v1160, 0
      %v1399 = vsel %vm1343, %v1161, 0
      %v1402 = vsel %vm1343, %v1162, 0
      %v1405 = vsel %vm1343, %v1163, 0
      %v1408 = vsel %vm1343, %v1164, 0
      %v1411 = vsel %vm1343, %v1165, 0
      %v1414 = vsel %vm1343, %v1166, 0
      %v1417 = vsel %vm1343, %v1167, 0
      %v1420 = vsel %vm1343, %v1168, 0
      %v1423 = vsel %vm1343, %v1169, 0
      %v1426 = vsel %vm1343, %v1170, 0
      %1428 = vmatpush.bf16.msra.mxu0 0
      %1429 = vmatpush.bf16.msra.mxu0 %v1345
      %1430 = vmatpush.bf16.msra.mxu0 %v1115
      %1431 = vmatpush.bf16.msra.mxu0 %v1087
      %1432 = vmatpush.bf16.msra.mxu0 %v1059
      %1433 = vmatpush.bf16.msra.mxu0 %v1031
      %1434 = vmatpush.bf16.msra.mxu0 %v1003
      %1435 = vmatpush.bf16.msra.mxu0 %v975
      %1436 = vmatmul.bf16.gmra.mxu0 %v1341
      %v1437 = vpop.f32.mrf.mxu0
      %v1438 = vadd.f32 0.0, %v1437
      %v1439 = vpop.f32.mrf.mxu0
      %v1440 = vadd.f32 0.0, %v1439
      %1441 = vdwg.mxu0
      %1442 = vmatpush.bf16.msra.mxu0 0
      %1443 = vmatpush.bf16.msra.mxu0 %v1348
      %1444 = vmatpush.bf16.msra.mxu0 %v1116
      %1445 = vmatpush.bf16.msra.mxu0 %v1088
      %1446 = vmatpush.bf16.msra.mxu0 %v1060
      %1447 = vmatpush.bf16.msra.mxu0 %v1032
      %1448 = vmatpush.bf16.msra.mxu0 %v1004
      %1449 = vmatpush.bf16.msra.mxu0 %v976
      %1450 = vmatmul.bf16.gmra.mxu0 %v1341
      %v1451 = vpop.f32.mrf.mxu0
      %v1452 = vadd.f32 0.0, %v1451
      %v1453 = vpop.f32.mrf.mxu0
      %v1454 = vadd.f32 0.0, %v1453
      %1455 = vdwg.mxu0
      %1456 = vmatpush.bf16.msra.mxu0 0
      %1457 = vmatpush.bf16.msra.mxu0 %v1351
      %1458 = vmatpush.bf16.msra.mxu0 %v1117
      %1459 = vmatpush.bf16.msra.mxu0 %v1089
      %1460 = vmatpush.bf16.msra.mxu0 %v1061
      %1461 = vmatpush.bf16.msra.mxu0 %v1033
      %1462 = vmatpush.bf16.msra.mxu0 %v1005
      %1463 = vmatpush.bf16.msra.mxu0 %v977
      %1464 = vmatmul.bf16.gmra.mxu0 %v1341
      %v1465 = vpop.f32.mrf.mxu0
      %v1466 = vadd.f32 0.0, %v1465
      %v1467 = vpop.f32.mrf.mxu0
      %v1468 = vadd.f32 0.0, %v1467
      %1469 = vdwg.mxu0
      %1470 = vmatpush.bf16.msra.mxu0 0
      %1471 = vmatpush.bf16.msra.mxu0 %v1354
      %1472 = vmatpush.bf16.msra.mxu0 %v1118
      %1473 = vmatpush.bf16.msra.mxu0 %v1090
      %1474 = vmatpush.bf16.msra.mxu0 %v1062
      %1475 = vmatpush.bf16.msra.mxu0 %v1034
      %1476 = vmatpush.bf16.msra.mxu0 %v1006
      %1477 = vmatpush.bf16.msra.mxu0 %v978
      %1478 = vmatmul.bf16.gmra.mxu0 %v1341
      %v1479 = vpop.f32.mrf.mxu0
      %v1480 = vadd.f32 0.0, %v1479
      %v1481 = vpop.f32.mrf.mxu0
      %v1482 = vadd.f32 0.0, %v1481
      %1483 = vdwg.mxu0
      %1484 = vmatpush.bf16.msra.mxu0 0
      %1485 = vmatpush.bf16.msra.mxu0 %v1357
      %1486 = vmatpush.bf16.msra.mxu0 %v1119
      %1487 = vmatpush.bf16.msra.mxu0 %v1091
      %1488 = vmatpush.bf16.msra.mxu0 %v1063
      %1489 = vmatpush.bf16.msra.mxu0 %v1035
      %1490 = vmatpush.bf16.msra.mxu0 %v1007
      %1491 = vmatpush.bf16.msra.mxu0 %v979
      %1492 = vmatmul.bf16.gmra.mxu0 %v1341
      %v1493 = vpop.f32.mrf.mxu0
      %v1494 = vadd.f32 0.0, %v1493
      %v1495 = vpop.f32.mrf.mxu0
      %v1496 = vadd.f32 0.0, %v1495
      %1497 = vdwg.mxu0
      %1498 = vmatpush.bf16.msra.mxu0 0
      %1499 = vmatpush.bf16.msra.mxu0 %v1360
      %1500 = vmatpush.bf16.msra.mxu0 %v1120
      %1501 = vmatpush.bf16.msra.mxu0 %v1092
      %1502 = vmatpush.bf16.msra.mxu0 %v1064
      %1503 = vmatpush.bf16.msra.mxu0 %v1036
      %1504 = vmatpush.bf16.msra.mxu0 %v1008
      %1505 = vmatpush.bf16.msra.mxu0 %v980
      %1506 = vmatmul.bf16.gmra.mxu0 %v1341
      %v1507 = vpop.f32.mrf.mxu0
      %v1508 = vadd.f32 0.0, %v1507
      %v1509 = vpop.f32.mrf.mxu0
      %v1510 = vadd.f32 0.0, %v1509
      %1511 = vdwg.mxu0
      %1512 = vmatpush.bf16.msra.mxu0 0
      %1513 = vmatpush.bf16.msra.mxu0 %v1363
      %1514 = vmatpush.bf16.msra.mxu0 %v1121
      %1515 = vmatpush.bf16.msra.mxu0 %v1093
      %1516 = vmatpush.bf16.msra.mxu0 %v1065
      %1517 = vmatpush.bf16.msra.mxu0 %v1037
      %1518 = vmatpush.bf16.msra.mxu0 %v1009
      %1519 = vmatpush.bf16.msra.mxu0 %v981
      %1520 = vmatmul.bf16.gmra.mxu0 %v1341
      %v1521 = vpop.f32.mrf.mxu0
      %v1522 = vadd.f32 0.0, %v1521
      %v1523 = vpop.f32.mrf.mxu0
      %v1524 = vadd.f32 0.0, %v1523
      %1525 = vdwg.mxu0
      %1526 = vmatpush.bf16.msra.mxu0 0
      %1527 = vmatpush.bf16.msra.mxu0 %v1366
      %1528 = vmatpush.bf16.msra.mxu0 %v1122
      %1529 = vmatpush.bf16.msra.mxu0 %v1094
      %1530 = vmatpush.bf16.msra.mxu0 %v1066
      %1531 = vmatpush.bf16.msra.mxu0 %v1038
      %1532 = vmatpush.bf16.msra.mxu0 %v1010
      %1533 = vmatpush.bf16.msra.mxu0 %v982
      %1534 = vmatmul.bf16.gmra.mxu0 %v1341
      %v1535 = vpop.f32.mrf.mxu0
      %v1536 = vadd.f32 0.0, %v1535
      %v1537 = vpop.f32.mrf.mxu0
      %v1538 = vadd.f32 0.0, %v1537
      %1539 = vdwg.mxu0
      %1540 = vmatpush.bf16.msra.mxu0 0
      %1541 = vmatpush.bf16.msra.mxu0 %v1369
      %1542 = vmatpush.bf16.msra.mxu0 %v1123
      %1543 = vmatpush.bf16.msra.mxu0 %v1095
      %1544 = vmatpush.bf16.msra.mxu0 %v1067
      %1545 = vmatpush.bf16.msra.mxu0 %v1039
      %1546 = vmatpush.bf16.msra.mxu0 %v1011
      %1547 = vmatpush.bf16.msra.mxu0 %v983
      %1548 = vmatmul.bf16.gmra.mxu0 %v1341
      %v1549 = vpop.f32.mrf.mxu0
      %v1550 = vadd.f32 0.0, %v1549
      %v1551 = vpop.f32.mrf.mxu0
      %v1552 = vadd.f32 0.0, %v1551
      %1553 = vdwg.mxu0
      %1554 = vmatpush.bf16.msra.mxu0 0
      %1555 = vmatpush.bf16.msra.mxu0 %v1372
      %1556 = vmatpush.bf16.msra.mxu0 %v1124
      %1557 = vmatpush.bf16.msra.mxu0 %v1096
      %1558 = vmatpush.bf16.msra.mxu0 %v1068
      %1559 = vmatpush.bf16.msra.mxu0 %v1040
      %1560 = vmatpush.bf16.msra.mxu0 %v1012
      %1561 = vmatpush.bf16.msra.mxu0 %v984
      %1562 = vmatmul.bf16.gmra.mxu0 %v1341
      %v1563 = vpop.f32.mrf.mxu0
      %v1564 = vadd.f32 0.0, %v1563
      %v1565 = vpop.f32.mrf.mxu0
      %v1566 = vadd.f32 0.0, %v1565
      %1567 = vdwg.mxu0
      %1568 = vmatpush.bf16.msra.mxu0 0
      %1569 = vmatpush.bf16.msra.mxu0 %v1375
      %1570 = vmatpush.bf16.msra.mxu0 %v1125
      %1571 = vmatpush.bf16.msra.mxu0 %v1097
      %1572 = vmatpush.bf16.msra.mxu0 %v1069
      %1573 = vmatpush.bf16.msra.mxu0 %v1041
      %1574 = vmatpush.bf16.msra.mxu0 %v1013
      %1575 = vmatpush.bf16.msra.mxu0 %v985
      %1576 = vmatmul.bf16.gmra.mxu0 %v1341
      %v1577 = vpop.f32.mrf.mxu0
      %v1578 = vadd.f32 0.0, %v1577
      %v1579 = vpop.f32.mrf.mxu0
      %v1580 = vadd.f32 0.0, %v1579
      %1581 = vdwg.mxu0
      %1582 = vmatpush.bf16.msra.mxu0 0
      %1583 = vmatpush.bf16.msra.mxu0 %v1378
      %1584 = vmatpush.bf16.msra.mxu0 %v1126
      %1585 = vmatpush.bf16.msra.mxu0 %v1098
      %1586 = vmatpush.bf16.msra.mxu0 %v1070
      %1587 = vmatpush.bf16.msra.mxu0 %v1042
      %1588 = vmatpush.bf16.msra.mxu0 %v1014
      %1589 = vmatpush.bf16.msra.mxu0 %v986
      %1590 = vmatmul.bf16.gmra.mxu0 %v1341
      %v1591 = vpop.f32.mrf.mxu0
      %v1592 = vadd.f32 0.0, %v1591
      %v1593 = vpop.f32.mrf.mxu0
      %v1594 = vadd.f32 0.0, %v1593
      %1595 = vdwg.mxu0
      %1596 = vmatpush.bf16.msra.mxu0 0
      %1597 = vmatpush.bf16.msra.mxu0 %v1381
      %1598 = vmatpush.bf16.msra.mxu0 %v1127
      %1599 = vmatpush.bf16.msra.mxu0 %v1099
      %1600 = vmatpush.bf16.msra.mxu0 %v1071
      %1601 = vmatpush.bf16.msra.mxu0 %v1043
      %1602 = vmatpush.bf16.msra.mxu0 %v1015
      %1603 = vmatpush.bf16.msra.mxu0 %v987
      %1604 = vmatmul.bf16.gmra.mxu0 %v1341
      %v1605 = vpop.f32.mrf.mxu0
      %v1606 = vadd.f32 0.0, %v1605
      %v1607 = vpop.f32.mrf.mxu0
      %v1608 = vadd.f32 0.0, %v1607
      %1609 = vdwg.mxu0
      %1610 = vmatpush.bf16.msra.mxu0 0
      %1611 = vmatpush.bf16.msra.mxu0 %v1384
      %1612 = vmatpush.bf16.msra.mxu0 %v1128
      %1613 = vmatpush.bf16.msra.mxu0 %v1100
      %1614 = vmatpush.bf16.msra.mxu0 %v1072
      %1615 = vmatpush.bf16.msra.mxu0 %v1044
      %1616 = vmatpush.bf16.msra.mxu0 %v1016
      %1617 = vmatpush.bf16.msra.mxu0 %v988
      %1618 = vmatmul.bf16.gmra.mxu0 %v1341
      %v1619 = vpop.f32.mrf.mxu0
      %v1620 = vadd.f32 0.0, %v1619
      %v1621 = vpop.f32.mrf.mxu0
      %v1622 = vadd.f32 0.0, %v1621
      %1623 = vdwg.mxu0
      %1624 = vmatpush.bf16.msra.mxu0 0
      %1625 = vmatpush.bf16.msra.mxu0 %v1387
      %1626 = vmatpush.bf16.msra.mxu0 %v1129
      %1627 = vmatpush.bf16.msra.mxu0 %v1101
      %1628 = vmatpush.bf16.msra.mxu0 %v1073
      %1629 = vmatpush.bf16.msra.mxu0 %v1045
      %1630 = vmatpush.bf16.msra.mxu0 %v1017
      %1631 = vmatpush.bf16.msra.mxu0 %v989
      %1632 = vmatmul.bf16.gmra.mxu0 %v1341
      %v1633 = vpop.f32.mrf.mxu0
      %v1634 = vadd.f32 0.0, %v1633
      %v1635 = vpop.f32.mrf.mxu0
      %v1636 = vadd.f32 0.0, %v1635
      %1637 = vdwg.mxu0
      %1638 = vmatpush.bf16.msra.mxu0 0
      %1639 = vmatpush.bf16.msra.mxu0 %v1390
      %1640 = vmatpush.bf16.msra.mxu0 %v1130
      %1641 = vmatpush.bf16.msra.mxu0 %v1102
      %1642 = vmatpush.bf16.msra.mxu0 %v1074
      %1643 = vmatpush.bf16.msra.mxu0 %v1046
      %1644 = vmatpush.bf16.msra.mxu0 %v1018
      %1645 = vmatpush.bf16.msra.mxu0 %v990
      %1646 = vmatmul.bf16.gmra.mxu0 %v1341
      %v1647 = vpop.f32.mrf.mxu0
      %v1648 = vadd.f32 0.0, %v1647
      %v1649 = vpop.f32.mrf.mxu0
      %v1650 = vadd.f32 0.0, %v1649
      %1651 = vdwg.mxu0
      %1652 = vmatpush.bf16.msra.mxu0 0
      %1653 = vmatpush.bf16.msra.mxu0 %v1393
      %1654 = vmatpush.bf16.msra.mxu0 %v1131
      %1655 = vmatpush.bf16.msra.mxu0 %v1103
      %1656 = vmatpush.bf16.msra.mxu0 %v1075
      %1657 = vmatpush.bf16.msra.mxu0 %v1047
      %1658 = vmatpush.bf16.msra.mxu0 %v1019
      %1659 = vmatpush.bf16.msra.mxu0 %v991
      %1660 = vmatmul.bf16.gmra.mxu0 %v1341
      %v1661 = vpop.f32.mrf.mxu0
      %v1662 = vadd.f32 0.0, %v1661
      %v1663 = vpop.f32.mrf.mxu0
      %v1664 = vadd.f32 0.0, %v1663
      %1665 = vdwg.mxu0
      %1666 = vmatpush.bf16.msra.mxu0 0
      %1667 = vmatpush.bf16.msra.mxu0 %v1396
      %1668 = vmatpush.bf16.msra.mxu0 %v1132
      %1669 = vmatpush.bf16.msra.mxu0 %v1104
      %1670 = vmatpush.bf16.msra.mxu0 %v1076
      %1671 = vmatpush.bf16.msra.mxu0 %v1048
      %1672 = vmatpush.bf16.msra.mxu0 %v1020
      %1673 = vmatpush.bf16.msra.mxu0 %v992
      %1674 = vmatmul.bf16.gmra.mxu0 %v1341
      %v1675 = vpop.f32.mrf.mxu0
      %v1676 = vadd.f32 0.0, %v1675
      %v1677 = vpop.f32.mrf.mxu0
      %v1678 = vadd.f32 0.0, %v1677
      %1679 = vdwg.mxu0
      %1680 = vmatpush.bf16.msra.mxu0 0
      %1681 = vmatpush.bf16.msra.mxu0 %v1399
      %1682 = vmatpush.bf16.msra.mxu0 %v1133
      %1683 = vmatpush.bf16.msra.mxu0 %v1105
      %1684 = vmatpush.bf16.msra.mxu0 %v1077
      %1685 = vmatpush.bf16.msra.mxu0 %v1049
      %1686 = vmatpush.bf16.msra.mxu0 %v1021
      %1687 = vmatpush.bf16.msra.mxu0 %v993
      %1688 = vmatmul.bf16.gmra.mxu0 %v1341
      %v1689 = vpop.f32.mrf.mxu0
      %v1690 = vadd.f32 0.0, %v1689
      %v1691 = vpop.f32.mrf.mxu0
      %v1692 = vadd.f32 0.0, %v1691
      %1693 = vdwg.mxu0
      %1694 = vmatpush.bf16.msra.mxu0 0
      %1695 = vmatpush.bf16.msra.mxu0 %v1402
      %1696 = vmatpush.bf16.msra.mxu0 %v1134
      %1697 = vmatpush.bf16.msra.mxu0 %v1106
      %1698 = vmatpush.bf16.msra.mxu0 %v1078
      %1699 = vmatpush.bf16.msra.mxu0 %v1050
      %1700 = vmatpush.bf16.msra.mxu0 %v1022
      %1701 = vmatpush.bf16.msra.mxu0 %v994
      %1702 = vmatmul.bf16.gmra.mxu0 %v1341
      %v1703 = vpop.f32.mrf.mxu0
      %v1704 = vadd.f32 0.0, %v1703
      %v1705 = vpop.f32.mrf.mxu0
      %v1706 = vadd.f32 0.0, %v1705
      %1707 = vdwg.mxu0
      %1708 = vmatpush.bf16.msra.mxu0 0
      %1709 = vmatpush.bf16.msra.mxu0 %v1405
      %1710 = vmatpush.bf16.msra.mxu0 %v1135
      %1711 = vmatpush.bf16.msra.mxu0 %v1107
      %1712 = vmatpush.bf16.msra.mxu0 %v1079
      %1713 = vmatpush.bf16.msra.mxu0 %v1051
      %1714 = vmatpush.bf16.msra.mxu0 %v1023
      %1715 = vmatpush.bf16.msra.mxu0 %v995
      %1716 = vmatmul.bf16.gmra.mxu0 %v1341
      %v1717 = vpop.f32.mrf.mxu0
      %v1718 = vadd.f32 0.0, %v1717
      %v1719 = vpop.f32.mrf.mxu0
      %v1720 = vadd.f32 0.0, %v1719
      %1721 = vdwg.mxu0
      %1722 = vmatpush.bf16.msra.mxu0 0
      %1723 = vmatpush.bf16.msra.mxu0 %v1408
      %1724 = vmatpush.bf16.msra.mxu0 %v1136
      %1725 = vmatpush.bf16.msra.mxu0 %v1108
      %1726 = vmatpush.bf16.msra.mxu0 %v1080
      %1727 = vmatpush.bf16.msra.mxu0 %v1052
      %1728 = vmatpush.bf16.msra.mxu0 %v1024
      %1729 = vmatpush.bf16.msra.mxu0 %v996
      %1730 = vmatmul.bf16.gmra.mxu0 %v1341
      %v1731 = vpop.f32.mrf.mxu0
      %v1732 = vadd.f32 0.0, %v1731
      %v1733 = vpop.f32.mrf.mxu0
      %v1734 = vadd.f32 0.0, %v1733
      %1735 = vdwg.mxu0
      %1736 = vmatpush.bf16.msra.mxu0 0
      %1737 = vmatpush.bf16.msra.mxu0 %v1411
      %1738 = vmatpush.bf16.msra.mxu0 %v1137
      %1739 = vmatpush.bf16.msra.mxu0 %v1109
      %1740 = vmatpush.bf16.msra.mxu0 %v1081
      %1741 = vmatpush.bf16.msra.mxu0 %v1053
      %1742 = vmatpush.bf16.msra.mxu0 %v1025
      %1743 = vmatpush.bf16.msra.mxu0 %v997
      %1744 = vmatmul.bf16.gmra.mxu0 %v1341
      %v1745 = vpop.f32.mrf.mxu0
      %v1746 = vadd.f32 0.0, %v1745
      %v1747 = vpop.f32.mrf.mxu0
      %v1748 = vadd.f32 0.0, %v1747
      %1749 = vdwg.mxu0
      %1750 = vmatpush.bf16.msra.mxu0 0
      %1751 = vmatpush.bf16.msra.mxu0 %v1414
      %1752 = vmatpush.bf16.msra.mxu0 %v1138
      %1753 = vmatpush.bf16.msra.mxu0 %v1110
      %1754 = vmatpush.bf16.msra.mxu0 %v1082
      %1755 = vmatpush.bf16.msra.mxu0 %v1054
      %1756 = vmatpush.bf16.msra.mxu0 %v1026
      %1757 = vmatpush.bf16.msra.mxu0 %v998
      %1758 = vmatmul.bf16.gmra.mxu0 %v1341
      %v1759 = vpop.f32.mrf.mxu0
      %v1760 = vadd.f32 0.0, %v1759
      %v1761 = vpop.f32.mrf.mxu0
      %v1762 = vadd.f32 0.0, %v1761
      %1763 = vdwg.mxu0
      %1764 = vmatpush.bf16.msra.mxu0 0
      %1765 = vmatpush.bf16.msra.mxu0 %v1417
      %1766 = vmatpush.bf16.msra.mxu0 %v1139
      %1767 = vmatpush.bf16.msra.mxu0 %v1111
      %1768 = vmatpush.bf16.msra.mxu0 %v1083
      %1769 = vmatpush.bf16.msra.mxu0 %v1055
      %1770 = vmatpush.bf16.msra.mxu0 %v1027
      %1771 = vmatpush.bf16.msra.mxu0 %v999
      %1772 = vmatmul.bf16.gmra.mxu0 %v1341
      %v1773 = vpop.f32.mrf.mxu0
      %v1774 = vadd.f32 0.0, %v1773
      %v1775 = vpop.f32.mrf.mxu0
      %v1776 = vadd.f32 0.0, %v1775
      %1777 = vdwg.mxu0
      %1778 = vmatpush.bf16.msra.mxu0 0
      %1779 = vmatpush.bf16.msra.mxu0 %v1420
      %1780 = vmatpush.bf16.msra.mxu0 %v1140
      %1781 = vmatpush.bf16.msra.mxu0 %v1112
      %1782 = vmatpush.bf16.msra.mxu0 %v1084
      %1783 = vmatpush.bf16.msra.mxu0 %v1056
      %1784 = vmatpush.bf16.msra.mxu0 %v1028
      %1785 = vmatpush.bf16.msra.mxu0 %v1000
      %1786 = vmatmul.bf16.gmra.mxu0 %v1341
      %v1787 = vpop.f32.mrf.mxu0
      %v1788 = vadd.f32 0.0, %v1787
      %v1789 = vpop.f32.mrf.mxu0
      %v1790 = vadd.f32 0.0, %v1789
      %1791 = vdwg.mxu0
      %1792 = vmatpush.bf16.msra.mxu0 0
      %1793 = vmatpush.bf16.msra.mxu0 %v1423
      %1794 = vmatpush.bf16.msra.mxu0 %v1141
      %1795 = vmatpush.bf16.msra.mxu0 %v1113
      %1796 = vmatpush.bf16.msra.mxu0 %v1085
      %1797 = vmatpush.bf16.msra.mxu0 %v1057
      %1798 = vmatpush.bf16.msra.mxu0 %v1029
      %1799 = vmatpush.bf16.msra.mxu0 %v1001
      %1800 = vmatmul.bf16.gmra.mxu0 %v1341
      %v1801 = vpop.f32.mrf.mxu0
      %v1802 = vadd.f32 0.0, %v1801
      %v1803 = vpop.f32.mrf.mxu0
      %v1804 = vadd.f32 0.0, %v1803
      %1805 = vdwg.mxu0
      %1806 = vmatpush.bf16.msra.mxu0 0
      %1807 = vmatpush.bf16.msra.mxu0 %v1426
      %1808 = vmatpush.bf16.msra.mxu0 %v1142
      %1809 = vmatpush.bf16.msra.mxu0 %v1114
      %1810 = vmatpush.bf16.msra.mxu0 %v1086
      %1811 = vmatpush.bf16.msra.mxu0 %v1058
      %1812 = vmatpush.bf16.msra.mxu0 %v1030
      %1813 = vmatpush.bf16.msra.mxu0 %v1002
      %1814 = vmatmul.bf16.gmra.mxu0 %v1341
      %v1815 = vpop.f32.mrf.mxu0
      %v1816 = vadd.f32 0.0, %v1815
      %v1817 = vpop.f32.mrf.mxu0
      %v1818 = vadd.f32 0.0, %v1817
      %1819 = vdwg.mxu0
      %p1820 = scmp.eq.s32.totalorder %s15, 0
      // Predicated region
      $region37: #{dqn_forward.3} parent=35 // pred_check
        %p1821 = pneg %p1820
      $region38: #{dqn_forward.3} parent=35 // pred_check_branch
        %1823 = sbr.rel (%p1821) target = $region40
      $region39: #{dqn_forward.3} parent=35 // pred_region
        %1824 = vst [vmem:[#allocation2] sm:$0xff] %v1438
        %1825 = vst [vmem:[#allocation2 + $0x8] sm:$0xff] %v1452
        %1826 = vst [vmem:[#allocation2 + $0x10] sm:$0xff] %v1466
        %1827 = vst [vmem:[#allocation2 + $0x18] sm:$0xff] %v1480
        %1828 = vst [vmem:[#allocation2 + $0x20] sm:$0xff] %v1494
        %1829 = vst [vmem:[#allocation2 + $0x28] sm:$0xff] %v1508
        %1830 = vst [vmem:[#allocation2 + $0x30] sm:$0xff] %v1522
        %1831 = vst [vmem:[#allocation2 + $0x38] sm:$0xff] %v1536
        %1832 = vst [vmem:[#allocation2 + $0x40] sm:$0xff] %v1550
        %1833 = vst [vmem:[#allocation2 + $0x48] sm:$0xff] %v1564
        %1834 = vst [vmem:[#allocation2 + $0x50] sm:$0xff] %v1578
        %1835 = vst [vmem:[#allocation2 + $0x58] sm:$0xff] %v1592
        %1836 = vst [vmem:[#allocation2 + $0x60] sm:$0xff] %v1606
        %1837 = vst [vmem:[#allocation2 + $0x68] sm:$0xff] %v1620
        %1838 = vst [vmem:[#allocation2 + $0x70] sm:$0xff] %v1634
        %1839 = vst [vmem:[#allocation2 + $0x78] sm:$0xff] %v1648
        %1840 = vst [vmem:[#allocation2 + $0x80] sm:$0xff] %v1662
        %1841 = vst [vmem:[#allocation2 + $0x88] sm:$0xff] %v1676
        %1842 = vst [vmem:[#allocation2 + $0x90] sm:$0xff] %v1690
        %1843 = vst [vmem:[#allocation2 + $0x98] sm:$0xff] %v1704
        %1844 = vst [vmem:[#allocation2 + $0xa0] sm:$0xff] %v1718
        %1845 = vst [vmem:[#allocation2 + $0xa8] sm:$0xff] %v1732
        %1846 = vst [vmem:[#allocation2 + $0xb0] sm:$0xff] %v1746
        %1847 = vst [vmem:[#allocation2 + $0xb8] sm:$0xff] %v1760
        %1848 = vst [vmem:[#allocation2 + $0xc0] sm:$0xff] %v1774
        %1849 = vst [vmem:[#allocation2 + $0xc8] sm:$0xff] %v1788
        %1850 = vst [vmem:[#allocation2 + $0xd0] sm:$0xff] %v1802
        %1851 = vst [vmem:[#allocation2 + $0xd8] sm:$0xff] %v1816
        %1852 = vst [vmem:[#allocation2 + $0xe0] sm:$0xff] %v1440
        %1853 = vst [vmem:[#allocation2 + $0xe8] sm:$0xff] %v1454
        %1854 = vst [vmem:[#allocation2 + $0xf0] sm:$0xff] %v1468
        %1855 = vst [vmem:[#allocation2 + $0xf8] sm:$0xff] %v1482
        %1856 = vst [vmem:[#allocation2 + $0x100] sm:$0xff] %v1496
        %1857 = vst [vmem:[#allocation2 + $0x108] sm:$0xff] %v1510
        %1858 = vst [vmem:[#allocation2 + $0x110] sm:$0xff] %v1524
        %1859 = vst [vmem:[#allocation2 + $0x118] sm:$0xff] %v1538
        %1860 = vst [vmem:[#allocation2 + $0x120] sm:$0xff] %v1552
        %1861 = vst [vmem:[#allocation2 + $0x128] sm:$0xff] %v1566
        %1862 = vst [vmem:[#allocation2 + $0x130] sm:$0xff] %v1580
        %1863 = vst [vmem:[#allocation2 + $0x138] sm:$0xff] %v1594
        %1864 = vst [vmem:[#allocation2 + $0x140] sm:$0xff] %v1608
        %1865 = vst [vmem:[#allocation2 + $0x148] sm:$0xff] %v1622
        %1866 = vst [vmem:[#allocation2 + $0x150] sm:$0xff] %v1636
        %1867 = vst [vmem:[#allocation2 + $0x158] sm:$0xff] %v1650
        %1868 = vst [vmem:[#allocation2 + $0x160] sm:$0xff] %v1664
        %1869 = vst [vmem:[#allocation2 + $0x168] sm:$0xff] %v1678
        %1870 = vst [vmem:[#allocation2 + $0x170] sm:$0xff] %v1692
        %1871 = vst [vmem:[#allocation2 + $0x178] sm:$0xff] %v1706
        %1872 = vst [vmem:[#allocation2 + $0x180] sm:$0xff] %v1720
        %1873 = vst [vmem:[#allocation2 + $0x188] sm:$0xff] %v1734
        %1874 = vst [vmem:[#allocation2 + $0x190] sm:$0xff] %v1748
        %1875 = vst [vmem:[#allocation2 + $0x198] sm:$0xff] %v1762
        %1876 = vst [vmem:[#allocation2 + $0x1a0] sm:$0xff] %v1776
        %1877 = vst [vmem:[#allocation2 + $0x1a8] sm:$0xff] %v1790
        %1878 = vst [vmem:[#allocation2 + $0x1b0] sm:$0xff] %v1804
        %1879 = vst [vmem:[#allocation2 + $0x1b8] sm:$0xff] %v1818
        %1880 = vst [vmem:[#allocation3] sm:$0xff] %v1438
        %1881 = vst [vmem:[#allocation3 + $0x8] sm:$0xff] %v1452
        %1882 = vst [vmem:[#allocation3 + $0x10] sm:$0xff] %v1466
        %1883 = vst [vmem:[#allocation3 + $0x18] sm:$0xff] %v1480
        %1884 = vst [vmem:[#allocation3 + $0x20] sm:$0xff] %v1494
        %1885 = vst [vmem:[#allocation3 + $0x28] sm:$0xff] %v1508
        %1886 = vst [vmem:[#allocation3 + $0x30] sm:$0xff] %v1522
        %1887 = vst [vmem:[#allocation3 + $0x38] sm:$0xff] %v1536
        %1888 = vst [vmem:[#allocation3 + $0x40] sm:$0xff] %v1550
        %1889 = vst [vmem:[#allocation3 + $0x48] sm:$0xff] %v1564
        %1890 = vst [vmem:[#allocation3 + $0x50] sm:$0xff] %v1578
        %1891 = vst [vmem:[#allocation3 + $0x58] sm:$0xff] %v1592
        %1892 = vst [vmem:[#allocation3 + $0x60] sm:$0xff] %v1606
        %1893 = vst [vmem:[#allocation3 + $0x68] sm:$0xff] %v1620
        %1894 = vst [vmem:[#allocation3 + $0x70] sm:$0xff] %v1634
        %1895 = vst [vmem:[#allocation3 + $0x78] sm:$0xff] %v1648
        %1896 = vst [vmem:[#allocation3 + $0x80] sm:$0xff] %v1662
        %1897 = vst [vmem:[#allocation3 + $0x88] sm:$0xff] %v1676
        %1898 = vst [vmem:[#allocation3 + $0x90] sm:$0xff] %v1690
        %1899 = vst [vmem:[#allocation3 + $0x98] sm:$0xff] %v1704
        %1900 = vst [vmem:[#allocation3 + $0xa0] sm:$0xff] %v1718
        %1901 = vst [vmem:[#allocation3 + $0xa8] sm:$0xff] %v1732
        %1902 = vst [vmem:[#allocation3 + $0xb0] sm:$0xff] %v1746
        %1903 = vst [vmem:[#allocation3 + $0xb8] sm:$0xff] %v1760
        %1904 = vst [vmem:[#allocation3 + $0xc0] sm:$0xff] %v1774
        %1905 = vst [vmem:[#allocation3 + $0xc8] sm:$0xff] %v1788
        %1906 = vst [vmem:[#allocation3 + $0xd0] sm:$0xff] %v1802
        %1907 = vst [vmem:[#allocation3 + $0xd8] sm:$0xff] %v1816
        %1908 = vst [vmem:[#allocation3 + $0xe0] sm:$0xff] %v1440
        %1909 = vst [vmem:[#allocation3 + $0xe8] sm:$0xff] %v1454
        %1910 = vst [vmem:[#allocation3 + $0xf0] sm:$0xff] %v1468
        %1911 = vst [vmem:[#allocation3 + $0xf8] sm:$0xff] %v1482
        %1912 = vst [vmem:[#allocation3 + $0x100] sm:$0xff] %v1496
        %1913 = vst [vmem:[#allocation3 + $0x108] sm:$0xff] %v1510
        %1914 = vst [vmem:[#allocation3 + $0x110] sm:$0xff] %v1524
        %1915 = vst [vmem:[#allocation3 + $0x118] sm:$0xff] %v1538
        %1916 = vst [vmem:[#allocation3 + $0x120] sm:$0xff] %v1552
        %1917 = vst [vmem:[#allocation3 + $0x128] sm:$0xff] %v1566
        %1918 = vst [vmem:[#allocation3 + $0x130] sm:$0xff] %v1580
        %1919 = vst [vmem:[#allocation3 + $0x138] sm:$0xff] %v1594
        %1920 = vst [vmem:[#allocation3 + $0x140] sm:$0xff] %v1608
        %1921 = vst [vmem:[#allocation3 + $0x148] sm:$0xff] %v1622
        %1922 = vst [vmem:[#allocation3 + $0x150] sm:$0xff] %v1636
        %1923 = vst [vmem:[#allocation3 + $0x158] sm:$0xff] %v1650
        %1924 = vst [vmem:[#allocation3 + $0x160] sm:$0xff] %v1664
        %1925 = vst [vmem:[#allocation3 + $0x168] sm:$0xff] %v1678
        %1926 = vst [vmem:[#allocation3 + $0x170] sm:$0xff] %v1692
        %1927 = vst [vmem:[#allocation3 + $0x178] sm:$0xff] %v1706
        %1928 = vst [vmem:[#allocation3 + $0x180] sm:$0xff] %v1720
        %1929 = vst [vmem:[#allocation3 + $0x188] sm:$0xff] %v1734
        %1930 = vst [vmem:[#allocation3 + $0x190] sm:$0xff] %v1748
        %1931 = vst [vmem:[#allocation3 + $0x198] sm:$0xff] %v1762
        %1932 = vst [vmem:[#allocation3 + $0x1a0] sm:$0xff] %v1776
        %1933 = vst [vmem:[#allocation3 + $0x1a8] sm:$0xff] %v1790
        %1934 = vst [vmem:[#allocation3 + $0x1b0] sm:$0xff] %v1804
        %1935 = vst [vmem:[#allocation3 + $0x1b8] sm:$0xff] %v1818
        %vm1936 = vcmask 7168
        %1937 = vst.msk [vmem:[#allocation4] sm:$0xff] %vm1936, 0.0
        %1938 = vst.msk [vmem:[#allocation4 + $0x8] sm:$0xff] %vm1936, 0.0
        %1939 = vst.msk [vmem:[#allocation5] sm:$0xff] %vm1936, 0.0
        %1940 = vst.msk [vmem:[#allocation5 + $0x8] sm:$0xff] %vm1936, 0.0
      $region40: #{dqn_forward.3} parent=35 // pred_fallthru
        _
      %p1941 = scmp.gt.s32.totalorder %s15, 0
      // Predicated region
      $region41: #{dqn_forward.3} parent=35 // pred_check
        %p1942 = pneg %p1941
      $region42: #{dqn_forward.3} parent=35 // pred_check_branch
        %1944 = sbr.rel (%p1942) target = $region44
      $region43: #{dqn_forward.3} parent=35 // pred_region
        %v1945 = vld [vmem:[#allocation2] sm:$0xff]
        %v1946 = vld [vmem:[#allocation2 + $0x8] sm:$0xff]
        %v1947 = vld [vmem:[#allocation2 + $0x10] sm:$0xff]
        %v1948 = vld [vmem:[#allocation2 + $0x18] sm:$0xff]
        %v1949 = vld [vmem:[#allocation2 + $0x20] sm:$0xff]
        %v1950 = vld [vmem:[#allocation2 + $0x28] sm:$0xff]
        %v1951 = vld [vmem:[#allocation2 + $0x30] sm:$0xff]
        %v1952 = vld [vmem:[#allocation2 + $0x38] sm:$0xff]
        %v1953 = vld [vmem:[#allocation2 + $0x40] sm:$0xff]
        %v1954 = vld [vmem:[#allocation2 + $0x48] sm:$0xff]
        %v1955 = vld [vmem:[#allocation2 + $0x50] sm:$0xff]
        %v1956 = vld [vmem:[#allocation2 + $0x58] sm:$0xff]
        %v1957 = vld [vmem:[#allocation2 + $0x60] sm:$0xff]
        %v1958 = vld [vmem:[#allocation2 + $0x68] sm:$0xff]
        %v1959 = vld [vmem:[#allocation2 + $0x70] sm:$0xff]
        %v1960 = vld [vmem:[#allocation2 + $0x78] sm:$0xff]
        %v1961 = vld [vmem:[#allocation2 + $0x80] sm:$0xff]
        %v1962 = vld [vmem:[#allocation2 + $0x88] sm:$0xff]
        %v1963 = vld [vmem:[#allocation2 + $0x90] sm:$0xff]
        %v1964 = vld [vmem:[#allocation2 + $0x98] sm:$0xff]
        %v1965 = vld [vmem:[#allocation2 + $0xa0] sm:$0xff]
        %v1966 = vld [vmem:[#allocation2 + $0xa8] sm:$0xff]
        %v1967 = vld [vmem:[#allocation2 + $0xb0] sm:$0xff]
        %v1968 = vld [vmem:[#allocation2 + $0xb8] sm:$0xff]
        %v1969 = vld [vmem:[#allocation2 + $0xc0] sm:$0xff]
        %v1970 = vld [vmem:[#allocation2 + $0xc8] sm:$0xff]
        %v1971 = vld [vmem:[#allocation2 + $0xd0] sm:$0xff]
        %v1972 = vld [vmem:[#allocation2 + $0xd8] sm:$0xff]
        %v1973 = vld [vmem:[#allocation2 + $0xe0] sm:$0xff]
        %v1974 = vld [vmem:[#allocation2 + $0xe8] sm:$0xff]
        %v1975 = vld [vmem:[#allocation2 + $0xf0] sm:$0xff]
        %v1976 = vld [vmem:[#allocation2 + $0xf8] sm:$0xff]
        %v1977 = vld [vmem:[#allocation2 + $0x100] sm:$0xff]
        %v1978 = vld [vmem:[#allocation2 + $0x108] sm:$0xff]
        %v1979 = vld [vmem:[#allocation2 + $0x110] sm:$0xff]
        %v1980 = vld [vmem:[#allocation2 + $0x118] sm:$0xff]
        %v1981 = vld [vmem:[#allocation2 + $0x120] sm:$0xff]
        %v1982 = vld [vmem:[#allocation2 + $0x128] sm:$0xff]
        %v1983 = vld [vmem:[#allocation2 + $0x130] sm:$0xff]
        %v1984 = vld [vmem:[#allocation2 + $0x138] sm:$0xff]
        %v1985 = vld [vmem:[#allocation2 + $0x140] sm:$0xff]
        %v1986 = vld [vmem:[#allocation2 + $0x148] sm:$0xff]
        %v1987 = vld [vmem:[#allocation2 + $0x150] sm:$0xff]
        %v1988 = vld [vmem:[#allocation2 + $0x158] sm:$0xff]
        %v1989 = vld [vmem:[#allocation2 + $0x160] sm:$0xff]
        %v1990 = vld [vmem:[#allocation2 + $0x168] sm:$0xff]
        %v1991 = vld [vmem:[#allocation2 + $0x170] sm:$0xff]
        %v1992 = vld [vmem:[#allocation2 + $0x178] sm:$0xff]
        %v1993 = vld [vmem:[#allocation2 + $0x180] sm:$0xff]
        %v1994 = vld [vmem:[#allocation2 + $0x188] sm:$0xff]
        %v1995 = vld [vmem:[#allocation2 + $0x190] sm:$0xff]
        %v1996 = vld [vmem:[#allocation2 + $0x198] sm:$0xff]
        %v1997 = vld [vmem:[#allocation2 + $0x1a0] sm:$0xff]
        %v1998 = vld [vmem:[#allocation2 + $0x1a8] sm:$0xff]
        %v1999 = vld [vmem:[#allocation2 + $0x1b0] sm:$0xff]
        %v2000 = vld [vmem:[#allocation2 + $0x1b8] sm:$0xff]
        %v2001 = vmax.f32 %v1945, %v1438
        %v2002 = vmax.f32 %v1946, %v1452
        %v2003 = vmax.f32 %v1947, %v1466
        %v2004 = vmax.f32 %v1948, %v1480
        %v2005 = vmax.f32 %v1949, %v1494
        %v2006 = vmax.f32 %v1950, %v1508
        %v2007 = vmax.f32 %v1951, %v1522
        %v2008 = vmax.f32 %v1952, %v1536
        %v2009 = vmax.f32 %v1953, %v1550
        %v2010 = vmax.f32 %v1954, %v1564
        %v2011 = vmax.f32 %v1955, %v1578
        %v2012 = vmax.f32 %v1956, %v1592
        %v2013 = vmax.f32 %v1957, %v1606
        %v2014 = vmax.f32 %v1958, %v1620
        %v2015 = vmax.f32 %v1959, %v1634
        %v2016 = vmax.f32 %v1960, %v1648
        %v2017 = vmax.f32 %v1961, %v1662
        %v2018 = vmax.f32 %v1962, %v1676
        %v2019 = vmax.f32 %v1963, %v1690
        %v2020 = vmax.f32 %v1964, %v1704
        %v2021 = vmax.f32 %v1965, %v1718
        %v2022 = vmax.f32 %v1966, %v1732
        %v2023 = vmax.f32 %v1967, %v1746
        %v2024 = vmax.f32 %v1968, %v1760
        %v2025 = vmax.f32 %v1969, %v1774
        %v2026 = vmax.f32 %v1970, %v1788
        %v2027 = vmax.f32 %v1971, %v1802
        %v2028 = vmax.f32 %v1972, %v1816
        %v2029 = vmax.f32 %v1973, %v1440
        %v2030 = vmax.f32 %v1974, %v1454
        %v2031 = vmax.f32 %v1975, %v1468
        %v2032 = vmax.f32 %v1976, %v1482
        %v2033 = vmax.f32 %v1977, %v1496
        %v2034 = vmax.f32 %v1978, %v1510
        %v2035 = vmax.f32 %v1979, %v1524
        %v2036 = vmax.f32 %v1980, %v1538
        %v2037 = vmax.f32 %v1981, %v1552
        %v2038 = vmax.f32 %v1982, %v1566
        %v2039 = vmax.f32 %v1983, %v1580
        %v2040 = vmax.f32 %v1984, %v1594
        %v2041 = vmax.f32 %v1985, %v1608
        %v2042 = vmax.f32 %v1986, %v1622
        %v2043 = vmax.f32 %v1987, %v1636
        %v2044 = vmax.f32 %v1988, %v1650
        %v2045 = vmax.f32 %v1989, %v1664
        %v2046 = vmax.f32 %v1990, %v1678
        %v2047 = vmax.f32 %v1991, %v1692
        %v2048 = vmax.f32 %v1992, %v1706
        %v2049 = vmax.f32 %v1993, %v1720
        %v2050 = vmax.f32 %v1994, %v1734
        %v2051 = vmax.f32 %v1995, %v1748
        %v2052 = vmax.f32 %v1996, %v1762
        %v2053 = vmax.f32 %v1997, %v1776
        %v2054 = vmax.f32 %v1998, %v1790
        %v2055 = vmax.f32 %v1999, %v1804
        %v2056 = vmax.f32 %v2000, %v1818
        %2057 = vst [vmem:[#allocation2] sm:$0xff] %v2001
        %2058 = vst [vmem:[#allocation2 + $0x8] sm:$0xff] %v2002
        %2059 = vst [vmem:[#allocation2 + $0x10] sm:$0xff] %v2003
        %2060 = vst [vmem:[#allocation2 + $0x18] sm:$0xff] %v2004
        %2061 = vst [vmem:[#allocation2 + $0x20] sm:$0xff] %v2005
        %2062 = vst [vmem:[#allocation2 + $0x28] sm:$0xff] %v2006
        %2063 = vst [vmem:[#allocation2 + $0x30] sm:$0xff] %v2007
        %2064 = vst [vmem:[#allocation2 + $0x38] sm:$0xff] %v2008
        %2065 = vst [vmem:[#allocation2 + $0x40] sm:$0xff] %v2009
        %2066 = vst [vmem:[#allocation2 + $0x48] sm:$0xff] %v2010
        %2067 = vst [vmem:[#allocation2 + $0x50] sm:$0xff] %v2011
        %2068 = vst [vmem:[#allocation2 + $0x58] sm:$0xff] %v2012
        %2069 = vst [vmem:[#allocation2 + $0x60] sm:$0xff] %v2013
        %2070 = vst [vmem:[#allocation2 + $0x68] sm:$0xff] %v2014
        %2071 = vst [vmem:[#allocation2 + $0x70] sm:$0xff] %v2015
        %2072 = vst [vmem:[#allocation2 + $0x78] sm:$0xff] %v2016
        %2073 = vst [vmem:[#allocation2 + $0x80] sm:$0xff] %v2017
        %2074 = vst [vmem:[#allocation2 + $0x88] sm:$0xff] %v2018
        %2075 = vst [vmem:[#allocation2 + $0x90] sm:$0xff] %v2019
        %2076 = vst [vmem:[#allocation2 + $0x98] sm:$0xff] %v2020
        %2077 = vst [vmem:[#allocation2 + $0xa0] sm:$0xff] %v2021
        %2078 = vst [vmem:[#allocation2 + $0xa8] sm:$0xff] %v2022
        %2079 = vst [vmem:[#allocation2 + $0xb0] sm:$0xff] %v2023
        %2080 = vst [vmem:[#allocation2 + $0xb8] sm:$0xff] %v2024
        %2081 = vst [vmem:[#allocation2 + $0xc0] sm:$0xff] %v2025
        %2082 = vst [vmem:[#allocation2 + $0xc8] sm:$0xff] %v2026
        %2083 = vst [vmem:[#allocation2 + $0xd0] sm:$0xff] %v2027
        %2084 = vst [vmem:[#allocation2 + $0xd8] sm:$0xff] %v2028
        %2085 = vst [vmem:[#allocation2 + $0xe0] sm:$0xff] %v2029
        %2086 = vst [vmem:[#allocation2 + $0xe8] sm:$0xff] %v2030
        %2087 = vst [vmem:[#allocation2 + $0xf0] sm:$0xff] %v2031
        %2088 = vst [vmem:[#allocation2 + $0xf8] sm:$0xff] %v2032
        %2089 = vst [vmem:[#allocation2 + $0x100] sm:$0xff] %v2033
        %2090 = vst [vmem:[#allocation2 + $0x108] sm:$0xff] %v2034
        %2091 = vst [vmem:[#allocation2 + $0x110] sm:$0xff] %v2035
        %2092 = vst [vmem:[#allocation2 + $0x118] sm:$0xff] %v2036
        %2093 = vst [vmem:[#allocation2 + $0x120] sm:$0xff] %v2037
        %2094 = vst [vmem:[#allocation2 + $0x128] sm:$0xff] %v2038
        %2095 = vst [vmem:[#allocation2 + $0x130] sm:$0xff] %v2039
        %2096 = vst [vmem:[#allocation2 + $0x138] sm:$0xff] %v2040
        %2097 = vst [vmem:[#allocation2 + $0x140] sm:$0xff] %v2041
        %2098 = vst [vmem:[#allocation2 + $0x148] sm:$0xff] %v2042
        %2099 = vst [vmem:[#allocation2 + $0x150] sm:$0xff] %v2043
        %2100 = vst [vmem:[#allocation2 + $0x158] sm:$0xff] %v2044
        %2101 = vst [vmem:[#allocation2 + $0x160] sm:$0xff] %v2045
        %2102 = vst [vmem:[#allocation2 + $0x168] sm:$0xff] %v2046
        %2103 = vst [vmem:[#allocation2 + $0x170] sm:$0xff] %v2047
        %2104 = vst [vmem:[#allocation2 + $0x178] sm:$0xff] %v2048
        %2105 = vst [vmem:[#allocation2 + $0x180] sm:$0xff] %v2049
        %2106 = vst [vmem:[#allocation2 + $0x188] sm:$0xff] %v2050
        %2107 = vst [vmem:[#allocation2 + $0x190] sm:$0xff] %v2051
        %2108 = vst [vmem:[#allocation2 + $0x198] sm:$0xff] %v2052
        %2109 = vst [vmem:[#allocation2 + $0x1a0] sm:$0xff] %v2053
        %2110 = vst [vmem:[#allocation2 + $0x1a8] sm:$0xff] %v2054
        %2111 = vst [vmem:[#allocation2 + $0x1b0] sm:$0xff] %v2055
        %2112 = vst [vmem:[#allocation2 + $0x1b8] sm:$0xff] %v2056
        %v2113 = vld [vmem:[#allocation3] sm:$0xff]
        %v2114 = vld [vmem:[#allocation3 + $0x8] sm:$0xff]
        %v2115 = vld [vmem:[#allocation3 + $0x10] sm:$0xff]
        %v2116 = vld [vmem:[#allocation3 + $0x18] sm:$0xff]
        %v2117 = vld [vmem:[#allocation3 + $0x20] sm:$0xff]
        %v2118 = vld [vmem:[#allocation3 + $0x28] sm:$0xff]
        %v2119 = vld [vmem:[#allocation3 + $0x30] sm:$0xff]
        %v2120 = vld [vmem:[#allocation3 + $0x38] sm:$0xff]
        %v2121 = vld [vmem:[#allocation3 + $0x40] sm:$0xff]
        %v2122 = vld [vmem:[#allocation3 + $0x48] sm:$0xff]
        %v2123 = vld [vmem:[#allocation3 + $0x50] sm:$0xff]
        %v2124 = vld [vmem:[#allocation3 + $0x58] sm:$0xff]
        %v2125 = vld [vmem:[#allocation3 + $0x60] sm:$0xff]
        %v2126 = vld [vmem:[#allocation3 + $0x68] sm:$0xff]
        %v2127 = vld [vmem:[#allocation3 + $0x70] sm:$0xff]
        %v2128 = vld [vmem:[#allocation3 + $0x78] sm:$0xff]
        %v2129 = vld [vmem:[#allocation3 + $0x80] sm:$0xff]
        %v2130 = vld [vmem:[#allocation3 + $0x88] sm:$0xff]
        %v2131 = vld [vmem:[#allocation3 + $0x90] sm:$0xff]
        %v2132 = vld [vmem:[#allocation3 + $0x98] sm:$0xff]
        %v2133 = vld [vmem:[#allocation3 + $0xa0] sm:$0xff]
        %v2134 = vld [vmem:[#allocation3 + $0xa8] sm:$0xff]
        %v2135 = vld [vmem:[#allocation3 + $0xb0] sm:$0xff]
        %v2136 = vld [vmem:[#allocation3 + $0xb8] sm:$0xff]
        %v2137 = vld [vmem:[#allocation3 + $0xc0] sm:$0xff]
        %v2138 = vld [vmem:[#allocation3 + $0xc8] sm:$0xff]
        %v2139 = vld [vmem:[#allocation3 + $0xd0] sm:$0xff]
        %v2140 = vld [vmem:[#allocation3 + $0xd8] sm:$0xff]
        %v2141 = vld [vmem:[#allocation3 + $0xe0] sm:$0xff]
        %v2142 = vld [vmem:[#allocation3 + $0xe8] sm:$0xff]
        %v2143 = vld [vmem:[#allocation3 + $0xf0] sm:$0xff]
        %v2144 = vld [vmem:[#allocation3 + $0xf8] sm:$0xff]
        %v2145 = vld [vmem:[#allocation3 + $0x100] sm:$0xff]
        %v2146 = vld [vmem:[#allocation3 + $0x108] sm:$0xff]
        %v2147 = vld [vmem:[#allocation3 + $0x110] sm:$0xff]
        %v2148 = vld [vmem:[#allocation3 + $0x118] sm:$0xff]
        %v2149 = vld [vmem:[#allocation3 + $0x120] sm:$0xff]
        %v2150 = vld [vmem:[#allocation3 + $0x128] sm:$0xff]
        %v2151 = vld [vmem:[#allocation3 + $0x130] sm:$0xff]
        %v2152 = vld [vmem:[#allocation3 + $0x138] sm:$0xff]
        %v2153 = vld [vmem:[#allocation3 + $0x140] sm:$0xff]
        %v2154 = vld [vmem:[#allocation3 + $0x148] sm:$0xff]
        %v2155 = vld [vmem:[#allocation3 + $0x150] sm:$0xff]
        %v2156 = vld [vmem:[#allocation3 + $0x158] sm:$0xff]
        %v2157 = vld [vmem:[#allocation3 + $0x160] sm:$0xff]
        %v2158 = vld [vmem:[#allocation3 + $0x168] sm:$0xff]
        %v2159 = vld [vmem:[#allocation3 + $0x170] sm:$0xff]
        %v2160 = vld [vmem:[#allocation3 + $0x178] sm:$0xff]
        %v2161 = vld [vmem:[#allocation3 + $0x180] sm:$0xff]
        %v2162 = vld [vmem:[#allocation3 + $0x188] sm:$0xff]
        %v2163 = vld [vmem:[#allocation3 + $0x190] sm:$0xff]
        %v2164 = vld [vmem:[#allocation3 + $0x198] sm:$0xff]
        %v2165 = vld [vmem:[#allocation3 + $0x1a0] sm:$0xff]
        %v2166 = vld [vmem:[#allocation3 + $0x1a8] sm:$0xff]
        %v2167 = vld [vmem:[#allocation3 + $0x1b0] sm:$0xff]
        %v2168 = vld [vmem:[#allocation3 + $0x1b8] sm:$0xff]
        %v2169 = vmin.f32 %v2113, %v1438
        %v2170 = vmin.f32 %v2114, %v1452
        %v2171 = vmin.f32 %v2115, %v1466
        %v2172 = vmin.f32 %v2116, %v1480
        %v2173 = vmin.f32 %v2117, %v1494
        %v2174 = vmin.f32 %v2118, %v1508
        %v2175 = vmin.f32 %v2119, %v1522
        %v2176 = vmin.f32 %v2120, %v1536
        %v2177 = vmin.f32 %v2121, %v1550
        %v2178 = vmin.f32 %v2122, %v1564
        %v2179 = vmin.f32 %v2123, %v1578
        %v2180 = vmin.f32 %v2124, %v1592
        %v2181 = vmin.f32 %v2125, %v1606
        %v2182 = vmin.f32 %v2126, %v1620
        %v2183 = vmin.f32 %v2127, %v1634
        %v2184 = vmin.f32 %v2128, %v1648
        %v2185 = vmin.f32 %v2129, %v1662
        %v2186 = vmin.f32 %v2130, %v1676
        %v2187 = vmin.f32 %v2131, %v1690
        %v2188 = vmin.f32 %v2132, %v1704
        %v2189 = vmin.f32 %v2133, %v1718
        %v2190 = vmin.f32 %v2134, %v1732
        %v2191 = vmin.f32 %v2135, %v1746
        %v2192 = vmin.f32 %v2136, %v1760
        %v2193 = vmin.f32 %v2137, %v1774
        %v2194 = vmin.f32 %v2138, %v1788
        %v2195 = vmin.f32 %v2139, %v1802
        %v2196 = vmin.f32 %v2140, %v1816
        %v2197 = vmin.f32 %v2141, %v1440
        %v2198 = vmin.f32 %v2142, %v1454
        %v2199 = vmin.f32 %v2143, %v1468
        %v2200 = vmin.f32 %v2144, %v1482
        %v2201 = vmin.f32 %v2145, %v1496
        %v2202 = vmin.f32 %v2146, %v1510
        %v2203 = vmin.f32 %v2147, %v1524
        %v2204 = vmin.f32 %v2148, %v1538
        %v2205 = vmin.f32 %v2149, %v1552
        %v2206 = vmin.f32 %v2150, %v1566
        %v2207 = vmin.f32 %v2151, %v1580
        %v2208 = vmin.f32 %v2152, %v1594
        %v2209 = vmin.f32 %v2153, %v1608
        %v2210 = vmin.f32 %v2154, %v1622
        %v2211 = vmin.f32 %v2155, %v1636
        %v2212 = vmin.f32 %v2156, %v1650
        %v2213 = vmin.f32 %v2157, %v1664
        %v2214 = vmin.f32 %v2158, %v1678
        %v2215 = vmin.f32 %v2159, %v1692
        %v2216 = vmin.f32 %v2160, %v1706
        %v2217 = vmin.f32 %v2161, %v1720
        %v2218 = vmin.f32 %v2162, %v1734
        %v2219 = vmin.f32 %v2163, %v1748
        %v2220 = vmin.f32 %v2164, %v1762
        %v2221 = vmin.f32 %v2165, %v1776
        %v2222 = vmin.f32 %v2166, %v1790
        %v2223 = vmin.f32 %v2167, %v1804
        %v2224 = vmin.f32 %v2168, %v1818
        %2225 = vst [vmem:[#allocation3] sm:$0xff] %v2169
        %2226 = vst [vmem:[#allocation3 + $0x8] sm:$0xff] %v2170
        %2227 = vst [vmem:[#allocation3 + $0x10] sm:$0xff] %v2171
        %2228 = vst [vmem:[#allocation3 + $0x18] sm:$0xff] %v2172
        %2229 = vst [vmem:[#allocation3 + $0x20] sm:$0xff] %v2173
        %2230 = vst [vmem:[#allocation3 + $0x28] sm:$0xff] %v2174
        %2231 = vst [vmem:[#allocation3 + $0x30] sm:$0xff] %v2175
        %2232 = vst [vmem:[#allocation3 + $0x38] sm:$0xff] %v2176
        %2233 = vst [vmem:[#allocation3 + $0x40] sm:$0xff] %v2177
        %2234 = vst [vmem:[#allocation3 + $0x48] sm:$0xff] %v2178
        %2235 = vst [vmem:[#allocation3 + $0x50] sm:$0xff] %v2179
        %2236 = vst [vmem:[#allocation3 + $0x58] sm:$0xff] %v2180
        %2237 = vst [vmem:[#allocation3 + $0x60] sm:$0xff] %v2181
        %2238 = vst [vmem:[#allocation3 + $0x68] sm:$0xff] %v2182
        %2239 = vst [vmem:[#allocation3 + $0x70] sm:$0xff] %v2183
        %2240 = vst [vmem:[#allocation3 + $0x78] sm:$0xff] %v2184
        %2241 = vst [vmem:[#allocation3 + $0x80] sm:$0xff] %v2185
        %2242 = vst [vmem:[#allocation3 + $0x88] sm:$0xff] %v2186
        %2243 = vst [vmem:[#allocation3 + $0x90] sm:$0xff] %v2187
        %2244 = vst [vmem:[#allocation3 + $0x98] sm:$0xff] %v2188
        %2245 = vst [vmem:[#allocation3 + $0xa0] sm:$0xff] %v2189
        %2246 = vst [vmem:[#allocation3 + $0xa8] sm:$0xff] %v2190
        %2247 = vst [vmem:[#allocation3 + $0xb0] sm:$0xff] %v2191
        %2248 = vst [vmem:[#allocation3 + $0xb8] sm:$0xff] %v2192
        %2249 = vst [vmem:[#allocation3 + $0xc0] sm:$0xff] %v2193
        %2250 = vst [vmem:[#allocation3 + $0xc8] sm:$0xff] %v2194
        %2251 = vst [vmem:[#allocation3 + $0xd0] sm:$0xff] %v2195
        %2252 = vst [vmem:[#allocation3 + $0xd8] sm:$0xff] %v2196
        %2253 = vst [vmem:[#allocation3 + $0xe0] sm:$0xff] %v2197
        %2254 = vst [vmem:[#allocation3 + $0xe8] sm:$0xff] %v2198
        %2255 = vst [vmem:[#allocation3 + $0xf0] sm:$0xff] %v2199
        %2256 = vst [vmem:[#allocation3 + $0xf8] sm:$0xff] %v2200
        %2257 = vst [vmem:[#allocation3 + $0x100] sm:$0xff] %v2201
        %2258 = vst [vmem:[#allocation3 + $0x108] sm:$0xff] %v2202
        %2259 = vst [vmem:[#allocation3 + $0x110] sm:$0xff] %v2203
        %2260 = vst [vmem:[#allocation3 + $0x118] sm:$0xff] %v2204
        %2261 = vst [vmem:[#allocation3 + $0x120] sm:$0xff] %v2205
        %2262 = vst [vmem:[#allocation3 + $0x128] sm:$0xff] %v2206
        %2263 = vst [vmem:[#allocation3 + $0x130] sm:$0xff] %v2207
        %2264 = vst [vmem:[#allocation3 + $0x138] sm:$0xff] %v2208
        %2265 = vst [vmem:[#allocation3 + $0x140] sm:$0xff] %v2209
        %2266 = vst [vmem:[#allocation3 + $0x148] sm:$0xff] %v2210
        %2267 = vst [vmem:[#allocation3 + $0x150] sm:$0xff] %v2211
        %2268 = vst [vmem:[#allocation3 + $0x158] sm:$0xff] %v2212
        %2269 = vst [vmem:[#allocation3 + $0x160] sm:$0xff] %v2213
        %2270 = vst [vmem:[#allocation3 + $0x168] sm:$0xff] %v2214
        %2271 = vst [vmem:[#allocation3 + $0x170] sm:$0xff] %v2215
        %2272 = vst [vmem:[#allocation3 + $0x178] sm:$0xff] %v2216
        %2273 = vst [vmem:[#allocation3 + $0x180] sm:$0xff] %v2217
        %2274 = vst [vmem:[#allocation3 + $0x188] sm:$0xff] %v2218
        %2275 = vst [vmem:[#allocation3 + $0x190] sm:$0xff] %v2219
        %2276 = vst [vmem:[#allocation3 + $0x198] sm:$0xff] %v2220
        %2277 = vst [vmem:[#allocation3 + $0x1a0] sm:$0xff] %v2221
        %2278 = vst [vmem:[#allocation3 + $0x1a8] sm:$0xff] %v2222
        %2279 = vst [vmem:[#allocation3 + $0x1b0] sm:$0xff] %v2223
        %2280 = vst [vmem:[#allocation3 + $0x1b8] sm:$0xff] %v2224
      $region44: #{dqn_forward.3} parent=35 // pred_fallthru
        _
      %v2281 = vld [vmem:[#allocation4] sm:$0xff]
      %v2282 = vld [vmem:[#allocation4 + $0x8] sm:$0xff]
      %v2283 = vadd.f32 %v1438, %v1452
      %v2284 = vadd.f32 %v2283, %v1466
      %v2285 = vadd.f32 %v2284, %v1480
      %v2286 = vadd.f32 %v2285, %v1494
      %v2287 = vadd.f32 %v2286, %v1508
      %v2288 = vadd.f32 %v2287, %v1522
      %v2289 = vadd.f32 %v2288, %v1536
      %v2290 = vadd.f32 %v2289, %v1550
      %v2291 = vadd.f32 %v2290, %v1564
      %v2292 = vadd.f32 %v2291, %v1578
      %v2293 = vadd.f32 %v2292, %v1592
      %v2294 = vadd.f32 %v2293, %v1606
      %v2295 = vadd.f32 %v2294, %v1620
      %v2296 = vadd.f32 %v2295, %v1634
      %v2297 = vadd.f32 %v2296, %v1648
      %v2298 = vadd.f32 %v2297, %v1662
      %v2299 = vadd.f32 %v2298, %v1676
      %v2300 = vadd.f32 %v2299, %v1690
      %v2301 = vadd.f32 %v2300, %v1704
      %v2302 = vadd.f32 %v2301, %v1718
      %v2303 = vadd.f32 %v2302, %v1732
      %v2304 = vadd.f32 %v2303, %v1746
      %v2305 = vadd.f32 %v2304, %v1760
      %v2306 = vadd.f32 %v2305, %v1774
      %v2307 = vadd.f32 %v2306, %v1788
      %v2308 = vadd.f32 %v2307, %v1802
      %v2309 = vadd.f32 %v2308, %v1816
      %2310 = vadd.xlane.f32.xlu0 %v2309
      %v2311 = vpop.xlane.xlu0 %2310
      %v2312 = vadd.f32 %v1440, %v1454
      %v2313 = vadd.f32 %v2312, %v1468
      %v2314 = vadd.f32 %v2313, %v1482
      %v2315 = vadd.f32 %v2314, %v1496
      %v2316 = vadd.f32 %v2315, %v1510
      %v2317 = vadd.f32 %v2316, %v1524
      %v2318 = vadd.f32 %v2317, %v1538
      %v2319 = vadd.f32 %v2318, %v1552
      %v2320 = vadd.f32 %v2319, %v1566
      %v2321 = vadd.f32 %v2320, %v1580
      %v2322 = vadd.f32 %v2321, %v1594
      %v2323 = vadd.f32 %v2322, %v1608
      %v2324 = vadd.f32 %v2323, %v1622
      %v2325 = vadd.f32 %v2324, %v1636
      %v2326 = vadd.f32 %v2325, %v1650
      %v2327 = vadd.f32 %v2326, %v1664
      %v2328 = vadd.f32 %v2327, %v1678
      %v2329 = vadd.f32 %v2328, %v1692
      %v2330 = vadd.f32 %v2329, %v1706
      %v2331 = vadd.f32 %v2330, %v1720
      %v2332 = vadd.f32 %v2331, %v1734
      %v2333 = vadd.f32 %v2332, %v1748
      %v2334 = vadd.f32 %v2333, %v1762
      %v2335 = vadd.f32 %v2334, %v1776
      %v2336 = vadd.f32 %v2335, %v1790
      %v2337 = vadd.f32 %v2336, %v1804
      %v2338 = vadd.f32 %v2337, %v1818
      %2339 = vadd.xlane.f32.xlu0 %v2338
      %v2340 = vpop.xlane.xlu0 %2339
      %v2341 = vadd.f32 %v2281, %v2311
      %v2342 = vadd.f32 %v2282, %v2340
      %vm2343 = vcmask 7168
      %2344 = vst.msk [vmem:[#allocation4] sm:$0xff] %vm2343, %v2341
      %2345 = vst.msk [vmem:[#allocation4 + $0x8] sm:$0xff] %vm2343, %v2342
      %v2346 = vld [vmem:[#allocation5] sm:$0xff]
      %v2347 = vld [vmem:[#allocation5 + $0x8] sm:$0xff]
      %v2348 = vmul.f32 %v1438, %v1438
      %v2349 = vmul.f32 %v1452, %v1452
      %v2350 = vmul.f32 %v1466, %v1466
      %v2351 = vmul.f32 %v1480, %v1480
      %v2352 = vmul.f32 %v1494, %v1494
      %v2353 = vmul.f32 %v1508, %v1508
      %v2354 = vmul.f32 %v1522, %v1522
      %v2355 = vmul.f32 %v1536, %v1536
      %v2356 = vmul.f32 %v1550, %v1550
      %v2357 = vmul.f32 %v1564, %v1564
      %v2358 = vmul.f32 %v1578, %v1578
      %v2359 = vmul.f32 %v1592, %v1592
      %v2360 = vmul.f32 %v1606, %v1606
      %v2361 = vmul.f32 %v1620, %v1620
      %v2362 = vmul.f32 %v1634, %v1634
      %v2363 = vmul.f32 %v1648, %v1648
      %v2364 = vmul.f32 %v1662, %v1662
      %v2365 = vmul.f32 %v1676, %v1676
      %v2366 = vmul.f32 %v1690, %v1690
      %v2367 = vmul.f32 %v1704, %v1704
      %v2368 = vmul.f32 %v1718, %v1718
      %v2369 = vmul.f32 %v1732, %v1732
      %v2370 = vmul.f32 %v1746, %v1746
      %v2371 = vmul.f32 %v1760, %v1760
      %v2372 = vmul.f32 %v1774, %v1774
      %v2373 = vmul.f32 %v1788, %v1788
      %v2374 = vmul.f32 %v1802, %v1802
      %v2375 = vmul.f32 %v1816, %v1816
      %v2376 = vmul.f32 %v1440, %v1440
      %v2377 = vmul.f32 %v1454, %v1454
      %v2378 = vmul.f32 %v1468, %v1468
      %v2379 = vmul.f32 %v1482, %v1482
      %v2380 = vmul.f32 %v1496, %v1496
      %v2381 = vmul.f32 %v1510, %v1510
      %v2382 = vmul.f32 %v1524, %v1524
      %v2383 = vmul.f32 %v1538, %v1538
      %v2384 = vmul.f32 %v1552, %v1552
      %v2385 = vmul.f32 %v1566, %v1566
      %v2386 = vmul.f32 %v1580, %v1580
      %v2387 = vmul.f32 %v1594, %v1594
      %v2388 = vmul.f32 %v1608, %v1608
      %v2389 = vmul.f32 %v1622, %v1622
      %v2390 = vmul.f32 %v1636, %v1636
      %v2391 = vmul.f32 %v1650, %v1650
      %v2392 = vmul.f32 %v1664, %v1664
      %v2393 = vmul.f32 %v1678, %v1678
      %v2394 = vmul.f32 %v1692, %v1692
      %v2395 = vmul.f32 %v1706, %v1706
      %v2396 = vmul.f32 %v1720, %v1720
      %v2397 = vmul.f32 %v1734, %v1734
      %v2398 = vmul.f32 %v1748, %v1748
      %v2399 = vmul.f32 %v1762, %v1762
      %v2400 = vmul.f32 %v1776, %v1776
      %v2401 = vmul.f32 %v1790, %v1790
      %v2402 = vmul.f32 %v1804, %v1804
      %v2403 = vmul.f32 %v1818, %v1818
      %v2404 = vadd.f32 %v2348, %v2349
      %v2405 = vadd.f32 %v2404, %v2350
      %v2406 = vadd.f32 %v2405, %v2351
      %v2407 = vadd.f32 %v2406, %v2352
      %v2408 = vadd.f32 %v2407, %v2353
      %v2409 = vadd.f32 %v2408, %v2354
      %v2410 = vadd.f32 %v2409, %v2355
      %v2411 = vadd.f32 %v2410, %v2356
      %v2412 = vadd.f32 %v2411, %v2357
      %v2413 = vadd.f32 %v2412, %v2358
      %v2414 = vadd.f32 %v2413, %v2359
      %v2415 = vadd.f32 %v2414, %v2360
      %v2416 = vadd.f32 %v2415, %v2361
      %v2417 = vadd.f32 %v2416, %v2362
      %v2418 = vadd.f32 %v2417, %v2363
      %v2419 = vadd.f32 %v2418, %v2364
      %v2420 = vadd.f32 %v2419, %v2365
      %v2421 = vadd.f32 %v2420, %v2366
      %v2422 = vadd.f32 %v2421, %v2367
      %v2423 = vadd.f32 %v2422, %v2368
      %v2424 = vadd.f32 %v2423, %v2369
      %v2425 = vadd.f32 %v2424, %v2370
      %v2426 = vadd.f32 %v2425, %v2371
      %v2427 = vadd.f32 %v2426, %v2372
      %v2428 = vadd.f32 %v2427, %v2373
      %v2429 = vadd.f32 %v2428, %v2374
      %v2430 = vadd.f32 %v2429, %v2375
      %2431 = vadd.xlane.f32.xlu0 %v2430
      %v2432 = vpop.xlane.xlu0 %2431
      %v2433 = vadd.f32 %v2376, %v2377
      %v2434 = vadd.f32 %v2433, %v2378
      %v2435 = vadd.f32 %v2434, %v2379
      %v2436 = vadd.f32 %v2435, %v2380
      %v2437 = vadd.f32 %v2436, %v2381
      %v2438 = vadd.f32 %v2437, %v2382
      %v2439 = vadd.f32 %v2438, %v2383
      %v2440 = vadd.f32 %v2439, %v2384
      %v2441 = vadd.f32 %v2440, %v2385
      %v2442 = vadd.f32 %v2441, %v2386
      %v2443 = vadd.f32 %v2442, %v2387
      %v2444 = vadd.f32 %v2443, %v2388
      %v2445 = vadd.f32 %v2444, %v2389
      %v2446 = vadd.f32 %v2445, %v2390
      %v2447 = vadd.f32 %v2446, %v2391
      %v2448 = vadd.f32 %v2447, %v2392
      %v2449 = vadd.f32 %v2448, %v2393
      %v2450 = vadd.f32 %v2449, %v2394
      %v2451 = vadd.f32 %v2450, %v2395
      %v2452 = vadd.f32 %v2451, %v2396
      %v2453 = vadd.f32 %v2452, %v2397
      %v2454 = vadd.f32 %v2453, %v2398
      %v2455 = vadd.f32 %v2454, %v2399
      %v2456 = vadd.f32 %v2455, %v2400
      %v2457 = vadd.f32 %v2456, %v2401
      %v2458 = vadd.f32 %v2457, %v2402
      %v2459 = vadd.f32 %v2458, %v2403
      %2460 = vadd.xlane.f32.xlu0 %v2459
      %v2461 = vpop.xlane.xlu0 %2460
      %v2462 = vadd.f32 %v2346, %v2432
      %v2463 = vadd.f32 %v2347, %v2461
      %2464 = vst.msk [vmem:[#allocation5] sm:$0xff] %vm2343, %v2462
      %2465 = vst.msk [vmem:[#allocation5 + $0x8] sm:$0xff] %vm2343, %v2463
      %p2466 = scmp.eq.s32.totalorder %s15, 3
      // Predicated region
      $region45: #{dqn_forward.3} parent=35 // pred_check
        %p2467 = pneg %p2466
      $region46: #{dqn_forward.3} parent=35 // pred_check_branch
        %2469 = sbr.rel (%p2467) target = $region48
      $region47: #{dqn_forward.3} parent=35 // pred_region
        %v2470 = vld [vmem:[#allocation4] sm:$0xff]
        %v2471 = vld [vmem:[#allocation4 + $0x8] sm:$0xff]
        %v2472 = vmul.f32 %v2470, 7.086168e-05
        %v2473 = vmul.f32 %v2471, 7.086168e-05
        %v2474 = vld [vmem:[#allocation5] sm:$0xff]
        %v2475 = vld [vmem:[#allocation5 + $0x8] sm:$0xff]
        %v2476 = vmul.f32 %v2474, 7.086168e-05
        %v2477 = vmul.f32 %v2475, 7.086168e-05
        %v2478 = vmul.f32 %v2472, %v2472
        %v2479 = vmul.f32 %v2473, %v2473
        %v2480 = vsub.f32 %v2476, %v2478
        %v2481 = vsub.f32 %v2477, %v2479
        %v2482 = vmax.f32 %v2480, 0.0
        %v2483 = vmax.f32 %v2481, 0.0
        %v2484 = vld [vmem:[%s2] sm:$0xff]
        %v2485 = vld [vmem:[%s2 + $0x8] sm:$0xff]
        %v2486 = vadd.f32 %v2482, 1e-05
        %v2487 = vadd.f32 %v2483, 1e-05
        %v2488 = vrsqrt.pop %v2486
        %v2489 = vmul.f32 %v2488, %v2486
        %v2490 = vmul.f32 %v2489, %v2488
        %v2491 = vmul.f32 0.5, %v2490
        %v2492 = vsub.f32 1.5, %v2491
        %v2493 = vmul.f32 %v2488, %v2492
        %vm2494 = vweird.f32 %v2486
        %vm2495 = vweird.f32 %v2488
        %vm2496 = vmor %vm2494, %vm2495
        %v2497 = vsel %vm2496, %v2488, %v2493
        %v2498 = vrsqrt.pop %v2487
        %v2499 = vmul.f32 %v2498, %v2487
        %v2500 = vmul.f32 %v2499, %v2498
        %v2501 = vmul.f32 0.5, %v2500
        %v2502 = vsub.f32 1.5, %v2501
        %v2503 = vmul.f32 %v2498, %v2502
        %vm2504 = vweird.f32 %v2487
        %vm2505 = vweird.f32 %v2498
        %vm2506 = vmor %vm2504, %vm2505
        %v2507 = vsel %vm2506, %v2498, %v2503
        %v2508 = vmul.f32 %v2484, %v2497
        %v2509 = vmul.f32 %v2485, %v2507
        %v2510 = vld [vmem:[%s3] sm:$0xff]
        %v2511 = vld [vmem:[%s3 + $0x8] sm:$0xff]
        %v2512 = vmul.f32 %v2472, %v2508
        %v2513 = vmul.f32 %v2473, %v2509
        %v2514 = vsub.f32 %v2510, %v2512
        %v2515 = vsub.f32 %v2511, %v2513
        %vm2516 = vcmp.ge.f32.partialorder %v2508, 0.0
        %vm2517 = vcmp.ge.f32.partialorder %v2509, 0.0
        %v2518 = vld [vmem:[#allocation2] sm:$0xff]
        %v2519 = vld [vmem:[#allocation2 + $0x8] sm:$0xff]
        %v2520 = vld [vmem:[#allocation2 + $0x10] sm:$0xff]
        %v2521 = vld [vmem:[#allocation2 + $0x18] sm:$0xff]
        %v2522 = vld [vmem:[#allocation2 + $0x20] sm:$0xff]
        %v2523 = vld [vmem:[#allocation2 + $0x28] sm:$0xff]
        %v2524 = vld [vmem:[#allocation2 + $0x30] sm:$0xff]
        %v2525 = vld [vmem:[#allocation2 + $0x38] sm:$0xff]
        %v2526 = vld [vmem:[#allocation2 + $0x40] sm:$0xff]
        %v2527 = vld [vmem:[#allocation2 + $0x48] sm:$0xff]
        %v2528 = vld [vmem:[#allocation2 + $0x50] sm:$0xff]
        %v2529 = vld [vmem:[#allocation2 + $0x58] sm:$0xff]
        %v2530 = vld [vmem:[#allocation2 + $0x60] sm:$0xff]
        %v2531 = vld [vmem:[#allocation2 + $0x68] sm:$0xff]
        %v2532 = vld [vmem:[#allocation2 + $0x70] sm:$0xff]
        %v2533 = vld [vmem:[#allocation2 + $0x78] sm:$0xff]
        %v2534 = vld [vmem:[#allocation2 + $0x80] sm:$0xff]
        %v2535 = vld [vmem:[#allocation2 + $0x88] sm:$0xff]
        %v2536 = vld [vmem:[#allocation2 + $0x90] sm:$0xff]
        %v2537 = vld [vmem:[#allocation2 + $0x98] sm:$0xff]
        %v2538 = vld [vmem:[#allocation2 + $0xa0] sm:$0xff]
        %v2539 = vld [vmem:[#allocation2 + $0xa8] sm:$0xff]
        %v2540 = vld [vmem:[#allocation2 + $0xb0] sm:$0xff]
        %v2541 = vld [vmem:[#allocation2 + $0xb8] sm:$0xff]
        %v2542 = vld [vmem:[#allocation2 + $0xc0] sm:$0xff]
        %v2543 = vld [vmem:[#allocation2 + $0xc8] sm:$0xff]
        %v2544 = vld [vmem:[#allocation2 + $0xd0] sm:$0xff]
        %v2545 = vld [vmem:[#allocation2 + $0xd8] sm:$0xff]
        %v2546 = vld [vmem:[#allocation2 + $0xe0] sm:$0xff]
        %v2547 = vld [vmem:[#allocation2 + $0xe8] sm:$0xff]
        %v2548 = vld [vmem:[#allocation2 + $0xf0] sm:$0xff]
        %v2549 = vld [vmem:[#allocation2 + $0xf8] sm:$0xff]
        %v2550 = vld [vmem:[#allocation2 + $0x100] sm:$0xff]
        %v2551 = vld [vmem:[#allocation2 + $0x108] sm:$0xff]
        %v2552 = vld [vmem:[#allocation2 + $0x110] sm:$0xff]
        %v2553 = vld [vmem:[#allocation2 + $0x118] sm:$0xff]
        %v2554 = vld [vmem:[#allocation2 + $0x120] sm:$0xff]
        %v2555 = vld [vmem:[#allocation2 + $0x128] sm:$0xff]
        %v2556 = vld [vmem:[#allocation2 + $0x130] sm:$0xff]
        %v2557 = vld [vmem:[#allocation2 + $0x138] sm:$0xff]
        %v2558 = vld [vmem:[#allocation2 + $0x140] sm:$0xff]
        %v2559 = vld [vmem:[#allocation2 + $0x148] sm:$0xff]
        %v2560 = vld [vmem:[#allocation2 + $0x150] sm:$0xff]
        %v2561 = vld [vmem:[#allocation2 + $0x158] sm:$0xff]
        %v2562 = vld [vmem:[#allocation2 + $0x160] sm:$0xff]
        %v2563 = vld [vmem:[#allocation2 + $0x168] sm:$0xff]
        %v2564 = vld [vmem:[#allocation2 + $0x170] sm:$0xff]
        %v2565 = vld [vmem:[#allocation2 + $0x178] sm:$0xff]
        %v2566 = vld [vmem:[#allocation2 + $0x180] sm:$0xff]
        %v2567 = vld [vmem:[#allocation2 + $0x188] sm:$0xff]
        %v2568 = vld [vmem:[#allocation2 + $0x190] sm:$0xff]
        %v2569 = vld [vmem:[#allocation2 + $0x198] sm:$0xff]
        %v2570 = vld [vmem:[#allocation2 + $0x1a0] sm:$0xff]
        %v2571 = vld [vmem:[#allocation2 + $0x1a8] sm:$0xff]
        %v2572 = vld [vmem:[#allocation2 + $0x1b0] sm:$0xff]
        %v2573 = vld [vmem:[#allocation2 + $0x1b8] sm:$0xff]
        %v2574 = vld [vmem:[#allocation3] sm:$0xff]
        %v2575 = vld [vmem:[#allocation3 + $0x8] sm:$0xff]
        %v2576 = vld [vmem:[#allocation3 + $0x10] sm:$0xff]
        %v2577 = vld [vmem:[#allocation3 + $0x18] sm:$0xff]
        %v2578 = vld [vmem:[#allocation3 + $0x20] sm:$0xff]
        %v2579 = vld [vmem:[#allocation3 + $0x28] sm:$0xff]
        %v2580 = vld [vmem:[#allocation3 + $0x30] sm:$0xff]
        %v2581 = vld [vmem:[#allocation3 + $0x38] sm:$0xff]
        %v2582 = vld [vmem:[#allocation3 + $0x40] sm:$0xff]
        %v2583 = vld [vmem:[#allocation3 + $0x48] sm:$0xff]
        %v2584 = vld [vmem:[#allocation3 + $0x50] sm:$0xff]
        %v2585 = vld [vmem:[#allocation3 + $0x58] sm:$0xff]
        %v2586 = vld [vmem:[#allocation3 + $0x60] sm:$0xff]
        %v2587 = vld [vmem:[#allocation3 + $0x68] sm:$0xff]
        %v2588 = vld [vmem:[#allocation3 + $0x70] sm:$0xff]
        %v2589 = vld [vmem:[#allocation3 + $0x78] sm:$0xff]
        %v2590 = vld [vmem:[#allocation3 + $0x80] sm:$0xff]
        %v2591 = vld [vmem:[#allocation3 + $0x88] sm:$0xff]
        %v2592 = vld [vmem:[#allocation3 + $0x90] sm:$0xff]
        %v2593 = vld [vmem:[#allocation3 + $0x98] sm:$0xff]
        %v2594 = vld [vmem:[#allocation3 + $0xa0] sm:$0xff]
        %v2595 = vld [vmem:[#allocation3 + $0xa8] sm:$0xff]
        %v2596 = vld [vmem:[#allocation3 + $0xb0] sm:$0xff]
        %v2597 = vld [vmem:[#allocation3 + $0xb8] sm:$0xff]
        %v2598 = vld [vmem:[#allocation3 + $0xc0] sm:$0xff]
        %v2599 = vld [vmem:[#allocation3 + $0xc8] sm:$0xff]
        %v2600 = vld [vmem:[#allocation3 + $0xd0] sm:$0xff]
        %v2601 = vld [vmem:[#allocation3 + $0xd8] sm:$0xff]
        %v2602 = vld [vmem:[#allocation3 + $0xe0] sm:$0xff]
        %v2603 = vld [vmem:[#allocation3 + $0xe8] sm:$0xff]
        %v2604 = vld [vmem:[#allocation3 + $0xf0] sm:$0xff]
        %v2605 = vld [vmem:[#allocation3 + $0xf8] sm:$0xff]
        %v2606 = vld [vmem:[#allocation3 + $0x100] sm:$0xff]
        %v2607 = vld [vmem:[#allocation3 + $0x108] sm:$0xff]
        %v2608 = vld [vmem:[#allocation3 + $0x110] sm:$0xff]
        %v2609 = vld [vmem:[#allocation3 + $0x118] sm:$0xff]
        %v2610 = vld [vmem:[#allocation3 + $0x120] sm:$0xff]
        %v2611 = vld [vmem:[#allocation3 + $0x128] sm:$0xff]
        %v2612 = vld [vmem:[#allocation3 + $0x130] sm:$0xff]
        %v2613 = vld [vmem:[#allocation3 + $0x138] sm:$0xff]
        %v2614 = vld [vmem:[#allocation3 + $0x140] sm:$0xff]
        %v2615 = vld [vmem:[#allocation3 + $0x148] sm:$0xff]
        %v2616 = vld [vmem:[#allocation3 + $0x150] sm:$0xff]
        %v2617 = vld [vmem:[#allocation3 + $0x158] sm:$0xff]
        %v2618 = vld [vmem:[#allocation3 + $0x160] sm:$0xff]
        %v2619 = vld [vmem:[#allocation3 + $0x168] sm:$0xff]
        %v2620 = vld [vmem:[#allocation3 + $0x170] sm:$0xff]
        %v2621 = vld [vmem:[#allocation3 + $0x178] sm:$0xff]
        %v2622 = vld [vmem:[#allocation3 + $0x180] sm:$0xff]
        %v2623 = vld [vmem:[#allocation3 + $0x188] sm:$0xff]
        %v2624 = vld [vmem:[#allocation3 + $0x190] sm:$0xff]
        %v2625 = vld [vmem:[#allocation3 + $0x198] sm:$0xff]
        %v2626 = vld [vmem:[#allocation3 + $0x1a0] sm:$0xff]
        %v2627 = vld [vmem:[#allocation3 + $0x1a8] sm:$0xff]
        %v2628 = vld [vmem:[#allocation3 + $0x1b0] sm:$0xff]
        %v2629 = vld [vmem:[#allocation3 + $0x1b8] sm:$0xff]
        %v2630 = vsel %vm2516, 1, 0
        %v2631 = vsel %vm2517, 1, 0
        %2632 = vset.pattern.permute.xlu0 0
        %2633 = vperm.xlu0 %2632, %v2630
        %v2634 = vpop.permute.xlu0 %2633
        %2635 = vset.pattern.permute.xlu0 0
        %2636 = vperm.xlu0 %2635, %v2631
        %v2637 = vpop.permute.xlu0 %2636
        %vm2638 = vcmp.eq.s32.totalorder %v2634, 1
        %vm2639 = vcmp.eq.s32.totalorder %v2637, 1
        %v2640 = vsel %vm2638, %v2518, %v2574
        %v2641 = vsel %vm2638, %v2519, %v2575
        %v2642 = vsel %vm2638, %v2520, %v2576
        %v2643 = vsel %vm2638, %v2521, %v2577
        %v2644 = vsel %vm2638, %v2522, %v2578
        %v2645 = vsel %vm2638, %v2523, %v2579
        %v2646 = vsel %vm2638, %v2524, %v2580
        %v2647 = vsel %vm2638, %v2525, %v2581
        %v2648 = vsel %vm2638, %v2526, %v2582
        %v2649 = vsel %vm2638, %v2527, %v2583
        %v2650 = vsel %vm2638, %v2528, %v2584
        %v2651 = vsel %vm2638, %v2529, %v2585
        %v2652 = vsel %vm2638, %v2530, %v2586
        %v2653 = vsel %vm2638, %v2531, %v2587
        %v2654 = vsel %vm2638, %v2532, %v2588
        %v2655 = vsel %vm2638, %v2533, %v2589
        %v2656 = vsel %vm2638, %v2534, %v2590
        %v2657 = vsel %vm2638, %v2535, %v2591
        %v2658 = vsel %vm2638, %v2536, %v2592
        %v2659 = vsel %vm2638, %v2537, %v2593
        %v2660 = vsel %vm2638, %v2538, %v2594
        %v2661 = vsel %vm2638, %v2539, %v2595
        %v2662 = vsel %vm2638, %v2540, %v2596
        %v2663 = vsel %vm2638, %v2541, %v2597
        %v2664 = vsel %vm2638, %v2542, %v2598
        %v2665 = vsel %vm2638, %v2543, %v2599
        %v2666 = vsel %vm2638, %v2544, %v2600
        %v2667 = vsel %vm2638, %v2545, %v2601
        %v2668 = vsel %vm2639, %v2546, %v2602
        %v2669 = vsel %vm2639, %v2547, %v2603
        %v2670 = vsel %vm2639, %v2548, %v2604
        %v2671 = vsel %vm2639, %v2549, %v2605
        %v2672 = vsel %vm2639, %v2550, %v2606
        %v2673 = vsel %vm2639, %v2551, %v2607
        %v2674 = vsel %vm2639, %v2552, %v2608
        %v2675 = vsel %vm2639, %v2553, %v2609
        %v2676 = vsel %vm2639, %v2554, %v2610
        %v2677 = vsel %vm2639, %v2555, %v2611
        %v2678 = vsel %vm2639, %v2556, %v2612
        %v2679 = vsel %vm2639, %v2557, %v2613
        %v2680 = vsel %vm2639, %v2558, %v2614
        %v2681 = vsel %vm2639, %v2559, %v2615
        %v2682 = vsel %vm2639, %v2560, %v2616
        %v2683 = vsel %vm2639, %v2561, %v2617
        %v2684 = vsel %vm2639, %v2562, %v2618
        %v2685 = vsel %vm2639, %v2563, %v2619
        %v2686 = vsel %vm2639, %v2564, %v2620
        %v2687 = vsel %vm2639, %v2565, %v2621
        %v2688 = vsel %vm2639, %v2566, %v2622
        %v2689 = vsel %vm2639, %v2567, %v2623
        %v2690 = vsel %vm2639, %v2568, %v2624
        %v2691 = vsel %vm2639, %v2569, %v2625
        %v2692 = vsel %vm2639, %v2570, %v2626
        %v2693 = vsel %vm2639, %v2571, %v2627
        %v2694 = vsel %vm2639, %v2572, %v2628
        %v2695 = vsel %vm2639, %v2573, %v2629
        %2697 = vset.pattern.permute.xlu0 0
        %2698 = vperm.xlu0 %2697, %v2508
        %v2699 = vpop.permute.xlu0 %2698
        %2702 = vset.pattern.permute.xlu0 0
        %2703 = vperm.xlu0 %2702, %v2509
        %v2704 = vpop.permute.xlu0 %2703
        %v2706 = vmul.f32 %v2640, %v2699
        %v2707 = vmul.f32 %v2641, %v2699
        %v2708 = vmul.f32 %v2642, %v2699
        %v2709 = vmul.f32 %v2643, %v2699
        %v2710 = vmul.f32 %v2644, %v2699
        %v2711 = vmul.f32 %v2645, %v2699
        %v2712 = vmul.f32 %v2646, %v2699
        %v2713 = vmul.f32 %v2647, %v2699
        %v2714 = vmul.f32 %v2648, %v2699
        %v2715 = vmul.f32 %v2649, %v2699
        %v2716 = vmul.f32 %v2650, %v2699
        %v2717 = vmul.f32 %v2651, %v2699
        %v2718 = vmul.f32 %v2652, %v2699
        %v2719 = vmul.f32 %v2653, %v2699
        %v2720 = vmul.f32 %v2654, %v2699
        %v2721 = vmul.f32 %v2655, %v2699
        %v2722 = vmul.f32 %v2656, %v2699
        %v2723 = vmul.f32 %v2657, %v2699
        %v2724 = vmul.f32 %v2658, %v2699
        %v2725 = vmul.f32 %v2659, %v2699
        %v2726 = vmul.f32 %v2660, %v2699
        %v2727 = vmul.f32 %v2661, %v2699
        %v2728 = vmul.f32 %v2662, %v2699
        %v2729 = vmul.f32 %v2663, %v2699
        %v2730 = vmul.f32 %v2664, %v2699
        %v2731 = vmul.f32 %v2665, %v2699
        %v2732 = vmul.f32 %v2666, %v2699
        %v2733 = vmul.f32 %v2667, %v2699
        %v2734 = vmul.f32 %v2668, %v2704
        %v2735 = vmul.f32 %v2669, %v2704
        %v2736 = vmul.f32 %v2670, %v2704
        %v2737 = vmul.f32 %v2671, %v2704
        %v2738 = vmul.f32 %v2672, %v2704
        %v2739 = vmul.f32 %v2673, %v2704
        %v2740 = vmul.f32 %v2674, %v2704
        %v2741 = vmul.f32 %v2675, %v2704
        %v2742 = vmul.f32 %v2676, %v2704
        %v2743 = vmul.f32 %v2677, %v2704
        %v2744 = vmul.f32 %v2678, %v2704
        %v2745 = vmul.f32 %v2679, %v2704
        %v2746 = vmul.f32 %v2680, %v2704
        %v2747 = vmul.f32 %v2681, %v2704
        %v2748 = vmul.f32 %v2682, %v2704
        %v2749 = vmul.f32 %v2683, %v2704
        %v2750 = vmul.f32 %v2684, %v2704
        %v2751 = vmul.f32 %v2685, %v2704
        %v2752 = vmul.f32 %v2686, %v2704
        %v2753 = vmul.f32 %v2687, %v2704
        %v2754 = vmul.f32 %v2688, %v2704
        %v2755 = vmul.f32 %v2689, %v2704
        %v2756 = vmul.f32 %v2690, %v2704
        %v2757 = vmul.f32 %v2691, %v2704
        %v2758 = vmul.f32 %v2692, %v2704
        %v2759 = vmul.f32 %v2693, %v2704
        %v2760 = vmul.f32 %v2694, %v2704
        %v2761 = vmul.f32 %v2695, %v2704
        %2763 = vset.pattern.permute.xlu0 0
        %2764 = vperm.xlu0 %2763, %v2514
        %v2765 = vpop.permute.xlu0 %2764
        %2768 = vset.pattern.permute.xlu0 0
        %2769 = vperm.xlu0 %2768, %v2515
        %v2770 = vpop.permute.xlu0 %2769
        %v2772 = vadd.f32 %v2706, %v2765
        %v2773 = vadd.f32 %v2707, %v2765
        %v2774 = vadd.f32 %v2708, %v2765
        %v2775 = vadd.f32 %v2709, %v2765
        %v2776 = vadd.f32 %v2710, %v2765
        %v2777 = vadd.f32 %v2711, %v2765
        %v2778 = vadd.f32 %v2712, %v2765
        %v2779 = vadd.f32 %v2713, %v2765
        %v2780 = vadd.f32 %v2714, %v2765
        %v2781 = vadd.f32 %v2715, %v2765
        %v2782 = vadd.f32 %v2716, %v2765
        %v2783 = vadd.f32 %v2717, %v2765
        %v2784 = vadd.f32 %v2718, %v2765
        %v2785 = vadd.f32 %v2719, %v2765
        %v2786 = vadd.f32 %v2720, %v2765
        %v2787 = vadd.f32 %v2721, %v2765
        %v2788 = vadd.f32 %v2722, %v2765
        %v2789 = vadd.f32 %v2723, %v2765
        %v2790 = vadd.f32 %v2724, %v2765
        %v2791 = vadd.f32 %v2725, %v2765
        %v2792 = vadd.f32 %v2726, %v2765
        %v2793 = vadd.f32 %v2727, %v2765
        %v2794 = vadd.f32 %v2728, %v2765
        %v2795 = vadd.f32 %v2729, %v2765
        %v2796 = vadd.f32 %v2730, %v2765
        %v2797 = vadd.f32 %v2731, %v2765
        %v2798 = vadd.f32 %v2732, %v2765
        %v2799 = vadd.f32 %v2733, %v2765
        %v2800 = vadd.f32 %v2734, %v2770
        %v2801 = vadd.f32 %v2735, %v2770
        %v2802 = vadd.f32 %v2736, %v2770
        %v2803 = vadd.f32 %v2737, %v2770
        %v2804 = vadd.f32 %v2738, %v2770
        %v2805 = vadd.f32 %v2739, %v2770
        %v2806 = vadd.f32 %v2740, %v2770
        %v2807 = vadd.f32 %v2741, %v2770
        %v2808 = vadd.f32 %v2742, %v2770
        %v2809 = vadd.f32 %v2743, %v2770
        %v2810 = vadd.f32 %v2744, %v2770
        %v2811 = vadd.f32 %v2745, %v2770
        %v2812 = vadd.f32 %v2746, %v2770
        %v2813 = vadd.f32 %v2747, %v2770
        %v2814 = vadd.f32 %v2748, %v2770
        %v2815 = vadd.f32 %v2749, %v2770
        %v2816 = vadd.f32 %v2750, %v2770
        %v2817 = vadd.f32 %v2751, %v2770
        %v2818 = vadd.f32 %v2752, %v2770
        %v2819 = vadd.f32 %v2753, %v2770
        %v2820 = vadd.f32 %v2754, %v2770
        %v2821 = vadd.f32 %v2755, %v2770
        %v2822 = vadd.f32 %v2756, %v2770
        %v2823 = vadd.f32 %v2757, %v2770
        %v2824 = vadd.f32 %v2758, %v2770
        %v2825 = vadd.f32 %v2759, %v2770
        %v2826 = vadd.f32 %v2760, %v2770
        %v2827 = vadd.f32 %v2761, %v2770
        %v2828 = vmax.f32 %v2772, 0.0
        %v2829 = vmax.f32 %v2773, 0.0
        %v2830 = vmax.f32 %v2774, 0.0
        %v2831 = vmax.f32 %v2775, 0.0
        %v2832 = vmax.f32 %v2776, 0.0
        %v2833 = vmax.f32 %v2777, 0.0
        %v2834 = vmax.f32 %v2778, 0.0
        %v2835 = vmax.f32 %v2779, 0.0
        %v2836 = vmax.f32 %v2780, 0.0
        %v2837 = vmax.f32 %v2781, 0.0
        %v2838 = vmax.f32 %v2782, 0.0
        %v2839 = vmax.f32 %v2783, 0.0
        %v2840 = vmax.f32 %v2784, 0.0
        %v2841 = vmax.f32 %v2785, 0.0
        %v2842 = vmax.f32 %v2786, 0.0
        %v2843 = vmax.f32 %v2787, 0.0
        %v2844 = vmax.f32 %v2788, 0.0
        %v2845 = vmax.f32 %v2789, 0.0
        %v2846 = vmax.f32 %v2790, 0.0
        %v2847 = vmax.f32 %v2791, 0.0
        %v2848 = vmax.f32 %v2792, 0.0
        %v2849 = vmax.f32 %v2793, 0.0
        %v2850 = vmax.f32 %v2794, 0.0
        %v2851 = vmax.f32 %v2795, 0.0
        %v2852 = vmax.f32 %v2796, 0.0
        %v2853 = vmax.f32 %v2797, 0.0
        %v2854 = vmax.f32 %v2798, 0.0
        %v2855 = vmax.f32 %v2799, 0.0
        %v2856 = vmax.f32 %v2800, 0.0
        %v2857 = vmax.f32 %v2801, 0.0
        %v2858 = vmax.f32 %v2802, 0.0
        %v2859 = vmax.f32 %v2803, 0.0
        %v2860 = vmax.f32 %v2804, 0.0
        %v2861 = vmax.f32 %v2805, 0.0
        %v2862 = vmax.f32 %v2806, 0.0
        %v2863 = vmax.f32 %v2807, 0.0
        %v2864 = vmax.f32 %v2808, 0.0
        %v2865 = vmax.f32 %v2809, 0.0
        %v2866 = vmax.f32 %v2810, 0.0
        %v2867 = vmax.f32 %v2811, 0.0
        %v2868 = vmax.f32 %v2812, 0.0
        %v2869 = vmax.f32 %v2813, 0.0
        %v2870 = vmax.f32 %v2814, 0.0
        %v2871 = vmax.f32 %v2815, 0.0
        %v2872 = vmax.f32 %v2816, 0.0
        %v2873 = vmax.f32 %v2817, 0.0
        %v2874 = vmax.f32 %v2818, 0.0
        %v2875 = vmax.f32 %v2819, 0.0
        %v2876 = vmax.f32 %v2820, 0.0
        %v2877 = vmax.f32 %v2821, 0.0
        %v2878 = vmax.f32 %v2822, 0.0
        %v2879 = vmax.f32 %v2823, 0.0
        %v2880 = vmax.f32 %v2824, 0.0
        %v2881 = vmax.f32 %v2825, 0.0
        %v2882 = vmax.f32 %v2826, 0.0
        %v2883 = vmax.f32 %v2827, 0.0
        %v2884 = vpack.c.bf16 %v2829, %v2828
        %v2885 = vpack.c.bf16 %v2831, %v2830
        %v2886 = vpack.c.bf16 %v2833, %v2832
        %v2887 = vpack.c.bf16 %v2835, %v2834
        %v2888 = vpack.c.bf16 %v2837, %v2836
        %v2889 = vpack.c.bf16 %v2839, %v2838
        %v2890 = vpack.c.bf16 %v2841, %v2840
        %v2891 = vpack.c.bf16 %v2843, %v2842
        %v2892 = vpack.c.bf16 %v2845, %v2844
        %v2893 = vpack.c.bf16 %v2847, %v2846
        %v2894 = vpack.c.bf16 %v2849, %v2848
        %v2895 = vpack.c.bf16 %v2851, %v2850
        %v2896 = vpack.c.bf16 %v2853, %v2852
        %v2897 = vpack.c.bf16 %v2855, %v2854
        %v2898 = vpack.c.bf16 %v2857, %v2856
        %v2899 = vpack.c.bf16 %v2859, %v2858
        %v2900 = vpack.c.bf16 %v2861, %v2860
        %v2901 = vpack.c.bf16 %v2863, %v2862
        %v2902 = vpack.c.bf16 %v2865, %v2864
        %v2903 = vpack.c.bf16 %v2867, %v2866
        %v2904 = vpack.c.bf16 %v2869, %v2868
        %v2905 = vpack.c.bf16 %v2871, %v2870
        %v2906 = vpack.c.bf16 %v2873, %v2872
        %v2907 = vpack.c.bf16 %v2875, %v2874
        %v2908 = vpack.c.bf16 %v2877, %v2876
        %v2909 = vpack.c.bf16 %v2879, %v2878
        %v2910 = vpack.c.bf16 %v2881, %v2880
        %v2911 = vpack.c.bf16 %v2883, %v2882
        %2912 = vst [vmem:[%s4] sm:$0xff] %v2884
        %2913 = vst [vmem:[%s4 + $0x8] sm:$0xff] %v2885
        %2914 = vst [vmem:[%s4 + $0x10] sm:$0xff] %v2886
        %2915 = vst [vmem:[%s4 + $0x18] sm:$0xff] %v2887
        %2916 = vst [vmem:[%s4 + $0x20] sm:$0xff] %v2888
        %2917 = vst [vmem:[%s4 + $0x28] sm:$0xff] %v2889
        %2918 = vst [vmem:[%s4 + $0x30] sm:$0xff] %v2890
        %2919 = vst [vmem:[%s4 + $0x38] sm:$0xff] %v2891
        %2920 = vst [vmem:[%s4 + $0x40] sm:$0xff] %v2892
        %2921 = vst [vmem:[%s4 + $0x48] sm:$0xff] %v2893
        %2922 = vst [vmem:[%s4 + $0x50] sm:$0xff] %v2894
        %2923 = vst [vmem:[%s4 + $0x58] sm:$0xff] %v2895
        %2924 = vst [vmem:[%s4 + $0x60] sm:$0xff] %v2896
        %2925 = vst [vmem:[%s4 + $0x68] sm:$0xff] %v2897
        %2926 = vst [vmem:[%s4 + $0x70] sm:$0xff] %v2898
        %2927 = vst [vmem:[%s4 + $0x78] sm:$0xff] %v2899
        %2928 = vst [vmem:[%s4 + $0x80] sm:$0xff] %v2900
        %2929 = vst [vmem:[%s4 + $0x88] sm:$0xff] %v2901
        %2930 = vst [vmem:[%s4 + $0x90] sm:$0xff] %v2902
        %2931 = vst [vmem:[%s4 + $0x98] sm:$0xff] %v2903
        %2932 = vst [vmem:[%s4 + $0xa0] sm:$0xff] %v2904
        %2933 = vst [vmem:[%s4 + $0xa8] sm:$0xff] %v2905
        %2934 = vst [vmem:[%s4 + $0xb0] sm:$0xff] %v2906
        %2935 = vst [vmem:[%s4 + $0xb8] sm:$0xff] %v2907
        %2936 = vst [vmem:[%s4 + $0xc0] sm:$0xff] %v2908
        %2937 = vst [vmem:[%s4 + $0xc8] sm:$0xff] %v2909
        %2938 = vst [vmem:[%s4 + $0xd0] sm:$0xff] %v2910
        %2939 = vst [vmem:[%s4 + $0xd8] sm:$0xff] %v2911
      $region48: #{dqn_forward.3} parent=35 // pred_fallthru
        _
      // Predicated region
      $region49: #{dqn_forward.3} parent=35 // pred_check
        %p2940 = pneg %p117
      $region50: #{dqn_forward.3} parent=35 // pred_check_branch
        %2942 = sbr.rel (%p2940) target = $region52
      $region51: #{dqn_forward.3} parent=35 // pred_region
        _
      $region52: #{dqn_forward.3} parent=35 // pred_fallthru
        _
      // Predicated region
      $region53: #{dqn_forward.3} parent=35 // pred_check
        %p2943 = pneg %p117
      $region54: #{dqn_forward.3} parent=35 // pred_check_branch
        %2945 = sbr.rel (%p2943) target = $region56
      $region55: #{dqn_forward.3} parent=35 // pred_region
        _
      $region56: #{dqn_forward.3} parent=35 // pred_fallthru
        _
    $region36: #{dqn_forward.3} parent=5 // pred_fallthru
      _
    %p2946 = scmp.le.s32.totalorder 2, %s10
    // Predicated region
    $region57: #{dqn_forward.3} parent=5 // pred_check
      %p2947 = pneg %p2946
    $region58: #{dqn_forward.3} parent=5 // pred_check_branch
      %2949 = sbr.rel (%p2947) target = $region60
    $region59: #{dqn_forward.3} parent=5 // pred_region
      %s2950 = ssub.s32 %s10, 2
    $region60: #{dqn_forward.3} parent=5 // pred_fallthru
      _
  $region6: #{dqn_forward.3} parent=0 // loop_footer
    %s14 = sadd.s32 1, %s10
  $region7: #{dqn_forward.3} parent=0 // loop_footer_branch
    %9 = sbr.rel target = $region3
  $region8: #{dqn_forward.3} parent=0 // loop_exit
    _

// kernel: dqn_forward.4
$region0: #{dqn_forward.4}
  #allocation0 [shape = 'u32[]', space=smem, size = 0x4, offset = 0x4, fixed_abs, tag = 'smem constant byte address 0x4 - core index']
  #allocation1 [shape = 'u32[72,128]{1,0:T(1,128)}', space=vmem, size = 0x9000, scoped, tag = 'internal scratch']
  #allocation2 [shape = 'f32[32,896]{1,0:T(8,128)}', space=vmem, size = 0x1c000, scoped, tag = 'scratch operand']
  #allocation3 [shape = 'f32[32,896]{1,0:T(8,128)}', space=vmem, size = 0x1c000, scoped, tag = 'scratch operand']
  #allocation4 [shape = 'f32[32,1]{1,0:T(8,128)}', space=vmem, size = 0x4000, scoped, tag = 'scratch operand']
  #allocation5 [shape = 'f32[32,1]{1,0:T(8,128)}', space=vmem, size = 0x4000, scoped, tag = 'scratch operand']
  %s0 = inlined_call_operand.vmem [shape: bf16[4,144,896], index: 0, kind: input, shape index: {}]
  %s1 = inlined_call_operand.vmem [shape: bf16[32,144], index: 1, kind: input, shape index: {}]
  %s2 = inlined_call_operand.vmem [shape: f32[32,1], index: 2, kind: input, shape index: {}]
  %s3 = inlined_call_operand.vmem [shape: f32[32,1], index: 3, kind: input, shape index: {}]
  %s4 = inlined_call_operand.vmem [shape: bf16[32,896], index: 4, kind: output, shape index: {}]
  %s5 = sld [smem:[#allocation0]]
  $region61: #{dqn_forward.4} parent=0
    _
  %s7 = ssub.s32 1, %s5
  %s8 = scalar_select 0, %s7, %s5
  loop: start=0, step=1, limit=6
  $region2: #{dqn_forward.4} parent=0 // loop_pre_header
    _
  $region3: #{dqn_forward.4} parent=0 // loop_header
    %s10 = sphi 0, %s14
    %p11 = scmp.ge.s32.totalorder %s10, 6
    %s20 = sphi 0, %s22
    %s23 = sphi 0, %s20
    %s24 = sphi 0, %s23
    %s40 = sphi 0, %s24
    %s44 = sphi 0, %s44
    %s46 = sphi 0, %s44
    %s47 = sphi 0, %s46
    %s61 = sphi 0, %s47
    %s65 = sphi 0, %s65
    %s67 = sphi 0, %s65
    %s68 = sphi 0, %s67
    %s82 = sphi 0, %s68
    %s86 = sphi 0, %s86
    %s88 = sphi 0, %s86
    %s89 = sphi 0, %s88
    %s103 = sphi 0, %s89
    %s107 = sphi 0, %s107
    %s109 = sphi 0, %s107
    %s110 = sphi 0, %s109
    %s124 = sphi 0, %s110
  $region4: #{dqn_forward.4} parent=0 // loop_header_branch
    %13 = sbr.rel (%p11) target = $region8
  $region5: #{dqn_forward.4} parent=0 // loop_body
    %s15 = ssub.s32 %s10, 1
    %s16 = ssub.s32 %s10, 2
    %s17 = sadd.s32 %s10, 1
    %s18 = ssub.s32 %s10, %s17
    %p19 = scmp.eq.s32.totalorder %s18, 0
    %s21 = sadd.s32 %s20, 1
    %s22 = scalar_select %p19, %s20, %s21
    %p25 = pneg %p19
    %p26 = scmp.eq.s32.totalorder %s10, 3
    %p27 = por %p25, %p26
    %p28 = scmp.ne.s32.totalorder %s20, %s23
    %p29 = scmp.eq.s32.totalorder %s10, 0
    %p30 = por %p28, %p29
    %p31 = scmp.ne.s32.totalorder %s20, %s23
    %p32 = scmp.eq.s32.totalorder %s15, 3
    %p33 = por %p31, %p32
    %p34 = scmp.ne.s32.totalorder %s23, %s24
    %p35 = scmp.eq.s32.totalorder %s15, 0
    %p36 = por %p34, %p35
    %p37 = scmp.ne.s32.totalorder %s23, %s24
    %p38 = scmp.eq.s32.totalorder %s16, 3
    %p39 = por %p37, %p38
    %p41 = scmp.ne.s32.totalorder %s24, %s40
    %p42 = scmp.eq.s32.totalorder %s16, 0
    %p43 = por %p41, %p42
    %s45 = sadd.s32 %s44, 1
    %p48 = scmp.eq.s32.totalorder %s10, 3
    %p49 = scmp.ne.s32.totalorder %s44, %s46
    %p50 = scmp.eq.s32.totalorder %s10, 0
    %p51 = por %p49, %p50
    %p52 = scmp.ne.s32.totalorder %s44, %s46
    %p53 = scmp.eq.s32.totalorder %s15, 3
    %p54 = por %p52, %p53
    %p55 = scmp.ne.s32.totalorder %s46, %s47
    %p56 = scmp.eq.s32.totalorder %s15, 0
    %p57 = por %p55, %p56
    %p58 = scmp.ne.s32.totalorder %s46, %s47
    %p59 = scmp.eq.s32.totalorder %s16, 3
    %p60 = por %p58, %p59
    %p62 = scmp.ne.s32.totalorder %s47, %s61
    %p63 = scmp.eq.s32.totalorder %s16, 0
    %p64 = por %p62, %p63
    %s66 = sadd.s32 %s65, 1
    %p69 = scmp.eq.s32.totalorder %s10, 3
    %p70 = scmp.ne.s32.totalorder %s65, %s67
    %p71 = scmp.eq.s32.totalorder %s10, 0
    %p72 = por %p70, %p71
    %p73 = scmp.ne.s32.totalorder %s65, %s67
    %p74 = scmp.eq.s32.totalorder %s15, 3
    %p75 = por %p73, %p74
    %p76 = scmp.ne.s32.totalorder %s67, %s68
    %p77 = scmp.eq.s32.totalorder %s15, 0
    %p78 = por %p76, %p77
    %p79 = scmp.ne.s32.totalorder %s67, %s68
    %p80 = scmp.eq.s32.totalorder %s16, 3
    %p81 = por %p79, %p80
    %p83 = scmp.ne.s32.totalorder %s68, %s82
    %p84 = scmp.eq.s32.totalorder %s16, 0
    %p85 = por %p83, %p84
    %s87 = sadd.s32 %s86, 1
    %p90 = scmp.eq.s32.totalorder %s10, 3
    %p91 = scmp.ne.s32.totalorder %s86, %s88
    %p92 = scmp.eq.s32.totalorder %s10, 0
    %p93 = por %p91, %p92
    %p94 = scmp.ne.s32.totalorder %s86, %s88
    %p95 = scmp.eq.s32.totalorder %s15, 3
    %p96 = por %p94, %p95
    %p97 = scmp.ne.s32.totalorder %s88, %s89
    %p98 = scmp.eq.s32.totalorder %s15, 0
    %p99 = por %p97, %p98
    %p100 = scmp.ne.s32.totalorder %s88, %s89
    %p101 = scmp.eq.s32.totalorder %s16, 3
    %p102 = por %p100, %p101
    %p104 = scmp.ne.s32.totalorder %s89, %s103
    %p105 = scmp.eq.s32.totalorder %s16, 0
    %p106 = por %p104, %p105
    %s108 = sadd.s32 %s107, 1
    %p111 = scmp.eq.s32.totalorder %s10, 3
    %p112 = scmp.ne.s32.totalorder %s107, %s109
    %p113 = scmp.eq.s32.totalorder %s10, 0
    %p114 = por %p112, %p113
    %p115 = scmp.ne.s32.totalorder %s107, %s109
    %p116 = scmp.eq.s32.totalorder %s15, 3
    %p117 = por %p115, %p116
    %p118 = scmp.ne.s32.totalorder %s109, %s110
    %p119 = scmp.eq.s32.totalorder %s15, 0
    %p120 = por %p118, %p119
    %p121 = scmp.ne.s32.totalorder %s109, %s110
    %p122 = scmp.eq.s32.totalorder %s16, 3
    %p123 = por %p121, %p122
    %p125 = scmp.ne.s32.totalorder %s110, %s124
    %p126 = scmp.eq.s32.totalorder %s16, 0
    %p127 = por %p125, %p126
    %p128 = scmp.le.s32.totalorder 1, %s10
    %p129 = scmp.lt.s32.totalorder %s10, 5
    %p130 = pnand %p128, %p129
    %p131 = pneg %p130
    // Predicated region
    $region9: #{dqn_forward.4} parent=5 // pred_check
      _
    $region10: #{dqn_forward.4} parent=5 // pred_check_branch
      %133 = sbr.rel (%p130) target = $region12
    $region11: #{dqn_forward.4} parent=5 // pred_region
      %s134 = ssub.s32 %s10, 1
      // Predicated region
      $region13: #{dqn_forward.4} parent=11 // pred_check
        %p135 = pneg %p57
      $region14: #{dqn_forward.4} parent=11 // pred_check_branch
        %137 = sbr.rel (%p135) target = $region16
      $region15: #{dqn_forward.4} parent=11 // pred_region
        _
      $region16: #{dqn_forward.4} parent=11 // pred_fallthru
        _
      // Predicated region
      $region17: #{dqn_forward.4} parent=11 // pred_check
        %p138 = pneg %p78
      $region18: #{dqn_forward.4} parent=11 // pred_check_branch
        %140 = sbr.rel (%p138) target = $region20
      $region19: #{dqn_forward.4} parent=11 // pred_region
        _
      $region20: #{dqn_forward.4} parent=11 // pred_fallthru
        _
      // Predicated region
      $region21: #{dqn_forward.4} parent=11 // pred_check
        %p141 = pneg %p99
      $region22: #{dqn_forward.4} parent=11 // pred_check_branch
        %143 = sbr.rel (%p141) target = $region24
      $region23: #{dqn_forward.4} parent=11 // pred_region
        _
      $region24: #{dqn_forward.4} parent=11 // pred_fallthru
        _
    $region12: #{dqn_forward.4} parent=5 // pred_fallthru
      _
    %p144 = scmp.lt.s32.totalorder %s10, 4
    // Predicated region
    $region25: #{dqn_forward.4} parent=5 // pred_check
      %p145 = pneg %p144
    $region26: #{dqn_forward.4} parent=5 // pred_check_branch
      %147 = sbr.rel (%p145) target = $region28
    $region27: #{dqn_forward.4} parent=5 // pred_region
      // Predicated region
      $region29: #{dqn_forward.4} parent=27 // pred_check
        %p148 = pneg %p30
      $region30: #{dqn_forward.4} parent=27 // pred_check_branch
        %150 = sbr.rel (%p148) target = $region32
      $region31: #{dqn_forward.4} parent=27 // pred_region
        %p151 = scmp.lt.s32.totalorder %s10, 3
        %s152 = scalar_select %p151, %s10, 3
        %s153 = smul.addr %s152, 126
        %s154 = smul.addr %s153, 4
        %s155 = scalar_lea.vmem %s0, %s154
      $region32: #{dqn_forward.4} parent=27 // pred_fallthru
        _
    $region28: #{dqn_forward.4} parent=5 // pred_fallthru
      _
    %p156 = scmp.le.s32.totalorder 1, %s10
    %p157 = scmp.lt.s32.totalorder %s10, 5
    %p158 = pnand %p156, %p157
    %p159 = pneg %p158
    // Predicated region
    $region33: #{dqn_forward.4} parent=5 // pred_check
      _
    $region34: #{dqn_forward.4} parent=5 // pred_check_branch
      %161 = sbr.rel (%p158) target = $region36
    $region35: #{dqn_forward.4} parent=5 // pred_region
      %s162 = ssub.s32 %s10, 1
      %p163 = scmp.lt.s32.totalorder %s15, 3
      %s164 = scalar_select %p163, %s15, 3
      %s165 = smul.addr %s164, 126
      %s166 = smul.addr %s165, 4
      %s167 = scalar_lea.vmem %s0, %s166
      %p168 = pneg %p36
      %p169 = pneg %p33
      %p170 = pneg %p57
      %p171 = pneg %p54
      %p172 = pneg %p78
      %p173 = pneg %p75
      %p174 = pneg %p99
      %p175 = pneg %p96
      %p176 = pneg %p120
      %p177 = pneg %p117
      %p178 = scmp.lt.s32.totalorder %s15, 3
      %s179 = scalar_select %p178, %s15, 3
      %s180 = smul.addr %s179, 126
      %s181 = smul.addr %s180, 4
      %s182 = scalar_lea.vmem %s0, %s181
      %v184 = vld [vmem:[%s1] sm:$0xff]
      %v185 = vld [vmem:[%s1 + $0x8] sm:$0xff]
      %v186 = vld [vmem:[%s1 + $0x10] sm:$0xff]
      %v187 = vld [vmem:[%s1 + $0x18] sm:$0xff]
      %v188 = vld [vmem:[%s182] sm:$0xff]
      %v189 = vld [vmem:[%s182 + $0x8] sm:$0xff]
      %v190 = vld [vmem:[%s182 + $0x10] sm:$0xff]
      %v191 = vld [vmem:[%s182 + $0x18] sm:$0xf]
      %v192 = vld [vmem:[%s182 + $0x1c] sm:$0xff]
      %v193 = vld [vmem:[%s182 + $0x24] sm:$0xff]
      %v194 = vld [vmem:[%s182 + $0x2c] sm:$0xff]
      %v195 = vld [vmem:[%s182 + $0x34] sm:$0xf]
      %v196 = vld [vmem:[%s182 + $0x38] sm:$0xff]
      %v197 = vld [vmem:[%s182 + $0x40] sm:$0xff]
      %v198 = vld [vmem:[%s182 + $0x48] sm:$0xff]
      %v199 = vld [vmem:[%s182 + $0x50] sm:$0xf]
      %v200 = vld [vmem:[%s182 + $0x54] sm:$0xff]
      %v201 = vld [vmem:[%s182 + $0x5c] sm:$0xff]
      %v202 = vld [vmem:[%s182 + $0x64] sm:$0xff]
      %v203 = vld [vmem:[%s182 + $0x6c] sm:$0xf]
      %v204 = vld [vmem:[%s182 + $0x70] sm:$0xff]
      %v205 = vld [vmem:[%s182 + $0x78] sm:$0xff]
      %v206 = vld [vmem:[%s182 + $0x80] sm:$0xff]
      %v207 = vld [vmem:[%s182 + $0x88] sm:$0xf]
      %v208 = vld [vmem:[%s182 + $0x8c] sm:$0xff]
      %v209 = vld [vmem:[%s182 + $0x94] sm:$0xff]
      %v210 = vld [vmem:[%s182 + $0x9c] sm:$0xff]
      %v211 = vld [vmem:[%s182 + $0xa4] sm:$0xf]
      %v212 = vld [vmem:[%s182 + $0xa8] sm:$0xff]
      %v213 = vld [vmem:[%s182 + $0xb0] sm:$0xff]
      %v214 = vld [vmem:[%s182 + $0xb8] sm:$0xff]
      %v215 = vld [vmem:[%s182 + $0xc0] sm:$0xf]
      %v216 = vld [vmem:[%s182 + $0xc4] sm:$0xff]
      %v217 = vld [vmem:[%s182 + $0xcc] sm:$0xff]
      %v218 = vld [vmem:[%s182 + $0xd4] sm:$0xff]
      %v219 = vld [vmem:[%s182 + $0xdc] sm:$0xf]
      %v220 = vld [vmem:[%s182 + $0xe0] sm:$0xff]
      %v221 = vld [vmem:[%s182 + $0xe8] sm:$0xff]
      %v222 = vld [vmem:[%s182 + $0xf0] sm:$0xff]
      %v223 = vld [vmem:[%s182 + $0xf8] sm:$0xf]
      %v224 = vld [vmem:[%s182 + $0xfc] sm:$0xff]
      %v225 = vld [vmem:[%s182 + $0x104] sm:$0xff]
      %v226 = vld [vmem:[%s182 + $0x10c] sm:$0xff]
      %v227 = vld [vmem:[%s182 + $0x114] sm:$0xf]
      %v228 = vld [vmem:[%s182 + $0x118] sm:$0xff]
      %v229 = vld [vmem:[%s182 + $0x120] sm:$0xff]
      %v230 = vld [vmem:[%s182 + $0x128] sm:$0xff]
      %v231 = vld [vmem:[%s182 + $0x130] sm:$0xf]
      %v232 = vld [vmem:[%s182 + $0x134] sm:$0xff]
      %v233 = vld [vmem:[%s182 + $0x13c] sm:$0xff]
      %v234 = vld [vmem:[%s182 + $0x144] sm:$0xff]
      %v235 = vld [vmem:[%s182 + $0x14c] sm:$0xf]
      %v236 = vld [vmem:[%s182 + $0x150] sm:$0xff]
      %v237 = vld [vmem:[%s182 + $0x158] sm:$0xff]
      %v238 = vld [vmem:[%s182 + $0x160] sm:$0xff]
      %v239 = vld [vmem:[%s182 + $0x168] sm:$0xf]
      %v240 = vld [vmem:[%s182 + $0x16c] sm:$0xff]
      %v241 = vld [vmem:[%s182 + $0x174] sm:$0xff]
      %v242 = vld [vmem:[%s182 + $0x17c] sm:$0xff]
      %v243 = vld [vmem:[%s182 + $0x184] sm:$0xf]
      %v244 = vld [vmem:[%s182 + $0x188] sm:$0xff]
      %v245 = vld [vmem:[%s182 + $0x190] sm:$0xff]
      %v246 = vld [vmem:[%s182 + $0x198] sm:$0xff]
      %v247 = vld [vmem:[%s182 + $0x1a0] sm:$0xf]
      %v248 = vld [vmem:[%s182 + $0x1a4] sm:$0xff]
      %v249 = vld [vmem:[%s182 + $0x1ac] sm:$0xff]
      %v250 = vld [vmem:[%s182 + $0x1b4] sm:$0xff]
      %v251 = vld [vmem:[%s182 + $0x1bc] sm:$0xf]
      %v252 = vld [vmem:[%s182 + $0x1c0] sm:$0xff]
      %v253 = vld [vmem:[%s182 + $0x1c8] sm:$0xff]
      %v254 = vld [vmem:[%s182 + $0x1d0] sm:$0xff]
      %v255 = vld [vmem:[%s182 + $0x1d8] sm:$0xf]
      %v256 = vld [vmem:[%s182 + $0x1dc] sm:$0xff]
      %v257 = vld [vmem:[%s182 + $0x1e4] sm:$0xff]
      %v258 = vld [vmem:[%s182 + $0x1ec] sm:$0xff]
      %v259 = vld [vmem:[%s182 + $0x1f4] sm:$0xf]
      %v264 = vunpack.c.l.b16 %v184
      %v265 = vunpack.c.h.b16 %v184
      %v266 = vunpack.c.l.b16 %v185
      %v267 = vunpack.c.h.b16 %v185
      %v268 = vunpack.c.l.b16 %v186
      %v269 = vunpack.c.h.b16 %v186
      %v270 = vunpack.c.l.b16 %v187
      %v271 = vunpack.c.h.b16 %v187
      %v272 = vpack.c.b16 %v266, %v264
      %v273 = vpack.c.b16 %v267, %v265
      %v274 = vpack.c.b16 %v270, %v268
      %v275 = vpack.c.b16 %v271, %v269
      %v350 = vunpack.c.l.b16 %v188
      %v351 = vunpack.c.h.b16 %v188
      %v352 = vunpack.c.l.b16 %v189
      %v353 = vunpack.c.h.b16 %v189
      %v354 = vunpack.c.l.b16 %v190
      %v355 = vunpack.c.h.b16 %v190
      %v356 = vunpack.c.l.b16 %v191
      %v357 = vunpack.c.l.b16 %v192
      %v358 = vunpack.c.h.b16 %v192
      %v359 = vunpack.c.l.b16 %v193
      %v360 = vunpack.c.h.b16 %v193
      %v361 = vunpack.c.l.b16 %v194
      %v362 = vunpack.c.h.b16 %v194
      %v363 = vunpack.c.l.b16 %v195
      %v364 = vunpack.c.l.b16 %v196
      %v365 = vunpack.c.h.b16 %v196
      %v366 = vunpack.c.l.b16 %v197
      %v367 = vunpack.c.h.b16 %v197
      %v368 = vunpack.c.l.b16 %v198
      %v369 = vunpack.c.h.b16 %v198
      %v370 = vunpack.c.l.b16 %v199
      %v371 = vunpack.c.l.b16 %v200
      %v372 = vunpack.c.h.b16 %v200
      %v373 = vunpack.c.l.b16 %v201
      %v374 = vunpack.c.h.b16 %v201
      %v375 = vunpack.c.l.b16 %v202
      %v376 = vunpack.c.h.b16 %v202
      %v377 = vunpack.c.l.b16 %v203
      %v378 = vunpack.c.l.b16 %v204
      %v379 = vunpack.c.h.b16 %v204
      %v380 = vunpack.c.l.b16 %v205
      %v381 = vunpack.c.h.b16 %v205
      %v382 = vunpack.c.l.b16 %v206
      %v383 = vunpack.c.h.b16 %v206
      %v384 = vunpack.c.l.b16 %v207
      %v385 = vunpack.c.l.b16 %v208
      %v386 = vunpack.c.h.b16 %v208
      %v387 = vunpack.c.l.b16 %v209
      %v388 = vunpack.c.h.b16 %v209
      %v389 = vunpack.c.l.b16 %v210
      %v390 = vunpack.c.h.b16 %v210
      %v391 = vunpack.c.l.b16 %v211
      %v392 = vunpack.c.l.b16 %v212
      %v393 = vunpack.c.h.b16 %v212
      %v394 = vunpack.c.l.b16 %v213
      %v395 = vunpack.c.h.b16 %v213
      %v396 = vunpack.c.l.b16 %v214
      %v397 = vunpack.c.h.b16 %v214
      %v398 = vunpack.c.l.b16 %v215
      %v399 = vunpack.c.l.b16 %v216
      %v400 = vunpack.c.h.b16 %v216
      %v401 = vunpack.c.l.b16 %v217
      %v402 = vunpack.c.h.b16 %v217
      %v403 = vunpack.c.l.b16 %v218
      %v404 = vunpack.c.h.b16 %v218
      %v405 = vunpack.c.l.b16 %v219
      %v406 = vunpack.c.l.b16 %v220
      %v407 = vunpack.c.h.b16 %v220
      %v408 = vunpack.c.l.b16 %v221
      %v409 = vunpack.c.h.b16 %v221
      %v410 = vunpack.c.l.b16 %v222
      %v411 = vunpack.c.h.b16 %v222
      %v412 = vunpack.c.l.b16 %v223
      %v413 = vunpack.c.l.b16 %v224
      %v414 = vunpack.c.h.b16 %v224
      %v415 = vunpack.c.l.b16 %v225
      %v416 = vunpack.c.h.b16 %v225
      %v417 = vunpack.c.l.b16 %v226
      %v418 = vunpack.c.h.b16 %v226
      %v419 = vunpack.c.l.b16 %v227
      %v420 = vunpack.c.l.b16 %v228
      %v421 = vunpack.c.h.b16 %v228
      %v422 = vunpack.c.l.b16 %v229
      %v423 = vunpack.c.h.b16 %v229
      %v424 = vunpack.c.l.b16 %v230
      %v425 = vunpack.c.h.b16 %v230
      %v426 = vunpack.c.l.b16 %v231
      %v427 = vunpack.c.l.b16 %v232
      %v428 = vunpack.c.h.b16 %v232
      %v429 = vunpack.c.l.b16 %v233
      %v430 = vunpack.c.h.b16 %v233
      %v431 = vunpack.c.l.b16 %v234
      %v432 = vunpack.c.h.b16 %v234
      %v433 = vunpack.c.l.b16 %v235
      %v434 = vunpack.c.l.b16 %v236
      %v435 = vunpack.c.h.b16 %v236
      %v436 = vunpack.c.l.b16 %v237
      %v437 = vunpack.c.h.b16 %v237
      %v438 = vunpack.c.l.b16 %v238
      %v439 = vunpack.c.h.b16 %v238
      %v440 = vunpack.c.l.b16 %v239
      %v441 = vunpack.c.l.b16 %v240
      %v442 = vunpack.c.h.b16 %v240
      %v443 = vunpack.c.l.b16 %v241
      %v444 = vunpack.c.h.b16 %v241
      %v445 = vunpack.c.l.b16 %v242
      %v446 = vunpack.c.h.b16 %v242
      %v447 = vunpack.c.l.b16 %v243
      %v448 = vunpack.c.l.b16 %v244
      %v449 = vunpack.c.h.b16 %v244
      %v450 = vunpack.c.l.b16 %v245
      %v451 = vunpack.c.h.b16 %v245
      %v452 = vunpack.c.l.b16 %v246
      %v453 = vunpack.c.h.b16 %v246
      %v454 = vunpack.c.l.b16 %v247
      %v455 = vunpack.c.l.b16 %v248
      %v456 = vunpack.c.h.b16 %v248
      %v457 = vunpack.c.l.b16 %v249
      %v458 = vunpack.c.h.b16 %v249
      %v459 = vunpack.c.l.b16 %v250
      %v460 = vunpack.c.h.b16 %v250
      %v461 = vunpack.c.l.b16 %v251
      %v462 = vunpack.c.l.b16 %v252
      %v463 = vunpack.c.h.b16 %v252
      %v464 = vunpack.c.l.b16 %v253
      %v465 = vunpack.c.h.b16 %v253
      %v466 = vunpack.c.l.b16 %v254
      %v467 = vunpack.c.h.b16 %v254
      %v468 = vunpack.c.l.b16 %v255
      %v469 = vunpack.c.l.b16 %v256
      %v470 = vunpack.c.h.b16 %v256
      %v471 = vunpack.c.l.b16 %v257
      %v472 = vunpack.c.h.b16 %v257
      %v473 = vunpack.c.l.b16 %v258
      %v474 = vunpack.c.h.b16 %v258
      %v475 = vunpack.c.l.b16 %v259
      %v476 = vpack.c.b16 %v357, %v350
      %v477 = vpack.c.b16 %v358, %v351
      %v478 = vpack.c.b16 %v359, %v352
      %v479 = vpack.c.b16 %v360, %v353
      %v480 = vpack.c.b16 %v361, %v354
      %v481 = vpack.c.b16 %v362, %v355
      %v482 = vpack.c.b16 %v363, %v356
      %v483 = vpack.c.b16 %v371, %v364
      %v484 = vpack.c.b16 %v372, %v365
      %v485 = vpack.c.b16 %v373, %v366
      %v486 = vpack.c.b16 %v374, %v367
      %v487 = vpack.c.b16 %v375, %v368
      %v488 = vpack.c.b16 %v376, %v369
      %v489 = vpack.c.b16 %v377, %v370
      %v490 = vpack.c.b16 %v385, %v378
      %v491 = vpack.c.b16 %v386, %v379
      %v492 = vpack.c.b16 %v387, %v380
      %v493 = vpack.c.b16 %v388, %v381
      %v494 = vpack.c.b16 %v389, %v382
      %v495 = vpack.c.b16 %v390, %v383
      %v496 = vpack.c.b16 %v391, %v384
      %v497 = vpack.c.b16 %v399, %v392
      %v498 = vpack.c.b16 %v400, %v393
      %v499 = vpack.c.b16 %v401, %v394
      %v500 = vpack.c.b16 %v402, %v395
      %v501 = vpack.c.b16 %v403, %v396
      %v502 = vpack.c.b16 %v404, %v397
      %v503 = vpack.c.b16 %v405, %v398
      %v504 = vpack.c.b16 %v413, %v406
      %v505 = vpack.c.b16 %v414, %v407
      %v506 = vpack.c.b16 %v415, %v408
      %v507 = vpack.c.b16 %v416, %v409
      %v508 = vpack.c.b16 %v417, %v410
      %v509 = vpack.c.b16 %v418, %v411
      %v510 = vpack.c.b16 %v419, %v412
      %v511 = vpack.c.b16 %v427, %v420
      %v512 = vpack.c.b16 %v428, %v421
      %v513 = vpack.c.b16 %v429, %v422
      %v514 = vpack.c.b16 %v430, %v423
      %v515 = vpack.c.b16 %v431, %v424
      %v516 = vpack.c.b16 %v432, %v425
      %v517 = vpack.c.b16 %v433, %v426
      %v518 = vpack.c.b16 %v441, %v434
      %v519 = vpack.c.b16 %v442, %v435
      %v520 = vpack.c.b16 %v443, %v436
      %v521 = vpack.c.b16 %v444, %v437
      %v522 = vpack.c.b16 %v445, %v438
      %v523 = vpack.c.b16 %v446, %v439
      %v524 = vpack.c.b16 %v447, %v440
      %v525 = vpack.c.b16 %v455, %v448
      %v526 = vpack.c.b16 %v456, %v449
      %v527 = vpack.c.b16 %v457, %v450
      %v528 = vpack.c.b16 %v458, %v451
      %v529 = vpack.c.b16 %v459, %v452
      %v530 = vpack.c.b16 %v460, %v453
      %v531 = vpack.c.b16 %v461, %v454
      %v532 = vpack.c.b16 %v469, %v462
      %v533 = vpack.c.b16 %v470, %v463
      %v534 = vpack.c.b16 %v471, %v464
      %v535 = vpack.c.b16 %v472, %v465
      %v536 = vpack.c.b16 %v473, %v466
      %v537 = vpack.c.b16 %v474, %v467
      %v538 = vpack.c.b16 %v475, %v468
      %vm602 = vcmask 130048
      %v604 = vsel %vm602, %v273, 0
      %v607 = vsel %vm602, %v275, 0
      %609 = vmatpush.bf16.msra.mxu0 %v525
      %610 = vmatpush.bf16.msra.mxu0 %v518
      %611 = vmatpush.bf16.msra.mxu0 %v511
      %612 = vmatpush.bf16.msra.mxu0 %v504
      %613 = vmatpush.bf16.msra.mxu0 %v497
      %614 = vmatpush.bf16.msra.mxu0 %v490
      %615 = vmatpush.bf16.msra.mxu0 %v483
      %616 = vmatpush.bf16.msra.mxu0 %v476
      %617 = vmatmul.bf16.gmra.mxu0 %v272
      %v618 = vpop.f32.mrf.mxu0
      %v619 = vadd.f32 0.0, %v618
      %v620 = vpop.f32.mrf.mxu0
      %v621 = vadd.f32 0.0, %v620
      %622 = vmatmul.bf16.gmra.mxu0 %v274
      %v623 = vpop.f32.mrf.mxu0
      %v624 = vadd.f32 0.0, %v623
      %v625 = vpop.f32.mrf.mxu0
      %v626 = vadd.f32 0.0, %v625
      %627 = vdwg.mxu0
      %628 = vmatpush.bf16.msra.mxu0 0
      %629 = vmatpush.bf16.msra.mxu0 0
      %630 = vmatpush.bf16.msra.mxu0 0
      %631 = vmatpush.bf16.msra.mxu0 0
      %632 = vmatpush.bf16.msra.mxu0 0
      %633 = vmatpush.bf16.msra.mxu0 0
      %634 = vmatpush.bf16.msra.mxu0 0
      %635 = vmatpush.bf16.msra.mxu0 %v532
      %636 = vmatmul.bf16.gmra.mxu0 %v604
      %v637 = vpop.f32.mrf.mxu0
      %v638 = vadd.f32 %v619, %v637
      %v639 = vpop.f32.mrf.mxu0
      %v640 = vadd.f32 %v621, %v639
      %641 = vmatmul.bf16.gmra.mxu0 %v607
      %v642 = vpop.f32.mrf.mxu0
      %v643 = vadd.f32 %v624, %v642
      %v644 = vpop.f32.mrf.mxu0
      %v645 = vadd.f32 %v626, %v644
      %646 = vdwg.mxu0
      %647 = vmatpush.bf16.msra.mxu0 %v526
      %648 = vmatpush.bf16.msra.mxu0 %v519
      %649 = vmatpush.bf16.msra.mxu0 %v512
      %650 = vmatpush.bf16.msra.mxu0 %v505
      %651 = vmatpush.bf16.msra.mxu0 %v498
      %652 = vmatpush.bf16.msra.mxu0 %v491
      %653 = vmatpush.bf16.msra.mxu0 %v484
      %654 = vmatpush.bf16.msra.mxu0 %v477
      %655 = vmatmul.bf16.gmra.mxu0 %v272
      %v656 = vpop.f32.mrf.mxu0
      %v657 = vadd.f32 0.0, %v656
      %v658 = vpop.f32.mrf.mxu0
      %v659 = vadd.f32 0.0, %v658
      %660 = vmatmul.bf16.gmra.mxu0 %v274
      %v661 = vpop.f32.mrf.mxu0
      %v662 = vadd.f32 0.0, %v661
      %v663 = vpop.f32.mrf.mxu0
      %v664 = vadd.f32 0.0, %v663
      %665 = vdwg.mxu0
      %666 = vmatpush.bf16.msra.mxu0 0
      %667 = vmatpush.bf16.msra.mxu0 0
      %668 = vmatpush.bf16.msra.mxu0 0
      %669 = vmatpush.bf16.msra.mxu0 0
      %670 = vmatpush.bf16.msra.mxu0 0
      %671 = vmatpush.bf16.msra.mxu0 0
      %672 = vmatpush.bf16.msra.mxu0 0
      %673 = vmatpush.bf16.msra.mxu0 %v533
      %674 = vmatmul.bf16.gmra.mxu0 %v604
      %v675 = vpop.f32.mrf.mxu0
      %v676 = vadd.f32 %v657, %v675
      %v677 = vpop.f32.mrf.mxu0
      %v678 = vadd.f32 %v659, %v677
      %679 = vmatmul.bf16.gmra.mxu0 %v607
      %v680 = vpop.f32.mrf.mxu0
      %v681 = vadd.f32 %v662, %v680
      %v682 = vpop.f32.mrf.mxu0
      %v683 = vadd.f32 %v664, %v682
      %684 = vdwg.mxu0
      %685 = vmatpush.bf16.msra.mxu0 %v527
      %686 = vmatpush.bf16.msra.mxu0 %v520
      %687 = vmatpush.bf16.msra.mxu0 %v513
      %688 = vmatpush.bf16.msra.mxu0 %v506
      %689 = vmatpush.bf16.msra.mxu0 %v499
      %690 = vmatpush.bf16.msra.mxu0 %v492
      %691 = vmatpush.bf16.msra.mxu0 %v485
      %692 = vmatpush.bf16.msra.mxu0 %v478
      %693 = vmatmul.bf16.gmra.mxu0 %v272
      %v694 = vpop.f32.mrf.mxu0
      %v695 = vadd.f32 0.0, %v694
      %v696 = vpop.f32.mrf.mxu0
      %v697 = vadd.f32 0.0, %v696
      %698 = vmatmul.bf16.gmra.mxu0 %v274
      %v699 = vpop.f32.mrf.mxu0
      %v700 = vadd.f32 0.0, %v699
      %v701 = vpop.f32.mrf.mxu0
      %v702 = vadd.f32 0.0, %v701
      %703 = vdwg.mxu0
      %704 = vmatpush.bf16.msra.mxu0 0
      %705 = vmatpush.bf16.msra.mxu0 0
      %706 = vmatpush.bf16.msra.mxu0 0
      %707 = vmatpush.bf16.msra.mxu0 0
      %708 = vmatpush.bf16.msra.mxu0 0
      %709 = vmatpush.bf16.msra.mxu0 0
      %710 = vmatpush.bf16.msra.mxu0 0
      %711 = vmatpush.bf16.msra.mxu0 %v534
      %712 = vmatmul.bf16.gmra.mxu0 %v604
      %v713 = vpop.f32.mrf.mxu0
      %v714 = vadd.f32 %v695, %v713
      %v715 = vpop.f32.mrf.mxu0
      %v716 = vadd.f32 %v697, %v715
      %717 = vmatmul.bf16.gmra.mxu0 %v607
      %v718 = vpop.f32.mrf.mxu0
      %v719 = vadd.f32 %v700, %v718
      %v720 = vpop.f32.mrf.mxu0
      %v721 = vadd.f32 %v702, %v720
      %722 = vdwg.mxu0
      %723 = vmatpush.bf16.msra.mxu0 %v528
      %724 = vmatpush.bf16.msra.mxu0 %v521
      %725 = vmatpush.bf16.msra.mxu0 %v514
      %726 = vmatpush.bf16.msra.mxu0 %v507
      %727 = vmatpush.bf16.msra.mxu0 %v500
      %728 = vmatpush.bf16.msra.mxu0 %v493
      %729 = vmatpush.bf16.msra.mxu0 %v486
      %730 = vmatpush.bf16.msra.mxu0 %v479
      %731 = vmatmul.bf16.gmra.mxu0 %v272
      %v732 = vpop.f32.mrf.mxu0
      %v733 = vadd.f32 0.0, %v732
      %v734 = vpop.f32.mrf.mxu0
      %v735 = vadd.f32 0.0, %v734
      %736 = vmatmul.bf16.gmra.mxu0 %v274
      %v737 = vpop.f32.mrf.mxu0
      %v738 = vadd.f32 0.0, %v737
      %v739 = vpop.f32.mrf.mxu0
      %v740 = vadd.f32 0.0, %v739
      %741 = vdwg.mxu0
      %742 = vmatpush.bf16.msra.mxu0 0
      %743 = vmatpush.bf16.msra.mxu0 0
      %744 = vmatpush.bf16.msra.mxu0 0
      %745 = vmatpush.bf16.msra.mxu0 0
      %746 = vmatpush.bf16.msra.mxu0 0
      %747 = vmatpush.bf16.msra.mxu0 0
      %748 = vmatpush.bf16.msra.mxu0 0
      %749 = vmatpush.bf16.msra.mxu0 %v535
      %750 = vmatmul.bf16.gmra.mxu0 %v604
      %v751 = vpop.f32.mrf.mxu0
      %v752 = vadd.f32 %v733, %v751
      %v753 = vpop.f32.mrf.mxu0
      %v754 = vadd.f32 %v735, %v753
      %755 = vmatmul.bf16.gmra.mxu0 %v607
      %v756 = vpop.f32.mrf.mxu0
      %v757 = vadd.f32 %v738, %v756
      %v758 = vpop.f32.mrf.mxu0
      %v759 = vadd.f32 %v740, %v758
      %760 = vdwg.mxu0
      %761 = vmatpush.bf16.msra.mxu0 %v529
      %762 = vmatpush.bf16.msra.mxu0 %v522
      %763 = vmatpush.bf16.msra.mxu0 %v515
      %764 = vmatpush.bf16.msra.mxu0 %v508
      %765 = vmatpush.bf16.msra.mxu0 %v501
      %766 = vmatpush.bf16.msra.mxu0 %v494
      %767 = vmatpush.bf16.msra.mxu0 %v487
      %768 = vmatpush.bf16.msra.mxu0 %v480
      %769 = vmatmul.bf16.gmra.mxu0 %v272
      %v770 = vpop.f32.mrf.mxu0
      %v771 = vadd.f32 0.0, %v770
      %v772 = vpop.f32.mrf.mxu0
      %v773 = vadd.f32 0.0, %v772
      %774 = vmatmul.bf16.gmra.mxu0 %v274
      %v775 = vpop.f32.mrf.mxu0
      %v776 = vadd.f32 0.0, %v775
      %v777 = vpop.f32.mrf.mxu0
      %v778 = vadd.f32 0.0, %v777
      %779 = vdwg.mxu0
      %780 = vmatpush.bf16.msra.mxu0 0
      %781 = vmatpush.bf16.msra.mxu0 0
      %782 = vmatpush.bf16.msra.mxu0 0
      %783 = vmatpush.bf16.msra.mxu0 0
      %784 = vmatpush.bf16.msra.mxu0 0
      %785 = vmatpush.bf16.msra.mxu0 0
      %786 = vmatpush.bf16.msra.mxu0 0
      %787 = vmatpush.bf16.msra.mxu0 %v536
      %788 = vmatmul.bf16.gmra.mxu0 %v604
      %v789 = vpop.f32.mrf.mxu0
      %v790 = vadd.f32 %v771, %v789
      %v791 = vpop.f32.mrf.mxu0
      %v792 = vadd.f32 %v773, %v791
      %793 = vmatmul.bf16.gmra.mxu0 %v607
      %v794 = vpop.f32.mrf.mxu0
      %v795 = vadd.f32 %v776, %v794
      %v796 = vpop.f32.mrf.mxu0
      %v797 = vadd.f32 %v778, %v796
      %798 = vdwg.mxu0
      %799 = vmatpush.bf16.msra.mxu0 %v530
      %800 = vmatpush.bf16.msra.mxu0 %v523
      %801 = vmatpush.bf16.msra.mxu0 %v516
      %802 = vmatpush.bf16.msra.mxu0 %v509
      %803 = vmatpush.bf16.msra.mxu0 %v502
      %804 = vmatpush.bf16.msra.mxu0 %v495
      %805 = vmatpush.bf16.msra.mxu0 %v488
      %806 = vmatpush.bf16.msra.mxu0 %v481
      %807 = vmatmul.bf16.gmra.mxu0 %v272
      %v808 = vpop.f32.mrf.mxu0
      %v809 = vadd.f32 0.0, %v808
      %v810 = vpop.f32.mrf.mxu0
      %v811 = vadd.f32 0.0, %v810
      %812 = vmatmul.bf16.gmra.mxu0 %v274
      %v813 = vpop.f32.mrf.mxu0
      %v814 = vadd.f32 0.0, %v813
      %v815 = vpop.f32.mrf.mxu0
      %v816 = vadd.f32 0.0, %v815
      %817 = vdwg.mxu0
      %818 = vmatpush.bf16.msra.mxu0 0
      %819 = vmatpush.bf16.msra.mxu0 0
      %820 = vmatpush.bf16.msra.mxu0 0
      %821 = vmatpush.bf16.msra.mxu0 0
      %822 = vmatpush.bf16.msra.mxu0 0
      %823 = vmatpush.bf16.msra.mxu0 0
      %824 = vmatpush.bf16.msra.mxu0 0
      %825 = vmatpush.bf16.msra.mxu0 %v537
      %826 = vmatmul.bf16.gmra.mxu0 %v604
      %v827 = vpop.f32.mrf.mxu0
      %v828 = vadd.f32 %v809, %v827
      %v829 = vpop.f32.mrf.mxu0
      %v830 = vadd.f32 %v811, %v829
      %831 = vmatmul.bf16.gmra.mxu0 %v607
      %v832 = vpop.f32.mrf.mxu0
      %v833 = vadd.f32 %v814, %v832
      %v834 = vpop.f32.mrf.mxu0
      %v835 = vadd.f32 %v816, %v834
      %836 = vdwg.mxu0
      %837 = vmatpush.bf16.msra.mxu0 %v531
      %838 = vmatpush.bf16.msra.mxu0 %v524
      %839 = vmatpush.bf16.msra.mxu0 %v517
      %840 = vmatpush.bf16.msra.mxu0 %v510
      %841 = vmatpush.bf16.msra.mxu0 %v503
      %842 = vmatpush.bf16.msra.mxu0 %v496
      %843 = vmatpush.bf16.msra.mxu0 %v489
      %844 = vmatpush.bf16.msra.mxu0 %v482
      %845 = vmatmul.bf16.gmra.mxu0 %v272
      %v846 = vpop.f32.mrf.mxu0
      %v847 = vadd.f32 0.0, %v846
      %v848 = vpop.f32.mrf.mxu0
      %v849 = vadd.f32 0.0, %v848
      %850 = vmatmul.bf16.gmra.mxu0 %v274
      %v851 = vpop.f32.mrf.mxu0
      %v852 = vadd.f32 0.0, %v851
      %v853 = vpop.f32.mrf.mxu0
      %v854 = vadd.f32 0.0, %v853
      %855 = vdwg.mxu0
      %856 = vmatpush.bf16.msra.mxu0 0
      %857 = vmatpush.bf16.msra.mxu0 0
      %858 = vmatpush.bf16.msra.mxu0 0
      %859 = vmatpush.bf16.msra.mxu0 0
      %860 = vmatpush.bf16.msra.mxu0 0
      %861 = vmatpush.bf16.msra.mxu0 0
      %862 = vmatpush.bf16.msra.mxu0 0
      %863 = vmatpush.bf16.msra.mxu0 %v538
      %864 = vmatmul.bf16.gmra.mxu0 %v604
      %v865 = vpop.f32.mrf.mxu0
      %v866 = vadd.f32 %v847, %v865
      %v867 = vpop.f32.mrf.mxu0
      %v868 = vadd.f32 %v849, %v867
      %869 = vmatmul.bf16.gmra.mxu0 %v607
      %v870 = vpop.f32.mrf.mxu0
      %v871 = vadd.f32 %v852, %v870
      %v872 = vpop.f32.mrf.mxu0
      %v873 = vadd.f32 %v854, %v872
      %874 = vdwg.mxu0
      %p875 = scmp.eq.s32.totalorder %s15, 0
      // Predicated region
      $region37: #{dqn_forward.4} parent=35 // pred_check
        %p876 = pneg %p875
      $region38: #{dqn_forward.4} parent=35 // pred_check_branch
        %878 = sbr.rel (%p876) target = $region40
      $region39: #{dqn_forward.4} parent=35 // pred_region
        %879 = vst [vmem:[#allocation2] sm:$0xff] %v638
        %880 = vst [vmem:[#allocation2 + $0x8] sm:$0xff] %v676
        %881 = vst [vmem:[#allocation2 + $0x10] sm:$0xff] %v714
        %882 = vst [vmem:[#allocation2 + $0x18] sm:$0xff] %v752
        %883 = vst [vmem:[#allocation2 + $0x20] sm:$0xff] %v790
        %884 = vst [vmem:[#allocation2 + $0x28] sm:$0xff] %v828
        %885 = vst [vmem:[#allocation2 + $0x30] sm:$0xff] %v866
        %886 = vst [vmem:[#allocation2 + $0x38] sm:$0xff] %v640
        %887 = vst [vmem:[#allocation2 + $0x40] sm:$0xff] %v678
        %888 = vst [vmem:[#allocation2 + $0x48] sm:$0xff] %v716
        %889 = vst [vmem:[#allocation2 + $0x50] sm:$0xff] %v754
        %890 = vst [vmem:[#allocation2 + $0x58] sm:$0xff] %v792
        %891 = vst [vmem:[#allocation2 + $0x60] sm:$0xff] %v830
        %892 = vst [vmem:[#allocation2 + $0x68] sm:$0xff] %v868
        %893 = vst [vmem:[#allocation2 + $0x70] sm:$0xff] %v643
        %894 = vst [vmem:[#allocation2 + $0x78] sm:$0xff] %v681
        %895 = vst [vmem:[#allocation2 + $0x80] sm:$0xff] %v719
        %896 = vst [vmem:[#allocation2 + $0x88] sm:$0xff] %v757
        %897 = vst [vmem:[#allocation2 + $0x90] sm:$0xff] %v795
        %898 = vst [vmem:[#allocation2 + $0x98] sm:$0xff] %v833
        %899 = vst [vmem:[#allocation2 + $0xa0] sm:$0xff] %v871
        %900 = vst [vmem:[#allocation2 + $0xa8] sm:$0xff] %v645
        %901 = vst [vmem:[#allocation2 + $0xb0] sm:$0xff] %v683
        %902 = vst [vmem:[#allocation2 + $0xb8] sm:$0xff] %v721
        %903 = vst [vmem:[#allocation2 + $0xc0] sm:$0xff] %v759
        %904 = vst [vmem:[#allocation2 + $0xc8] sm:$0xff] %v797
        %905 = vst [vmem:[#allocation2 + $0xd0] sm:$0xff] %v835
        %906 = vst [vmem:[#allocation2 + $0xd8] sm:$0xff] %v873
        %907 = vst [vmem:[#allocation3] sm:$0xff] %v638
        %908 = vst [vmem:[#allocation3 + $0x8] sm:$0xff] %v676
        %909 = vst [vmem:[#allocation3 + $0x10] sm:$0xff] %v714
        %910 = vst [vmem:[#allocation3 + $0x18] sm:$0xff] %v752
        %911 = vst [vmem:[#allocation3 + $0x20] sm:$0xff] %v790
        %912 = vst [vmem:[#allocation3 + $0x28] sm:$0xff] %v828
        %913 = vst [vmem:[#allocation3 + $0x30] sm:$0xff] %v866
        %914 = vst [vmem:[#allocation3 + $0x38] sm:$0xff] %v640
        %915 = vst [vmem:[#allocation3 + $0x40] sm:$0xff] %v678
        %916 = vst [vmem:[#allocation3 + $0x48] sm:$0xff] %v716
        %917 = vst [vmem:[#allocation3 + $0x50] sm:$0xff] %v754
        %918 = vst [vmem:[#allocation3 + $0x58] sm:$0xff] %v792
        %919 = vst [vmem:[#allocation3 + $0x60] sm:$0xff] %v830
        %920 = vst [vmem:[#allocation3 + $0x68] sm:$0xff] %v868
        %921 = vst [vmem:[#allocation3 + $0x70] sm:$0xff] %v643
        %922 = vst [vmem:[#allocation3 + $0x78] sm:$0xff] %v681
        %923 = vst [vmem:[#allocation3 + $0x80] sm:$0xff] %v719
        %924 = vst [vmem:[#allocation3 + $0x88] sm:$0xff] %v757
        %925 = vst [vmem:[#allocation3 + $0x90] sm:$0xff] %v795
        %926 = vst [vmem:[#allocation3 + $0x98] sm:$0xff] %v833
        %927 = vst [vmem:[#allocation3 + $0xa0] sm:$0xff] %v871
        %928 = vst [vmem:[#allocation3 + $0xa8] sm:$0xff] %v645
        %929 = vst [vmem:[#allocation3 + $0xb0] sm:$0xff] %v683
        %930 = vst [vmem:[#allocation3 + $0xb8] sm:$0xff] %v721
        %931 = vst [vmem:[#allocation3 + $0xc0] sm:$0xff] %v759
        %932 = vst [vmem:[#allocation3 + $0xc8] sm:$0xff] %v797
        %933 = vst [vmem:[#allocation3 + $0xd0] sm:$0xff] %v835
        %934 = vst [vmem:[#allocation3 + $0xd8] sm:$0xff] %v873
        %vm935 = vcmask 7168
        %936 = vst.msk [vmem:[#allocation4] sm:$0xff] %vm935, 0.0
        %937 = vst.msk [vmem:[#allocation4 + $0x8] sm:$0xff] %vm935, 0.0
        %938 = vst.msk [vmem:[#allocation4 + $0x10] sm:$0xff] %vm935, 0.0
        %939 = vst.msk [vmem:[#allocation4 + $0x18] sm:$0xff] %vm935, 0.0
        %940 = vst.msk [vmem:[#allocation5] sm:$0xff] %vm935, 0.0
        %941 = vst.msk [vmem:[#allocation5 + $0x8] sm:$0xff] %vm935, 0.0
        %942 = vst.msk [vmem:[#allocation5 + $0x10] sm:$0xff] %vm935, 0.0
        %943 = vst.msk [vmem:[#allocation5 + $0x18] sm:$0xff] %vm935, 0.0
      $region40: #{dqn_forward.4} parent=35 // pred_fallthru
        _
      %p944 = scmp.gt.s32.totalorder %s15, 0
      // Predicated region
      $region41: #{dqn_forward.4} parent=35 // pred_check
        %p945 = pneg %p944
      $region42: #{dqn_forward.4} parent=35 // pred_check_branch
        %947 = sbr.rel (%p945) target = $region44
      $region43: #{dqn_forward.4} parent=35 // pred_region
        %v948 = vld [vmem:[#allocation2] sm:$0xff]
        %v949 = vld [vmem:[#allocation2 + $0x8] sm:$0xff]
        %v950 = vld [vmem:[#allocation2 + $0x10] sm:$0xff]
        %v951 = vld [vmem:[#allocation2 + $0x18] sm:$0xff]
        %v952 = vld [vmem:[#allocation2 + $0x20] sm:$0xff]
        %v953 = vld [vmem:[#allocation2 + $0x28] sm:$0xff]
        %v954 = vld [vmem:[#allocation2 + $0x30] sm:$0xff]
        %v955 = vld [vmem:[#allocation2 + $0x38] sm:$0xff]
        %v956 = vld [vmem:[#allocation2 + $0x40] sm:$0xff]
        %v957 = vld [vmem:[#allocation2 + $0x48] sm:$0xff]
        %v958 = vld [vmem:[#allocation2 + $0x50] sm:$0xff]
        %v959 = vld [vmem:[#allocation2 + $0x58] sm:$0xff]
        %v960 = vld [vmem:[#allocation2 + $0x60] sm:$0xff]
        %v961 = vld [vmem:[#allocation2 + $0x68] sm:$0xff]
        %v962 = vld [vmem:[#allocation2 + $0x70] sm:$0xff]
        %v963 = vld [vmem:[#allocation2 + $0x78] sm:$0xff]
        %v964 = vld [vmem:[#allocation2 + $0x80] sm:$0xff]
        %v965 = vld [vmem:[#allocation2 + $0x88] sm:$0xff]
        %v966 = vld [vmem:[#allocation2 + $0x90] sm:$0xff]
        %v967 = vld [vmem:[#allocation2 + $0x98] sm:$0xff]
        %v968 = vld [vmem:[#allocation2 + $0xa0] sm:$0xff]
        %v969 = vld [vmem:[#allocation2 + $0xa8] sm:$0xff]
        %v970 = vld [vmem:[#allocation2 + $0xb0] sm:$0xff]
        %v971 = vld [vmem:[#allocation2 + $0xb8] sm:$0xff]
        %v972 = vld [vmem:[#allocation2 + $0xc0] sm:$0xff]
        %v973 = vld [vmem:[#allocation2 + $0xc8] sm:$0xff]
        %v974 = vld [vmem:[#allocation2 + $0xd0] sm:$0xff]
        %v975 = vld [vmem:[#allocation2 + $0xd8] sm:$0xff]
        %v976 = vmax.f32 %v948, %v638
        %v977 = vmax.f32 %v949, %v676
        %v978 = vmax.f32 %v950, %v714
        %v979 = vmax.f32 %v951, %v752
        %v980 = vmax.f32 %v952, %v790
        %v981 = vmax.f32 %v953, %v828
        %v982 = vmax.f32 %v954, %v866
        %v983 = vmax.f32 %v955, %v640
        %v984 = vmax.f32 %v956, %v678
        %v985 = vmax.f32 %v957, %v716
        %v986 = vmax.f32 %v958, %v754
        %v987 = vmax.f32 %v959, %v792
        %v988 = vmax.f32 %v960, %v830
        %v989 = vmax.f32 %v961, %v868
        %v990 = vmax.f32 %v962, %v643
        %v991 = vmax.f32 %v963, %v681
        %v992 = vmax.f32 %v964, %v719
        %v993 = vmax.f32 %v965, %v757
        %v994 = vmax.f32 %v966, %v795
        %v995 = vmax.f32 %v967, %v833
        %v996 = vmax.f32 %v968, %v871
        %v997 = vmax.f32 %v969, %v645
        %v998 = vmax.f32 %v970, %v683
        %v999 = vmax.f32 %v971, %v721
        %v1000 = vmax.f32 %v972, %v759
        %v1001 = vmax.f32 %v973, %v797
        %v1002 = vmax.f32 %v974, %v835
        %v1003 = vmax.f32 %v975, %v873
        %1004 = vst [vmem:[#allocation2] sm:$0xff] %v976
        %1005 = vst [vmem:[#allocation2 + $0x8] sm:$0xff] %v977
        %1006 = vst [vmem:[#allocation2 + $0x10] sm:$0xff] %v978
        %1007 = vst [vmem:[#allocation2 + $0x18] sm:$0xff] %v979
        %1008 = vst [vmem:[#allocation2 + $0x20] sm:$0xff] %v980
        %1009 = vst [vmem:[#allocation2 + $0x28] sm:$0xff] %v981
        %1010 = vst [vmem:[#allocation2 + $0x30] sm:$0xff] %v982
        %1011 = vst [vmem:[#allocation2 + $0x38] sm:$0xff] %v983
        %1012 = vst [vmem:[#allocation2 + $0x40] sm:$0xff] %v984
        %1013 = vst [vmem:[#allocation2 + $0x48] sm:$0xff] %v985
        %1014 = vst [vmem:[#allocation2 + $0x50] sm:$0xff] %v986
        %1015 = vst [vmem:[#allocation2 + $0x58] sm:$0xff] %v987
        %1016 = vst [vmem:[#allocation2 + $0x60] sm:$0xff] %v988
        %1017 = vst [vmem:[#allocation2 + $0x68] sm:$0xff] %v989
        %1018 = vst [vmem:[#allocation2 + $0x70] sm:$0xff] %v990
        %1019 = vst [vmem:[#allocation2 + $0x78] sm:$0xff] %v991
        %1020 = vst [vmem:[#allocation2 + $0x80] sm:$0xff] %v992
        %1021 = vst [vmem:[#allocation2 + $0x88] sm:$0xff] %v993
        %1022 = vst [vmem:[#allocation2 + $0x90] sm:$0xff] %v994
        %1023 = vst [vmem:[#allocation2 + $0x98] sm:$0xff] %v995
        %1024 = vst [vmem:[#allocation2 + $0xa0] sm:$0xff] %v996
        %1025 = vst [vmem:[#allocation2 + $0xa8] sm:$0xff] %v997
        %1026 = vst [vmem:[#allocation2 + $0xb0] sm:$0xff] %v998
        %1027 = vst [vmem:[#allocation2 + $0xb8] sm:$0xff] %v999
        %1028 = vst [vmem:[#allocation2 + $0xc0] sm:$0xff] %v1000
        %1029 = vst [vmem:[#allocation2 + $0xc8] sm:$0xff] %v1001
        %1030 = vst [vmem:[#allocation2 + $0xd0] sm:$0xff] %v1002
        %1031 = vst [vmem:[#allocation2 + $0xd8] sm:$0xff] %v1003
        %v1032 = vld [vmem:[#allocation3] sm:$0xff]
        %v1033 = vld [vmem:[#allocation3 + $0x8] sm:$0xff]
        %v1034 = vld [vmem:[#allocation3 + $0x10] sm:$0xff]
        %v1035 = vld [vmem:[#allocation3 + $0x18] sm:$0xff]
        %v1036 = vld [vmem:[#allocation3 + $0x20] sm:$0xff]
        %v1037 = vld [vmem:[#allocation3 + $0x28] sm:$0xff]
        %v1038 = vld [vmem:[#allocation3 + $0x30] sm:$0xff]
        %v1039 = vld [vmem:[#allocation3 + $0x38] sm:$0xff]
        %v1040 = vld [vmem:[#allocation3 + $0x40] sm:$0xff]
        %v1041 = vld [vmem:[#allocation3 + $0x48] sm:$0xff]
        %v1042 = vld [vmem:[#allocation3 + $0x50] sm:$0xff]
        %v1043 = vld [vmem:[#allocation3 + $0x58] sm:$0xff]
        %v1044 = vld [vmem:[#allocation3 + $0x60] sm:$0xff]
        %v1045 = vld [vmem:[#allocation3 + $0x68] sm:$0xff]
        %v1046 = vld [vmem:[#allocation3 + $0x70] sm:$0xff]
        %v1047 = vld [vmem:[#allocation3 + $0x78] sm:$0xff]
        %v1048 = vld [vmem:[#allocation3 + $0x80] sm:$0xff]
        %v1049 = vld [vmem:[#allocation3 + $0x88] sm:$0xff]
        %v1050 = vld [vmem:[#allocation3 + $0x90] sm:$0xff]
        %v1051 = vld [vmem:[#allocation3 + $0x98] sm:$0xff]
        %v1052 = vld [vmem:[#allocation3 + $0xa0] sm:$0xff]
        %v1053 = vld [vmem:[#allocation3 + $0xa8] sm:$0xff]
        %v1054 = vld [vmem:[#allocation3 + $0xb0] sm:$0xff]
        %v1055 = vld [vmem:[#allocation3 + $0xb8] sm:$0xff]
        %v1056 = vld [vmem:[#allocation3 + $0xc0] sm:$0xff]
        %v1057 = vld [vmem:[#allocation3 + $0xc8] sm:$0xff]
        %v1058 = vld [vmem:[#allocation3 + $0xd0] sm:$0xff]
        %v1059 = vld [vmem:[#allocation3 + $0xd8] sm:$0xff]
        %v1060 = vmin.f32 %v1032, %v638
        %v1061 = vmin.f32 %v1033, %v676
        %v1062 = vmin.f32 %v1034, %v714
        %v1063 = vmin.f32 %v1035, %v752
        %v1064 = vmin.f32 %v1036, %v790
        %v1065 = vmin.f32 %v1037, %v828
        %v1066 = vmin.f32 %v1038, %v866
        %v1067 = vmin.f32 %v1039, %v640
        %v1068 = vmin.f32 %v1040, %v678
        %v1069 = vmin.f32 %v1041, %v716
        %v1070 = vmin.f32 %v1042, %v754
        %v1071 = vmin.f32 %v1043, %v792
        %v1072 = vmin.f32 %v1044, %v830
        %v1073 = vmin.f32 %v1045, %v868
        %v1074 = vmin.f32 %v1046, %v643
        %v1075 = vmin.f32 %v1047, %v681
        %v1076 = vmin.f32 %v1048, %v719
        %v1077 = vmin.f32 %v1049, %v757
        %v1078 = vmin.f32 %v1050, %v795
        %v1079 = vmin.f32 %v1051, %v833
        %v1080 = vmin.f32 %v1052, %v871
        %v1081 = vmin.f32 %v1053, %v645
        %v1082 = vmin.f32 %v1054, %v683
        %v1083 = vmin.f32 %v1055, %v721
        %v1084 = vmin.f32 %v1056, %v759
        %v1085 = vmin.f32 %v1057, %v797
        %v1086 = vmin.f32 %v1058, %v835
        %v1087 = vmin.f32 %v1059, %v873
        %1088 = vst [vmem:[#allocation3] sm:$0xff] %v1060
        %1089 = vst [vmem:[#allocation3 + $0x8] sm:$0xff] %v1061
        %1090 = vst [vmem:[#allocation3 + $0x10] sm:$0xff] %v1062
        %1091 = vst [vmem:[#allocation3 + $0x18] sm:$0xff] %v1063
        %1092 = vst [vmem:[#allocation3 + $0x20] sm:$0xff] %v1064
        %1093 = vst [vmem:[#allocation3 + $0x28] sm:$0xff] %v1065
        %1094 = vst [vmem:[#allocation3 + $0x30] sm:$0xff] %v1066
        %1095 = vst [vmem:[#allocation3 + $0x38] sm:$0xff] %v1067
        %1096 = vst [vmem:[#allocation3 + $0x40] sm:$0xff] %v1068
        %1097 = vst [vmem:[#allocation3 + $0x48] sm:$0xff] %v1069
        %1098 = vst [vmem:[#allocation3 + $0x50] sm:$0xff] %v1070
        %1099 = vst [vmem:[#allocation3 + $0x58] sm:$0xff] %v1071
        %1100 = vst [vmem:[#allocation3 + $0x60] sm:$0xff] %v1072
        %1101 = vst [vmem:[#allocation3 + $0x68] sm:$0xff] %v1073
        %1102 = vst [vmem:[#allocation3 + $0x70] sm:$0xff] %v1074
        %1103 = vst [vmem:[#allocation3 + $0x78] sm:$0xff] %v1075
        %1104 = vst [vmem:[#allocation3 + $0x80] sm:$0xff] %v1076
        %1105 = vst [vmem:[#allocation3 + $0x88] sm:$0xff] %v1077
        %1106 = vst [vmem:[#allocation3 + $0x90] sm:$0xff] %v1078
        %1107 = vst [vmem:[#allocation3 + $0x98] sm:$0xff] %v1079
        %1108 = vst [vmem:[#allocation3 + $0xa0] sm:$0xff] %v1080
        %1109 = vst [vmem:[#allocation3 + $0xa8] sm:$0xff] %v1081
        %1110 = vst [vmem:[#allocation3 + $0xb0] sm:$0xff] %v1082
        %1111 = vst [vmem:[#allocation3 + $0xb8] sm:$0xff] %v1083
        %1112 = vst [vmem:[#allocation3 + $0xc0] sm:$0xff] %v1084
        %1113 = vst [vmem:[#allocation3 + $0xc8] sm:$0xff] %v1085
        %1114 = vst [vmem:[#allocation3 + $0xd0] sm:$0xff] %v1086
        %1115 = vst [vmem:[#allocation3 + $0xd8] sm:$0xff] %v1087
      $region44: #{dqn_forward.4} parent=35 // pred_fallthru
        _
      %v1116 = vld [vmem:[#allocation4] sm:$0xff]
      %v1117 = vld [vmem:[#allocation4 + $0x8] sm:$0xff]
      %v1118 = vld [vmem:[#allocation4 + $0x10] sm:$0xff]
      %v1119 = vld [vmem:[#allocation4 + $0x18] sm:$0xff]
      %v1120 = vadd.f32 %v638, %v676
      %v1121 = vadd.f32 %v1120, %v714
      %v1122 = vadd.f32 %v1121, %v752
      %v1123 = vadd.f32 %v1122, %v790
      %v1124 = vadd.f32 %v1123, %v828
      %v1125 = vadd.f32 %v1124, %v866
      %1126 = vadd.xlane.f32.xlu0 %v1125
      %v1127 = vpop.xlane.xlu0 %1126
      %v1128 = vadd.f32 %v640, %v678
      %v1129 = vadd.f32 %v1128, %v716
      %v1130 = vadd.f32 %v1129, %v754
      %v1131 = vadd.f32 %v1130, %v792
      %v1132 = vadd.f32 %v1131, %v830
      %v1133 = vadd.f32 %v1132, %v868
      %1134 = vadd.xlane.f32.xlu0 %v1133
      %v1135 = vpop.xlane.xlu0 %1134
      %v1136 = vadd.f32 %v643, %v681
      %v1137 = vadd.f32 %v1136, %v719
      %v1138 = vadd.f32 %v1137, %v757
      %v1139 = vadd.f32 %v1138, %v795
      %v1140 = vadd.f32 %v1139, %v833
      %v1141 = vadd.f32 %v1140, %v871
      %1142 = vadd.xlane.f32.xlu0 %v1141
      %v1143 = vpop.xlane.xlu0 %1142
      %v1144 = vadd.f32 %v645, %v683
      %v1145 = vadd.f32 %v1144, %v721
      %v1146 = vadd.f32 %v1145, %v759
      %v1147 = vadd.f32 %v1146, %v797
      %v1148 = vadd.f32 %v1147, %v835
      %v1149 = vadd.f32 %v1148, %v873
      %1150 = vadd.xlane.f32.xlu0 %v1149
      %v1151 = vpop.xlane.xlu0 %1150
      %v1152 = vadd.f32 %v1116, %v1127
      %v1153 = vadd.f32 %v1117, %v1135
      %v1154 = vadd.f32 %v1118, %v1143
      %v1155 = vadd.f32 %v1119, %v1151
      %vm1156 = vcmask 7168
      %1157 = vst.msk [vmem:[#allocation4] sm:$0xff] %vm1156, %v1152
      %1158 = vst.msk [vmem:[#allocation4 + $0x8] sm:$0xff] %vm1156, %v1153
      %1159 = vst.msk [vmem:[#allocation4 + $0x10] sm:$0xff] %vm1156, %v1154
      %1160 = vst.msk [vmem:[#allocation4 + $0x18] sm:$0xff] %vm1156, %v1155
      %v1161 = vld [vmem:[#allocation5] sm:$0xff]
      %v1162 = vld [vmem:[#allocation5 + $0x8] sm:$0xff]
      %v1163 = vld [vmem:[#allocation5 + $0x10] sm:$0xff]
      %v1164 = vld [vmem:[#allocation5 + $0x18] sm:$0xff]
      %v1165 = vmul.f32 %v638, %v638
      %v1166 = vmul.f32 %v676, %v676
      %v1167 = vmul.f32 %v714, %v714
      %v1168 = vmul.f32 %v752, %v752
      %v1169 = vmul.f32 %v790, %v790
      %v1170 = vmul.f32 %v828, %v828
      %v1171 = vmul.f32 %v866, %v866
      %v1172 = vmul.f32 %v640, %v640
      %v1173 = vmul.f32 %v678, %v678
      %v1174 = vmul.f32 %v716, %v716
      %v1175 = vmul.f32 %v754, %v754
      %v1176 = vmul.f32 %v792, %v792
      %v1177 = vmul.f32 %v830, %v830
      %v1178 = vmul.f32 %v868, %v868
      %v1179 = vmul.f32 %v643, %v643
      %v1180 = vmul.f32 %v681, %v681
      %v1181 = vmul.f32 %v719, %v719
      %v1182 = vmul.f32 %v757, %v757
      %v1183 = vmul.f32 %v795, %v795
      %v1184 = vmul.f32 %v833, %v833
      %v1185 = vmul.f32 %v871, %v871
      %v1186 = vmul.f32 %v645, %v645
      %v1187 = vmul.f32 %v683, %v683
      %v1188 = vmul.f32 %v721, %v721
      %v1189 = vmul.f32 %v759, %v759
      %v1190 = vmul.f32 %v797, %v797
      %v1191 = vmul.f32 %v835, %v835
      %v1192 = vmul.f32 %v873, %v873
      %v1193 = vadd.f32 %v1165, %v1166
      %v1194 = vadd.f32 %v1193, %v1167
      %v1195 = vadd.f32 %v1194, %v1168
      %v1196 = vadd.f32 %v1195, %v1169
      %v1197 = vadd.f32 %v1196, %v1170
      %v1198 = vadd.f32 %v1197, %v1171
      %1199 = vadd.xlane.f32.xlu0 %v1198
      %v1200 = vpop.xlane.xlu0 %1199
      %v1201 = vadd.f32 %v1172, %v1173
      %v1202 = vadd.f32 %v1201, %v1174
      %v1203 = vadd.f32 %v1202, %v1175
      %v1204 = vadd.f32 %v1203, %v1176
      %v1205 = vadd.f32 %v1204, %v1177
      %v1206 = vadd.f32 %v1205, %v1178
      %1207 = vadd.xlane.f32.xlu0 %v1206
      %v1208 = vpop.xlane.xlu0 %1207
      %v1209 = vadd.f32 %v1179, %v1180
      %v1210 = vadd.f32 %v1209, %v1181
      %v1211 = vadd.f32 %v1210, %v1182
      %v1212 = vadd.f32 %v1211, %v1183
      %v1213 = vadd.f32 %v1212, %v1184
      %v1214 = vadd.f32 %v1213, %v1185
      %1215 = vadd.xlane.f32.xlu0 %v1214
      %v1216 = vpop.xlane.xlu0 %1215
      %v1217 = vadd.f32 %v1186, %v1187
      %v1218 = vadd.f32 %v1217, %v1188
      %v1219 = vadd.f32 %v1218, %v1189
      %v1220 = vadd.f32 %v1219, %v1190
      %v1221 = vadd.f32 %v1220, %v1191
      %v1222 = vadd.f32 %v1221, %v1192
      %1223 = vadd.xlane.f32.xlu0 %v1222
      %v1224 = vpop.xlane.xlu0 %1223
      %v1225 = vadd.f32 %v1161, %v1200
      %v1226 = vadd.f32 %v1162, %v1208
      %v1227 = vadd.f32 %v1163, %v1216
      %v1228 = vadd.f32 %v1164, %v1224
      %1229 = vst.msk [vmem:[#allocation5] sm:$0xff] %vm1156, %v1225
      %1230 = vst.msk [vmem:[#allocation5 + $0x8] sm:$0xff] %vm1156, %v1226
      %1231 = vst.msk [vmem:[#allocation5 + $0x10] sm:$0xff] %vm1156, %v1227
      %1232 = vst.msk [vmem:[#allocation5 + $0x18] sm:$0xff] %vm1156, %v1228
      %p1233 = scmp.eq.s32.totalorder %s15, 3
      // Predicated region
      $region45: #{dqn_forward.4} parent=35 // pred_check
        %p1234 = pneg %p1233
      $region46: #{dqn_forward.4} parent=35 // pred_check_branch
        %1236 = sbr.rel (%p1234) target = $region48
      $region47: #{dqn_forward.4} parent=35 // pred_region
        %v1237 = vld [vmem:[#allocation4] sm:$0xff]
        %v1238 = vld [vmem:[#allocation4 + $0x8] sm:$0xff]
        %v1239 = vld [vmem:[#allocation4 + $0x10] sm:$0xff]
        %v1240 = vld [vmem:[#allocation4 + $0x18] sm:$0xff]
        %v1241 = vmul.f32 %v1237, 0.00028344672
        %v1242 = vmul.f32 %v1238, 0.00028344672
        %v1243 = vmul.f32 %v1239, 0.00028344672
        %v1244 = vmul.f32 %v1240, 0.00028344672
        %v1245 = vld [vmem:[#allocation5] sm:$0xff]
        %v1246 = vld [vmem:[#allocation5 + $0x8] sm:$0xff]
        %v1247 = vld [vmem:[#allocation5 + $0x10] sm:$0xff]
        %v1248 = vld [vmem:[#allocation5 + $0x18] sm:$0xff]
        %v1249 = vmul.f32 %v1245, 0.00028344672
        %v1250 = vmul.f32 %v1246, 0.00028344672
        %v1251 = vmul.f32 %v1247, 0.00028344672
        %v1252 = vmul.f32 %v1248, 0.00028344672
        %v1253 = vmul.f32 %v1241, %v1241
        %v1254 = vmul.f32 %v1242, %v1242
        %v1255 = vmul.f32 %v1243, %v1243
        %v1256 = vmul.f32 %v1244, %v1244
        %v1257 = vsub.f32 %v1249, %v1253
        %v1258 = vsub.f32 %v1250, %v1254
        %v1259 = vsub.f32 %v1251, %v1255
        %v1260 = vsub.f32 %v1252, %v1256
        %v1261 = vmax.f32 %v1257, 0.0
        %v1262 = vmax.f32 %v1258, 0.0
        %v1263 = vmax.f32 %v1259, 0.0
        %v1264 = vmax.f32 %v1260, 0.0
        %v1265 = vld [vmem:[%s2] sm:$0xff]
        %v1266 = vld [vmem:[%s2 + $0x8] sm:$0xff]
        %v1267 = vld [vmem:[%s2 + $0x10] sm:$0xff]
        %v1268 = vld [vmem:[%s2 + $0x18] sm:$0xff]
        %v1269 = vadd.f32 %v1261, 1e-05
        %v1270 = vadd.f32 %v1262, 1e-05
        %v1271 = vadd.f32 %v1263, 1e-05
        %v1272 = vadd.f32 %v1264, 1e-05
        %v1273 = vrsqrt.pop %v1269
        %v1274 = vmul.f32 %v1273, %v1269
        %v1275 = vmul.f32 %v1274, %v1273
        %v1276 = vmul.f32 0.5, %v1275
        %v1277 = vsub.f32 1.5, %v1276
        %v1278 = vmul.f32 %v1273, %v1277
        %vm1279 = vweird.f32 %v1269
        %vm1280 = vweird.f32 %v1273
        %vm1281 = vmor %vm1279, %vm1280
        %v1282 = vsel %vm1281, %v1273, %v1278
        %v1283 = vrsqrt.pop %v1270
        %v1284 = vmul.f32 %v1283, %v1270
        %v1285 = vmul.f32 %v1284, %v1283
        %v1286 = vmul.f32 0.5, %v1285
        %v1287 = vsub.f32 1.5, %v1286
        %v1288 = vmul.f32 %v1283, %v1287
        %vm1289 = vweird.f32 %v1270
        %vm1290 = vweird.f32 %v1283
        %vm1291 = vmor %vm1289, %vm1290
        %v1292 = vsel %vm1291, %v1283, %v1288
        %v1293 = vrsqrt.pop %v1271
        %v1294 = vmul.f32 %v1293, %v1271
        %v1295 = vmul.f32 %v1294, %v1293
        %v1296 = vmul.f32 0.5, %v1295
        %v1297 = vsub.f32 1.5, %v1296
        %v1298 = vmul.f32 %v1293, %v1297
        %vm1299 = vweird.f32 %v1271
        %vm1300 = vweird.f32 %v1293
        %vm1301 = vmor %vm1299, %vm1300
        %v1302 = vsel %vm1301, %v1293, %v1298
        %v1303 = vrsqrt.pop %v1272
        %v1304 = vmul.f32 %v1303, %v1272
        %v1305 = vmul.f32 %v1304, %v1303
        %v1306 = vmul.f32 0.5, %v1305
        %v1307 = vsub.f32 1.5, %v1306
        %v1308 = vmul.f32 %v1303, %v1307
        %vm1309 = vweird.f32 %v1272
        %vm1310 = vweird.f32 %v1303
        %vm1311 = vmor %vm1309, %vm1310
        %v1312 = vsel %vm1311, %v1303, %v1308
        %v1313 = vmul.f32 %v1265, %v1282
        %v1314 = vmul.f32 %v1266, %v1292
        %v1315 = vmul.f32 %v1267, %v1302
        %v1316 = vmul.f32 %v1268, %v1312
        %v1317 = vld [vmem:[%s3] sm:$0xff]
        %v1318 = vld [vmem:[%s3 + $0x8] sm:$0xff]
        %v1319 = vld [vmem:[%s3 + $0x10] sm:$0xff]
        %v1320 = vld [vmem:[%s3 + $0x18] sm:$0xff]
        %v1321 = vmul.f32 %v1241, %v1313
        %v1322 = vmul.f32 %v1242, %v1314
        %v1323 = vmul.f32 %v1243, %v1315
        %v1324 = vmul.f32 %v1244, %v1316
        %v1325 = vsub.f32 %v1317, %v1321
        %v1326 = vsub.f32 %v1318, %v1322
        %v1327 = vsub.f32 %v1319, %v1323
        %v1328 = vsub.f32 %v1320, %v1324
        %vm1329 = vcmp.ge.f32.partialorder %v1313, 0.0
        %vm1330 = vcmp.ge.f32.partialorder %v1314, 0.0
        %vm1331 = vcmp.ge.f32.partialorder %v1315, 0.0
        %vm1332 = vcmp.ge.f32.partialorder %v1316, 0.0
        %v1333 = vld [vmem:[#allocation2] sm:$0xff]
        %v1334 = vld [vmem:[#allocation2 + $0x8] sm:$0xff]
        %v1335 = vld [vmem:[#allocation2 + $0x10] sm:$0xff]
        %v1336 = vld [vmem:[#allocation2 + $0x18] sm:$0xff]
        %v1337 = vld [vmem:[#allocation2 + $0x20] sm:$0xff]
        %v1338 = vld [vmem:[#allocation2 + $0x28] sm:$0xff]
        %v1339 = vld [vmem:[#allocation2 + $0x30] sm:$0xff]
        %v1340 = vld [vmem:[#allocation2 + $0x38] sm:$0xff]
        %v1341 = vld [vmem:[#allocation2 + $0x40] sm:$0xff]
        %v1342 = vld [vmem:[#allocation2 + $0x48] sm:$0xff]
        %v1343 = vld [vmem:[#allocation2 + $0x50] sm:$0xff]
        %v1344 = vld [vmem:[#allocation2 + $0x58] sm:$0xff]
        %v1345 = vld [vmem:[#allocation2 + $0x60] sm:$0xff]
        %v1346 = vld [vmem:[#allocation2 + $0x68] sm:$0xff]
        %v1347 = vld [vmem:[#allocation2 + $0x70] sm:$0xff]
        %v1348 = vld [vmem:[#allocation2 + $0x78] sm:$0xff]
        %v1349 = vld [vmem:[#allocation2 + $0x80] sm:$0xff]
        %v1350 = vld [vmem:[#allocation2 + $0x88] sm:$0xff]
        %v1351 = vld [vmem:[#allocation2 + $0x90] sm:$0xff]
        %v1352 = vld [vmem:[#allocation2 + $0x98] sm:$0xff]
        %v1353 = vld [vmem:[#allocation2 + $0xa0] sm:$0xff]
        %v1354 = vld [vmem:[#allocation2 + $0xa8] sm:$0xff]
        %v1355 = vld [vmem:[#allocation2 + $0xb0] sm:$0xff]
        %v1356 = vld [vmem:[#allocation2 + $0xb8] sm:$0xff]
        %v1357 = vld [vmem:[#allocation2 + $0xc0] sm:$0xff]
        %v1358 = vld [vmem:[#allocation2 + $0xc8] sm:$0xff]
        %v1359 = vld [vmem:[#allocation2 + $0xd0] sm:$0xff]
        %v1360 = vld [vmem:[#allocation2 + $0xd8] sm:$0xff]
        %v1361 = vld [vmem:[#allocation3] sm:$0xff]
        %v1362 = vld [vmem:[#allocation3 + $0x8] sm:$0xff]
        %v1363 = vld [vmem:[#allocation3 + $0x10] sm:$0xff]
        %v1364 = vld [vmem:[#allocation3 + $0x18] sm:$0xff]
        %v1365 = vld [vmem:[#allocation3 + $0x20] sm:$0xff]
        %v1366 = vld [vmem:[#allocation3 + $0x28] sm:$0xff]
        %v1367 = vld [vmem:[#allocation3 + $0x30] sm:$0xff]
        %v1368 = vld [vmem:[#allocation3 + $0x38] sm:$0xff]
        %v1369 = vld [vmem:[#allocation3 + $0x40] sm:$0xff]
        %v1370 = vld [vmem:[#allocation3 + $0x48] sm:$0xff]
        %v1371 = vld [vmem:[#allocation3 + $0x50] sm:$0xff]
        %v1372 = vld [vmem:[#allocation3 + $0x58] sm:$0xff]
        %v1373 = vld [vmem:[#allocation3 + $0x60] sm:$0xff]
        %v1374 = vld [vmem:[#allocation3 + $0x68] sm:$0xff]
        %v1375 = vld [vmem:[#allocation3 + $0x70] sm:$0xff]
        %v1376 = vld [vmem:[#allocation3 + $0x78] sm:$0xff]
        %v1377 = vld [vmem:[#allocation3 + $0x80] sm:$0xff]
        %v1378 = vld [vmem:[#allocation3 + $0x88] sm:$0xff]
        %v1379 = vld [vmem:[#allocation3 + $0x90] sm:$0xff]
        %v1380 = vld [vmem:[#allocation3 + $0x98] sm:$0xff]
        %v1381 = vld [vmem:[#allocation3 + $0xa0] sm:$0xff]
        %v1382 = vld [vmem:[#allocation3 + $0xa8] sm:$0xff]
        %v1383 = vld [vmem:[#allocation3 + $0xb0] sm:$0xff]
        %v1384 = vld [vmem:[#allocation3 + $0xb8] sm:$0xff]
        %v1385 = vld [vmem:[#allocation3 + $0xc0] sm:$0xff]
        %v1386 = vld [vmem:[#allocation3 + $0xc8] sm:$0xff]
        %v1387 = vld [vmem:[#allocation3 + $0xd0] sm:$0xff]
        %v1388 = vld [vmem:[#allocation3 + $0xd8] sm:$0xff]
        %v1389 = vsel %vm1329, 1, 0
        %v1390 = vsel %vm1330, 1, 0
        %v1391 = vsel %vm1331, 1, 0
        %v1392 = vsel %vm1332, 1, 0
        %1393 = vset.pattern.permute.xlu0 0
        %1394 = vperm.xlu0 %1393, %v1389
        %v1395 = vpop.permute.xlu0 %1394
        %1396 = vset.pattern.permute.xlu0 0
        %1397 = vperm.xlu0 %1396, %v1390
        %v1398 = vpop.permute.xlu0 %1397
        %1399 = vset.pattern.permute.xlu0 0
        %1400 = vperm.xlu0 %1399, %v1391
        %v1401 = vpop.permute.xlu0 %1400
        %1402 = vset.pattern.permute.xlu0 0
        %1403 = vperm.xlu0 %1402, %v1392
        %v1404 = vpop.permute.xlu0 %1403
        %vm1405 = vcmp.eq.s32.totalorder %v1395, 1
        %vm1406 = vcmp.eq.s32.totalorder %v1398, 1
        %vm1407 = vcmp.eq.s32.totalorder %v1401, 1
        %vm1408 = vcmp.eq.s32.totalorder %v1404, 1
        %v1409 = vsel %vm1405, %v1333, %v1361
        %v1410 = vsel %vm1405, %v1334, %v1362
        %v1411 = vsel %vm1405, %v1335, %v1363
        %v1412 = vsel %vm1405, %v1336, %v1364
        %v1413 = vsel %vm1405, %v1337, %v1365
        %v1414 = vsel %vm1405, %v1338, %v1366
        %v1415 = vsel %vm1405, %v1339, %v1367
        %v1416 = vsel %vm1406, %v1340, %v1368
        %v1417 = vsel %vm1406, %v1341, %v1369
        %v1418 = vsel %vm1406, %v1342, %v1370
        %v1419 = vsel %vm1406, %v1343, %v1371
        %v1420 = vsel %vm1406, %v1344, %v1372
        %v1421 = vsel %vm1406, %v1345, %v1373
        %v1422 = vsel %vm1406, %v1346, %v1374
        %v1423 = vsel %vm1407, %v1347, %v1375
        %v1424 = vsel %vm1407, %v1348, %v1376
        %v1425 = vsel %vm1407, %v1349, %v1377
        %v1426 = vsel %vm1407, %v1350, %v1378
        %v1427 = vsel %vm1407, %v1351, %v1379
        %v1428 = vsel %vm1407, %v1352, %v1380
        %v1429 = vsel %vm1407, %v1353, %v1381
        %v1430 = vsel %vm1408, %v1354, %v1382
        %v1431 = vsel %vm1408, %v1355, %v1383
        %v1432 = vsel %vm1408, %v1356, %v1384
        %v1433 = vsel %vm1408, %v1357, %v1385
        %v1434 = vsel %vm1408, %v1358, %v1386
        %v1435 = vsel %vm1408, %v1359, %v1387
        %v1436 = vsel %vm1408, %v1360, %v1388
        %1438 = vset.pattern.permute.xlu0 0
        %1439 = vperm.xlu0 %1438, %v1313
        %v1440 = vpop.permute.xlu0 %1439
        %1443 = vset.pattern.permute.xlu0 0
        %1444 = vperm.xlu0 %1443, %v1314
        %v1445 = vpop.permute.xlu0 %1444
        %1448 = vset.pattern.permute.xlu0 0
        %1449 = vperm.xlu0 %1448, %v1315
        %v1450 = vpop.permute.xlu0 %1449
        %1453 = vset.pattern.permute.xlu0 0
        %1454 = vperm.xlu0 %1453, %v1316
        %v1455 = vpop.permute.xlu0 %1454
        %v1457 = vmul.f32 %v1409, %v1440
        %v1458 = vmul.f32 %v1410, %v1440
        %v1459 = vmul.f32 %v1411, %v1440
        %v1460 = vmul.f32 %v1412, %v1440
        %v1461 = vmul.f32 %v1413, %v1440
        %v1462 = vmul.f32 %v1414, %v1440
        %v1463 = vmul.f32 %v1415, %v1440
        %v1464 = vmul.f32 %v1416, %v1445
        %v1465 = vmul.f32 %v1417, %v1445
        %v1466 = vmul.f32 %v1418, %v1445
        %v1467 = vmul.f32 %v1419, %v1445
        %v1468 = vmul.f32 %v1420, %v1445
        %v1469 = vmul.f32 %v1421, %v1445
        %v1470 = vmul.f32 %v1422, %v1445
        %v1471 = vmul.f32 %v1423, %v1450
        %v1472 = vmul.f32 %v1424, %v1450
        %v1473 = vmul.f32 %v1425, %v1450
        %v1474 = vmul.f32 %v1426, %v1450
        %v1475 = vmul.f32 %v1427, %v1450
        %v1476 = vmul.f32 %v1428, %v1450
        %v1477 = vmul.f32 %v1429, %v1450
        %v1478 = vmul.f32 %v1430, %v1455
        %v1479 = vmul.f32 %v1431, %v1455
        %v1480 = vmul.f32 %v1432, %v1455
        %v1481 = vmul.f32 %v1433, %v1455
        %v1482 = vmul.f32 %v1434, %v1455
        %v1483 = vmul.f32 %v1435, %v1455
        %v1484 = vmul.f32 %v1436, %v1455
        %1486 = vset.pattern.permute.xlu0 0
        %1487 = vperm.xlu0 %1486, %v1325
        %v1488 = vpop.permute.xlu0 %1487
        %1491 = vset.pattern.permute.xlu0 0
        %1492 = vperm.xlu0 %1491, %v1326
        %v1493 = vpop.permute.xlu0 %1492
        %1496 = vset.pattern.permute.xlu0 0
        %1497 = vperm.xlu0 %1496, %v1327
        %v1498 = vpop.permute.xlu0 %1497
        %1501 = vset.pattern.permute.xlu0 0
        %1502 = vperm.xlu0 %1501, %v1328
        %v1503 = vpop.permute.xlu0 %1502
        %v1505 = vadd.f32 %v1457, %v1488
        %v1506 = vadd.f32 %v1458, %v1488
        %v1507 = vadd.f32 %v1459, %v1488
        %v1508 = vadd.f32 %v1460, %v1488
        %v1509 = vadd.f32 %v1461, %v1488
        %v1510 = vadd.f32 %v1462, %v1488
        %v1511 = vadd.f32 %v1463, %v1488
        %v1512 = vadd.f32 %v1464, %v1493
        %v1513 = vadd.f32 %v1465, %v1493
        %v1514 = vadd.f32 %v1466, %v1493
        %v1515 = vadd.f32 %v1467, %v1493
        %v1516 = vadd.f32 %v1468, %v1493
        %v1517 = vadd.f32 %v1469, %v1493
        %v1518 = vadd.f32 %v1470, %v1493
        %v1519 = vadd.f32 %v1471, %v1498
        %v1520 = vadd.f32 %v1472, %v1498
        %v1521 = vadd.f32 %v1473, %v1498
        %v1522 = vadd.f32 %v1474, %v1498
        %v1523 = vadd.f32 %v1475, %v1498
        %v1524 = vadd.f32 %v1476, %v1498
        %v1525 = vadd.f32 %v1477, %v1498
        %v1526 = vadd.f32 %v1478, %v1503
        %v1527 = vadd.f32 %v1479, %v1503
        %v1528 = vadd.f32 %v1480, %v1503
        %v1529 = vadd.f32 %v1481, %v1503
        %v1530 = vadd.f32 %v1482, %v1503
        %v1531 = vadd.f32 %v1483, %v1503
        %v1532 = vadd.f32 %v1484, %v1503
        %v1533 = vmax.f32 %v1505, 0.0
        %v1534 = vmax.f32 %v1506, 0.0
        %v1535 = vmax.f32 %v1507, 0.0
        %v1536 = vmax.f32 %v1508, 0.0
        %v1537 = vmax.f32 %v1509, 0.0
        %v1538 = vmax.f32 %v1510, 0.0
        %v1539 = vmax.f32 %v1511, 0.0
        %v1540 = vmax.f32 %v1512, 0.0
        %v1541 = vmax.f32 %v1513, 0.0
        %v1542 = vmax.f32 %v1514, 0.0
        %v1543 = vmax.f32 %v1515, 0.0
        %v1544 = vmax.f32 %v1516, 0.0
        %v1545 = vmax.f32 %v1517, 0.0
        %v1546 = vmax.f32 %v1518, 0.0
        %v1547 = vmax.f32 %v1519, 0.0
        %v1548 = vmax.f32 %v1520, 0.0
        %v1549 = vmax.f32 %v1521, 0.0
        %v1550 = vmax.f32 %v1522, 0.0
        %v1551 = vmax.f32 %v1523, 0.0
        %v1552 = vmax.f32 %v1524, 0.0
        %v1553 = vmax.f32 %v1525, 0.0
        %v1554 = vmax.f32 %v1526, 0.0
        %v1555 = vmax.f32 %v1527, 0.0
        %v1556 = vmax.f32 %v1528, 0.0
        %v1557 = vmax.f32 %v1529, 0.0
        %v1558 = vmax.f32 %v1530, 0.0
        %v1559 = vmax.f32 %v1531, 0.0
        %v1560 = vmax.f32 %v1532, 0.0
        %v1561 = vpack.c.bf16 %v1534, %v1533
        %v1562 = vpack.c.bf16 %v1536, %v1535
        %v1563 = vpack.c.bf16 %v1538, %v1537
        %v1564 = vpack.c.bf16 %v1539, %v1539
        %v1565 = vpack.c.bf16 %v1541, %v1540
        %v1566 = vpack.c.bf16 %v1543, %v1542
        %v1567 = vpack.c.bf16 %v1545, %v1544
        %v1568 = vpack.c.bf16 %v1546, %v1546
        %v1569 = vpack.c.bf16 %v1548, %v1547
        %v1570 = vpack.c.bf16 %v1550, %v1549
        %v1571 = vpack.c.bf16 %v1552, %v1551
        %v1572 = vpack.c.bf16 %v1553, %v1553
        %v1573 = vpack.c.bf16 %v1555, %v1554
        %v1574 = vpack.c.bf16 %v1557, %v1556
        %v1575 = vpack.c.bf16 %v1559, %v1558
        %v1576 = vpack.c.bf16 %v1560, %v1560
        %1577 = vst [vmem:[%s4] sm:$0xff] %v1561
        %1578 = vst [vmem:[%s4 + $0x8] sm:$0xff] %v1562
        %1579 = vst [vmem:[%s4 + $0x10] sm:$0xff] %v1563
        %1580 = vst [vmem:[%s4 + $0x18] sm:$0xf] %v1564
        %1581 = vst [vmem:[%s4 + $0x1c] sm:$0xff] %v1565
        %1582 = vst [vmem:[%s4 + $0x24] sm:$0xff] %v1566
        %1583 = vst [vmem:[%s4 + $0x2c] sm:$0xff] %v1567
        %1584 = vst [vmem:[%s4 + $0x34] sm:$0xf] %v1568
        %1585 = vst [vmem:[%s4 + $0x38] sm:$0xff] %v1569
        %1586 = vst [vmem:[%s4 + $0x40] sm:$0xff] %v1570
        %1587 = vst [vmem:[%s4 + $0x48] sm:$0xff] %v1571
        %1588 = vst [vmem:[%s4 + $0x50] sm:$0xf] %v1572
        %1589 = vst [vmem:[%s4 + $0x54] sm:$0xff] %v1573
        %1590 = vst [vmem:[%s4 + $0x5c] sm:$0xff] %v1574
        %1591 = vst [vmem:[%s4 + $0x64] sm:$0xff] %v1575
        %1592 = vst [vmem:[%s4 + $0x6c] sm:$0xf] %v1576
      $region48: #{dqn_forward.4} parent=35 // pred_fallthru
        _
      // Predicated region
      $region49: #{dqn_forward.4} parent=35 // pred_check
        %p1593 = pneg %p117
      $region50: #{dqn_forward.4} parent=35 // pred_check_branch
        %1595 = sbr.rel (%p1593) target = $region52
      $region51: #{dqn_forward.4} parent=35 // pred_region
        _
      $region52: #{dqn_forward.4} parent=35 // pred_fallthru
        _
      // Predicated region
      $region53: #{dqn_forward.4} parent=35 // pred_check
        %p1596 = pneg %p117
      $region54: #{dqn_forward.4} parent=35 // pred_check_branch
        %1598 = sbr.rel (%p1596) target = $region56
      $region55: #{dqn_forward.4} parent=35 // pred_region
        _
      $region56: #{dqn_forward.4} parent=35 // pred_fallthru
        _
    $region36: #{dqn_forward.4} parent=5 // pred_fallthru
      _
    %p1599 = scmp.le.s32.totalorder 2, %s10
    // Predicated region
    $region57: #{dqn_forward.4} parent=5 // pred_check
      %p1600 = pneg %p1599
    $region58: #{dqn_forward.4} parent=5 // pred_check_branch
      %1602 = sbr.rel (%p1600) target = $region60
    $region59: #{dqn_forward.4} parent=5 // pred_region
      %s1603 = ssub.s32 %s10, 2
    $region60: #{dqn_forward.4} parent=5 // pred_fallthru
      _
  $region6: #{dqn_forward.4} parent=0 // loop_footer
    %s14 = sadd.s32 1, %s10
  $region7: #{dqn_forward.4} parent=0 // loop_footer_branch
    %9 = sbr.rel target = $region3
  $region8: #{dqn_forward.4} parent=0 // loop_exit
    _

// kernel: dqn_forward.5
$region0: #{dqn_forward.5}
  #allocation0 [shape = 'u32[]', space=smem, size = 0x4, offset = 0x4, fixed_abs, tag = 'smem constant byte address 0x4 - core index']
  #allocation1 [shape = 'u32[72,128]{1,0:T(1,128)}', space=vmem, size = 0x9000, scoped, tag = 'internal scratch']
  #allocation2 [shape = 'f32[2,64]{1,0:T(2,128)}', space=vmem, size = 0x400, scoped, tag = 'scratch operand']
  %s0 = inlined_call_operand.vmem [shape: bf16[2,14336], index: 0, kind: input, shape index: {}]
  %s1 = inlined_call_operand.vmem [shape: bf16[14336,64], index: 1, kind: input, shape index: {}]
  %s2 = inlined_call_operand.vmem [shape: f32[1,64], index: 2, kind: input, shape index: {}]
  %s3 = inlined_call_operand.vmem [shape: f32[1,64], index: 3, kind: input, shape index: {}]
  %s4 = inlined_call_operand.vmem [shape: f32[64,64], index: 4, kind: input, shape index: {}]
  %s5 = inlined_call_operand.vmem [shape: f32[1,64], index: 5, kind: input, shape index: {}]
  %s6 = inlined_call_operand.vmem [shape: f32[1,64], index: 6, kind: input, shape index: {}]
  %s7 = inlined_call_operand.vmem [shape: f32[64,4], index: 7, kind: input, shape index: {}]
  %s8 = inlined_call_operand.vmem [shape: f32[1,4], index: 8, kind: input, shape index: {}]
  %s9 = inlined_call_operand.hbm [shape: f32[2,4], index: 9, kind: output, shape index: {}]
  %s10 = sld [smem:[#allocation0]]
  $region77: #{dqn_forward.5} parent=0
    _
  %s12 = ssub.s32 1, %s10
  %s13 = scalar_select 0, %s12, %s10
  $region1: #{dqn_forward.5} parent=0
    #allocation3 [shape = 'u8[1024]{0}', space=vmem, size = 0x400, scoped, tag = 'output window, operand 0, single buffered']
    #allocation4 [shape = 's32[2]{0}', space=sflag, size = 0x8, scoped, tag = 'scoped memory for dqn_forward.5']
    %14 = vsyncpa [#allocation4], 0
    loop: start=0, step=1, limit=4
    $region2: #{dqn_forward.5} parent=1 // loop_pre_header
      _
    $region3: #{dqn_forward.5} parent=1 // loop_header
      %s16 = sphi 0, %s20
      %p17 = scmp.ge.s32.totalorder %s16, 4
      %s26 = sphi 0, %s28
      %s29 = sphi 0, %s26
      %s30 = sphi 0, %s29
      %s46 = sphi 0, %s30
      %s52 = sphi 0, %s54
      %s55 = sphi 0, %s52
      %s56 = sphi 0, %s55
      %s72 = sphi 0, %s56
      %s76 = sphi 0, %s76
      %s78 = sphi 0, %s76
      %s79 = sphi 0, %s78
      %s93 = sphi 0, %s79
      %s97 = sphi 0, %s97
      %s99 = sphi 0, %s97
      %s100 = sphi 0, %s99
      %s114 = sphi 0, %s100
      %s118 = sphi 0, %s118
      %s120 = sphi 0, %s118
      %s121 = sphi 0, %s120
      %s135 = sphi 0, %s121
      %s139 = sphi 0, %s139
      %s141 = sphi 0, %s139
      %s142 = sphi 0, %s141
      %s156 = sphi 0, %s142
      %s160 = sphi 0, %s160
      %s162 = sphi 0, %s160
      %s163 = sphi 0, %s162
      %s177 = sphi 0, %s163
      %s181 = sphi 0, %s181
      %s183 = sphi 0, %s181
      %s184 = sphi 0, %s183
      %s198 = sphi 0, %s184
      %s202 = sphi 0, %s202
      %s204 = sphi 0, %s202
      %s205 = sphi 0, %s204
      %s219 = sphi 0, %s205
      %s223 = sphi 0, %s223
      %s225 = sphi 0, %s223
      %s226 = sphi 0, %s225
      %s240 = sphi 0, %s226
    $region4: #{dqn_forward.5} parent=1 // loop_header_branch
      %19 = sbr.rel (%p17) target = $region8
    $region5: #{dqn_forward.5} parent=1 // loop_body
      %s21 = ssub.s32 %s16, 1
      %s22 = ssub.s32 %s16, 2
      %s23 = sadd.s32 %s16, 1
      %s24 = ssub.s32 %s16, %s23
      %p25 = scmp.eq.s32.totalorder %s24, 0
      %s27 = sadd.s32 %s26, 1
      %s28 = scalar_select %p25, %s26, %s27
      %p31 = pneg %p25
      %p32 = scmp.eq.s32.totalorder %s16, 1
      %p33 = por %p31, %p32
      %p34 = scmp.ne.s32.totalorder %s26, %s29
      %p35 = scmp.eq.s32.totalorder %s16, 0
      %p36 = por %p34, %p35
      %p37 = scmp.ne.s32.totalorder %s26, %s29
      %p38 = scmp.eq.s32.totalorder %s21, 1
      %p39 = por %p37, %p38
      %p40 = scmp.ne.s32.totalorder %s29, %s30
      %p41 = scmp.eq.s32.totalorder %s21, 0
      %p42 = por %p40, %p41
      %p43 = scmp.ne.s32.totalorder %s29, %s30
      %p44 = scmp.eq.s32.totalorder %s22, 1
      %p45 = por %p43, %p44
      %p47 = scmp.ne.s32.totalorder %s30, %s46
      %p48 = scmp.eq.s32.totalorder %s22, 0
      %p49 = por %p47, %p48
      %s50 = ssub.s32 %s16, %s23
      %p51 = scmp.eq.s32.totalorder %s50, 0
      %s53 = sadd.s32 %s52, 1
      %s54 = scalar_select %p51, %s52, %s53
      %p57 = pneg %p51
      %p58 = scmp.eq.s32.totalorder %s16, 1
      %p59 = por %p57, %p58
      %p60 = scmp.ne.s32.totalorder %s52, %s55
      %p61 = scmp.eq.s32.totalorder %s16, 0
      %p62 = por %p60, %p61
      %p63 = scmp.ne.s32.totalorder %s52, %s55
      %p64 = scmp.eq.s32.totalorder %s21, 1
      %p65 = por %p63, %p64
      %p66 = scmp.ne.s32.totalorder %s55, %s56
      %p67 = scmp.eq.s32.totalorder %s21, 0
      %p68 = por %p66, %p67
      %p69 = scmp.ne.s32.totalorder %s55, %s56
      %p70 = scmp.eq.s32.totalorder %s22, 1
      %p71 = por %p69, %p70
      %p73 = scmp.ne.s32.totalorder %s56, %s72
      %p74 = scmp.eq.s32.totalorder %s22, 0
      %p75 = por %p73, %p74
      %s77 = sadd.s32 %s76, 1
      %p80 = scmp.eq.s32.totalorder %s16, 1
      %p81 = scmp.ne.s32.totalorder %s76, %s78
      %p82 = scmp.eq.s32.totalorder %s16, 0
      %p83 = por %p81, %p82
      %p84 = scmp.ne.s32.totalorder %s76, %s78
      %p85 = scmp.eq.s32.totalorder %s21, 1
      %p86 = por %p84, %p85
      %p87 = scmp.ne.s32.totalorder %s78, %s79
      %p88 = scmp.eq.s32.totalorder %s21, 0
      %p89 = por %p87, %p88
      %p90 = scmp.ne.s32.totalorder %s78, %s79
      %p91 = scmp.eq.s32.totalorder %s22, 1
      %p92 = por %p90, %p91
      %p94 = scmp.ne.s32.totalorder %s79, %s93
      %p95 = scmp.eq.s32.totalorder %s22, 0
      %p96 = por %p94, %p95
      %s98 = sadd.s32 %s97, 1
      %p101 = scmp.eq.s32.totalorder %s16, 1
      %p102 = scmp.ne.s32.totalorder %s97, %s99
      %p103 = scmp.eq.s32.totalorder %s16, 0
      %p104 = por %p102, %p103
      %p105 = scmp.ne.s32.totalorder %s97, %s99
      %p106 = scmp.eq.s32.totalorder %s21, 1
      %p107 = por %p105, %p106
      %p108 = scmp.ne.s32.totalorder %s99, %s100
      %p109 = scmp.eq.s32.totalorder %s21, 0
      %p110 = por %p108, %p109
      %p111 = scmp.ne.s32.totalorder %s99, %s100
      %p112 = scmp.eq.s32.totalorder %s22, 1
      %p113 = por %p111, %p112
      %p115 = scmp.ne.s32.totalorder %s100, %s114
      %p116 = scmp.eq.s32.totalorder %s22, 0
      %p117 = por %p115, %p116
      %s119 = sadd.s32 %s118, 1
      %p122 = scmp.eq.s32.totalorder %s16, 1
      %p123 = scmp.ne.s32.totalorder %s118, %s120
      %p124 = scmp.eq.s32.totalorder %s16, 0
      %p125 = por %p123, %p124
      %p126 = scmp.ne.s32.totalorder %s118, %s120
      %p127 = scmp.eq.s32.totalorder %s21, 1
      %p128 = por %p126, %p127
      %p129 = scmp.ne.s32.totalorder %s120, %s121
      %p130 = scmp.eq.s32.totalorder %s21, 0
      %p131 = por %p129, %p130
      %p132 = scmp.ne.s32.totalorder %s120, %s121
      %p133 = scmp.eq.s32.totalorder %s22, 1
      %p134 = por %p132, %p133
      %p136 = scmp.ne.s32.totalorder %s121, %s135
      %p137 = scmp.eq.s32.totalorder %s22, 0
      %p138 = por %p136, %p137
      %s140 = sadd.s32 %s139, 1
      %p143 = scmp.eq.s32.totalorder %s16, 1
      %p144 = scmp.ne.s32.totalorder %s139, %s141
      %p145 = scmp.eq.s32.totalorder %s16, 0
      %p146 = por %p144, %p145
      %p147 = scmp.ne.s32.totalorder %s139, %s141
      %p148 = scmp.eq.s32.totalorder %s21, 1
      %p149 = por %p147, %p148
      %p150 = scmp.ne.s32.totalorder %s141, %s142
      %p151 = scmp.eq.s32.totalorder %s21, 0
      %p152 = por %p150, %p151
      %p153 = scmp.ne.s32.totalorder %s141, %s142
      %p154 = scmp.eq.s32.totalorder %s22, 1
      %p155 = por %p153, %p154
      %p157 = scmp.ne.s32.totalorder %s142, %s156
      %p158 = scmp.eq.s32.totalorder %s22, 0
      %p159 = por %p157, %p158
      %s161 = sadd.s32 %s160, 1
      %p164 = scmp.eq.s32.totalorder %s16, 1
      %p165 = scmp.ne.s32.totalorder %s160, %s162
      %p166 = scmp.eq.s32.totalorder %s16, 0
      %p167 = por %p165, %p166
      %p168 = scmp.ne.s32.totalorder %s160, %s162
      %p169 = scmp.eq.s32.totalorder %s21, 1
      %p170 = por %p168, %p169
      %p171 = scmp.ne.s32.totalorder %s162, %s163
      %p172 = scmp.eq.s32.totalorder %s21, 0
      %p173 = por %p171, %p172
      %p174 = scmp.ne.s32.totalorder %s162, %s163
      %p175 = scmp.eq.s32.totalorder %s22, 1
      %p176 = por %p174, %p175
      %p178 = scmp.ne.s32.totalorder %s163, %s177
      %p179 = scmp.eq.s32.totalorder %s22, 0
      %p180 = por %p178, %p179
      %s182 = sadd.s32 %s181, 1
      %p185 = scmp.eq.s32.totalorder %s16, 1
      %p186 = scmp.ne.s32.totalorder %s181, %s183
      %p187 = scmp.eq.s32.totalorder %s16, 0
      %p188 = por %p186, %p187
      %p189 = scmp.ne.s32.totalorder %s181, %s183
      %p190 = scmp.eq.s32.totalorder %s21, 1
      %p191 = por %p189, %p190
      %p192 = scmp.ne.s32.totalorder %s183, %s184
      %p193 = scmp.eq.s32.totalorder %s21, 0
      %p194 = por %p192, %p193
      %p195 = scmp.ne.s32.totalorder %s183, %s184
      %p196 = scmp.eq.s32.totalorder %s22, 1
      %p197 = por %p195, %p196
      %p199 = scmp.ne.s32.totalorder %s184, %s198
      %p200 = scmp.eq.s32.totalorder %s22, 0
      %p201 = por %p199, %p200
      %s203 = sadd.s32 %s202, 1
      %p206 = scmp.eq.s32.totalorder %s16, 1
      %p207 = scmp.ne.s32.totalorder %s202, %s204
      %p208 = scmp.eq.s32.totalorder %s16, 0
      %p209 = por %p207, %p208
      %p210 = scmp.ne.s32.totalorder %s202, %s204
      %p211 = scmp.eq.s32.totalorder %s21, 1
      %p212 = por %p210, %p211
      %p213 = scmp.ne.s32.totalorder %s204, %s205
      %p214 = scmp.eq.s32.totalorder %s21, 0
      %p215 = por %p213, %p214
      %p216 = scmp.ne.s32.totalorder %s204, %s205
      %p217 = scmp.eq.s32.totalorder %s22, 1
      %p218 = por %p216, %p217
      %p220 = scmp.ne.s32.totalorder %s205, %s219
      %p221 = scmp.eq.s32.totalorder %s22, 0
      %p222 = por %p220, %p221
      %s224 = sadd.s32 %s223, 1
      %p227 = scmp.eq.s32.totalorder %s16, 1
      %p228 = scmp.ne.s32.totalorder %s223, %s225
      %p229 = scmp.eq.s32.totalorder %s16, 0
      %p230 = por %p228, %p229
      %p231 = scmp.ne.s32.totalorder %s223, %s225
      %p232 = scmp.eq.s32.totalorder %s21, 1
      %p233 = por %p231, %p232
      %p234 = scmp.ne.s32.totalorder %s225, %s226
      %p235 = scmp.eq.s32.totalorder %s21, 0
      %p236 = por %p234, %p235
      %p237 = scmp.ne.s32.totalorder %s225, %s226
      %p238 = scmp.eq.s32.totalorder %s22, 1
      %p239 = por %p237, %p238
      %p241 = scmp.ne.s32.totalorder %s226, %s240
      %p242 = scmp.eq.s32.totalorder %s22, 0
      %p243 = por %p241, %p242
      %p244 = scmp.le.s32.totalorder 1, %s16
      %p245 = scmp.lt.s32.totalorder %s16, 3
      %p246 = pnand %p244, %p245
      %p247 = pneg %p246
      // Predicated region
      $region9: #{dqn_forward.5} parent=5 // pred_check
        _
      $region10: #{dqn_forward.5} parent=5 // pred_check_branch
        %249 = sbr.rel (%p246) target = $region12
      $region11: #{dqn_forward.5} parent=5 // pred_region
        %s250 = ssub.s32 %s16, 1
        // Predicated region
        $region13: #{dqn_forward.5} parent=11 // pred_check
          %p251 = pneg %p89
        $region14: #{dqn_forward.5} parent=11 // pred_check_branch
          %253 = sbr.rel (%p251) target = $region16
        $region15: #{dqn_forward.5} parent=11 // pred_region
          _
        $region16: #{dqn_forward.5} parent=11 // pred_fallthru
          _
        // Predicated region
        $region17: #{dqn_forward.5} parent=11 // pred_check
          %p254 = pneg %p110
        $region18: #{dqn_forward.5} parent=11 // pred_check_branch
          %256 = sbr.rel (%p254) target = $region20
        $region19: #{dqn_forward.5} parent=11 // pred_region
          _
        $region20: #{dqn_forward.5} parent=11 // pred_fallthru
          _
        // Predicated region
        $region21: #{dqn_forward.5} parent=11 // pred_check
          %p257 = pneg %p131
        $region22: #{dqn_forward.5} parent=11 // pred_check_branch
          %259 = sbr.rel (%p257) target = $region24
        $region23: #{dqn_forward.5} parent=11 // pred_region
          _
        $region24: #{dqn_forward.5} parent=11 // pred_fallthru
          _
        // Predicated region
        $region25: #{dqn_forward.5} parent=11 // pred_check
          %p260 = pneg %p152
        $region26: #{dqn_forward.5} parent=11 // pred_check_branch
          %262 = sbr.rel (%p260) target = $region28
        $region27: #{dqn_forward.5} parent=11 // pred_region
          _
        $region28: #{dqn_forward.5} parent=11 // pred_fallthru
          _
        // Predicated region
        $region29: #{dqn_forward.5} parent=11 // pred_check
          %p263 = pneg %p173
        $region30: #{dqn_forward.5} parent=11 // pred_check_branch
          %265 = sbr.rel (%p263) target = $region32
        $region31: #{dqn_forward.5} parent=11 // pred_region
          _
        $region32: #{dqn_forward.5} parent=11 // pred_fallthru
          _
        // Predicated region
        $region33: #{dqn_forward.5} parent=11 // pred_check
          %p266 = pneg %p194
        $region34: #{dqn_forward.5} parent=11 // pred_check_branch
          %268 = sbr.rel (%p266) target = $region36
        $region35: #{dqn_forward.5} parent=11 // pred_region
          _
        $region36: #{dqn_forward.5} parent=11 // pred_fallthru
          _
        // Predicated region
        $region37: #{dqn_forward.5} parent=11 // pred_check
          %p269 = pneg %p215
        $region38: #{dqn_forward.5} parent=11 // pred_check_branch
          %271 = sbr.rel (%p269) target = $region40
        $region39: #{dqn_forward.5} parent=11 // pred_region
          _
        $region40: #{dqn_forward.5} parent=11 // pred_fallthru
          _
      $region12: #{dqn_forward.5} parent=5 // pred_fallthru
        _
      %p272 = scmp.lt.s32.totalorder %s16, 2
      // Predicated region
      $region41: #{dqn_forward.5} parent=5 // pred_check
        %p273 = pneg %p272
      $region42: #{dqn_forward.5} parent=5 // pred_check_branch
        %275 = sbr.rel (%p273) target = $region44
      $region43: #{dqn_forward.5} parent=5 // pred_region
        // Predicated region
        $region45: #{dqn_forward.5} parent=43 // pred_check
          %p276 = pneg %p36
        $region46: #{dqn_forward.5} parent=43 // pred_check_branch
          %278 = sbr.rel (%p276) target = $region48
        $region47: #{dqn_forward.5} parent=43 // pred_region
          %s279 = smul.u32 56, %s16
          %p280 = scmp.lt.s32.totalorder %s279, 111
          %s281 = scalar_select %p280, %s279, 111
          %s282 = scalar_lea.vmem %s0, %s281
          %s283 = smul.u32 56, %s16
        $region48: #{dqn_forward.5} parent=43 // pred_fallthru
          _
        // Predicated region
        $region49: #{dqn_forward.5} parent=43 // pred_check
          %p284 = pneg %p62
        $region50: #{dqn_forward.5} parent=43 // pred_check_branch
          %286 = sbr.rel (%p284) target = $region52
        $region51: #{dqn_forward.5} parent=43 // pred_region
          %s287 = smul.u32 896, %s16
          %p288 = scmp.lt.s32.totalorder %s287, 1791
          %s289 = scalar_select %p288, %s287, 1791
          %s290 = smul.addr %s289, 4
          %s291 = scalar_lea.vmem %s1, %s290
          %s292 = smul.u32 896, %s16
        $region52: #{dqn_forward.5} parent=43 // pred_fallthru
          _
      $region44: #{dqn_forward.5} parent=5 // pred_fallthru
        _
      %p293 = scmp.le.s32.totalorder 1, %s16
      %p294 = scmp.lt.s32.totalorder %s16, 3
      %p295 = pnand %p293, %p294
      %p296 = pneg %p295
      // Predicated region
      $region53: #{dqn_forward.5} parent=5 // pred_check
        _
      $region54: #{dqn_forward.5} parent=5 // pred_check_branch
        %298 = sbr.rel (%p295) target = $region56
      $region55: #{dqn_forward.5} parent=5 // pred_region
        %s299 = ssub.s32 %s16, 1
        %s300 = smul.u32 56, %s21
        %p301 = scmp.lt.s32.totalorder %s300, 111
        %s302 = scalar_select %p301, %s300, 111
        %s303 = scalar_lea.vmem %s0, %s302
        %p304 = pneg %p42
        %p305 = pneg %p39
        %s306 = smul.u32 896, %s21
        %p307 = scmp.lt.s32.totalorder %s306, 1791
        %s308 = scalar_select %p307, %s306, 1791
        %s309 = smul.addr %s308, 4
        %s310 = scalar_lea.vmem %s1, %s309
        %p311 = pneg %p68
        %p312 = pneg %p65
        %p313 = pneg %p89
        %p314 = pneg %p86
        %p315 = pneg %p110
        %p316 = pneg %p107
        %p317 = pneg %p131
        %p318 = pneg %p128
        %p319 = pneg %p152
        %p320 = pneg %p149
        %p321 = pneg %p173
        %p322 = pneg %p170
        %p323 = pneg %p194
        %p324 = pneg %p191
        %p325 = pneg %p215
        %p326 = pneg %p212
        %p327 = pneg %p236
        %p328 = pneg %p233
        %s329 = smul.u32 56, %s21
        %p330 = scmp.lt.s32.totalorder %s329, 111
        %s331 = scalar_select %p330, %s329, 111
        %s332 = scalar_lea.vmem %s0, %s331
        %s333 = smul.u32 56, %s21
        %s334 = smul.u32 896, %s21
        %p335 = scmp.lt.s32.totalorder %s334, 1791
        %s336 = scalar_select %p335, %s334, 1791
        %s337 = smul.addr %s336, 4
        %s338 = scalar_lea.vmem %s1, %s337
        %s339 = smul.u32 896, %s21
        %p340 = scmp.eq.s32.totalorder %s21, 0
        // Predicated region
        $region57: #{dqn_forward.5} parent=55 // pred_check
          %p341 = pneg %p340
        $region58: #{dqn_forward.5} parent=55 // pred_check_branch
          %343 = sbr.rel (%p341) target = $region60
        $region59: #{dqn_forward.5} parent=55 // pred_region
          %vm344 = vcmask 517120
          %345 = vst.msk [vmem:[#allocation2] sm:$0x3] %vm344, 0.0
        $region60: #{dqn_forward.5} parent=55 // pred_fallthru
          _
        %v346 = vld [vmem:[#allocation2] sm:$0x3]
        %v347 = vld [vmem:[%s332] sm:$0xff]
        %v348 = vld [vmem:[%s332 + $0x8] sm:$0xff]
        %v349 = vld [vmem:[%s332 + $0x10] sm:$0xff]
        %v350 = vld [vmem:[%s332 + $0x18] sm:$0xff]
        %v351 = vld [vmem:[%s332 + $0x20] sm:$0xff]
        %v352 = vld [vmem:[%s332 + $0x28] sm:$0xff]
        %v353 = vld [vmem:[%s332 + $0x30] sm:$0xff]
        %v354 = vld [vmem:[%s338] sm:$0xf]
        %v355 = vld [vmem:[%s338 + $0x4] sm:$0xf]
        %v356 = vld [vmem:[%s338 + $0x8] sm:$0xf]
        %v357 = vld [vmem:[%s338 + $0xc] sm:$0xf]
        %v358 = vld [vmem:[%s338 + $0x10] sm:$0xf]
        %v359 = vld [vmem:[%s338 + $0x14] sm:$0xf]
        %v360 = vld [vmem:[%s338 + $0x18] sm:$0xf]
        %v361 = vld [vmem:[%s338 + $0x1c] sm:$0xf]
        %v362 = vld [vmem:[%s338 + $0x20] sm:$0xf]
        %v363 = vld [vmem:[%s338 + $0x24] sm:$0xf]
        %v364 = vld [vmem:[%s338 + $0x28] sm:$0xf]
        %v365 = vld [vmem:[%s338 + $0x2c] sm:$0xf]
        %v366 = vld [vmem:[%s338 + $0x30] sm:$0xf]
        %v367 = vld [vmem:[%s338 + $0x34] sm:$0xf]
        %v368 = vld [vmem:[%s338 + $0x38] sm:$0xf]
        %v369 = vld [vmem:[%s338 + $0x3c] sm:$0xf]
        %v370 = vld [vmem:[%s338 + $0x40] sm:$0xf]
        %v371 = vld [vmem:[%s338 + $0x44] sm:$0xf]
        %v372 = vld [vmem:[%s338 + $0x48] sm:$0xf]
        %v373 = vld [vmem:[%s338 + $0x4c] sm:$0xf]
        %v374 = vld [vmem:[%s338 + $0x50] sm:$0xf]
        %v375 = vld [vmem:[%s338 + $0x54] sm:$0xf]
        %v376 = vld [vmem:[%s338 + $0x58] sm:$0xf]
        %v377 = vld [vmem:[%s338 + $0x5c] sm:$0xf]
        %v378 = vld [vmem:[%s338 + $0x60] sm:$0xf]
        %v379 = vld [vmem:[%s338 + $0x64] sm:$0xf]
        %v380 = vld [vmem:[%s338 + $0x68] sm:$0xf]
        %v381 = vld [vmem:[%s338 + $0x6c] sm:$0xf]
        %v382 = vld [vmem:[%s338 + $0x70] sm:$0xf]
        %v383 = vld [vmem:[%s338 + $0x74] sm:$0xf]
        %v384 = vld [vmem:[%s338 + $0x78] sm:$0xf]
        %v385 = vld [vmem:[%s338 + $0x7c] sm:$0xf]
        %v386 = vld [vmem:[%s338 + $0x80] sm:$0xf]
        %v387 = vld [vmem:[%s338 + $0x84] sm:$0xf]
        %v388 = vld [vmem:[%s338 + $0x88] sm:$0xf]
        %v389 = vld [vmem:[%s338 + $0x8c] sm:$0xf]
        %v390 = vld [vmem:[%s338 + $0x90] sm:$0xf]
        %v391 = vld [vmem:[%s338 + $0x94] sm:$0xf]
        %v392 = vld [vmem:[%s338 + $0x98] sm:$0xf]
        %v393 = vld [vmem:[%s338 + $0x9c] sm:$0xf]
        %v394 = vld [vmem:[%s338 + $0xa0] sm:$0xf]
        %v395 = vld [vmem:[%s338 + $0xa4] sm:$0xf]
        %v396 = vld [vmem:[%s338 + $0xa8] sm:$0xf]
        %v397 = vld [vmem:[%s338 + $0xac] sm:$0xf]
        %v398 = vld [vmem:[%s338 + $0xb0] sm:$0xf]
        %v399 = vld [vmem:[%s338 + $0xb4] sm:$0xf]
        %v400 = vld [vmem:[%s338 + $0xb8] sm:$0xf]
        %v401 = vld [vmem:[%s338 + $0xbc] sm:$0xf]
        %v402 = vld [vmem:[%s338 + $0xc0] sm:$0xf]
        %v403 = vld [vmem:[%s338 + $0xc4] sm:$0xf]
        %v404 = vld [vmem:[%s338 + $0xc8] sm:$0xf]
        %v405 = vld [vmem:[%s338 + $0xcc] sm:$0xf]
        %v406 = vld [vmem:[%s338 + $0xd0] sm:$0xf]
        %v407 = vld [vmem:[%s338 + $0xd4] sm:$0xf]
        %v408 = vld [vmem:[%s338 + $0xd8] sm:$0xf]
        %v409 = vld [vmem:[%s338 + $0xdc] sm:$0xf]
        %v410 = vld [vmem:[%s338 + $0xe0] sm:$0xf]
        %v411 = vld [vmem:[%s338 + $0xe4] sm:$0xf]
        %v412 = vld [vmem:[%s338 + $0xe8] sm:$0xf]
        %v413 = vld [vmem:[%s338 + $0xec] sm:$0xf]
        %v414 = vld [vmem:[%s338 + $0xf0] sm:$0xf]
        %v415 = vld [vmem:[%s338 + $0xf4] sm:$0xf]
        %v416 = vld [vmem:[%s338 + $0xf8] sm:$0xf]
        %v417 = vld [vmem:[%s338 + $0xfc] sm:$0xf]
        %v418 = vld [vmem:[%s338 + $0x100] sm:$0xf]
        %v419 = vld [vmem:[%s338 + $0x104] sm:$0xf]
        %v420 = vld [vmem:[%s338 + $0x108] sm:$0xf]
        %v421 = vld [vmem:[%s338 + $0x10c] sm:$0xf]
        %v422 = vld [vmem:[%s338 + $0x110] sm:$0xf]
        %v423 = vld [vmem:[%s338 + $0x114] sm:$0xf]
        %v424 = vld [vmem:[%s338 + $0x118] sm:$0xf]
        %v425 = vld [vmem:[%s338 + $0x11c] sm:$0xf]
        %v426 = vld [vmem:[%s338 + $0x120] sm:$0xf]
        %v427 = vld [vmem:[%s338 + $0x124] sm:$0xf]
        %v428 = vld [vmem:[%s338 + $0x128] sm:$0xf]
        %v429 = vld [vmem:[%s338 + $0x12c] sm:$0xf]
        %v430 = vld [vmem:[%s338 + $0x130] sm:$0xf]
        %v431 = vld [vmem:[%s338 + $0x134] sm:$0xf]
        %v432 = vld [vmem:[%s338 + $0x138] sm:$0xf]
        %v433 = vld [vmem:[%s338 + $0x13c] sm:$0xf]
        %v434 = vld [vmem:[%s338 + $0x140] sm:$0xf]
        %v435 = vld [vmem:[%s338 + $0x144] sm:$0xf]
        %v436 = vld [vmem:[%s338 + $0x148] sm:$0xf]
        %v437 = vld [vmem:[%s338 + $0x14c] sm:$0xf]
        %v438 = vld [vmem:[%s338 + $0x150] sm:$0xf]
        %v439 = vld [vmem:[%s338 + $0x154] sm:$0xf]
        %v440 = vld [vmem:[%s338 + $0x158] sm:$0xf]
        %v441 = vld [vmem:[%s338 + $0x15c] sm:$0xf]
        %v442 = vld [vmem:[%s338 + $0x160] sm:$0xf]
        %v443 = vld [vmem:[%s338 + $0x164] sm:$0xf]
        %v444 = vld [vmem:[%s338 + $0x168] sm:$0xf]
        %v445 = vld [vmem:[%s338 + $0x16c] sm:$0xf]
        %v446 = vld [vmem:[%s338 + $0x170] sm:$0xf]
        %v447 = vld [vmem:[%s338 + $0x174] sm:$0xf]
        %v448 = vld [vmem:[%s338 + $0x178] sm:$0xf]
        %v449 = vld [vmem:[%s338 + $0x17c] sm:$0xf]
        %v450 = vld [vmem:[%s338 + $0x180] sm:$0xf]
        %v451 = vld [vmem:[%s338 + $0x184] sm:$0xf]
        %v452 = vld [vmem:[%s338 + $0x188] sm:$0xf]
        %v453 = vld [vmem:[%s338 + $0x18c] sm:$0xf]
        %v454 = vld [vmem:[%s338 + $0x190] sm:$0xf]
        %v455 = vld [vmem:[%s338 + $0x194] sm:$0xf]
        %v456 = vld [vmem:[%s338 + $0x198] sm:$0xf]
        %v457 = vld [vmem:[%s338 + $0x19c] sm:$0xf]
        %v458 = vld [vmem:[%s338 + $0x1a0] sm:$0xf]
        %v459 = vld [vmem:[%s338 + $0x1a4] sm:$0xf]
        %v460 = vld [vmem:[%s338 + $0x1a8] sm:$0xf]
        %v461 = vld [vmem:[%s338 + $0x1ac] sm:$0xf]
        %v462 = vld [vmem:[%s338 + $0x1b0] sm:$0xf]
        %v463 = vld [vmem:[%s338 + $0x1b4] sm:$0xf]
        %v464 = vld [vmem:[%s338 + $0x1b8] sm:$0xf]
        %v465 = vld [vmem:[%s338 + $0x1bc] sm:$0xf]
        %v466 = vld [vmem:[%s338 + $0x1c0] sm:$0xf]
        %v467 = vld [vmem:[%s338 + $0x1c4] sm:$0xf]
        %v468 = vld [vmem:[%s338 + $0x1c8] sm:$0xf]
        %v469 = vld [vmem:[%s338 + $0x1cc] sm:$0xf]
        %v470 = vld [vmem:[%s338 + $0x1d0] sm:$0xf]
        %v471 = vld [vmem:[%s338 + $0x1d4] sm:$0xf]
        %v472 = vld [vmem:[%s338 + $0x1d8] sm:$0xf]
        %v473 = vld [vmem:[%s338 + $0x1dc] sm:$0xf]
        %v474 = vld [vmem:[%s338 + $0x1e0] sm:$0xf]
        %v475 = vld [vmem:[%s338 + $0x1e4] sm:$0xf]
        %v476 = vld [vmem:[%s338 + $0x1e8] sm:$0xf]
        %v477 = vld [vmem:[%s338 + $0x1ec] sm:$0xf]
        %v478 = vld [vmem:[%s338 + $0x1f0] sm:$0xf]
        %v479 = vld [vmem:[%s338 + $0x1f4] sm:$0xf]
        %v480 = vld [vmem:[%s338 + $0x1f8] sm:$0xf]
        %v481 = vld [vmem:[%s338 + $0x1fc] sm:$0xf]
        %v482 = vld [vmem:[%s338 + $0x200] sm:$0xf]
        %v483 = vld [vmem:[%s338 + $0x204] sm:$0xf]
        %v484 = vld [vmem:[%s338 + $0x208] sm:$0xf]
        %v485 = vld [vmem:[%s338 + $0x20c] sm:$0xf]
        %v486 = vld [vmem:[%s338 + $0x210] sm:$0xf]
        %v487 = vld [vmem:[%s338 + $0x214] sm:$0xf]
        %v488 = vld [vmem:[%s338 + $0x218] sm:$0xf]
        %v489 = vld [vmem:[%s338 + $0x21c] sm:$0xf]
        %v490 = vld [vmem:[%s338 + $0x220] sm:$0xf]
        %v491 = vld [vmem:[%s338 + $0x224] sm:$0xf]
        %v492 = vld [vmem:[%s338 + $0x228] sm:$0xf]
        %v493 = vld [vmem:[%s338 + $0x22c] sm:$0xf]
        %v494 = vld [vmem:[%s338 + $0x230] sm:$0xf]
        %v495 = vld [vmem:[%s338 + $0x234] sm:$0xf]
        %v496 = vld [vmem:[%s338 + $0x238] sm:$0xf]
        %v497 = vld [vmem:[%s338 + $0x23c] sm:$0xf]
        %v498 = vld [vmem:[%s338 + $0x240] sm:$0xf]
        %v499 = vld [vmem:[%s338 + $0x244] sm:$0xf]
        %v500 = vld [vmem:[%s338 + $0x248] sm:$0xf]
        %v501 = vld [vmem:[%s338 + $0x24c] sm:$0xf]
        %v502 = vld [vmem:[%s338 + $0x250] sm:$0xf]
        %v503 = vld [vmem:[%s338 + $0x254] sm:$0xf]
        %v504 = vld [vmem:[%s338 + $0x258] sm:$0xf]
        %v505 = vld [vmem:[%s338 + $0x25c] sm:$0xf]
        %v506 = vld [vmem:[%s338 + $0x260] sm:$0xf]
        %v507 = vld [vmem:[%s338 + $0x264] sm:$0xf]
        %v508 = vld [vmem:[%s338 + $0x268] sm:$0xf]
        %v509 = vld [vmem:[%s338 + $0x26c] sm:$0xf]
        %v510 = vld [vmem:[%s338 + $0x270] sm:$0xf]
        %v511 = vld [vmem:[%s338 + $0x274] sm:$0xf]
        %v512 = vld [vmem:[%s338 + $0x278] sm:$0xf]
        %v513 = vld [vmem:[%s338 + $0x27c] sm:$0xf]
        %v514 = vld [vmem:[%s338 + $0x280] sm:$0xf]
        %v515 = vld [vmem:[%s338 + $0x284] sm:$0xf]
        %v516 = vld [vmem:[%s338 + $0x288] sm:$0xf]
        %v517 = vld [vmem:[%s338 + $0x28c] sm:$0xf]
        %v518 = vld [vmem:[%s338 + $0x290] sm:$0xf]
        %v519 = vld [vmem:[%s338 + $0x294] sm:$0xf]
        %v520 = vld [vmem:[%s338 + $0x298] sm:$0xf]
        %v521 = vld [vmem:[%s338 + $0x29c] sm:$0xf]
        %v522 = vld [vmem:[%s338 + $0x2a0] sm:$0xf]
        %v523 = vld [vmem:[%s338 + $0x2a4] sm:$0xf]
        %v524 = vld [vmem:[%s338 + $0x2a8] sm:$0xf]
        %v525 = vld [vmem:[%s338 + $0x2ac] sm:$0xf]
        %v526 = vld [vmem:[%s338 + $0x2b0] sm:$0xf]
        %v527 = vld [vmem:[%s338 + $0x2b4] sm:$0xf]
        %v528 = vld [vmem:[%s338 + $0x2b8] sm:$0xf]
        %v529 = vld [vmem:[%s338 + $0x2bc] sm:$0xf]
        %v530 = vld [vmem:[%s338 + $0x2c0] sm:$0xf]
        %v531 = vld [vmem:[%s338 + $0x2c4] sm:$0xf]
        %v532 = vld [vmem:[%s338 + $0x2c8] sm:$0xf]
        %v533 = vld [vmem:[%s338 + $0x2cc] sm:$0xf]
        %v534 = vld [vmem:[%s338 + $0x2d0] sm:$0xf]
        %v535 = vld [vmem:[%s338 + $0x2d4] sm:$0xf]
        %v536 = vld [vmem:[%s338 + $0x2d8] sm:$0xf]
        %v537 = vld [vmem:[%s338 + $0x2dc] sm:$0xf]
        %v538 = vld [vmem:[%s338 + $0x2e0] sm:$0xf]
        %v539 = vld [vmem:[%s338 + $0x2e4] sm:$0xf]
        %v540 = vld [vmem:[%s338 + $0x2e8] sm:$0xf]
        %v541 = vld [vmem:[%s338 + $0x2ec] sm:$0xf]
        %v542 = vld [vmem:[%s338 + $0x2f0] sm:$0xf]
        %v543 = vld [vmem:[%s338 + $0x2f4] sm:$0xf]
        %v544 = vld [vmem:[%s338 + $0x2f8] sm:$0xf]
        %v545 = vld [vmem:[%s338 + $0x2fc] sm:$0xf]
        %v546 = vld [vmem:[%s338 + $0x300] sm:$0xf]
        %v547 = vld [vmem:[%s338 + $0x304] sm:$0xf]
        %v548 = vld [vmem:[%s338 + $0x308] sm:$0xf]
        %v549 = vld [vmem:[%s338 + $0x30c] sm:$0xf]
        %v550 = vld [vmem:[%s338 + $0x310] sm:$0xf]
        %v551 = vld [vmem:[%s338 + $0x314] sm:$0xf]
        %v552 = vld [vmem:[%s338 + $0x318] sm:$0xf]
        %v553 = vld [vmem:[%s338 + $0x31c] sm:$0xf]
        %v554 = vld [vmem:[%s338 + $0x320] sm:$0xf]
        %v555 = vld [vmem:[%s338 + $0x324] sm:$0xf]
        %v556 = vld [vmem:[%s338 + $0x328] sm:$0xf]
        %v557 = vld [vmem:[%s338 + $0x32c] sm:$0xf]
        %v558 = vld [vmem:[%s338 + $0x330] sm:$0xf]
        %v559 = vld [vmem:[%s338 + $0x334] sm:$0xf]
        %v560 = vld [vmem:[%s338 + $0x338] sm:$0xf]
        %v561 = vld [vmem:[%s338 + $0x33c] sm:$0xf]
        %v562 = vld [vmem:[%s338 + $0x340] sm:$0xf]
        %v563 = vld [vmem:[%s338 + $0x344] sm:$0xf]
        %v564 = vld [vmem:[%s338 + $0x348] sm:$0xf]
        %v565 = vld [vmem:[%s338 + $0x34c] sm:$0xf]
        %v566 = vld [vmem:[%s338 + $0x350] sm:$0xf]
        %v567 = vld [vmem:[%s338 + $0x354] sm:$0xf]
        %v568 = vld [vmem:[%s338 + $0x358] sm:$0xf]
        %v569 = vld [vmem:[%s338 + $0x35c] sm:$0xf]
        %v570 = vld [vmem:[%s338 + $0x360] sm:$0xf]
        %v571 = vld [vmem:[%s338 + $0x364] sm:$0xf]
        %v572 = vld [vmem:[%s338 + $0x368] sm:$0xf]
        %v573 = vld [vmem:[%s338 + $0x36c] sm:$0xf]
        %v574 = vld [vmem:[%s338 + $0x370] sm:$0xf]
        %v575 = vld [vmem:[%s338 + $0x374] sm:$0xf]
        %v576 = vld [vmem:[%s338 + $0x378] sm:$0xf]
        %v577 = vld [vmem:[%s338 + $0x37c] sm:$0xf]
        %v578 = vld [vmem:[%s338 + $0x380] sm:$0xf]
        %v579 = vld [vmem:[%s338 + $0x384] sm:$0xf]
        %v580 = vld [vmem:[%s338 + $0x388] sm:$0xf]
        %v581 = vld [vmem:[%s338 + $0x38c] sm:$0xf]
        %v582 = vld [vmem:[%s338 + $0x390] sm:$0xf]
        %v583 = vld [vmem:[%s338 + $0x394] sm:$0xf]
        %v584 = vld [vmem:[%s338 + $0x398] sm:$0xf]
        %v585 = vld [vmem:[%s338 + $0x39c] sm:$0xf]
        %v586 = vld [vmem:[%s338 + $0x3a0] sm:$0xf]
        %v587 = vld [vmem:[%s338 + $0x3a4] sm:$0xf]
        %v588 = vld [vmem:[%s338 + $0x3a8] sm:$0xf]
        %v589 = vld [vmem:[%s338 + $0x3ac] sm:$0xf]
        %v590 = vld [vmem:[%s338 + $0x3b0] sm:$0xf]
        %v591 = vld [vmem:[%s338 + $0x3b4] sm:$0xf]
        %v592 = vld [vmem:[%s338 + $0x3b8] sm:$0xf]
        %v593 = vld [vmem:[%s338 + $0x3bc] sm:$0xf]
        %v594 = vld [vmem:[%s338 + $0x3c0] sm:$0xf]
        %v595 = vld [vmem:[%s338 + $0x3c4] sm:$0xf]
        %v596 = vld [vmem:[%s338 + $0x3c8] sm:$0xf]
        %v597 = vld [vmem:[%s338 + $0x3cc] sm:$0xf]
        %v598 = vld [vmem:[%s338 + $0x3d0] sm:$0xf]
        %v599 = vld [vmem:[%s338 + $0x3d4] sm:$0xf]
        %v600 = vld [vmem:[%s338 + $0x3d8] sm:$0xf]
        %v601 = vld [vmem:[%s338 + $0x3dc] sm:$0xf]
        %v602 = vld [vmem:[%s338 + $0x3e0] sm:$0xf]
        %v603 = vld [vmem:[%s338 + $0x3e4] sm:$0xf]
        %v604 = vld [vmem:[%s338 + $0x3e8] sm:$0xf]
        %v605 = vld [vmem:[%s338 + $0x3ec] sm:$0xf]
        %v606 = vld [vmem:[%s338 + $0x3f0] sm:$0xf]
        %v607 = vld [vmem:[%s338 + $0x3f4] sm:$0xf]
        %v608 = vld [vmem:[%s338 + $0x3f8] sm:$0xf]
        %v609 = vld [vmem:[%s338 + $0x3fc] sm:$0xf]
        %v610 = vld [vmem:[%s338 + $0x400] sm:$0xf]
        %v611 = vld [vmem:[%s338 + $0x404] sm:$0xf]
        %v612 = vld [vmem:[%s338 + $0x408] sm:$0xf]
        %v613 = vld [vmem:[%s338 + $0x40c] sm:$0xf]
        %v614 = vld [vmem:[%s338 + $0x410] sm:$0xf]
        %v615 = vld [vmem:[%s338 + $0x414] sm:$0xf]
        %v616 = vld [vmem:[%s338 + $0x418] sm:$0xf]
        %v617 = vld [vmem:[%s338 + $0x41c] sm:$0xf]
        %v618 = vld [vmem:[%s338 + $0x420] sm:$0xf]
        %v619 = vld [vmem:[%s338 + $0x424] sm:$0xf]
        %v620 = vld [vmem:[%s338 + $0x428] sm:$0xf]
        %v621 = vld [vmem:[%s338 + $0x42c] sm:$0xf]
        %v622 = vld [vmem:[%s338 + $0x430] sm:$0xf]
        %v623 = vld [vmem:[%s338 + $0x434] sm:$0xf]
        %v624 = vld [vmem:[%s338 + $0x438] sm:$0xf]
        %v625 = vld [vmem:[%s338 + $0x43c] sm:$0xf]
        %v626 = vld [vmem:[%s338 + $0x440] sm:$0xf]
        %v627 = vld [vmem:[%s338 + $0x444] sm:$0xf]
        %v628 = vld [vmem:[%s338 + $0x448] sm:$0xf]
        %v629 = vld [vmem:[%s338 + $0x44c] sm:$0xf]
        %v630 = vld [vmem:[%s338 + $0x450] sm:$0xf]
        %v631 = vld [vmem:[%s338 + $0x454] sm:$0xf]
        %v632 = vld [vmem:[%s338 + $0x458] sm:$0xf]
        %v633 = vld [vmem:[%s338 + $0x45c] sm:$0xf]
        %v634 = vld [vmem:[%s338 + $0x460] sm:$0xf]
        %v635 = vld [vmem:[%s338 + $0x464] sm:$0xf]
        %v636 = vld [vmem:[%s338 + $0x468] sm:$0xf]
        %v637 = vld [vmem:[%s338 + $0x46c] sm:$0xf]
        %v638 = vld [vmem:[%s338 + $0x470] sm:$0xf]
        %v639 = vld [vmem:[%s338 + $0x474] sm:$0xf]
        %v640 = vld [vmem:[%s338 + $0x478] sm:$0xf]
        %v641 = vld [vmem:[%s338 + $0x47c] sm:$0xf]
        %v642 = vld [vmem:[%s338 + $0x480] sm:$0xf]
        %v643 = vld [vmem:[%s338 + $0x484] sm:$0xf]
        %v644 = vld [vmem:[%s338 + $0x488] sm:$0xf]
        %v645 = vld [vmem:[%s338 + $0x48c] sm:$0xf]
        %v646 = vld [vmem:[%s338 + $0x490] sm:$0xf]
        %v647 = vld [vmem:[%s338 + $0x494] sm:$0xf]
        %v648 = vld [vmem:[%s338 + $0x498] sm:$0xf]
        %v649 = vld [vmem:[%s338 + $0x49c] sm:$0xf]
        %v650 = vld [vmem:[%s338 + $0x4a0] sm:$0xf]
        %v651 = vld [vmem:[%s338 + $0x4a4] sm:$0xf]
        %v652 = vld [vmem:[%s338 + $0x4a8] sm:$0xf]
        %v653 = vld [vmem:[%s338 + $0x4ac] sm:$0xf]
        %v654 = vld [vmem:[%s338 + $0x4b0] sm:$0xf]
        %v655 = vld [vmem:[%s338 + $0x4b4] sm:$0xf]
        %v656 = vld [vmem:[%s338 + $0x4b8] sm:$0xf]
        %v657 = vld [vmem:[%s338 + $0x4bc] sm:$0xf]
        %v658 = vld [vmem:[%s338 + $0x4c0] sm:$0xf]
        %v659 = vld [vmem:[%s338 + $0x4c4] sm:$0xf]
        %v660 = vld [vmem:[%s338 + $0x4c8] sm:$0xf]
        %v661 = vld [vmem:[%s338 + $0x4cc] sm:$0xf]
        %v662 = vld [vmem:[%s338 + $0x4d0] sm:$0xf]
        %v663 = vld [vmem:[%s338 + $0x4d4] sm:$0xf]
        %v664 = vld [vmem:[%s338 + $0x4d8] sm:$0xf]
        %v665 = vld [vmem:[%s338 + $0x4dc] sm:$0xf]
        %v666 = vld [vmem:[%s338 + $0x4e0] sm:$0xf]
        %v667 = vld [vmem:[%s338 + $0x4e4] sm:$0xf]
        %v668 = vld [vmem:[%s338 + $0x4e8] sm:$0xf]
        %v669 = vld [vmem:[%s338 + $0x4ec] sm:$0xf]
        %v670 = vld [vmem:[%s338 + $0x4f0] sm:$0xf]
        %v671 = vld [vmem:[%s338 + $0x4f4] sm:$0xf]
        %v672 = vld [vmem:[%s338 + $0x4f8] sm:$0xf]
        %v673 = vld [vmem:[%s338 + $0x4fc] sm:$0xf]
        %v674 = vld [vmem:[%s338 + $0x500] sm:$0xf]
        %v675 = vld [vmem:[%s338 + $0x504] sm:$0xf]
        %v676 = vld [vmem:[%s338 + $0x508] sm:$0xf]
        %v677 = vld [vmem:[%s338 + $0x50c] sm:$0xf]
        %v678 = vld [vmem:[%s338 + $0x510] sm:$0xf]
        %v679 = vld [vmem:[%s338 + $0x514] sm:$0xf]
        %v680 = vld [vmem:[%s338 + $0x518] sm:$0xf]
        %v681 = vld [vmem:[%s338 + $0x51c] sm:$0xf]
        %v682 = vld [vmem:[%s338 + $0x520] sm:$0xf]
        %v683 = vld [vmem:[%s338 + $0x524] sm:$0xf]
        %v684 = vld [vmem:[%s338 + $0x528] sm:$0xf]
        %v685 = vld [vmem:[%s338 + $0x52c] sm:$0xf]
        %v686 = vld [vmem:[%s338 + $0x530] sm:$0xf]
        %v687 = vld [vmem:[%s338 + $0x534] sm:$0xf]
        %v688 = vld [vmem:[%s338 + $0x538] sm:$0xf]
        %v689 = vld [vmem:[%s338 + $0x53c] sm:$0xf]
        %v690 = vld [vmem:[%s338 + $0x540] sm:$0xf]
        %v691 = vld [vmem:[%s338 + $0x544] sm:$0xf]
        %v692 = vld [vmem:[%s338 + $0x548] sm:$0xf]
        %v693 = vld [vmem:[%s338 + $0x54c] sm:$0xf]
        %v694 = vld [vmem:[%s338 + $0x550] sm:$0xf]
        %v695 = vld [vmem:[%s338 + $0x554] sm:$0xf]
        %v696 = vld [vmem:[%s338 + $0x558] sm:$0xf]
        %v697 = vld [vmem:[%s338 + $0x55c] sm:$0xf]
        %v698 = vld [vmem:[%s338 + $0x560] sm:$0xf]
        %v699 = vld [vmem:[%s338 + $0x564] sm:$0xf]
        %v700 = vld [vmem:[%s338 + $0x568] sm:$0xf]
        %v701 = vld [vmem:[%s338 + $0x56c] sm:$0xf]
        %v702 = vld [vmem:[%s338 + $0x570] sm:$0xf]
        %v703 = vld [vmem:[%s338 + $0x574] sm:$0xf]
        %v704 = vld [vmem:[%s338 + $0x578] sm:$0xf]
        %v705 = vld [vmem:[%s338 + $0x57c] sm:$0xf]
        %v706 = vld [vmem:[%s338 + $0x580] sm:$0xf]
        %v707 = vld [vmem:[%s338 + $0x584] sm:$0xf]
        %v708 = vld [vmem:[%s338 + $0x588] sm:$0xf]
        %v709 = vld [vmem:[%s338 + $0x58c] sm:$0xf]
        %v710 = vld [vmem:[%s338 + $0x590] sm:$0xf]
        %v711 = vld [vmem:[%s338 + $0x594] sm:$0xf]
        %v712 = vld [vmem:[%s338 + $0x598] sm:$0xf]
        %v713 = vld [vmem:[%s338 + $0x59c] sm:$0xf]
        %v714 = vld [vmem:[%s338 + $0x5a0] sm:$0xf]
        %v715 = vld [vmem:[%s338 + $0x5a4] sm:$0xf]
        %v716 = vld [vmem:[%s338 + $0x5a8] sm:$0xf]
        %v717 = vld [vmem:[%s338 + $0x5ac] sm:$0xf]
        %v718 = vld [vmem:[%s338 + $0x5b0] sm:$0xf]
        %v719 = vld [vmem:[%s338 + $0x5b4] sm:$0xf]
        %v720 = vld [vmem:[%s338 + $0x5b8] sm:$0xf]
        %v721 = vld [vmem:[%s338 + $0x5bc] sm:$0xf]
        %v722 = vld [vmem:[%s338 + $0x5c0] sm:$0xf]
        %v723 = vld [vmem:[%s338 + $0x5c4] sm:$0xf]
        %v724 = vld [vmem:[%s338 + $0x5c8] sm:$0xf]
        %v725 = vld [vmem:[%s338 + $0x5cc] sm:$0xf]
        %v726 = vld [vmem:[%s338 + $0x5d0] sm:$0xf]
        %v727 = vld [vmem:[%s338 + $0x5d4] sm:$0xf]
        %v728 = vld [vmem:[%s338 + $0x5d8] sm:$0xf]
        %v729 = vld [vmem:[%s338 + $0x5dc] sm:$0xf]
        %v730 = vld [vmem:[%s338 + $0x5e0] sm:$0xf]
        %v731 = vld [vmem:[%s338 + $0x5e4] sm:$0xf]
        %v732 = vld [vmem:[%s338 + $0x5e8] sm:$0xf]
        %v733 = vld [vmem:[%s338 + $0x5ec] sm:$0xf]
        %v734 = vld [vmem:[%s338 + $0x5f0] sm:$0xf]
        %v735 = vld [vmem:[%s338 + $0x5f4] sm:$0xf]
        %v736 = vld [vmem:[%s338 + $0x5f8] sm:$0xf]
        %v737 = vld [vmem:[%s338 + $0x5fc] sm:$0xf]
        %v738 = vld [vmem:[%s338 + $0x600] sm:$0xf]
        %v739 = vld [vmem:[%s338 + $0x604] sm:$0xf]
        %v740 = vld [vmem:[%s338 + $0x608] sm:$0xf]
        %v741 = vld [vmem:[%s338 + $0x60c] sm:$0xf]
        %v742 = vld [vmem:[%s338 + $0x610] sm:$0xf]
        %v743 = vld [vmem:[%s338 + $0x614] sm:$0xf]
        %v744 = vld [vmem:[%s338 + $0x618] sm:$0xf]
        %v745 = vld [vmem:[%s338 + $0x61c] sm:$0xf]
        %v746 = vld [vmem:[%s338 + $0x620] sm:$0xf]
        %v747 = vld [vmem:[%s338 + $0x624] sm:$0xf]
        %v748 = vld [vmem:[%s338 + $0x628] sm:$0xf]
        %v749 = vld [vmem:[%s338 + $0x62c] sm:$0xf]
        %v750 = vld [vmem:[%s338 + $0x630] sm:$0xf]
        %v751 = vld [vmem:[%s338 + $0x634] sm:$0xf]
        %v752 = vld [vmem:[%s338 + $0x638] sm:$0xf]
        %v753 = vld [vmem:[%s338 + $0x63c] sm:$0xf]
        %v754 = vld [vmem:[%s338 + $0x640] sm:$0xf]
        %v755 = vld [vmem:[%s338 + $0x644] sm:$0xf]
        %v756 = vld [vmem:[%s338 + $0x648] sm:$0xf]
        %v757 = vld [vmem:[%s338 + $0x64c] sm:$0xf]
        %v758 = vld [vmem:[%s338 + $0x650] sm:$0xf]
        %v759 = vld [vmem:[%s338 + $0x654] sm:$0xf]
        %v760 = vld [vmem:[%s338 + $0x658] sm:$0xf]
        %v761 = vld [vmem:[%s338 + $0x65c] sm:$0xf]
        %v762 = vld [vmem:[%s338 + $0x660] sm:$0xf]
        %v763 = vld [vmem:[%s338 + $0x664] sm:$0xf]
        %v764 = vld [vmem:[%s338 + $0x668] sm:$0xf]
        %v765 = vld [vmem:[%s338 + $0x66c] sm:$0xf]
        %v766 = vld [vmem:[%s338 + $0x670] sm:$0xf]
        %v767 = vld [vmem:[%s338 + $0x674] sm:$0xf]
        %v768 = vld [vmem:[%s338 + $0x678] sm:$0xf]
        %v769 = vld [vmem:[%s338 + $0x67c] sm:$0xf]
        %v770 = vld [vmem:[%s338 + $0x680] sm:$0xf]
        %v771 = vld [vmem:[%s338 + $0x684] sm:$0xf]
        %v772 = vld [vmem:[%s338 + $0x688] sm:$0xf]
        %v773 = vld [vmem:[%s338 + $0x68c] sm:$0xf]
        %v774 = vld [vmem:[%s338 + $0x690] sm:$0xf]
        %v775 = vld [vmem:[%s338 + $0x694] sm:$0xf]
        %v776 = vld [vmem:[%s338 + $0x698] sm:$0xf]
        %v777 = vld [vmem:[%s338 + $0x69c] sm:$0xf]
        %v778 = vld [vmem:[%s338 + $0x6a0] sm:$0xf]
        %v779 = vld [vmem:[%s338 + $0x6a4] sm:$0xf]
        %v780 = vld [vmem:[%s338 + $0x6a8] sm:$0xf]
        %v781 = vld [vmem:[%s338 + $0x6ac] sm:$0xf]
        %v782 = vld [vmem:[%s338 + $0x6b0] sm:$0xf]
        %v783 = vld [vmem:[%s338 + $0x6b4] sm:$0xf]
        %v784 = vld [vmem:[%s338 + $0x6b8] sm:$0xf]
        %v785 = vld [vmem:[%s338 + $0x6bc] sm:$0xf]
        %v786 = vld [vmem:[%s338 + $0x6c0] sm:$0xf]
        %v787 = vld [vmem:[%s338 + $0x6c4] sm:$0xf]
        %v788 = vld [vmem:[%s338 + $0x6c8] sm:$0xf]
        %v789 = vld [vmem:[%s338 + $0x6cc] sm:$0xf]
        %v790 = vld [vmem:[%s338 + $0x6d0] sm:$0xf]
        %v791 = vld [vmem:[%s338 + $0x6d4] sm:$0xf]
        %v792 = vld [vmem:[%s338 + $0x6d8] sm:$0xf]
        %v793 = vld [vmem:[%s338 + $0x6dc] sm:$0xf]
        %v794 = vld [vmem:[%s338 + $0x6e0] sm:$0xf]
        %v795 = vld [vmem:[%s338 + $0x6e4] sm:$0xf]
        %v796 = vld [vmem:[%s338 + $0x6e8] sm:$0xf]
        %v797 = vld [vmem:[%s338 + $0x6ec] sm:$0xf]
        %v798 = vld [vmem:[%s338 + $0x6f0] sm:$0xf]
        %v799 = vld [vmem:[%s338 + $0x6f4] sm:$0xf]
        %v800 = vld [vmem:[%s338 + $0x6f8] sm:$0xf]
        %v801 = vld [vmem:[%s338 + $0x6fc] sm:$0xf]
        %v802 = vld [vmem:[%s338 + $0x700] sm:$0xf]
        %v803 = vld [vmem:[%s338 + $0x704] sm:$0xf]
        %v804 = vld [vmem:[%s338 + $0x708] sm:$0xf]
        %v805 = vld [vmem:[%s338 + $0x70c] sm:$0xf]
        %v806 = vld [vmem:[%s338 + $0x710] sm:$0xf]
        %v807 = vld [vmem:[%s338 + $0x714] sm:$0xf]
        %v808 = vld [vmem:[%s338 + $0x718] sm:$0xf]
        %v809 = vld [vmem:[%s338 + $0x71c] sm:$0xf]
        %v810 = vld [vmem:[%s338 + $0x720] sm:$0xf]
        %v811 = vld [vmem:[%s338 + $0x724] sm:$0xf]
        %v812 = vld [vmem:[%s338 + $0x728] sm:$0xf]
        %v813 = vld [vmem:[%s338 + $0x72c] sm:$0xf]
        %v814 = vld [vmem:[%s338 + $0x730] sm:$0xf]
        %v815 = vld [vmem:[%s338 + $0x734] sm:$0xf]
        %v816 = vld [vmem:[%s338 + $0x738] sm:$0xf]
        %v817 = vld [vmem:[%s338 + $0x73c] sm:$0xf]
        %v818 = vld [vmem:[%s338 + $0x740] sm:$0xf]
        %v819 = vld [vmem:[%s338 + $0x744] sm:$0xf]
        %v820 = vld [vmem:[%s338 + $0x748] sm:$0xf]
        %v821 = vld [vmem:[%s338 + $0x74c] sm:$0xf]
        %v822 = vld [vmem:[%s338 + $0x750] sm:$0xf]
        %v823 = vld [vmem:[%s338 + $0x754] sm:$0xf]
        %v824 = vld [vmem:[%s338 + $0x758] sm:$0xf]
        %v825 = vld [vmem:[%s338 + $0x75c] sm:$0xf]
        %v826 = vld [vmem:[%s338 + $0x760] sm:$0xf]
        %v827 = vld [vmem:[%s338 + $0x764] sm:$0xf]
        %v828 = vld [vmem:[%s338 + $0x768] sm:$0xf]
        %v829 = vld [vmem:[%s338 + $0x76c] sm:$0xf]
        %v830 = vld [vmem:[%s338 + $0x770] sm:$0xf]
        %v831 = vld [vmem:[%s338 + $0x774] sm:$0xf]
        %v832 = vld [vmem:[%s338 + $0x778] sm:$0xf]
        %v833 = vld [vmem:[%s338 + $0x77c] sm:$0xf]
        %v834 = vld [vmem:[%s338 + $0x780] sm:$0xf]
        %v835 = vld [vmem:[%s338 + $0x784] sm:$0xf]
        %v836 = vld [vmem:[%s338 + $0x788] sm:$0xf]
        %v837 = vld [vmem:[%s338 + $0x78c] sm:$0xf]
        %v838 = vld [vmem:[%s338 + $0x790] sm:$0xf]
        %v839 = vld [vmem:[%s338 + $0x794] sm:$0xf]
        %v840 = vld [vmem:[%s338 + $0x798] sm:$0xf]
        %v841 = vld [vmem:[%s338 + $0x79c] sm:$0xf]
        %v842 = vld [vmem:[%s338 + $0x7a0] sm:$0xf]
        %v843 = vld [vmem:[%s338 + $0x7a4] sm:$0xf]
        %v844 = vld [vmem:[%s338 + $0x7a8] sm:$0xf]
        %v845 = vld [vmem:[%s338 + $0x7ac] sm:$0xf]
        %v846 = vld [vmem:[%s338 + $0x7b0] sm:$0xf]
        %v847 = vld [vmem:[%s338 + $0x7b4] sm:$0xf]
        %v848 = vld [vmem:[%s338 + $0x7b8] sm:$0xf]
        %v849 = vld [vmem:[%s338 + $0x7bc] sm:$0xf]
        %v850 = vld [vmem:[%s338 + $0x7c0] sm:$0xf]
        %v851 = vld [vmem:[%s338 + $0x7c4] sm:$0xf]
        %v852 = vld [vmem:[%s338 + $0x7c8] sm:$0xf]
        %v853 = vld [vmem:[%s338 + $0x7cc] sm:$0xf]
        %v854 = vld [vmem:[%s338 + $0x7d0] sm:$0xf]
        %v855 = vld [vmem:[%s338 + $0x7d4] sm:$0xf]
        %v856 = vld [vmem:[%s338 + $0x7d8] sm:$0xf]
        %v857 = vld [vmem:[%s338 + $0x7dc] sm:$0xf]
        %v858 = vld [vmem:[%s338 + $0x7e0] sm:$0xf]
        %v859 = vld [vmem:[%s338 + $0x7e4] sm:$0xf]
        %v860 = vld [vmem:[%s338 + $0x7e8] sm:$0xf]
        %v861 = vld [vmem:[%s338 + $0x7ec] sm:$0xf]
        %v862 = vld [vmem:[%s338 + $0x7f0] sm:$0xf]
        %v863 = vld [vmem:[%s338 + $0x7f4] sm:$0xf]
        %v864 = vld [vmem:[%s338 + $0x7f8] sm:$0xf]
        %v865 = vld [vmem:[%s338 + $0x7fc] sm:$0xf]
        %v866 = vld [vmem:[%s338 + $0x800] sm:$0xf]
        %v867 = vld [vmem:[%s338 + $0x804] sm:$0xf]
        %v868 = vld [vmem:[%s338 + $0x808] sm:$0xf]
        %v869 = vld [vmem:[%s338 + $0x80c] sm:$0xf]
        %v870 = vld [vmem:[%s338 + $0x810] sm:$0xf]
        %v871 = vld [vmem:[%s338 + $0x814] sm:$0xf]
        %v872 = vld [vmem:[%s338 + $0x818] sm:$0xf]
        %v873 = vld [vmem:[%s338 + $0x81c] sm:$0xf]
        %v874 = vld [vmem:[%s338 + $0x820] sm:$0xf]
        %v875 = vld [vmem:[%s338 + $0x824] sm:$0xf]
        %v876 = vld [vmem:[%s338 + $0x828] sm:$0xf]
        %v877 = vld [vmem:[%s338 + $0x82c] sm:$0xf]
        %v878 = vld [vmem:[%s338 + $0x830] sm:$0xf]
        %v879 = vld [vmem:[%s338 + $0x834] sm:$0xf]
        %v880 = vld [vmem:[%s338 + $0x838] sm:$0xf]
        %v881 = vld [vmem:[%s338 + $0x83c] sm:$0xf]
        %v882 = vld [vmem:[%s338 + $0x840] sm:$0xf]
        %v883 = vld [vmem:[%s338 + $0x844] sm:$0xf]
        %v884 = vld [vmem:[%s338 + $0x848] sm:$0xf]
        %v885 = vld [vmem:[%s338 + $0x84c] sm:$0xf]
        %v886 = vld [vmem:[%s338 + $0x850] sm:$0xf]
        %v887 = vld [vmem:[%s338 + $0x854] sm:$0xf]
        %v888 = vld [vmem:[%s338 + $0x858] sm:$0xf]
        %v889 = vld [vmem:[%s338 + $0x85c] sm:$0xf]
        %v890 = vld [vmem:[%s338 + $0x860] sm:$0xf]
        %v891 = vld [vmem:[%s338 + $0x864] sm:$0xf]
        %v892 = vld [vmem:[%s338 + $0x868] sm:$0xf]
        %v893 = vld [vmem:[%s338 + $0x86c] sm:$0xf]
        %v894 = vld [vmem:[%s338 + $0x870] sm:$0xf]
        %v895 = vld [vmem:[%s338 + $0x874] sm:$0xf]
        %v896 = vld [vmem:[%s338 + $0x878] sm:$0xf]
        %v897 = vld [vmem:[%s338 + $0x87c] sm:$0xf]
        %v898 = vld [vmem:[%s338 + $0x880] sm:$0xf]
        %v899 = vld [vmem:[%s338 + $0x884] sm:$0xf]
        %v900 = vld [vmem:[%s338 + $0x888] sm:$0xf]
        %v901 = vld [vmem:[%s338 + $0x88c] sm:$0xf]
        %v902 = vld [vmem:[%s338 + $0x890] sm:$0xf]
        %v903 = vld [vmem:[%s338 + $0x894] sm:$0xf]
        %v904 = vld [vmem:[%s338 + $0x898] sm:$0xf]
        %v905 = vld [vmem:[%s338 + $0x89c] sm:$0xf]
        %v906 = vld [vmem:[%s338 + $0x8a0] sm:$0xf]
        %v907 = vld [vmem:[%s338 + $0x8a4] sm:$0xf]
        %v908 = vld [vmem:[%s338 + $0x8a8] sm:$0xf]
        %v909 = vld [vmem:[%s338 + $0x8ac] sm:$0xf]
        %v910 = vld [vmem:[%s338 + $0x8b0] sm:$0xf]
        %v911 = vld [vmem:[%s338 + $0x8b4] sm:$0xf]
        %v912 = vld [vmem:[%s338 + $0x8b8] sm:$0xf]
        %v913 = vld [vmem:[%s338 + $0x8bc] sm:$0xf]
        %v914 = vld [vmem:[%s338 + $0x8c0] sm:$0xf]
        %v915 = vld [vmem:[%s338 + $0x8c4] sm:$0xf]
        %v916 = vld [vmem:[%s338 + $0x8c8] sm:$0xf]
        %v917 = vld [vmem:[%s338 + $0x8cc] sm:$0xf]
        %v918 = vld [vmem:[%s338 + $0x8d0] sm:$0xf]
        %v919 = vld [vmem:[%s338 + $0x8d4] sm:$0xf]
        %v920 = vld [vmem:[%s338 + $0x8d8] sm:$0xf]
        %v921 = vld [vmem:[%s338 + $0x8dc] sm:$0xf]
        %v922 = vld [vmem:[%s338 + $0x8e0] sm:$0xf]
        %v923 = vld [vmem:[%s338 + $0x8e4] sm:$0xf]
        %v924 = vld [vmem:[%s338 + $0x8e8] sm:$0xf]
        %v925 = vld [vmem:[%s338 + $0x8ec] sm:$0xf]
        %v926 = vld [vmem:[%s338 + $0x8f0] sm:$0xf]
        %v927 = vld [vmem:[%s338 + $0x8f4] sm:$0xf]
        %v928 = vld [vmem:[%s338 + $0x8f8] sm:$0xf]
        %v929 = vld [vmem:[%s338 + $0x8fc] sm:$0xf]
        %v930 = vld [vmem:[%s338 + $0x900] sm:$0xf]
        %v931 = vld [vmem:[%s338 + $0x904] sm:$0xf]
        %v932 = vld [vmem:[%s338 + $0x908] sm:$0xf]
        %v933 = vld [vmem:[%s338 + $0x90c] sm:$0xf]
        %v934 = vld [vmem:[%s338 + $0x910] sm:$0xf]
        %v935 = vld [vmem:[%s338 + $0x914] sm:$0xf]
        %v936 = vld [vmem:[%s338 + $0x918] sm:$0xf]
        %v937 = vld [vmem:[%s338 + $0x91c] sm:$0xf]
        %v938 = vld [vmem:[%s338 + $0x920] sm:$0xf]
        %v939 = vld [vmem:[%s338 + $0x924] sm:$0xf]
        %v940 = vld [vmem:[%s338 + $0x928] sm:$0xf]
        %v941 = vld [vmem:[%s338 + $0x92c] sm:$0xf]
        %v942 = vld [vmem:[%s338 + $0x930] sm:$0xf]
        %v943 = vld [vmem:[%s338 + $0x934] sm:$0xf]
        %v944 = vld [vmem:[%s338 + $0x938] sm:$0xf]
        %v945 = vld [vmem:[%s338 + $0x93c] sm:$0xf]
        %v946 = vld [vmem:[%s338 + $0x940] sm:$0xf]
        %v947 = vld [vmem:[%s338 + $0x944] sm:$0xf]
        %v948 = vld [vmem:[%s338 + $0x948] sm:$0xf]
        %v949 = vld [vmem:[%s338 + $0x94c] sm:$0xf]
        %v950 = vld [vmem:[%s338 + $0x950] sm:$0xf]
        %v951 = vld [vmem:[%s338 + $0x954] sm:$0xf]
        %v952 = vld [vmem:[%s338 + $0x958] sm:$0xf]
        %v953 = vld [vmem:[%s338 + $0x95c] sm:$0xf]
        %v954 = vld [vmem:[%s338 + $0x960] sm:$0xf]
        %v955 = vld [vmem:[%s338 + $0x964] sm:$0xf]
        %v956 = vld [vmem:[%s338 + $0x968] sm:$0xf]
        %v957 = vld [vmem:[%s338 + $0x96c] sm:$0xf]
        %v958 = vld [vmem:[%s338 + $0x970] sm:$0xf]
        %v959 = vld [vmem:[%s338 + $0x974] sm:$0xf]
        %v960 = vld [vmem:[%s338 + $0x978] sm:$0xf]
        %v961 = vld [vmem:[%s338 + $0x97c] sm:$0xf]
        %v962 = vld [vmem:[%s338 + $0x980] sm:$0xf]
        %v963 = vld [vmem:[%s338 + $0x984] sm:$0xf]
        %v964 = vld [vmem:[%s338 + $0x988] sm:$0xf]
        %v965 = vld [vmem:[%s338 + $0x98c] sm:$0xf]
        %v966 = vld [vmem:[%s338 + $0x990] sm:$0xf]
        %v967 = vld [vmem:[%s338 + $0x994] sm:$0xf]
        %v968 = vld [vmem:[%s338 + $0x998] sm:$0xf]
        %v969 = vld [vmem:[%s338 + $0x99c] sm:$0xf]
        %v970 = vld [vmem:[%s338 + $0x9a0] sm:$0xf]
        %v971 = vld [vmem:[%s338 + $0x9a4] sm:$0xf]
        %v972 = vld [vmem:[%s338 + $0x9a8] sm:$0xf]
        %v973 = vld [vmem:[%s338 + $0x9ac] sm:$0xf]
        %v974 = vld [vmem:[%s338 + $0x9b0] sm:$0xf]
        %v975 = vld [vmem:[%s338 + $0x9b4] sm:$0xf]
        %v976 = vld [vmem:[%s338 + $0x9b8] sm:$0xf]
        %v977 = vld [vmem:[%s338 + $0x9bc] sm:$0xf]
        %v978 = vld [vmem:[%s338 + $0x9c0] sm:$0xf]
        %v979 = vld [vmem:[%s338 + $0x9c4] sm:$0xf]
        %v980 = vld [vmem:[%s338 + $0x9c8] sm:$0xf]
        %v981 = vld [vmem:[%s338 + $0x9cc] sm:$0xf]
        %v982 = vld [vmem:[%s338 + $0x9d0] sm:$0xf]
        %v983 = vld [vmem:[%s338 + $0x9d4] sm:$0xf]
        %v984 = vld [vmem:[%s338 + $0x9d8] sm:$0xf]
        %v985 = vld [vmem:[%s338 + $0x9dc] sm:$0xf]
        %v986 = vld [vmem:[%s338 + $0x9e0] sm:$0xf]
        %v987 = vld [vmem:[%s338 + $0x9e4] sm:$0xf]
        %v988 = vld [vmem:[%s338 + $0x9e8] sm:$0xf]
        %v989 = vld [vmem:[%s338 + $0x9ec] sm:$0xf]
        %v990 = vld [vmem:[%s338 + $0x9f0] sm:$0xf]
        %v991 = vld [vmem:[%s338 + $0x9f4] sm:$0xf]
        %v992 = vld [vmem:[%s338 + $0x9f8] sm:$0xf]
        %v993 = vld [vmem:[%s338 + $0x9fc] sm:$0xf]
        %v994 = vld [vmem:[%s338 + $0xa00] sm:$0xf]
        %v995 = vld [vmem:[%s338 + $0xa04] sm:$0xf]
        %v996 = vld [vmem:[%s338 + $0xa08] sm:$0xf]
        %v997 = vld [vmem:[%s338 + $0xa0c] sm:$0xf]
        %v998 = vld [vmem:[%s338 + $0xa10] sm:$0xf]
        %v999 = vld [vmem:[%s338 + $0xa14] sm:$0xf]
        %v1000 = vld [vmem:[%s338 + $0xa18] sm:$0xf]
        %v1001 = vld [vmem:[%s338 + $0xa1c] sm:$0xf]
        %v1002 = vld [vmem:[%s338 + $0xa20] sm:$0xf]
        %v1003 = vld [vmem:[%s338 + $0xa24] sm:$0xf]
        %v1004 = vld [vmem:[%s338 + $0xa28] sm:$0xf]
        %v1005 = vld [vmem:[%s338 + $0xa2c] sm:$0xf]
        %v1006 = vld [vmem:[%s338 + $0xa30] sm:$0xf]
        %v1007 = vld [vmem:[%s338 + $0xa34] sm:$0xf]
        %v1008 = vld [vmem:[%s338 + $0xa38] sm:$0xf]
        %v1009 = vld [vmem:[%s338 + $0xa3c] sm:$0xf]
        %v1010 = vld [vmem:[%s338 + $0xa40] sm:$0xf]
        %v1011 = vld [vmem:[%s338 + $0xa44] sm:$0xf]
        %v1012 = vld [vmem:[%s338 + $0xa48] sm:$0xf]
        %v1013 = vld [vmem:[%s338 + $0xa4c] sm:$0xf]
        %v1014 = vld [vmem:[%s338 + $0xa50] sm:$0xf]
        %v1015 = vld [vmem:[%s338 + $0xa54] sm:$0xf]
        %v1016 = vld [vmem:[%s338 + $0xa58] sm:$0xf]
        %v1017 = vld [vmem:[%s338 + $0xa5c] sm:$0xf]
        %v1018 = vld [vmem:[%s338 + $0xa60] sm:$0xf]
        %v1019 = vld [vmem:[%s338 + $0xa64] sm:$0xf]
        %v1020 = vld [vmem:[%s338 + $0xa68] sm:$0xf]
        %v1021 = vld [vmem:[%s338 + $0xa6c] sm:$0xf]
        %v1022 = vld [vmem:[%s338 + $0xa70] sm:$0xf]
        %v1023 = vld [vmem:[%s338 + $0xa74] sm:$0xf]
        %v1024 = vld [vmem:[%s338 + $0xa78] sm:$0xf]
        %v1025 = vld [vmem:[%s338 + $0xa7c] sm:$0xf]
        %v1026 = vld [vmem:[%s338 + $0xa80] sm:$0xf]
        %v1027 = vld [vmem:[%s338 + $0xa84] sm:$0xf]
        %v1028 = vld [vmem:[%s338 + $0xa88] sm:$0xf]
        %v1029 = vld [vmem:[%s338 + $0xa8c] sm:$0xf]
        %v1030 = vld [vmem:[%s338 + $0xa90] sm:$0xf]
        %v1031 = vld [vmem:[%s338 + $0xa94] sm:$0xf]
        %v1032 = vld [vmem:[%s338 + $0xa98] sm:$0xf]
        %v1033 = vld [vmem:[%s338 + $0xa9c] sm:$0xf]
        %v1034 = vld [vmem:[%s338 + $0xaa0] sm:$0xf]
        %v1035 = vld [vmem:[%s338 + $0xaa4] sm:$0xf]
        %v1036 = vld [vmem:[%s338 + $0xaa8] sm:$0xf]
        %v1037 = vld [vmem:[%s338 + $0xaac] sm:$0xf]
        %v1038 = vld [vmem:[%s338 + $0xab0] sm:$0xf]
        %v1039 = vld [vmem:[%s338 + $0xab4] sm:$0xf]
        %v1040 = vld [vmem:[%s338 + $0xab8] sm:$0xf]
        %v1041 = vld [vmem:[%s338 + $0xabc] sm:$0xf]
        %v1042 = vld [vmem:[%s338 + $0xac0] sm:$0xf]
        %v1043 = vld [vmem:[%s338 + $0xac4] sm:$0xf]
        %v1044 = vld [vmem:[%s338 + $0xac8] sm:$0xf]
        %v1045 = vld [vmem:[%s338 + $0xacc] sm:$0xf]
        %v1046 = vld [vmem:[%s338 + $0xad0] sm:$0xf]
        %v1047 = vld [vmem:[%s338 + $0xad4] sm:$0xf]
        %v1048 = vld [vmem:[%s338 + $0xad8] sm:$0xf]
        %v1049 = vld [vmem:[%s338 + $0xadc] sm:$0xf]
        %v1050 = vld [vmem:[%s338 + $0xae0] sm:$0xf]
        %v1051 = vld [vmem:[%s338 + $0xae4] sm:$0xf]
        %v1052 = vld [vmem:[%s338 + $0xae8] sm:$0xf]
        %v1053 = vld [vmem:[%s338 + $0xaec] sm:$0xf]
        %v1054 = vld [vmem:[%s338 + $0xaf0] sm:$0xf]
        %v1055 = vld [vmem:[%s338 + $0xaf4] sm:$0xf]
        %v1056 = vld [vmem:[%s338 + $0xaf8] sm:$0xf]
        %v1057 = vld [vmem:[%s338 + $0xafc] sm:$0xf]
        %v1058 = vld [vmem:[%s338 + $0xb00] sm:$0xf]
        %v1059 = vld [vmem:[%s338 + $0xb04] sm:$0xf]
        %v1060 = vld [vmem:[%s338 + $0xb08] sm:$0xf]
        %v1061 = vld [vmem:[%s338 + $0xb0c] sm:$0xf]
        %v1062 = vld [vmem:[%s338 + $0xb10] sm:$0xf]
        %v1063 = vld [vmem:[%s338 + $0xb14] sm:$0xf]
        %v1064 = vld [vmem:[%s338 + $0xb18] sm:$0xf]
        %v1065 = vld [vmem:[%s338 + $0xb1c] sm:$0xf]
        %v1066 = vld [vmem:[%s338 + $0xb20] sm:$0xf]
        %v1067 = vld [vmem:[%s338 + $0xb24] sm:$0xf]
        %v1068 = vld [vmem:[%s338 + $0xb28] sm:$0xf]
        %v1069 = vld [vmem:[%s338 + $0xb2c] sm:$0xf]
        %v1070 = vld [vmem:[%s338 + $0xb30] sm:$0xf]
        %v1071 = vld [vmem:[%s338 + $0xb34] sm:$0xf]
        %v1072 = vld [vmem:[%s338 + $0xb38] sm:$0xf]
        %v1073 = vld [vmem:[%s338 + $0xb3c] sm:$0xf]
        %v1074 = vld [vmem:[%s338 + $0xb40] sm:$0xf]
        %v1075 = vld [vmem:[%s338 + $0xb44] sm:$0xf]
        %v1076 = vld [vmem:[%s338 + $0xb48] sm:$0xf]
        %v1077 = vld [vmem:[%s338 + $0xb4c] sm:$0xf]
        %v1078 = vld [vmem:[%s338 + $0xb50] sm:$0xf]
        %v1079 = vld [vmem:[%s338 + $0xb54] sm:$0xf]
        %v1080 = vld [vmem:[%s338 + $0xb58] sm:$0xf]
        %v1081 = vld [vmem:[%s338 + $0xb5c] sm:$0xf]
        %v1082 = vld [vmem:[%s338 + $0xb60] sm:$0xf]
        %v1083 = vld [vmem:[%s338 + $0xb64] sm:$0xf]
        %v1084 = vld [vmem:[%s338 + $0xb68] sm:$0xf]
        %v1085 = vld [vmem:[%s338 + $0xb6c] sm:$0xf]
        %v1086 = vld [vmem:[%s338 + $0xb70] sm:$0xf]
        %v1087 = vld [vmem:[%s338 + $0xb74] sm:$0xf]
        %v1088 = vld [vmem:[%s338 + $0xb78] sm:$0xf]
        %v1089 = vld [vmem:[%s338 + $0xb7c] sm:$0xf]
        %v1090 = vld [vmem:[%s338 + $0xb80] sm:$0xf]
        %v1091 = vld [vmem:[%s338 + $0xb84] sm:$0xf]
        %v1092 = vld [vmem:[%s338 + $0xb88] sm:$0xf]
        %v1093 = vld [vmem:[%s338 + $0xb8c] sm:$0xf]
        %v1094 = vld [vmem:[%s338 + $0xb90] sm:$0xf]
        %v1095 = vld [vmem:[%s338 + $0xb94] sm:$0xf]
        %v1096 = vld [vmem:[%s338 + $0xb98] sm:$0xf]
        %v1097 = vld [vmem:[%s338 + $0xb9c] sm:$0xf]
        %v1098 = vld [vmem:[%s338 + $0xba0] sm:$0xf]
        %v1099 = vld [vmem:[%s338 + $0xba4] sm:$0xf]
        %v1100 = vld [vmem:[%s338 + $0xba8] sm:$0xf]
        %v1101 = vld [vmem:[%s338 + $0xbac] sm:$0xf]
        %v1102 = vld [vmem:[%s338 + $0xbb0] sm:$0xf]
        %v1103 = vld [vmem:[%s338 + $0xbb4] sm:$0xf]
        %v1104 = vld [vmem:[%s338 + $0xbb8] sm:$0xf]
        %v1105 = vld [vmem:[%s338 + $0xbbc] sm:$0xf]
        %v1106 = vld [vmem:[%s338 + $0xbc0] sm:$0xf]
        %v1107 = vld [vmem:[%s338 + $0xbc4] sm:$0xf]
        %v1108 = vld [vmem:[%s338 + $0xbc8] sm:$0xf]
        %v1109 = vld [vmem:[%s338 + $0xbcc] sm:$0xf]
        %v1110 = vld [vmem:[%s338 + $0xbd0] sm:$0xf]
        %v1111 = vld [vmem:[%s338 + $0xbd4] sm:$0xf]
        %v1112 = vld [vmem:[%s338 + $0xbd8] sm:$0xf]
        %v1113 = vld [vmem:[%s338 + $0xbdc] sm:$0xf]
        %v1114 = vld [vmem:[%s338 + $0xbe0] sm:$0xf]
        %v1115 = vld [vmem:[%s338 + $0xbe4] sm:$0xf]
        %v1116 = vld [vmem:[%s338 + $0xbe8] sm:$0xf]
        %v1117 = vld [vmem:[%s338 + $0xbec] sm:$0xf]
        %v1118 = vld [vmem:[%s338 + $0xbf0] sm:$0xf]
        %v1119 = vld [vmem:[%s338 + $0xbf4] sm:$0xf]
        %v1120 = vld [vmem:[%s338 + $0xbf8] sm:$0xf]
        %v1121 = vld [vmem:[%s338 + $0xbfc] sm:$0xf]
        %v1122 = vld [vmem:[%s338 + $0xc00] sm:$0xf]
        %v1123 = vld [vmem:[%s338 + $0xc04] sm:$0xf]
        %v1124 = vld [vmem:[%s338 + $0xc08] sm:$0xf]
        %v1125 = vld [vmem:[%s338 + $0xc0c] sm:$0xf]
        %v1126 = vld [vmem:[%s338 + $0xc10] sm:$0xf]
        %v1127 = vld [vmem:[%s338 + $0xc14] sm:$0xf]
        %v1128 = vld [vmem:[%s338 + $0xc18] sm:$0xf]
        %v1129 = vld [vmem:[%s338 + $0xc1c] sm:$0xf]
        %v1130 = vld [vmem:[%s338 + $0xc20] sm:$0xf]
        %v1131 = vld [vmem:[%s338 + $0xc24] sm:$0xf]
        %v1132 = vld [vmem:[%s338 + $0xc28] sm:$0xf]
        %v1133 = vld [vmem:[%s338 + $0xc2c] sm:$0xf]
        %v1134 = vld [vmem:[%s338 + $0xc30] sm:$0xf]
        %v1135 = vld [vmem:[%s338 + $0xc34] sm:$0xf]
        %v1136 = vld [vmem:[%s338 + $0xc38] sm:$0xf]
        %v1137 = vld [vmem:[%s338 + $0xc3c] sm:$0xf]
        %v1138 = vld [vmem:[%s338 + $0xc40] sm:$0xf]
        %v1139 = vld [vmem:[%s338 + $0xc44] sm:$0xf]
        %v1140 = vld [vmem:[%s338 + $0xc48] sm:$0xf]
        %v1141 = vld [vmem:[%s338 + $0xc4c] sm:$0xf]
        %v1142 = vld [vmem:[%s338 + $0xc50] sm:$0xf]
        %v1143 = vld [vmem:[%s338 + $0xc54] sm:$0xf]
        %v1144 = vld [vmem:[%s338 + $0xc58] sm:$0xf]
        %v1145 = vld [vmem:[%s338 + $0xc5c] sm:$0xf]
        %v1146 = vld [vmem:[%s338 + $0xc60] sm:$0xf]
        %v1147 = vld [vmem:[%s338 + $0xc64] sm:$0xf]
        %v1148 = vld [vmem:[%s338 + $0xc68] sm:$0xf]
        %v1149 = vld [vmem:[%s338 + $0xc6c] sm:$0xf]
        %v1150 = vld [vmem:[%s338 + $0xc70] sm:$0xf]
        %v1151 = vld [vmem:[%s338 + $0xc74] sm:$0xf]
        %v1152 = vld [vmem:[%s338 + $0xc78] sm:$0xf]
        %v1153 = vld [vmem:[%s338 + $0xc7c] sm:$0xf]
        %v1154 = vld [vmem:[%s338 + $0xc80] sm:$0xf]
        %v1155 = vld [vmem:[%s338 + $0xc84] sm:$0xf]
        %v1156 = vld [vmem:[%s338 + $0xc88] sm:$0xf]
        %v1157 = vld [vmem:[%s338 + $0xc8c] sm:$0xf]
        %v1158 = vld [vmem:[%s338 + $0xc90] sm:$0xf]
        %v1159 = vld [vmem:[%s338 + $0xc94] sm:$0xf]
        %v1160 = vld [vmem:[%s338 + $0xc98] sm:$0xf]
        %v1161 = vld [vmem:[%s338 + $0xc9c] sm:$0xf]
        %v1162 = vld [vmem:[%s338 + $0xca0] sm:$0xf]
        %v1163 = vld [vmem:[%s338 + $0xca4] sm:$0xf]
        %v1164 = vld [vmem:[%s338 + $0xca8] sm:$0xf]
        %v1165 = vld [vmem:[%s338 + $0xcac] sm:$0xf]
        %v1166 = vld [vmem:[%s338 + $0xcb0] sm:$0xf]
        %v1167 = vld [vmem:[%s338 + $0xcb4] sm:$0xf]
        %v1168 = vld [vmem:[%s338 + $0xcb8] sm:$0xf]
        %v1169 = vld [vmem:[%s338 + $0xcbc] sm:$0xf]
        %v1170 = vld [vmem:[%s338 + $0xcc0] sm:$0xf]
        %v1171 = vld [vmem:[%s338 + $0xcc4] sm:$0xf]
        %v1172 = vld [vmem:[%s338 + $0xcc8] sm:$0xf]
        %v1173 = vld [vmem:[%s338 + $0xccc] sm:$0xf]
        %v1174 = vld [vmem:[%s338 + $0xcd0] sm:$0xf]
        %v1175 = vld [vmem:[%s338 + $0xcd4] sm:$0xf]
        %v1176 = vld [vmem:[%s338 + $0xcd8] sm:$0xf]
        %v1177 = vld [vmem:[%s338 + $0xcdc] sm:$0xf]
        %v1178 = vld [vmem:[%s338 + $0xce0] sm:$0xf]
        %v1179 = vld [vmem:[%s338 + $0xce4] sm:$0xf]
        %v1180 = vld [vmem:[%s338 + $0xce8] sm:$0xf]
        %v1181 = vld [vmem:[%s338 + $0xcec] sm:$0xf]
        %v1182 = vld [vmem:[%s338 + $0xcf0] sm:$0xf]
        %v1183 = vld [vmem:[%s338 + $0xcf4] sm:$0xf]
        %v1184 = vld [vmem:[%s338 + $0xcf8] sm:$0xf]
        %v1185 = vld [vmem:[%s338 + $0xcfc] sm:$0xf]
        %v1186 = vld [vmem:[%s338 + $0xd00] sm:$0xf]
        %v1187 = vld [vmem:[%s338 + $0xd04] sm:$0xf]
        %v1188 = vld [vmem:[%s338 + $0xd08] sm:$0xf]
        %v1189 = vld [vmem:[%s338 + $0xd0c] sm:$0xf]
        %v1190 = vld [vmem:[%s338 + $0xd10] sm:$0xf]
        %v1191 = vld [vmem:[%s338 + $0xd14] sm:$0xf]
        %v1192 = vld [vmem:[%s338 + $0xd18] sm:$0xf]
        %v1193 = vld [vmem:[%s338 + $0xd1c] sm:$0xf]
        %v1194 = vld [vmem:[%s338 + $0xd20] sm:$0xf]
        %v1195 = vld [vmem:[%s338 + $0xd24] sm:$0xf]
        %v1196 = vld [vmem:[%s338 + $0xd28] sm:$0xf]
        %v1197 = vld [vmem:[%s338 + $0xd2c] sm:$0xf]
        %v1198 = vld [vmem:[%s338 + $0xd30] sm:$0xf]
        %v1199 = vld [vmem:[%s338 + $0xd34] sm:$0xf]
        %v1200 = vld [vmem:[%s338 + $0xd38] sm:$0xf]
        %v1201 = vld [vmem:[%s338 + $0xd3c] sm:$0xf]
        %v1202 = vld [vmem:[%s338 + $0xd40] sm:$0xf]
        %v1203 = vld [vmem:[%s338 + $0xd44] sm:$0xf]
        %v1204 = vld [vmem:[%s338 + $0xd48] sm:$0xf]
        %v1205 = vld [vmem:[%s338 + $0xd4c] sm:$0xf]
        %v1206 = vld [vmem:[%s338 + $0xd50] sm:$0xf]
        %v1207 = vld [vmem:[%s338 + $0xd54] sm:$0xf]
        %v1208 = vld [vmem:[%s338 + $0xd58] sm:$0xf]
        %v1209 = vld [vmem:[%s338 + $0xd5c] sm:$0xf]
        %v1210 = vld [vmem:[%s338 + $0xd60] sm:$0xf]
        %v1211 = vld [vmem:[%s338 + $0xd64] sm:$0xf]
        %v1212 = vld [vmem:[%s338 + $0xd68] sm:$0xf]
        %v1213 = vld [vmem:[%s338 + $0xd6c] sm:$0xf]
        %v1214 = vld [vmem:[%s338 + $0xd70] sm:$0xf]
        %v1215 = vld [vmem:[%s338 + $0xd74] sm:$0xf]
        %v1216 = vld [vmem:[%s338 + $0xd78] sm:$0xf]
        %v1217 = vld [vmem:[%s338 + $0xd7c] sm:$0xf]
        %v1218 = vld [vmem:[%s338 + $0xd80] sm:$0xf]
        %v1219 = vld [vmem:[%s338 + $0xd84] sm:$0xf]
        %v1220 = vld [vmem:[%s338 + $0xd88] sm:$0xf]
        %v1221 = vld [vmem:[%s338 + $0xd8c] sm:$0xf]
        %v1222 = vld [vmem:[%s338 + $0xd90] sm:$0xf]
        %v1223 = vld [vmem:[%s338 + $0xd94] sm:$0xf]
        %v1224 = vld [vmem:[%s338 + $0xd98] sm:$0xf]
        %v1225 = vld [vmem:[%s338 + $0xd9c] sm:$0xf]
        %v1226 = vld [vmem:[%s338 + $0xda0] sm:$0xf]
        %v1227 = vld [vmem:[%s338 + $0xda4] sm:$0xf]
        %v1228 = vld [vmem:[%s338 + $0xda8] sm:$0xf]
        %v1229 = vld [vmem:[%s338 + $0xdac] sm:$0xf]
        %v1230 = vld [vmem:[%s338 + $0xdb0] sm:$0xf]
        %v1231 = vld [vmem:[%s338 + $0xdb4] sm:$0xf]
        %v1232 = vld [vmem:[%s338 + $0xdb8] sm:$0xf]
        %v1233 = vld [vmem:[%s338 + $0xdbc] sm:$0xf]
        %v1234 = vld [vmem:[%s338 + $0xdc0] sm:$0xf]
        %v1235 = vld [vmem:[%s338 + $0xdc4] sm:$0xf]
        %v1236 = vld [vmem:[%s338 + $0xdc8] sm:$0xf]
        %v1237 = vld [vmem:[%s338 + $0xdcc] sm:$0xf]
        %v1238 = vld [vmem:[%s338 + $0xdd0] sm:$0xf]
        %v1239 = vld [vmem:[%s338 + $0xdd4] sm:$0xf]
        %v1240 = vld [vmem:[%s338 + $0xdd8] sm:$0xf]
        %v1241 = vld [vmem:[%s338 + $0xddc] sm:$0xf]
        %v1242 = vld [vmem:[%s338 + $0xde0] sm:$0xf]
        %v1243 = vld [vmem:[%s338 + $0xde4] sm:$0xf]
        %v1244 = vld [vmem:[%s338 + $0xde8] sm:$0xf]
        %v1245 = vld [vmem:[%s338 + $0xdec] sm:$0xf]
        %v1246 = vld [vmem:[%s338 + $0xdf0] sm:$0xf]
        %v1247 = vld [vmem:[%s338 + $0xdf4] sm:$0xf]
        %v1248 = vld [vmem:[%s338 + $0xdf8] sm:$0xf]
        %v1249 = vld [vmem:[%s338 + $0xdfc] sm:$0xf]
        %1251 = vst [vmem:[#allocation1] ss:$9 sm:$0xff] %v347
        %v1252 = vld [vmem:[#allocation1] sm:$0xff]
        %v1253 = vld [vmem:[#allocation1 + $0x9] sm:$0xff]
        %v1254 = vld [vmem:[#allocation1 + $0x12] sm:$0xff]
        %v1255 = vld [vmem:[#allocation1 + $0x1b] sm:$0xff]
        %v1256 = vld [vmem:[#allocation1 + $0x24] sm:$0xff]
        %v1257 = vld [vmem:[#allocation1 + $0x2d] sm:$0xff]
        %v1258 = vld [vmem:[#allocation1 + $0x36] sm:$0xff]
        %v1259 = vld [vmem:[#allocation1 + $0x3f] sm:$0xff]
        %1261 = vst [vmem:[#allocation1] ss:$9 sm:$0xff] %v348
        %v1262 = vld [vmem:[#allocation1] sm:$0xff]
        %v1263 = vld [vmem:[#allocation1 + $0x9] sm:$0xff]
        %v1264 = vld [vmem:[#allocation1 + $0x12] sm:$0xff]
        %v1265 = vld [vmem:[#allocation1 + $0x1b] sm:$0xff]
        %v1266 = vld [vmem:[#allocation1 + $0x24] sm:$0xff]
        %v1267 = vld [vmem:[#allocation1 + $0x2d] sm:$0xff]
        %v1268 = vld [vmem:[#allocation1 + $0x36] sm:$0xff]
        %v1269 = vld [vmem:[#allocation1 + $0x3f] sm:$0xff]
        %1271 = vst [vmem:[#allocation1] ss:$9 sm:$0xff] %v349
        %v1272 = vld [vmem:[#allocation1] sm:$0xff]
        %v1273 = vld [vmem:[#allocation1 + $0x9] sm:$0xff]
        %v1274 = vld [vmem:[#allocation1 + $0x12] sm:$0xff]
        %v1275 = vld [vmem:[#allocation1 + $0x1b] sm:$0xff]
        %v1276 = vld [vmem:[#allocation1 + $0x24] sm:$0xff]
        %v1277 = vld [vmem:[#allocation1 + $0x2d] sm:$0xff]
        %v1278 = vld [vmem:[#allocation1 + $0x36] sm:$0xff]
        %v1279 = vld [vmem:[#allocation1 + $0x3f] sm:$0xff]
        %1281 = vst [vmem:[#allocation1] ss:$9 sm:$0xff] %v350
        %v1282 = vld [vmem:[#allocation1] sm:$0xff]
        %v1283 = vld [vmem:[#allocation1 + $0x9] sm:$0xff]
        %v1284 = vld [vmem:[#allocation1 + $0x12] sm:$0xff]
        %v1285 = vld [vmem:[#allocation1 + $0x1b] sm:$0xff]
        %v1286 = vld [vmem:[#allocation1 + $0x24] sm:$0xff]
        %v1287 = vld [vmem:[#allocation1 + $0x2d] sm:$0xff]
        %v1288 = vld [vmem:[#allocation1 + $0x36] sm:$0xff]
        %v1289 = vld [vmem:[#allocation1 + $0x3f] sm:$0xff]
        %1291 = vst [vmem:[#allocation1] ss:$9 sm:$0xff] %v351
        %v1292 = vld [vmem:[#allocation1] sm:$0xff]
        %v1293 = vld [vmem:[#allocation1 + $0x9] sm:$0xff]
        %v1294 = vld [vmem:[#allocation1 + $0x12] sm:$0xff]
        %v1295 = vld [vmem:[#allocation1 + $0x1b] sm:$0xff]
        %v1296 = vld [vmem:[#allocation1 + $0x24] sm:$0xff]
        %v1297 = vld [vmem:[#allocation1 + $0x2d] sm:$0xff]
        %v1298 = vld [vmem:[#allocation1 + $0x36] sm:$0xff]
        %v1299 = vld [vmem:[#allocation1 + $0x3f] sm:$0xff]
        %1301 = vst [vmem:[#allocation1] ss:$9 sm:$0xff] %v352
        %v1302 = vld [vmem:[#allocation1] sm:$0xff]
        %v1303 = vld [vmem:[#allocation1 + $0x9] sm:$0xff]
        %v1304 = vld [vmem:[#allocation1 + $0x12] sm:$0xff]
        %v1305 = vld [vmem:[#allocation1 + $0x1b] sm:$0xff]
        %v1306 = vld [vmem:[#allocation1 + $0x24] sm:$0xff]
        %v1307 = vld [vmem:[#allocation1 + $0x2d] sm:$0xff]
        %v1308 = vld [vmem:[#allocation1 + $0x36] sm:$0xff]
        %v1309 = vld [vmem:[#allocation1 + $0x3f] sm:$0xff]
        %1311 = vst [vmem:[#allocation1] ss:$9 sm:$0xff] %v353
        %v1312 = vld [vmem:[#allocation1] sm:$0xff]
        %v1313 = vld [vmem:[#allocation1 + $0x9] sm:$0xff]
        %v1314 = vld [vmem:[#allocation1 + $0x12] sm:$0xff]
        %v1315 = vld [vmem:[#allocation1 + $0x1b] sm:$0xff]
        %v1316 = vld [vmem:[#allocation1 + $0x24] sm:$0xff]
        %v1317 = vld [vmem:[#allocation1 + $0x2d] sm:$0xff]
        %v1318 = vld [vmem:[#allocation1 + $0x36] sm:$0xff]
        %v1319 = vld [vmem:[#allocation1 + $0x3f] sm:$0xff]
        %v2272 = vunpack.c.l.b16 %v354
        %v2273 = vunpack.c.l.b16 %v355
        %v2274 = vunpack.c.l.b16 %v356
        %v2275 = vunpack.c.l.b16 %v357
        %v2276 = vunpack.c.l.b16 %v358
        %v2277 = vunpack.c.l.b16 %v359
        %v2278 = vunpack.c.l.b16 %v360
        %v2279 = vunpack.c.l.b16 %v361
        %v2280 = vunpack.c.l.b16 %v362
        %v2281 = vunpack.c.l.b16 %v363
        %v2282 = vunpack.c.l.b16 %v364
        %v2283 = vunpack.c.l.b16 %v365
        %v2284 = vunpack.c.l.b16 %v366
        %v2285 = vunpack.c.l.b16 %v367
        %v2286 = vunpack.c.l.b16 %v368
        %v2287 = vunpack.c.l.b16 %v369
        %v2288 = vunpack.c.l.b16 %v370
        %v2289 = vunpack.c.l.b16 %v371
        %v2290 = vunpack.c.l.b16 %v372
        %v2291 = vunpack.c.l.b16 %v373
        %v2292 = vunpack.c.l.b16 %v374
        %v2293 = vunpack.c.l.b16 %v375
        %v2294 = vunpack.c.l.b16 %v376
        %v2295 = vunpack.c.l.b16 %v377
        %v2296 = vunpack.c.l.b16 %v378
        %v2297 = vunpack.c.l.b16 %v379
        %v2298 = vunpack.c.l.b16 %v380
        %v2299 = vunpack.c.l.b16 %v381
        %v2300 = vunpack.c.l.b16 %v382
        %v2301 = vunpack.c.l.b16 %v383
        %v2302 = vunpack.c.l.b16 %v384
        %v2303 = vunpack.c.l.b16 %v385
        %v2304 = vunpack.c.l.b16 %v386
        %v2305 = vunpack.c.l.b16 %v387
        %v2306 = vunpack.c.l.b16 %v388
        %v2307 = vunpack.c.l.b16 %v389
        %v2308 = vunpack.c.l.b16 %v390
        %v2309 = vunpack.c.l.b16 %v391
        %v2310 = vunpack.c.l.b16 %v392
        %v2311 = vunpack.c.l.b16 %v393
        %v2312 = vunpack.c.l.b16 %v394
        %v2313 = vunpack.c.l.b16 %v395
        %v2314 = vunpack.c.l.b16 %v396
        %v2315 = vunpack.c.l.b16 %v397
        %v2316 = vunpack.c.l.b16 %v398
        %v2317 = vunpack.c.l.b16 %v399
        %v2318 = vunpack.c.l.b16 %v400
        %v2319 = vunpack.c.l.b16 %v401
        %v2320 = vunpack.c.l.b16 %v402
        %v2321 = vunpack.c.l.b16 %v403
        %v2322 = vunpack.c.l.b16 %v404
        %v2323 = vunpack.c.l.b16 %v405
        %v2324 = vunpack.c.l.b16 %v406
        %v2325 = vunpack.c.l.b16 %v407
        %v2326 = vunpack.c.l.b16 %v408
        %v2327 = vunpack.c.l.b16 %v409
        %v2328 = vunpack.c.l.b16 %v410
        %v2329 = vunpack.c.l.b16 %v411
        %v2330 = vunpack.c.l.b16 %v412
        %v2331 = vunpack.c.l.b16 %v413
        %v2332 = vunpack.c.l.b16 %v414
        %v2333 = vunpack.c.l.b16 %v415
        %v2334 = vunpack.c.l.b16 %v416
        %v2335 = vunpack.c.l.b16 %v417
        %v2336 = vunpack.c.l.b16 %v418
        %v2337 = vunpack.c.l.b16 %v419
        %v2338 = vunpack.c.l.b16 %v420
        %v2339 = vunpack.c.l.b16 %v421
        %v2340 = vunpack.c.l.b16 %v422
        %v2341 = vunpack.c.l.b16 %v423
        %v2342 = vunpack.c.l.b16 %v424
        %v2343 = vunpack.c.l.b16 %v425
        %v2344 = vunpack.c.l.b16 %v426
        %v2345 = vunpack.c.l.b16 %v427
        %v2346 = vunpack.c.l.b16 %v428
        %v2347 = vunpack.c.l.b16 %v429
        %v2348 = vunpack.c.l.b16 %v430
        %v2349 = vunpack.c.l.b16 %v431
        %v2350 = vunpack.c.l.b16 %v432
        %v2351 = vunpack.c.l.b16 %v433
        %v2352 = vunpack.c.l.b16 %v434
        %v2353 = vunpack.c.l.b16 %v435
        %v2354 = vunpack.c.l.b16 %v436
        %v2355 = vunpack.c.l.b16 %v437
        %v2356 = vunpack.c.l.b16 %v438
        %v2357 = vunpack.c.l.b16 %v439
        %v2358 = vunpack.c.l.b16 %v440
        %v2359 = vunpack.c.l.b16 %v441
        %v2360 = vunpack.c.l.b16 %v442
        %v2361 = vunpack.c.l.b16 %v443
        %v2362 = vunpack.c.l.b16 %v444
        %v2363 = vunpack.c.l.b16 %v445
        %v2364 = vunpack.c.l.b16 %v446
        %v2365 = vunpack.c.l.b16 %v447
        %v2366 = vunpack.c.l.b16 %v448
        %v2367 = vunpack.c.l.b16 %v449
        %v2368 = vunpack.c.l.b16 %v450
        %v2369 = vunpack.c.l.b16 %v451
        %v2370 = vunpack.c.l.b16 %v452
        %v2371 = vunpack.c.l.b16 %v453
        %v2372 = vunpack.c.l.b16 %v454
        %v2373 = vunpack.c.l.b16 %v455
        %v2374 = vunpack.c.l.b16 %v456
        %v2375 = vunpack.c.l.b16 %v457
        %v2376 = vunpack.c.l.b16 %v458
        %v2377 = vunpack.c.l.b16 %v459
        %v2378 = vunpack.c.l.b16 %v460
        %v2379 = vunpack.c.l.b16 %v461
        %v2380 = vunpack.c.l.b16 %v462
        %v2381 = vunpack.c.l.b16 %v463
        %v2382 = vunpack.c.l.b16 %v464
        %v2383 = vunpack.c.l.b16 %v465
        %v2384 = vunpack.c.l.b16 %v466
        %v2385 = vunpack.c.l.b16 %v467
        %v2386 = vunpack.c.l.b16 %v468
        %v2387 = vunpack.c.l.b16 %v469
        %v2388 = vunpack.c.l.b16 %v470
        %v2389 = vunpack.c.l.b16 %v471
        %v2390 = vunpack.c.l.b16 %v472
        %v2391 = vunpack.c.l.b16 %v473
        %v2392 = vunpack.c.l.b16 %v474
        %v2393 = vunpack.c.l.b16 %v475
        %v2394 = vunpack.c.l.b16 %v476
        %v2395 = vunpack.c.l.b16 %v477
        %v2396 = vunpack.c.l.b16 %v478
        %v2397 = vunpack.c.l.b16 %v479
        %v2398 = vunpack.c.l.b16 %v480
        %v2399 = vunpack.c.l.b16 %v481
        %v2400 = vunpack.c.l.b16 %v482
        %v2401 = vunpack.c.l.b16 %v483
        %v2402 = vunpack.c.l.b16 %v484
        %v2403 = vunpack.c.l.b16 %v485
        %v2404 = vunpack.c.l.b16 %v486
        %v2405 = vunpack.c.l.b16 %v487
        %v2406 = vunpack.c.l.b16 %v488
        %v2407 = vunpack.c.l.b16 %v489
        %v2408 = vunpack.c.l.b16 %v490
        %v2409 = vunpack.c.l.b16 %v491
        %v2410 = vunpack.c.l.b16 %v492
        %v2411 = vunpack.c.l.b16 %v493
        %v2412 = vunpack.c.l.b16 %v494
        %v2413 = vunpack.c.l.b16 %v495
        %v2414 = vunpack.c.l.b16 %v496
        %v2415 = vunpack.c.l.b16 %v497
        %v2416 = vunpack.c.l.b16 %v498
        %v2417 = vunpack.c.l.b16 %v499
        %v2418 = vunpack.c.l.b16 %v500
        %v2419 = vunpack.c.l.b16 %v501
        %v2420 = vunpack.c.l.b16 %v502
        %v2421 = vunpack.c.l.b16 %v503
        %v2422 = vunpack.c.l.b16 %v504
        %v2423 = vunpack.c.l.b16 %v505
        %v2424 = vunpack.c.l.b16 %v506
        %v2425 = vunpack.c.l.b16 %v507
        %v2426 = vunpack.c.l.b16 %v508
        %v2427 = vunpack.c.l.b16 %v509
        %v2428 = vunpack.c.l.b16 %v510
        %v2429 = vunpack.c.l.b16 %v511
        %v2430 = vunpack.c.l.b16 %v512
        %v2431 = vunpack.c.l.b16 %v513
        %v2432 = vunpack.c.l.b16 %v514
        %v2433 = vunpack.c.l.b16 %v515
        %v2434 = vunpack.c.l.b16 %v516
        %v2435 = vunpack.c.l.b16 %v517
        %v2436 = vunpack.c.l.b16 %v518
        %v2437 = vunpack.c.l.b16 %v519
        %v2438 = vunpack.c.l.b16 %v520
        %v2439 = vunpack.c.l.b16 %v521
        %v2440 = vunpack.c.l.b16 %v522
        %v2441 = vunpack.c.l.b16 %v523
        %v2442 = vunpack.c.l.b16 %v524
        %v2443 = vunpack.c.l.b16 %v525
        %v2444 = vunpack.c.l.b16 %v526
        %v2445 = vunpack.c.l.b16 %v527
        %v2446 = vunpack.c.l.b16 %v528
        %v2447 = vunpack.c.l.b16 %v529
        %v2448 = vunpack.c.l.b16 %v530
        %v2449 = vunpack.c.l.b16 %v531
        %v2450 = vunpack.c.l.b16 %v532
        %v2451 = vunpack.c.l.b16 %v533
        %v2452 = vunpack.c.l.b16 %v534
        %v2453 = vunpack.c.l.b16 %v535
        %v2454 = vunpack.c.l.b16 %v536
        %v2455 = vunpack.c.l.b16 %v537
        %v2456 = vunpack.c.l.b16 %v538
        %v2457 = vunpack.c.l.b16 %v539
        %v2458 = vunpack.c.l.b16 %v540
        %v2459 = vunpack.c.l.b16 %v541
        %v2460 = vunpack.c.l.b16 %v542
        %v2461 = vunpack.c.l.b16 %v543
        %v2462 = vunpack.c.l.b16 %v544
        %v2463 = vunpack.c.l.b16 %v545
        %v2464 = vunpack.c.l.b16 %v546
        %v2465 = vunpack.c.l.b16 %v547
        %v2466 = vunpack.c.l.b16 %v548
        %v2467 = vunpack.c.l.b16 %v549
        %v2468 = vunpack.c.l.b16 %v550
        %v2469 = vunpack.c.l.b16 %v551
        %v2470 = vunpack.c.l.b16 %v552
        %v2471 = vunpack.c.l.b16 %v553
        %v2472 = vunpack.c.l.b16 %v554
        %v2473 = vunpack.c.l.b16 %v555
        %v2474 = vunpack.c.l.b16 %v556
        %v2475 = vunpack.c.l.b16 %v557
        %v2476 = vunpack.c.l.b16 %v558
        %v2477 = vunpack.c.l.b16 %v559
        %v2478 = vunpack.c.l.b16 %v560
        %v2479 = vunpack.c.l.b16 %v561
        %v2480 = vunpack.c.l.b16 %v562
        %v2481 = vunpack.c.l.b16 %v563
        %v2482 = vunpack.c.l.b16 %v564
        %v2483 = vunpack.c.l.b16 %v565
        %v2484 = vunpack.c.l.b16 %v566
        %v2485 = vunpack.c.l.b16 %v567
        %v2486 = vunpack.c.l.b16 %v568
        %v2487 = vunpack.c.l.b16 %v569
        %v2488 = vunpack.c.l.b16 %v570
        %v2489 = vunpack.c.l.b16 %v571
        %v2490 = vunpack.c.l.b16 %v572
        %v2491 = vunpack.c.l.b16 %v573
        %v2492 = vunpack.c.l.b16 %v574
        %v2493 = vunpack.c.l.b16 %v575
        %v2494 = vunpack.c.l.b16 %v576
        %v2495 = vunpack.c.l.b16 %v577
        %v2496 = vunpack.c.l.b16 %v578
        %v2497 = vunpack.c.l.b16 %v579
        %v2498 = vunpack.c.l.b16 %v580
        %v2499 = vunpack.c.l.b16 %v581
        %v2500 = vunpack.c.l.b16 %v582
        %v2501 = vunpack.c.l.b16 %v583
        %v2502 = vunpack.c.l.b16 %v584
        %v2503 = vunpack.c.l.b16 %v585
        %v2504 = vunpack.c.l.b16 %v586
        %v2505 = vunpack.c.l.b16 %v587
        %v2506 = vunpack.c.l.b16 %v588
        %v2507 = vunpack.c.l.b16 %v589
        %v2508 = vunpack.c.l.b16 %v590
        %v2509 = vunpack.c.l.b16 %v591
        %v2510 = vunpack.c.l.b16 %v592
        %v2511 = vunpack.c.l.b16 %v593
        %v2512 = vunpack.c.l.b16 %v594
        %v2513 = vunpack.c.l.b16 %v595
        %v2514 = vunpack.c.l.b16 %v596
        %v2515 = vunpack.c.l.b16 %v597
        %v2516 = vunpack.c.l.b16 %v598
        %v2517 = vunpack.c.l.b16 %v599
        %v2518 = vunpack.c.l.b16 %v600
        %v2519 = vunpack.c.l.b16 %v601
        %v2520 = vunpack.c.l.b16 %v602
        %v2521 = vunpack.c.l.b16 %v603
        %v2522 = vunpack.c.l.b16 %v604
        %v2523 = vunpack.c.l.b16 %v605
        %v2524 = vunpack.c.l.b16 %v606
        %v2525 = vunpack.c.l.b16 %v607
        %v2526 = vunpack.c.l.b16 %v608
        %v2527 = vunpack.c.l.b16 %v609
        %v2528 = vunpack.c.l.b16 %v610
        %v2529 = vunpack.c.l.b16 %v611
        %v2530 = vunpack.c.l.b16 %v612
        %v2531 = vunpack.c.l.b16 %v613
        %v2532 = vunpack.c.l.b16 %v614
        %v2533 = vunpack.c.l.b16 %v615
        %v2534 = vunpack.c.l.b16 %v616
        %v2535 = vunpack.c.l.b16 %v617
        %v2536 = vunpack.c.l.b16 %v618
        %v2537 = vunpack.c.l.b16 %v619
        %v2538 = vunpack.c.l.b16 %v620
        %v2539 = vunpack.c.l.b16 %v621
        %v2540 = vunpack.c.l.b16 %v622
        %v2541 = vunpack.c.l.b16 %v623
        %v2542 = vunpack.c.l.b16 %v624
        %v2543 = vunpack.c.l.b16 %v625
        %v2544 = vunpack.c.l.b16 %v626
        %v2545 = vunpack.c.l.b16 %v627
        %v2546 = vunpack.c.l.b16 %v628
        %v2547 = vunpack.c.l.b16 %v629
        %v2548 = vunpack.c.l.b16 %v630
        %v2549 = vunpack.c.l.b16 %v631
        %v2550 = vunpack.c.l.b16 %v632
        %v2551 = vunpack.c.l.b16 %v633
        %v2552 = vunpack.c.l.b16 %v634
        %v2553 = vunpack.c.l.b16 %v635
        %v2554 = vunpack.c.l.b16 %v636
        %v2555 = vunpack.c.l.b16 %v637
        %v2556 = vunpack.c.l.b16 %v638
        %v2557 = vunpack.c.l.b16 %v639
        %v2558 = vunpack.c.l.b16 %v640
        %v2559 = vunpack.c.l.b16 %v641
        %v2560 = vunpack.c.l.b16 %v642
        %v2561 = vunpack.c.l.b16 %v643
        %v2562 = vunpack.c.l.b16 %v644
        %v2563 = vunpack.c.l.b16 %v645
        %v2564 = vunpack.c.l.b16 %v646
        %v2565 = vunpack.c.l.b16 %v647
        %v2566 = vunpack.c.l.b16 %v648
        %v2567 = vunpack.c.l.b16 %v649
        %v2568 = vunpack.c.l.b16 %v650
        %v2569 = vunpack.c.l.b16 %v651
        %v2570 = vunpack.c.l.b16 %v652
        %v2571 = vunpack.c.l.b16 %v653
        %v2572 = vunpack.c.l.b16 %v654
        %v2573 = vunpack.c.l.b16 %v655
        %v2574 = vunpack.c.l.b16 %v656
        %v2575 = vunpack.c.l.b16 %v657
        %v2576 = vunpack.c.l.b16 %v658
        %v2577 = vunpack.c.l.b16 %v659
        %v2578 = vunpack.c.l.b16 %v660
        %v2579 = vunpack.c.l.b16 %v661
        %v2580 = vunpack.c.l.b16 %v662
        %v2581 = vunpack.c.l.b16 %v663
        %v2582 = vunpack.c.l.b16 %v664
        %v2583 = vunpack.c.l.b16 %v665
        %v2584 = vunpack.c.l.b16 %v666
        %v2585 = vunpack.c.l.b16 %v667
        %v2586 = vunpack.c.l.b16 %v668
        %v2587 = vunpack.c.l.b16 %v669
        %v2588 = vunpack.c.l.b16 %v670
        %v2589 = vunpack.c.l.b16 %v671
        %v2590 = vunpack.c.l.b16 %v672
        %v2591 = vunpack.c.l.b16 %v673
        %v2592 = vunpack.c.l.b16 %v674
        %v2593 = vunpack.c.l.b16 %v675
        %v2594 = vunpack.c.l.b16 %v676
        %v2595 = vunpack.c.l.b16 %v677
        %v2596 = vunpack.c.l.b16 %v678
        %v2597 = vunpack.c.l.b16 %v679
        %v2598 = vunpack.c.l.b16 %v680
        %v2599 = vunpack.c.l.b16 %v681
        %v2600 = vunpack.c.l.b16 %v682
        %v2601 = vunpack.c.l.b16 %v683
        %v2602 = vunpack.c.l.b16 %v684
        %v2603 = vunpack.c.l.b16 %v685
        %v2604 = vunpack.c.l.b16 %v686
        %v2605 = vunpack.c.l.b16 %v687
        %v2606 = vunpack.c.l.b16 %v688
        %v2607 = vunpack.c.l.b16 %v689
        %v2608 = vunpack.c.l.b16 %v690
        %v2609 = vunpack.c.l.b16 %v691
        %v2610 = vunpack.c.l.b16 %v692
        %v2611 = vunpack.c.l.b16 %v693
        %v2612 = vunpack.c.l.b16 %v694
        %v2613 = vunpack.c.l.b16 %v695
        %v2614 = vunpack.c.l.b16 %v696
        %v2615 = vunpack.c.l.b16 %v697
        %v2616 = vunpack.c.l.b16 %v698
        %v2617 = vunpack.c.l.b16 %v699
        %v2618 = vunpack.c.l.b16 %v700
        %v2619 = vunpack.c.l.b16 %v701
        %v2620 = vunpack.c.l.b16 %v702
        %v2621 = vunpack.c.l.b16 %v703
        %v2622 = vunpack.c.l.b16 %v704
        %v2623 = vunpack.c.l.b16 %v705
        %v2624 = vunpack.c.l.b16 %v706
        %v2625 = vunpack.c.l.b16 %v707
        %v2626 = vunpack.c.l.b16 %v708
        %v2627 = vunpack.c.l.b16 %v709
        %v2628 = vunpack.c.l.b16 %v710
        %v2629 = vunpack.c.l.b16 %v711
        %v2630 = vunpack.c.l.b16 %v712
        %v2631 = vunpack.c.l.b16 %v713
        %v2632 = vunpack.c.l.b16 %v714
        %v2633 = vunpack.c.l.b16 %v715
        %v2634 = vunpack.c.l.b16 %v716
        %v2635 = vunpack.c.l.b16 %v717
        %v2636 = vunpack.c.l.b16 %v718
        %v2637 = vunpack.c.l.b16 %v719
        %v2638 = vunpack.c.l.b16 %v720
        %v2639 = vunpack.c.l.b16 %v721
        %v2640 = vunpack.c.l.b16 %v722
        %v2641 = vunpack.c.l.b16 %v723
        %v2642 = vunpack.c.l.b16 %v724
        %v2643 = vunpack.c.l.b16 %v725
        %v2644 = vunpack.c.l.b16 %v726
        %v2645 = vunpack.c.l.b16 %v727
        %v2646 = vunpack.c.l.b16 %v728
        %v2647 = vunpack.c.l.b16 %v729
        %v2648 = vunpack.c.l.b16 %v730
        %v2649 = vunpack.c.l.b16 %v731
        %v2650 = vunpack.c.l.b16 %v732
        %v2651 = vunpack.c.l.b16 %v733
        %v2652 = vunpack.c.l.b16 %v734
        %v2653 = vunpack.c.l.b16 %v735
        %v2654 = vunpack.c.l.b16 %v736
        %v2655 = vunpack.c.l.b16 %v737
        %v2656 = vunpack.c.l.b16 %v738
        %v2657 = vunpack.c.l.b16 %v739
        %v2658 = vunpack.c.l.b16 %v740
        %v2659 = vunpack.c.l.b16 %v741
        %v2660 = vunpack.c.l.b16 %v742
        %v2661 = vunpack.c.l.b16 %v743
        %v2662 = vunpack.c.l.b16 %v744
        %v2663 = vunpack.c.l.b16 %v745
        %v2664 = vunpack.c.l.b16 %v746
        %v2665 = vunpack.c.l.b16 %v747
        %v2666 = vunpack.c.l.b16 %v748
        %v2667 = vunpack.c.l.b16 %v749
        %v2668 = vunpack.c.l.b16 %v750
        %v2669 = vunpack.c.l.b16 %v751
        %v2670 = vunpack.c.l.b16 %v752
        %v2671 = vunpack.c.l.b16 %v753
        %v2672 = vunpack.c.l.b16 %v754
        %v2673 = vunpack.c.l.b16 %v755
        %v2674 = vunpack.c.l.b16 %v756
        %v2675 = vunpack.c.l.b16 %v757
        %v2676 = vunpack.c.l.b16 %v758
        %v2677 = vunpack.c.l.b16 %v759
        %v2678 = vunpack.c.l.b16 %v760
        %v2679 = vunpack.c.l.b16 %v761
        %v2680 = vunpack.c.l.b16 %v762
        %v2681 = vunpack.c.l.b16 %v763
        %v2682 = vunpack.c.l.b16 %v764
        %v2683 = vunpack.c.l.b16 %v765
        %v2684 = vunpack.c.l.b16 %v766
        %v2685 = vunpack.c.l.b16 %v767
        %v2686 = vunpack.c.l.b16 %v768
        %v2687 = vunpack.c.l.b16 %v769
        %v2688 = vunpack.c.l.b16 %v770
        %v2689 = vunpack.c.l.b16 %v771
        %v2690 = vunpack.c.l.b16 %v772
        %v2691 = vunpack.c.l.b16 %v773
        %v2692 = vunpack.c.l.b16 %v774
        %v2693 = vunpack.c.l.b16 %v775
        %v2694 = vunpack.c.l.b16 %v776
        %v2695 = vunpack.c.l.b16 %v777
        %v2696 = vunpack.c.l.b16 %v778
        %v2697 = vunpack.c.l.b16 %v779
        %v2698 = vunpack.c.l.b16 %v780
        %v2699 = vunpack.c.l.b16 %v781
        %v2700 = vunpack.c.l.b16 %v782
        %v2701 = vunpack.c.l.b16 %v783
        %v2702 = vunpack.c.l.b16 %v784
        %v2703 = vunpack.c.l.b16 %v785
        %v2704 = vunpack.c.l.b16 %v786
        %v2705 = vunpack.c.l.b16 %v787
        %v2706 = vunpack.c.l.b16 %v788
        %v2707 = vunpack.c.l.b16 %v789
        %v2708 = vunpack.c.l.b16 %v790
        %v2709 = vunpack.c.l.b16 %v791
        %v2710 = vunpack.c.l.b16 %v792
        %v2711 = vunpack.c.l.b16 %v793
        %v2712 = vunpack.c.l.b16 %v794
        %v2713 = vunpack.c.l.b16 %v795
        %v2714 = vunpack.c.l.b16 %v796
        %v2715 = vunpack.c.l.b16 %v797
        %v2716 = vunpack.c.l.b16 %v798
        %v2717 = vunpack.c.l.b16 %v799
        %v2718 = vunpack.c.l.b16 %v800
        %v2719 = vunpack.c.l.b16 %v801
        %v2720 = vunpack.c.l.b16 %v802
        %v2721 = vunpack.c.l.b16 %v803
        %v2722 = vunpack.c.l.b16 %v804
        %v2723 = vunpack.c.l.b16 %v805
        %v2724 = vunpack.c.l.b16 %v806
        %v2725 = vunpack.c.l.b16 %v807
        %v2726 = vunpack.c.l.b16 %v808
        %v2727 = vunpack.c.l.b16 %v809
        %v2728 = vunpack.c.l.b16 %v810
        %v2729 = vunpack.c.l.b16 %v811
        %v2730 = vunpack.c.l.b16 %v812
        %v2731 = vunpack.c.l.b16 %v813
        %v2732 = vunpack.c.l.b16 %v814
        %v2733 = vunpack.c.l.b16 %v815
        %v2734 = vunpack.c.l.b16 %v816
        %v2735 = vunpack.c.l.b16 %v817
        %v2736 = vunpack.c.l.b16 %v818
        %v2737 = vunpack.c.l.b16 %v819
        %v2738 = vunpack.c.l.b16 %v820
        %v2739 = vunpack.c.l.b16 %v821
        %v2740 = vunpack.c.l.b16 %v822
        %v2741 = vunpack.c.l.b16 %v823
        %v2742 = vunpack.c.l.b16 %v824
        %v2743 = vunpack.c.l.b16 %v825
        %v2744 = vunpack.c.l.b16 %v826
        %v2745 = vunpack.c.l.b16 %v827
        %v2746 = vunpack.c.l.b16 %v828
        %v2747 = vunpack.c.l.b16 %v829
        %v2748 = vunpack.c.l.b16 %v830
        %v2749 = vunpack.c.l.b16 %v831
        %v2750 = vunpack.c.l.b16 %v832
        %v2751 = vunpack.c.l.b16 %v833
        %v2752 = vunpack.c.l.b16 %v834
        %v2753 = vunpack.c.l.b16 %v835
        %v2754 = vunpack.c.l.b16 %v836
        %v2755 = vunpack.c.l.b16 %v837
        %v2756 = vunpack.c.l.b16 %v838
        %v2757 = vunpack.c.l.b16 %v839
        %v2758 = vunpack.c.l.b16 %v840
        %v2759 = vunpack.c.l.b16 %v841
        %v2760 = vunpack.c.l.b16 %v842
        %v2761 = vunpack.c.l.b16 %v843
        %v2762 = vunpack.c.l.b16 %v844
        %v2763 = vunpack.c.l.b16 %v845
        %v2764 = vunpack.c.l.b16 %v846
        %v2765 = vunpack.c.l.b16 %v847
        %v2766 = vunpack.c.l.b16 %v848
        %v2767 = vunpack.c.l.b16 %v849
        %v2768 = vunpack.c.l.b16 %v850
        %v2769 = vunpack.c.l.b16 %v851
        %v2770 = vunpack.c.l.b16 %v852
        %v2771 = vunpack.c.l.b16 %v853
        %v2772 = vunpack.c.l.b16 %v854
        %v2773 = vunpack.c.l.b16 %v855
        %v2774 = vunpack.c.l.b16 %v856
        %v2775 = vunpack.c.l.b16 %v857
        %v2776 = vunpack.c.l.b16 %v858
        %v2777 = vunpack.c.l.b16 %v859
        %v2778 = vunpack.c.l.b16 %v860
        %v2779 = vunpack.c.l.b16 %v861
        %v2780 = vunpack.c.l.b16 %v862
        %v2781 = vunpack.c.l.b16 %v863
        %v2782 = vunpack.c.l.b16 %v864
        %v2783 = vunpack.c.l.b16 %v865
        %v2784 = vunpack.c.l.b16 %v866
        %v2785 = vunpack.c.l.b16 %v867
        %v2786 = vunpack.c.l.b16 %v868
        %v2787 = vunpack.c.l.b16 %v869
        %v2788 = vunpack.c.l.b16 %v870
        %v2789 = vunpack.c.l.b16 %v871
        %v2790 = vunpack.c.l.b16 %v872
        %v2791 = vunpack.c.l.b16 %v873
        %v2792 = vunpack.c.l.b16 %v874
        %v2793 = vunpack.c.l.b16 %v875
        %v2794 = vunpack.c.l.b16 %v876
        %v2795 = vunpack.c.l.b16 %v877
        %v2796 = vunpack.c.l.b16 %v878
        %v2797 = vunpack.c.l.b16 %v879
        %v2798 = vunpack.c.l.b16 %v880
        %v2799 = vunpack.c.l.b16 %v881
        %v2800 = vunpack.c.l.b16 %v882
        %v2801 = vunpack.c.l.b16 %v883
        %v2802 = vunpack.c.l.b16 %v884
        %v2803 = vunpack.c.l.b16 %v885
        %v2804 = vunpack.c.l.b16 %v886
        %v2805 = vunpack.c.l.b16 %v887
        %v2806 = vunpack.c.l.b16 %v888
        %v2807 = vunpack.c.l.b16 %v889
        %v2808 = vunpack.c.l.b16 %v890
        %v2809 = vunpack.c.l.b16 %v891
        %v2810 = vunpack.c.l.b16 %v892
        %v2811 = vunpack.c.l.b16 %v893
        %v2812 = vunpack.c.l.b16 %v894
        %v2813 = vunpack.c.l.b16 %v895
        %v2814 = vunpack.c.l.b16 %v896
        %v2815 = vunpack.c.l.b16 %v897
        %v2816 = vunpack.c.l.b16 %v898
        %v2817 = vunpack.c.l.b16 %v899
        %v2818 = vunpack.c.l.b16 %v900
        %v2819 = vunpack.c.l.b16 %v901
        %v2820 = vunpack.c.l.b16 %v902
        %v2821 = vunpack.c.l.b16 %v903
        %v2822 = vunpack.c.l.b16 %v904
        %v2823 = vunpack.c.l.b16 %v905
        %v2824 = vunpack.c.l.b16 %v906
        %v2825 = vunpack.c.l.b16 %v907
        %v2826 = vunpack.c.l.b16 %v908
        %v2827 = vunpack.c.l.b16 %v909
        %v2828 = vunpack.c.l.b16 %v910
        %v2829 = vunpack.c.l.b16 %v911
        %v2830 = vunpack.c.l.b16 %v912
        %v2831 = vunpack.c.l.b16 %v913
        %v2832 = vunpack.c.l.b16 %v914
        %v2833 = vunpack.c.l.b16 %v915
        %v2834 = vunpack.c.l.b16 %v916
        %v2835 = vunpack.c.l.b16 %v917
        %v2836 = vunpack.c.l.b16 %v918
        %v2837 = vunpack.c.l.b16 %v919
        %v2838 = vunpack.c.l.b16 %v920
        %v2839 = vunpack.c.l.b16 %v921
        %v2840 = vunpack.c.l.b16 %v922
        %v2841 = vunpack.c.l.b16 %v923
        %v2842 = vunpack.c.l.b16 %v924
        %v2843 = vunpack.c.l.b16 %v925
        %v2844 = vunpack.c.l.b16 %v926
        %v2845 = vunpack.c.l.b16 %v927
        %v2846 = vunpack.c.l.b16 %v928
        %v2847 = vunpack.c.l.b16 %v929
        %v2848 = vunpack.c.l.b16 %v930
        %v2849 = vunpack.c.l.b16 %v931
        %v2850 = vunpack.c.l.b16 %v932
        %v2851 = vunpack.c.l.b16 %v933
        %v2852 = vunpack.c.l.b16 %v934
        %v2853 = vunpack.c.l.b16 %v935
        %v2854 = vunpack.c.l.b16 %v936
        %v2855 = vunpack.c.l.b16 %v937
        %v2856 = vunpack.c.l.b16 %v938
        %v2857 = vunpack.c.l.b16 %v939
        %v2858 = vunpack.c.l.b16 %v940
        %v2859 = vunpack.c.l.b16 %v941
        %v2860 = vunpack.c.l.b16 %v942
        %v2861 = vunpack.c.l.b16 %v943
        %v2862 = vunpack.c.l.b16 %v944
        %v2863 = vunpack.c.l.b16 %v945
        %v2864 = vunpack.c.l.b16 %v946
        %v2865 = vunpack.c.l.b16 %v947
        %v2866 = vunpack.c.l.b16 %v948
        %v2867 = vunpack.c.l.b16 %v949
        %v2868 = vunpack.c.l.b16 %v950
        %v2869 = vunpack.c.l.b16 %v951
        %v2870 = vunpack.c.l.b16 %v952
        %v2871 = vunpack.c.l.b16 %v953
        %v2872 = vunpack.c.l.b16 %v954
        %v2873 = vunpack.c.l.b16 %v955
        %v2874 = vunpack.c.l.b16 %v956
        %v2875 = vunpack.c.l.b16 %v957
        %v2876 = vunpack.c.l.b16 %v958
        %v2877 = vunpack.c.l.b16 %v959
        %v2878 = vunpack.c.l.b16 %v960
        %v2879 = vunpack.c.l.b16 %v961
        %v2880 = vunpack.c.l.b16 %v962
        %v2881 = vunpack.c.l.b16 %v963
        %v2882 = vunpack.c.l.b16 %v964
        %v2883 = vunpack.c.l.b16 %v965
        %v2884 = vunpack.c.l.b16 %v966
        %v2885 = vunpack.c.l.b16 %v967
        %v2886 = vunpack.c.l.b16 %v968
        %v2887 = vunpack.c.l.b16 %v969
        %v2888 = vunpack.c.l.b16 %v970
        %v2889 = vunpack.c.l.b16 %v971
        %v2890 = vunpack.c.l.b16 %v972
        %v2891 = vunpack.c.l.b16 %v973
        %v2892 = vunpack.c.l.b16 %v974
        %v2893 = vunpack.c.l.b16 %v975
        %v2894 = vunpack.c.l.b16 %v976
        %v2895 = vunpack.c.l.b16 %v977
        %v2896 = vunpack.c.l.b16 %v978
        %v2897 = vunpack.c.l.b16 %v979
        %v2898 = vunpack.c.l.b16 %v980
        %v2899 = vunpack.c.l.b16 %v981
        %v2900 = vunpack.c.l.b16 %v982
        %v2901 = vunpack.c.l.b16 %v983
        %v2902 = vunpack.c.l.b16 %v984
        %v2903 = vunpack.c.l.b16 %v985
        %v2904 = vunpack.c.l.b16 %v986
        %v2905 = vunpack.c.l.b16 %v987
        %v2906 = vunpack.c.l.b16 %v988
        %v2907 = vunpack.c.l.b16 %v989
        %v2908 = vunpack.c.l.b16 %v990
        %v2909 = vunpack.c.l.b16 %v991
        %v2910 = vunpack.c.l.b16 %v992
        %v2911 = vunpack.c.l.b16 %v993
        %v2912 = vunpack.c.l.b16 %v994
        %v2913 = vunpack.c.l.b16 %v995
        %v2914 = vunpack.c.l.b16 %v996
        %v2915 = vunpack.c.l.b16 %v997
        %v2916 = vunpack.c.l.b16 %v998
        %v2917 = vunpack.c.l.b16 %v999
        %v2918 = vunpack.c.l.b16 %v1000
        %v2919 = vunpack.c.l.b16 %v1001
        %v2920 = vunpack.c.l.b16 %v1002
        %v2921 = vunpack.c.l.b16 %v1003
        %v2922 = vunpack.c.l.b16 %v1004
        %v2923 = vunpack.c.l.b16 %v1005
        %v2924 = vunpack.c.l.b16 %v1006
        %v2925 = vunpack.c.l.b16 %v1007
        %v2926 = vunpack.c.l.b16 %v1008
        %v2927 = vunpack.c.l.b16 %v1009
        %v2928 = vunpack.c.l.b16 %v1010
        %v2929 = vunpack.c.l.b16 %v1011
        %v2930 = vunpack.c.l.b16 %v1012
        %v2931 = vunpack.c.l.b16 %v1013
        %v2932 = vunpack.c.l.b16 %v1014
        %v2933 = vunpack.c.l.b16 %v1015
        %v2934 = vunpack.c.l.b16 %v1016
        %v2935 = vunpack.c.l.b16 %v1017
        %v2936 = vunpack.c.l.b16 %v1018
        %v2937 = vunpack.c.l.b16 %v1019
        %v2938 = vunpack.c.l.b16 %v1020
        %v2939 = vunpack.c.l.b16 %v1021
        %v2940 = vunpack.c.l.b16 %v1022
        %v2941 = vunpack.c.l.b16 %v1023
        %v2942 = vunpack.c.l.b16 %v1024
        %v2943 = vunpack.c.l.b16 %v1025
        %v2944 = vunpack.c.l.b16 %v1026
        %v2945 = vunpack.c.l.b16 %v1027
        %v2946 = vunpack.c.l.b16 %v1028
        %v2947 = vunpack.c.l.b16 %v1029
        %v2948 = vunpack.c.l.b16 %v1030
        %v2949 = vunpack.c.l.b16 %v1031
        %v2950 = vunpack.c.l.b16 %v1032
        %v2951 = vunpack.c.l.b16 %v1033
        %v2952 = vunpack.c.l.b16 %v1034
        %v2953 = vunpack.c.l.b16 %v1035
        %v2954 = vunpack.c.l.b16 %v1036
        %v2955 = vunpack.c.l.b16 %v1037
        %v2956 = vunpack.c.l.b16 %v1038
        %v2957 = vunpack.c.l.b16 %v1039
        %v2958 = vunpack.c.l.b16 %v1040
        %v2959 = vunpack.c.l.b16 %v1041
        %v2960 = vunpack.c.l.b16 %v1042
        %v2961 = vunpack.c.l.b16 %v1043
        %v2962 = vunpack.c.l.b16 %v1044
        %v2963 = vunpack.c.l.b16 %v1045
        %v2964 = vunpack.c.l.b16 %v1046
        %v2965 = vunpack.c.l.b16 %v1047
        %v2966 = vunpack.c.l.b16 %v1048
        %v2967 = vunpack.c.l.b16 %v1049
        %v2968 = vunpack.c.l.b16 %v1050
        %v2969 = vunpack.c.l.b16 %v1051
        %v2970 = vunpack.c.l.b16 %v1052
        %v2971 = vunpack.c.l.b16 %v1053
        %v2972 = vunpack.c.l.b16 %v1054
        %v2973 = vunpack.c.l.b16 %v1055
        %v2974 = vunpack.c.l.b16 %v1056
        %v2975 = vunpack.c.l.b16 %v1057
        %v2976 = vunpack.c.l.b16 %v1058
        %v2977 = vunpack.c.l.b16 %v1059
        %v2978 = vunpack.c.l.b16 %v1060
        %v2979 = vunpack.c.l.b16 %v1061
        %v2980 = vunpack.c.l.b16 %v1062
        %v2981 = vunpack.c.l.b16 %v1063
        %v2982 = vunpack.c.l.b16 %v1064
        %v2983 = vunpack.c.l.b16 %v1065
        %v2984 = vunpack.c.l.b16 %v1066
        %v2985 = vunpack.c.l.b16 %v1067
        %v2986 = vunpack.c.l.b16 %v1068
        %v2987 = vunpack.c.l.b16 %v1069
        %v2988 = vunpack.c.l.b16 %v1070
        %v2989 = vunpack.c.l.b16 %v1071
        %v2990 = vunpack.c.l.b16 %v1072
        %v2991 = vunpack.c.l.b16 %v1073
        %v2992 = vunpack.c.l.b16 %v1074
        %v2993 = vunpack.c.l.b16 %v1075
        %v2994 = vunpack.c.l.b16 %v1076
        %v2995 = vunpack.c.l.b16 %v1077
        %v2996 = vunpack.c.l.b16 %v1078
        %v2997 = vunpack.c.l.b16 %v1079
        %v2998 = vunpack.c.l.b16 %v1080
        %v2999 = vunpack.c.l.b16 %v1081
        %v3000 = vunpack.c.l.b16 %v1082
        %v3001 = vunpack.c.l.b16 %v1083
        %v3002 = vunpack.c.l.b16 %v1084
        %v3003 = vunpack.c.l.b16 %v1085
        %v3004 = vunpack.c.l.b16 %v1086
        %v3005 = vunpack.c.l.b16 %v1087
        %v3006 = vunpack.c.l.b16 %v1088
        %v3007 = vunpack.c.l.b16 %v1089
        %v3008 = vunpack.c.l.b16 %v1090
        %v3009 = vunpack.c.l.b16 %v1091
        %v3010 = vunpack.c.l.b16 %v1092
        %v3011 = vunpack.c.l.b16 %v1093
        %v3012 = vunpack.c.l.b16 %v1094
        %v3013 = vunpack.c.l.b16 %v1095
        %v3014 = vunpack.c.l.b16 %v1096
        %v3015 = vunpack.c.l.b16 %v1097
        %v3016 = vunpack.c.l.b16 %v1098
        %v3017 = vunpack.c.l.b16 %v1099
        %v3018 = vunpack.c.l.b16 %v1100
        %v3019 = vunpack.c.l.b16 %v1101
        %v3020 = vunpack.c.l.b16 %v1102
        %v3021 = vunpack.c.l.b16 %v1103
        %v3022 = vunpack.c.l.b16 %v1104
        %v3023 = vunpack.c.l.b16 %v1105
        %v3024 = vunpack.c.l.b16 %v1106
        %v3025 = vunpack.c.l.b16 %v1107
        %v3026 = vunpack.c.l.b16 %v1108
        %v3027 = vunpack.c.l.b16 %v1109
        %v3028 = vunpack.c.l.b16 %v1110
        %v3029 = vunpack.c.l.b16 %v1111
        %v3030 = vunpack.c.l.b16 %v1112
        %v3031 = vunpack.c.l.b16 %v1113
        %v3032 = vunpack.c.l.b16 %v1114
        %v3033 = vunpack.c.l.b16 %v1115
        %v3034 = vunpack.c.l.b16 %v1116
        %v3035 = vunpack.c.l.b16 %v1117
        %v3036 = vunpack.c.l.b16 %v1118
        %v3037 = vunpack.c.l.b16 %v1119
        %v3038 = vunpack.c.l.b16 %v1120
        %v3039 = vunpack.c.l.b16 %v1121
        %v3040 = vunpack.c.l.b16 %v1122
        %v3041 = vunpack.c.l.b16 %v1123
        %v3042 = vunpack.c.l.b16 %v1124
        %v3043 = vunpack.c.l.b16 %v1125
        %v3044 = vunpack.c.l.b16 %v1126
        %v3045 = vunpack.c.l.b16 %v1127
        %v3046 = vunpack.c.l.b16 %v1128
        %v3047 = vunpack.c.l.b16 %v1129
        %v3048 = vunpack.c.l.b16 %v1130
        %v3049 = vunpack.c.l.b16 %v1131
        %v3050 = vunpack.c.l.b16 %v1132
        %v3051 = vunpack.c.l.b16 %v1133
        %v3052 = vunpack.c.l.b16 %v1134
        %v3053 = vunpack.c.l.b16 %v1135
        %v3054 = vunpack.c.l.b16 %v1136
        %v3055 = vunpack.c.l.b16 %v1137
        %v3056 = vunpack.c.l.b16 %v1138
        %v3057 = vunpack.c.l.b16 %v1139
        %v3058 = vunpack.c.l.b16 %v1140
        %v3059 = vunpack.c.l.b16 %v1141
        %v3060 = vunpack.c.l.b16 %v1142
        %v3061 = vunpack.c.l.b16 %v1143
        %v3062 = vunpack.c.l.b16 %v1144
        %v3063 = vunpack.c.l.b16 %v1145
        %v3064 = vunpack.c.l.b16 %v1146
        %v3065 = vunpack.c.l.b16 %v1147
        %v3066 = vunpack.c.l.b16 %v1148
        %v3067 = vunpack.c.l.b16 %v1149
        %v3068 = vunpack.c.l.b16 %v1150
        %v3069 = vunpack.c.l.b16 %v1151
        %v3070 = vunpack.c.l.b16 %v1152
        %v3071 = vunpack.c.l.b16 %v1153
        %v3072 = vunpack.c.l.b16 %v1154
        %v3073 = vunpack.c.l.b16 %v1155
        %v3074 = vunpack.c.l.b16 %v1156
        %v3075 = vunpack.c.l.b16 %v1157
        %v3076 = vunpack.c.l.b16 %v1158
        %v3077 = vunpack.c.l.b16 %v1159
        %v3078 = vunpack.c.l.b16 %v1160
        %v3079 = vunpack.c.l.b16 %v1161
        %v3080 = vunpack.c.l.b16 %v1162
        %v3081 = vunpack.c.l.b16 %v1163
        %v3082 = vunpack.c.l.b16 %v1164
        %v3083 = vunpack.c.l.b16 %v1165
        %v3084 = vunpack.c.l.b16 %v1166
        %v3085 = vunpack.c.l.b16 %v1167
        %v3086 = vunpack.c.l.b16 %v1168
        %v3087 = vunpack.c.l.b16 %v1169
        %v3088 = vunpack.c.l.b16 %v1170
        %v3089 = vunpack.c.l.b16 %v1171
        %v3090 = vunpack.c.l.b16 %v1172
        %v3091 = vunpack.c.l.b16 %v1173
        %v3092 = vunpack.c.l.b16 %v1174
        %v3093 = vunpack.c.l.b16 %v1175
        %v3094 = vunpack.c.l.b16 %v1176
        %v3095 = vunpack.c.l.b16 %v1177
        %v3096 = vunpack.c.l.b16 %v1178
        %v3097 = vunpack.c.l.b16 %v1179
        %v3098 = vunpack.c.l.b16 %v1180
        %v3099 = vunpack.c.l.b16 %v1181
        %v3100 = vunpack.c.l.b16 %v1182
        %v3101 = vunpack.c.l.b16 %v1183
        %v3102 = vunpack.c.l.b16 %v1184
        %v3103 = vunpack.c.l.b16 %v1185
        %v3104 = vunpack.c.l.b16 %v1186
        %v3105 = vunpack.c.l.b16 %v1187
        %v3106 = vunpack.c.l.b16 %v1188
        %v3107 = vunpack.c.l.b16 %v1189
        %v3108 = vunpack.c.l.b16 %v1190
        %v3109 = vunpack.c.l.b16 %v1191
        %v3110 = vunpack.c.l.b16 %v1192
        %v3111 = vunpack.c.l.b16 %v1193
        %v3112 = vunpack.c.l.b16 %v1194
        %v3113 = vunpack.c.l.b16 %v1195
        %v3114 = vunpack.c.l.b16 %v1196
        %v3115 = vunpack.c.l.b16 %v1197
        %v3116 = vunpack.c.l.b16 %v1198
        %v3117 = vunpack.c.l.b16 %v1199
        %v3118 = vunpack.c.l.b16 %v1200
        %v3119 = vunpack.c.l.b16 %v1201
        %v3120 = vunpack.c.l.b16 %v1202
        %v3121 = vunpack.c.l.b16 %v1203
        %v3122 = vunpack.c.l.b16 %v1204
        %v3123 = vunpack.c.l.b16 %v1205
        %v3124 = vunpack.c.l.b16 %v1206
        %v3125 = vunpack.c.l.b16 %v1207
        %v3126 = vunpack.c.l.b16 %v1208
        %v3127 = vunpack.c.l.b16 %v1209
        %v3128 = vunpack.c.l.b16 %v1210
        %v3129 = vunpack.c.l.b16 %v1211
        %v3130 = vunpack.c.l.b16 %v1212
        %v3131 = vunpack.c.l.b16 %v1213
        %v3132 = vunpack.c.l.b16 %v1214
        %v3133 = vunpack.c.l.b16 %v1215
        %v3134 = vunpack.c.l.b16 %v1216
        %v3135 = vunpack.c.l.b16 %v1217
        %v3136 = vunpack.c.l.b16 %v1218
        %v3137 = vunpack.c.l.b16 %v1219
        %v3138 = vunpack.c.l.b16 %v1220
        %v3139 = vunpack.c.l.b16 %v1221
        %v3140 = vunpack.c.l.b16 %v1222
        %v3141 = vunpack.c.l.b16 %v1223
        %v3142 = vunpack.c.l.b16 %v1224
        %v3143 = vunpack.c.l.b16 %v1225
        %v3144 = vunpack.c.l.b16 %v1226
        %v3145 = vunpack.c.l.b16 %v1227
        %v3146 = vunpack.c.l.b16 %v1228
        %v3147 = vunpack.c.l.b16 %v1229
        %v3148 = vunpack.c.l.b16 %v1230
        %v3149 = vunpack.c.l.b16 %v1231
        %v3150 = vunpack.c.l.b16 %v1232
        %v3151 = vunpack.c.l.b16 %v1233
        %v3152 = vunpack.c.l.b16 %v1234
        %v3153 = vunpack.c.l.b16 %v1235
        %v3154 = vunpack.c.l.b16 %v1236
        %v3155 = vunpack.c.l.b16 %v1237
        %v3156 = vunpack.c.l.b16 %v1238
        %v3157 = vunpack.c.l.b16 %v1239
        %v3158 = vunpack.c.l.b16 %v1240
        %v3159 = vunpack.c.l.b16 %v1241
        %v3160 = vunpack.c.l.b16 %v1242
        %v3161 = vunpack.c.l.b16 %v1243
        %v3162 = vunpack.c.l.b16 %v1244
        %v3163 = vunpack.c.l.b16 %v1245
        %v3164 = vunpack.c.l.b16 %v1246
        %v3165 = vunpack.c.l.b16 %v1247
        %v3166 = vunpack.c.l.b16 %v1248
        %v3167 = vunpack.c.l.b16 %v1249
        %v3168 = vpack.c.b16 %v2273, %v2272
        %v3169 = vpack.c.b16 %v2275, %v2274
        %v3170 = vpack.c.b16 %v2277, %v2276
        %v3171 = vpack.c.b16 %v2279, %v2278
        %v3172 = vpack.c.b16 %v2281, %v2280
        %v3173 = vpack.c.b16 %v2283, %v2282
        %v3174 = vpack.c.b16 %v2285, %v2284
        %v3175 = vpack.c.b16 %v2287, %v2286
        %v3176 = vpack.c.b16 %v2289, %v2288
        %v3177 = vpack.c.b16 %v2291, %v2290
        %v3178 = vpack.c.b16 %v2293, %v2292
        %v3179 = vpack.c.b16 %v2295, %v2294
        %v3180 = vpack.c.b16 %v2297, %v2296
        %v3181 = vpack.c.b16 %v2299, %v2298
        %v3182 = vpack.c.b16 %v2301, %v2300
        %v3183 = vpack.c.b16 %v2303, %v2302
        %v3184 = vpack.c.b16 %v2305, %v2304
        %v3185 = vpack.c.b16 %v2307, %v2306
        %v3186 = vpack.c.b16 %v2309, %v2308
        %v3187 = vpack.c.b16 %v2311, %v2310
        %v3188 = vpack.c.b16 %v2313, %v2312
        %v3189 = vpack.c.b16 %v2315, %v2314
        %v3190 = vpack.c.b16 %v2317, %v2316
        %v3191 = vpack.c.b16 %v2319, %v2318
        %v3192 = vpack.c.b16 %v2321, %v2320
        %v3193 = vpack.c.b16 %v2323, %v2322
        %v3194 = vpack.c.b16 %v2325, %v2324
        %v3195 = vpack.c.b16 %v2327, %v2326
        %v3196 = vpack.c.b16 %v2329, %v2328
        %v3197 = vpack.c.b16 %v2331, %v2330
        %v3198 = vpack.c.b16 %v2333, %v2332
        %v3199 = vpack.c.b16 %v2335, %v2334
        %v3200 = vpack.c.b16 %v2337, %v2336
        %v3201 = vpack.c.b16 %v2339, %v2338
        %v3202 = vpack.c.b16 %v2341, %v2340
        %v3203 = vpack.c.b16 %v2343, %v2342
        %v3204 = vpack.c.b16 %v2345, %v2344
        %v3205 = vpack.c.b16 %v2347, %v2346
        %v3206 = vpack.c.b16 %v2349, %v2348
        %v3207 = vpack.c.b16 %v2351, %v2350
        %v3208 = vpack.c.b16 %v2353, %v2352
        %v3209 = vpack.c.b16 %v2355, %v2354
        %v3210 = vpack.c.b16 %v2357, %v2356
        %v3211 = vpack.c.b16 %v2359, %v2358
        %v3212 = vpack.c.b16 %v2361, %v2360
        %v3213 = vpack.c.b16 %v2363, %v2362
        %v3214 = vpack.c.b16 %v2365, %v2364
        %v3215 = vpack.c.b16 %v2367, %v2366
        %v3216 = vpack.c.b16 %v2369, %v2368
        %v3217 = vpack.c.b16 %v2371, %v2370
        %v3218 = vpack.c.b16 %v2373, %v2372
        %v3219 = vpack.c.b16 %v2375, %v2374
        %v3220 = vpack.c.b16 %v2377, %v2376
        %v3221 = vpack.c.b16 %v2379, %v2378
        %v3222 = vpack.c.b16 %v2381, %v2380
        %v3223 = vpack.c.b16 %v2383, %v2382
        %v3224 = vpack.c.b16 %v2385, %v2384
        %v3225 = vpack.c.b16 %v2387, %v2386
        %v3226 = vpack.c.b16 %v2389, %v2388
        %v3227 = vpack.c.b16 %v2391, %v2390
        %v3228 = vpack.c.b16 %v2393, %v2392
        %v3229 = vpack.c.b16 %v2395, %v2394
        %v3230 = vpack.c.b16 %v2397, %v2396
        %v3231 = vpack.c.b16 %v2399, %v2398
        %v3232 = vpack.c.b16 %v2401, %v2400
        %v3233 = vpack.c.b16 %v2403, %v2402
        %v3234 = vpack.c.b16 %v2405, %v2404
        %v3235 = vpack.c.b16 %v2407, %v2406
        %v3236 = vpack.c.b16 %v2409, %v2408
        %v3237 = vpack.c.b16 %v2411, %v2410
        %v3238 = vpack.c.b16 %v2413, %v2412
        %v3239 = vpack.c.b16 %v2415, %v2414
        %v3240 = vpack.c.b16 %v2417, %v2416
        %v3241 = vpack.c.b16 %v2419, %v2418
        %v3242 = vpack.c.b16 %v2421, %v2420
        %v3243 = vpack.c.b16 %v2423, %v2422
        %v3244 = vpack.c.b16 %v2425, %v2424
        %v3245 = vpack.c.b16 %v2427, %v2426
        %v3246 = vpack.c.b16 %v2429, %v2428
        %v3247 = vpack.c.b16 %v2431, %v2430
        %v3248 = vpack.c.b16 %v2433, %v2432
        %v3249 = vpack.c.b16 %v2435, %v2434
        %v3250 = vpack.c.b16 %v2437, %v2436
        %v3251 = vpack.c.b16 %v2439, %v2438
        %v3252 = vpack.c.b16 %v2441, %v2440
        %v3253 = vpack.c.b16 %v2443, %v2442
        %v3254 = vpack.c.b16 %v2445, %v2444
        %v3255 = vpack.c.b16 %v2447, %v2446
        %v3256 = vpack.c.b16 %v2449, %v2448
        %v3257 = vpack.c.b16 %v2451, %v2450
        %v3258 = vpack.c.b16 %v2453, %v2452
        %v3259 = vpack.c.b16 %v2455, %v2454
        %v3260 = vpack.c.b16 %v2457, %v2456
        %v3261 = vpack.c.b16 %v2459, %v2458
        %v3262 = vpack.c.b16 %v2461, %v2460
        %v3263 = vpack.c.b16 %v2463, %v2462
        %v3264 = vpack.c.b16 %v2465, %v2464
        %v3265 = vpack.c.b16 %v2467, %v2466
        %v3266 = vpack.c.b16 %v2469, %v2468
        %v3267 = vpack.c.b16 %v2471, %v2470
        %v3268 = vpack.c.b16 %v2473, %v2472
        %v3269 = vpack.c.b16 %v2475, %v2474
        %v3270 = vpack.c.b16 %v2477, %v2476
        %v3271 = vpack.c.b16 %v2479, %v2478
        %v3272 = vpack.c.b16 %v2481, %v2480
        %v3273 = vpack.c.b16 %v2483, %v2482
        %v3274 = vpack.c.b16 %v2485, %v2484
        %v3275 = vpack.c.b16 %v2487, %v2486
        %v3276 = vpack.c.b16 %v2489, %v2488
        %v3277 = vpack.c.b16 %v2491, %v2490
        %v3278 = vpack.c.b16 %v2493, %v2492
        %v3279 = vpack.c.b16 %v2495, %v2494
        %v3280 = vpack.c.b16 %v2497, %v2496
        %v3281 = vpack.c.b16 %v2499, %v2498
        %v3282 = vpack.c.b16 %v2501, %v2500
        %v3283 = vpack.c.b16 %v2503, %v2502
        %v3284 = vpack.c.b16 %v2505, %v2504
        %v3285 = vpack.c.b16 %v2507, %v2506
        %v3286 = vpack.c.b16 %v2509, %v2508
        %v3287 = vpack.c.b16 %v2511, %v2510
        %v3288 = vpack.c.b16 %v2513, %v2512
        %v3289 = vpack.c.b16 %v2515, %v2514
        %v3290 = vpack.c.b16 %v2517, %v2516
        %v3291 = vpack.c.b16 %v2519, %v2518
        %v3292 = vpack.c.b16 %v2521, %v2520
        %v3293 = vpack.c.b16 %v2523, %v2522
        %v3294 = vpack.c.b16 %v2525, %v2524
        %v3295 = vpack.c.b16 %v2527, %v2526
        %v3296 = vpack.c.b16 %v2529, %v2528
        %v3297 = vpack.c.b16 %v2531, %v2530
        %v3298 = vpack.c.b16 %v2533, %v2532
        %v3299 = vpack.c.b16 %v2535, %v2534
        %v3300 = vpack.c.b16 %v2537, %v2536
        %v3301 = vpack.c.b16 %v2539, %v2538
        %v3302 = vpack.c.b16 %v2541, %v2540
        %v3303 = vpack.c.b16 %v2543, %v2542
        %v3304 = vpack.c.b16 %v2545, %v2544
        %v3305 = vpack.c.b16 %v2547, %v2546
        %v3306 = vpack.c.b16 %v2549, %v2548
        %v3307 = vpack.c.b16 %v2551, %v2550
        %v3308 = vpack.c.b16 %v2553, %v2552
        %v3309 = vpack.c.b16 %v2555, %v2554
        %v3310 = vpack.c.b16 %v2557, %v2556
        %v3311 = vpack.c.b16 %v2559, %v2558
        %v3312 = vpack.c.b16 %v2561, %v2560
        %v3313 = vpack.c.b16 %v2563, %v2562
        %v3314 = vpack.c.b16 %v2565, %v2564
        %v3315 = vpack.c.b16 %v2567, %v2566
        %v3316 = vpack.c.b16 %v2569, %v2568
        %v3317 = vpack.c.b16 %v2571, %v2570
        %v3318 = vpack.c.b16 %v2573, %v2572
        %v3319 = vpack.c.b16 %v2575, %v2574
        %v3320 = vpack.c.b16 %v2577, %v2576
        %v3321 = vpack.c.b16 %v2579, %v2578
        %v3322 = vpack.c.b16 %v2581, %v2580
        %v3323 = vpack.c.b16 %v2583, %v2582
        %v3324 = vpack.c.b16 %v2585, %v2584
        %v3325 = vpack.c.b16 %v2587, %v2586
        %v3326 = vpack.c.b16 %v2589, %v2588
        %v3327 = vpack.c.b16 %v2591, %v2590
        %v3328 = vpack.c.b16 %v2593, %v2592
        %v3329 = vpack.c.b16 %v2595, %v2594
        %v3330 = vpack.c.b16 %v2597, %v2596
        %v3331 = vpack.c.b16 %v2599, %v2598
        %v3332 = vpack.c.b16 %v2601, %v2600
        %v3333 = vpack.c.b16 %v2603, %v2602
        %v3334 = vpack.c.b16 %v2605, %v2604
        %v3335 = vpack.c.b16 %v2607, %v2606
        %v3336 = vpack.c.b16 %v2609, %v2608
        %v3337 = vpack.c.b16 %v2611, %v2610
        %v3338 = vpack.c.b16 %v2613, %v2612
        %v3339 = vpack.c.b16 %v2615, %v2614
        %v3340 = vpack.c.b16 %v2617, %v2616
        %v3341 = vpack.c.b16 %v2619, %v2618
        %v3342 = vpack.c.b16 %v2621, %v2620
        %v3343 = vpack.c.b16 %v2623, %v2622
        %v3344 = vpack.c.b16 %v2625, %v2624
        %v3345 = vpack.c.b16 %v2627, %v2626
        %v3346 = vpack.c.b16 %v2629, %v2628
        %v3347 = vpack.c.b16 %v2631, %v2630
        %v3348 = vpack.c.b16 %v2633, %v2632
        %v3349 = vpack.c.b16 %v2635, %v2634
        %v3350 = vpack.c.b16 %v2637, %v2636
        %v3351 = vpack.c.b16 %v2639, %v2638
        %v3352 = vpack.c.b16 %v2641, %v2640
        %v3353 = vpack.c.b16 %v2643, %v2642
        %v3354 = vpack.c.b16 %v2645, %v2644
        %v3355 = vpack.c.b16 %v2647, %v2646
        %v3356 = vpack.c.b16 %v2649, %v2648
        %v3357 = vpack.c.b16 %v2651, %v2650
        %v3358 = vpack.c.b16 %v2653, %v2652
        %v3359 = vpack.c.b16 %v2655, %v2654
        %v3360 = vpack.c.b16 %v2657, %v2656
        %v3361 = vpack.c.b16 %v2659, %v2658
        %v3362 = vpack.c.b16 %v2661, %v2660
        %v3363 = vpack.c.b16 %v2663, %v2662
        %v3364 = vpack.c.b16 %v2665, %v2664
        %v3365 = vpack.c.b16 %v2667, %v2666
        %v3366 = vpack.c.b16 %v2669, %v2668
        %v3367 = vpack.c.b16 %v2671, %v2670
        %v3368 = vpack.c.b16 %v2673, %v2672
        %v3369 = vpack.c.b16 %v2675, %v2674
        %v3370 = vpack.c.b16 %v2677, %v2676
        %v3371 = vpack.c.b16 %v2679, %v2678
        %v3372 = vpack.c.b16 %v2681, %v2680
        %v3373 = vpack.c.b16 %v2683, %v2682
        %v3374 = vpack.c.b16 %v2685, %v2684
        %v3375 = vpack.c.b16 %v2687, %v2686
        %v3376 = vpack.c.b16 %v2689, %v2688
        %v3377 = vpack.c.b16 %v2691, %v2690
        %v3378 = vpack.c.b16 %v2693, %v2692
        %v3379 = vpack.c.b16 %v2695, %v2694
        %v3380 = vpack.c.b16 %v2697, %v2696
        %v3381 = vpack.c.b16 %v2699, %v2698
        %v3382 = vpack.c.b16 %v2701, %v2700
        %v3383 = vpack.c.b16 %v2703, %v2702
        %v3384 = vpack.c.b16 %v2705, %v2704
        %v3385 = vpack.c.b16 %v2707, %v2706
        %v3386 = vpack.c.b16 %v2709, %v2708
        %v3387 = vpack.c.b16 %v2711, %v2710
        %v3388 = vpack.c.b16 %v2713, %v2712
        %v3389 = vpack.c.b16 %v2715, %v2714
        %v3390 = vpack.c.b16 %v2717, %v2716
        %v3391 = vpack.c.b16 %v2719, %v2718
        %v3392 = vpack.c.b16 %v2721, %v2720
        %v3393 = vpack.c.b16 %v2723, %v2722
        %v3394 = vpack.c.b16 %v2725, %v2724
        %v3395 = vpack.c.b16 %v2727, %v2726
        %v3396 = vpack.c.b16 %v2729, %v2728
        %v3397 = vpack.c.b16 %v2731, %v2730
        %v3398 = vpack.c.b16 %v2733, %v2732
        %v3399 = vpack.c.b16 %v2735, %v2734
        %v3400 = vpack.c.b16 %v2737, %v2736
        %v3401 = vpack.c.b16 %v2739, %v2738
        %v3402 = vpack.c.b16 %v2741, %v2740
        %v3403 = vpack.c.b16 %v2743, %v2742
        %v3404 = vpack.c.b16 %v2745, %v2744
        %v3405 = vpack.c.b16 %v2747, %v2746
        %v3406 = vpack.c.b16 %v2749, %v2748
        %v3407 = vpack.c.b16 %v2751, %v2750
        %v3408 = vpack.c.b16 %v2753, %v2752
        %v3409 = vpack.c.b16 %v2755, %v2754
        %v3410 = vpack.c.b16 %v2757, %v2756
        %v3411 = vpack.c.b16 %v2759, %v2758
        %v3412 = vpack.c.b16 %v2761, %v2760
        %v3413 = vpack.c.b16 %v2763, %v2762
        %v3414 = vpack.c.b16 %v2765, %v2764
        %v3415 = vpack.c.b16 %v2767, %v2766
        %v3416 = vpack.c.b16 %v2769, %v2768
        %v3417 = vpack.c.b16 %v2771, %v2770
        %v3418 = vpack.c.b16 %v2773, %v2772
        %v3419 = vpack.c.b16 %v2775, %v2774
        %v3420 = vpack.c.b16 %v2777, %v2776
        %v3421 = vpack.c.b16 %v2779, %v2778
        %v3422 = vpack.c.b16 %v2781, %v2780
        %v3423 = vpack.c.b16 %v2783, %v2782
        %v3424 = vpack.c.b16 %v2785, %v2784
        %v3425 = vpack.c.b16 %v2787, %v2786
        %v3426 = vpack.c.b16 %v2789, %v2788
        %v3427 = vpack.c.b16 %v2791, %v2790
        %v3428 = vpack.c.b16 %v2793, %v2792
        %v3429 = vpack.c.b16 %v2795, %v2794
        %v3430 = vpack.c.b16 %v2797, %v2796
        %v3431 = vpack.c.b16 %v2799, %v2798
        %v3432 = vpack.c.b16 %v2801, %v2800
        %v3433 = vpack.c.b16 %v2803, %v2802
        %v3434 = vpack.c.b16 %v2805, %v2804
        %v3435 = vpack.c.b16 %v2807, %v2806
        %v3436 = vpack.c.b16 %v2809, %v2808
        %v3437 = vpack.c.b16 %v2811, %v2810
        %v3438 = vpack.c.b16 %v2813, %v2812
        %v3439 = vpack.c.b16 %v2815, %v2814
        %v3440 = vpack.c.b16 %v2817, %v2816
        %v3441 = vpack.c.b16 %v2819, %v2818
        %v3442 = vpack.c.b16 %v2821, %v2820
        %v3443 = vpack.c.b16 %v2823, %v2822
        %v3444 = vpack.c.b16 %v2825, %v2824
        %v3445 = vpack.c.b16 %v2827, %v2826
        %v3446 = vpack.c.b16 %v2829, %v2828
        %v3447 = vpack.c.b16 %v2831, %v2830
        %v3448 = vpack.c.b16 %v2833, %v2832
        %v3449 = vpack.c.b16 %v2835, %v2834
        %v3450 = vpack.c.b16 %v2837, %v2836
        %v3451 = vpack.c.b16 %v2839, %v2838
        %v3452 = vpack.c.b16 %v2841, %v2840
        %v3453 = vpack.c.b16 %v2843, %v2842
        %v3454 = vpack.c.b16 %v2845, %v2844
        %v3455 = vpack.c.b16 %v2847, %v2846
        %v3456 = vpack.c.b16 %v2849, %v2848
        %v3457 = vpack.c.b16 %v2851, %v2850
        %v3458 = vpack.c.b16 %v2853, %v2852
        %v3459 = vpack.c.b16 %v2855, %v2854
        %v3460 = vpack.c.b16 %v2857, %v2856
        %v3461 = vpack.c.b16 %v2859, %v2858
        %v3462 = vpack.c.b16 %v2861, %v2860
        %v3463 = vpack.c.b16 %v2863, %v2862
        %v3464 = vpack.c.b16 %v2865, %v2864
        %v3465 = vpack.c.b16 %v2867, %v2866
        %v3466 = vpack.c.b16 %v2869, %v2868
        %v3467 = vpack.c.b16 %v2871, %v2870
        %v3468 = vpack.c.b16 %v2873, %v2872
        %v3469 = vpack.c.b16 %v2875, %v2874
        %v3470 = vpack.c.b16 %v2877, %v2876
        %v3471 = vpack.c.b16 %v2879, %v2878
        %v3472 = vpack.c.b16 %v2881, %v2880
        %v3473 = vpack.c.b16 %v2883, %v2882
        %v3474 = vpack.c.b16 %v2885, %v2884
        %v3475 = vpack.c.b16 %v2887, %v2886
        %v3476 = vpack.c.b16 %v2889, %v2888
        %v3477 = vpack.c.b16 %v2891, %v2890
        %v3478 = vpack.c.b16 %v2893, %v2892
        %v3479 = vpack.c.b16 %v2895, %v2894
        %v3480 = vpack.c.b16 %v2897, %v2896
        %v3481 = vpack.c.b16 %v2899, %v2898
        %v3482 = vpack.c.b16 %v2901, %v2900
        %v3483 = vpack.c.b16 %v2903, %v2902
        %v3484 = vpack.c.b16 %v2905, %v2904
        %v3485 = vpack.c.b16 %v2907, %v2906
        %v3486 = vpack.c.b16 %v2909, %v2908
        %v3487 = vpack.c.b16 %v2911, %v2910
        %v3488 = vpack.c.b16 %v2913, %v2912
        %v3489 = vpack.c.b16 %v2915, %v2914
        %v3490 = vpack.c.b16 %v2917, %v2916
        %v3491 = vpack.c.b16 %v2919, %v2918
        %v3492 = vpack.c.b16 %v2921, %v2920
        %v3493 = vpack.c.b16 %v2923, %v2922
        %v3494 = vpack.c.b16 %v2925, %v2924
        %v3495 = vpack.c.b16 %v2927, %v2926
        %v3496 = vpack.c.b16 %v2929, %v2928
        %v3497 = vpack.c.b16 %v2931, %v2930
        %v3498 = vpack.c.b16 %v2933, %v2932
        %v3499 = vpack.c.b16 %v2935, %v2934
        %v3500 = vpack.c.b16 %v2937, %v2936
        %v3501 = vpack.c.b16 %v2939, %v2938
        %v3502 = vpack.c.b16 %v2941, %v2940
        %v3503 = vpack.c.b16 %v2943, %v2942
        %v3504 = vpack.c.b16 %v2945, %v2944
        %v3505 = vpack.c.b16 %v2947, %v2946
        %v3506 = vpack.c.b16 %v2949, %v2948
        %v3507 = vpack.c.b16 %v2951, %v2950
        %v3508 = vpack.c.b16 %v2953, %v2952
        %v3509 = vpack.c.b16 %v2955, %v2954
        %v3510 = vpack.c.b16 %v2957, %v2956
        %v3511 = vpack.c.b16 %v2959, %v2958
        %v3512 = vpack.c.b16 %v2961, %v2960
        %v3513 = vpack.c.b16 %v2963, %v2962
        %v3514 = vpack.c.b16 %v2965, %v2964
        %v3515 = vpack.c.b16 %v2967, %v2966
        %v3516 = vpack.c.b16 %v2969, %v2968
        %v3517 = vpack.c.b16 %v2971, %v2970
        %v3518 = vpack.c.b16 %v2973, %v2972
        %v3519 = vpack.c.b16 %v2975, %v2974
        %v3520 = vpack.c.b16 %v2977, %v2976
        %v3521 = vpack.c.b16 %v2979, %v2978
        %v3522 = vpack.c.b16 %v2981, %v2980
        %v3523 = vpack.c.b16 %v2983, %v2982
        %v3524 = vpack.c.b16 %v2985, %v2984
        %v3525 = vpack.c.b16 %v2987, %v2986
        %v3526 = vpack.c.b16 %v2989, %v2988
        %v3527 = vpack.c.b16 %v2991, %v2990
        %v3528 = vpack.c.b16 %v2993, %v2992
        %v3529 = vpack.c.b16 %v2995, %v2994
        %v3530 = vpack.c.b16 %v2997, %v2996
        %v3531 = vpack.c.b16 %v2999, %v2998
        %v3532 = vpack.c.b16 %v3001, %v3000
        %v3533 = vpack.c.b16 %v3003, %v3002
        %v3534 = vpack.c.b16 %v3005, %v3004
        %v3535 = vpack.c.b16 %v3007, %v3006
        %v3536 = vpack.c.b16 %v3009, %v3008
        %v3537 = vpack.c.b16 %v3011, %v3010
        %v3538 = vpack.c.b16 %v3013, %v3012
        %v3539 = vpack.c.b16 %v3015, %v3014
        %v3540 = vpack.c.b16 %v3017, %v3016
        %v3541 = vpack.c.b16 %v3019, %v3018
        %v3542 = vpack.c.b16 %v3021, %v3020
        %v3543 = vpack.c.b16 %v3023, %v3022
        %v3544 = vpack.c.b16 %v3025, %v3024
        %v3545 = vpack.c.b16 %v3027, %v3026
        %v3546 = vpack.c.b16 %v3029, %v3028
        %v3547 = vpack.c.b16 %v3031, %v3030
        %v3548 = vpack.c.b16 %v3033, %v3032
        %v3549 = vpack.c.b16 %v3035, %v3034
        %v3550 = vpack.c.b16 %v3037, %v3036
        %v3551 = vpack.c.b16 %v3039, %v3038
        %v3552 = vpack.c.b16 %v3041, %v3040
        %v3553 = vpack.c.b16 %v3043, %v3042
        %v3554 = vpack.c.b16 %v3045, %v3044
        %v3555 = vpack.c.b16 %v3047, %v3046
        %v3556 = vpack.c.b16 %v3049, %v3048
        %v3557 = vpack.c.b16 %v3051, %v3050
        %v3558 = vpack.c.b16 %v3053, %v3052
        %v3559 = vpack.c.b16 %v3055, %v3054
        %v3560 = vpack.c.b16 %v3057, %v3056
        %v3561 = vpack.c.b16 %v3059, %v3058
        %v3562 = vpack.c.b16 %v3061, %v3060
        %v3563 = vpack.c.b16 %v3063, %v3062
        %v3564 = vpack.c.b16 %v3065, %v3064
        %v3565 = vpack.c.b16 %v3067, %v3066
        %v3566 = vpack.c.b16 %v3069, %v3068
        %v3567 = vpack.c.b16 %v3071, %v3070
        %v3568 = vpack.c.b16 %v3073, %v3072
        %v3569 = vpack.c.b16 %v3075, %v3074
        %v3570 = vpack.c.b16 %v3077, %v3076
        %v3571 = vpack.c.b16 %v3079, %v3078
        %v3572 = vpack.c.b16 %v3081, %v3080
        %v3573 = vpack.c.b16 %v3083, %v3082
        %v3574 = vpack.c.b16 %v3085, %v3084
        %v3575 = vpack.c.b16 %v3087, %v3086
        %v3576 = vpack.c.b16 %v3089, %v3088
        %v3577 = vpack.c.b16 %v3091, %v3090
        %v3578 = vpack.c.b16 %v3093, %v3092
        %v3579 = vpack.c.b16 %v3095, %v3094
        %v3580 = vpack.c.b16 %v3097, %v3096
        %v3581 = vpack.c.b16 %v3099, %v3098
        %v3582 = vpack.c.b16 %v3101, %v3100
        %v3583 = vpack.c.b16 %v3103, %v3102
        %v3584 = vpack.c.b16 %v3105, %v3104
        %v3585 = vpack.c.b16 %v3107, %v3106
        %v3586 = vpack.c.b16 %v3109, %v3108
        %v3587 = vpack.c.b16 %v3111, %v3110
        %v3588 = vpack.c.b16 %v3113, %v3112
        %v3589 = vpack.c.b16 %v3115, %v3114
        %v3590 = vpack.c.b16 %v3117, %v3116
        %v3591 = vpack.c.b16 %v3119, %v3118
        %v3592 = vpack.c.b16 %v3121, %v3120
        %v3593 = vpack.c.b16 %v3123, %v3122
        %v3594 = vpack.c.b16 %v3125, %v3124
        %v3595 = vpack.c.b16 %v3127, %v3126
        %v3596 = vpack.c.b16 %v3129, %v3128
        %v3597 = vpack.c.b16 %v3131, %v3130
        %v3598 = vpack.c.b16 %v3133, %v3132
        %v3599 = vpack.c.b16 %v3135, %v3134
        %v3600 = vpack.c.b16 %v3137, %v3136
        %v3601 = vpack.c.b16 %v3139, %v3138
        %v3602 = vpack.c.b16 %v3141, %v3140
        %v3603 = vpack.c.b16 %v3143, %v3142
        %v3604 = vpack.c.b16 %v3145, %v3144
        %v3605 = vpack.c.b16 %v3147, %v3146
        %v3606 = vpack.c.b16 %v3149, %v3148
        %v3607 = vpack.c.b16 %v3151, %v3150
        %v3608 = vpack.c.b16 %v3153, %v3152
        %v3609 = vpack.c.b16 %v3155, %v3154
        %v3610 = vpack.c.b16 %v3157, %v3156
        %v3611 = vpack.c.b16 %v3159, %v3158
        %v3612 = vpack.c.b16 %v3161, %v3160
        %v3613 = vpack.c.b16 %v3163, %v3162
        %v3614 = vpack.c.b16 %v3165, %v3164
        %v3615 = vpack.c.b16 %v3167, %v3166
        %4064 = vmatpush.bf16.msra.mxu0 %v3175
        %4065 = vmatpush.bf16.msra.mxu0 %v3174
        %4066 = vmatpush.bf16.msra.mxu0 %v3173
        %4067 = vmatpush.bf16.msra.mxu0 %v3172
        %4068 = vmatpush.bf16.msra.mxu0 %v3171
        %4069 = vmatpush.bf16.msra.mxu0 %v3170
        %4070 = vmatpush.bf16.msra.mxu0 %v3169
        %4071 = vmatpush.bf16.msra.mxu0 %v3168
        %4072 = vmatmul.bf16.gmra.mxu0 %v1252
        %v4073 = vpop.f32.mrf.mxu0
        %v4074 = vadd.f32 0.0, %v4073
        %v4075 = vpop.f32.mrf.mxu0
        %4076 = vdwg.mxu0
        %4077 = vmatpush.bf16.msra.mxu0 %v3183
        %4078 = vmatpush.bf16.msra.mxu0 %v3182
        %4079 = vmatpush.bf16.msra.mxu0 %v3181
        %4080 = vmatpush.bf16.msra.mxu0 %v3180
        %4081 = vmatpush.bf16.msra.mxu0 %v3179
        %4082 = vmatpush.bf16.msra.mxu0 %v3178
        %4083 = vmatpush.bf16.msra.mxu0 %v3177
        %4084 = vmatpush.bf16.msra.mxu0 %v3176
        %4085 = vmatmul.bf16.gmra.mxu0 %v1253
        %v4086 = vpop.f32.mrf.mxu0
        %v4087 = vadd.f32 %v4074, %v4086
        %v4088 = vpop.f32.mrf.mxu0
        %4089 = vdwg.mxu0
        %4090 = vmatpush.bf16.msra.mxu0 %v3191
        %4091 = vmatpush.bf16.msra.mxu0 %v3190
        %4092 = vmatpush.bf16.msra.mxu0 %v3189
        %4093 = vmatpush.bf16.msra.mxu0 %v3188
        %4094 = vmatpush.bf16.msra.mxu0 %v3187
        %4095 = vmatpush.bf16.msra.mxu0 %v3186
        %4096 = vmatpush.bf16.msra.mxu0 %v3185
        %4097 = vmatpush.bf16.msra.mxu0 %v3184
        %4098 = vmatmul.bf16.gmra.mxu0 %v1254
        %v4099 = vpop.f32.mrf.mxu0
        %v4100 = vadd.f32 %v4087, %v4099
        %v4101 = vpop.f32.mrf.mxu0
        %4102 = vdwg.mxu0
        %4103 = vmatpush.bf16.msra.mxu0 %v3199
        %4104 = vmatpush.bf16.msra.mxu0 %v3198
        %4105 = vmatpush.bf16.msra.mxu0 %v3197
        %4106 = vmatpush.bf16.msra.mxu0 %v3196
        %4107 = vmatpush.bf16.msra.mxu0 %v3195
        %4108 = vmatpush.bf16.msra.mxu0 %v3194
        %4109 = vmatpush.bf16.msra.mxu0 %v3193
        %4110 = vmatpush.bf16.msra.mxu0 %v3192
        %4111 = vmatmul.bf16.gmra.mxu0 %v1255
        %v4112 = vpop.f32.mrf.mxu0
        %v4113 = vadd.f32 %v4100, %v4112
        %v4114 = vpop.f32.mrf.mxu0
        %4115 = vdwg.mxu0
        %4116 = vmatpush.bf16.msra.mxu0 %v3207
        %4117 = vmatpush.bf16.msra.mxu0 %v3206
        %4118 = vmatpush.bf16.msra.mxu0 %v3205
        %4119 = vmatpush.bf16.msra.mxu0 %v3204
        %4120 = vmatpush.bf16.msra.mxu0 %v3203
        %4121 = vmatpush.bf16.msra.mxu0 %v3202
        %4122 = vmatpush.bf16.msra.mxu0 %v3201
        %4123 = vmatpush.bf16.msra.mxu0 %v3200
        %4124 = vmatmul.bf16.gmra.mxu0 %v1256
        %v4125 = vpop.f32.mrf.mxu0
        %v4126 = vadd.f32 %v4113, %v4125
        %v4127 = vpop.f32.mrf.mxu0
        %4128 = vdwg.mxu0
        %4129 = vmatpush.bf16.msra.mxu0 %v3215
        %4130 = vmatpush.bf16.msra.mxu0 %v3214
        %4131 = vmatpush.bf16.msra.mxu0 %v3213
        %4132 = vmatpush.bf16.msra.mxu0 %v3212
        %4133 = vmatpush.bf16.msra.mxu0 %v3211
        %4134 = vmatpush.bf16.msra.mxu0 %v3210
        %4135 = vmatpush.bf16.msra.mxu0 %v3209
        %4136 = vmatpush.bf16.msra.mxu0 %v3208
        %4137 = vmatmul.bf16.gmra.mxu0 %v1257
        %v4138 = vpop.f32.mrf.mxu0
        %v4139 = vadd.f32 %v4126, %v4138
        %v4140 = vpop.f32.mrf.mxu0
        %4141 = vdwg.mxu0
        %4142 = vmatpush.bf16.msra.mxu0 %v3223
        %4143 = vmatpush.bf16.msra.mxu0 %v3222
        %4144 = vmatpush.bf16.msra.mxu0 %v3221
        %4145 = vmatpush.bf16.msra.mxu0 %v3220
        %4146 = vmatpush.bf16.msra.mxu0 %v3219
        %4147 = vmatpush.bf16.msra.mxu0 %v3218
        %4148 = vmatpush.bf16.msra.mxu0 %v3217
        %4149 = vmatpush.bf16.msra.mxu0 %v3216
        %4150 = vmatmul.bf16.gmra.mxu0 %v1258
        %v4151 = vpop.f32.mrf.mxu0
        %v4152 = vadd.f32 %v4139, %v4151
        %v4153 = vpop.f32.mrf.mxu0
        %4154 = vdwg.mxu0
        %4155 = vmatpush.bf16.msra.mxu0 %v3231
        %4156 = vmatpush.bf16.msra.mxu0 %v3230
        %4157 = vmatpush.bf16.msra.mxu0 %v3229
        %4158 = vmatpush.bf16.msra.mxu0 %v3228
        %4159 = vmatpush.bf16.msra.mxu0 %v3227
        %4160 = vmatpush.bf16.msra.mxu0 %v3226
        %4161 = vmatpush.bf16.msra.mxu0 %v3225
        %4162 = vmatpush.bf16.msra.mxu0 %v3224
        %4163 = vmatmul.bf16.gmra.mxu0 %v1259
        %v4164 = vpop.f32.mrf.mxu0
        %v4165 = vadd.f32 %v4152, %v4164
        %v4166 = vpop.f32.mrf.mxu0
        %4167 = vdwg.mxu0
        %4168 = vmatpush.bf16.msra.mxu0 %v3239
        %4169 = vmatpush.bf16.msra.mxu0 %v3238
        %4170 = vmatpush.bf16.msra.mxu0 %v3237
        %4171 = vmatpush.bf16.msra.mxu0 %v3236
        %4172 = vmatpush.bf16.msra.mxu0 %v3235
        %4173 = vmatpush.bf16.msra.mxu0 %v3234
        %4174 = vmatpush.bf16.msra.mxu0 %v3233
        %4175 = vmatpush.bf16.msra.mxu0 %v3232
        %4176 = vmatmul.bf16.gmra.mxu0 %v1262
        %v4177 = vpop.f32.mrf.mxu0
        %v4178 = vadd.f32 %v4165, %v4177
        %v4179 = vpop.f32.mrf.mxu0
        %4180 = vdwg.mxu0
        %4181 = vmatpush.bf16.msra.mxu0 %v3247
        %4182 = vmatpush.bf16.msra.mxu0 %v3246
        %4183 = vmatpush.bf16.msra.mxu0 %v3245
        %4184 = vmatpush.bf16.msra.mxu0 %v3244
        %4185 = vmatpush.bf16.msra.mxu0 %v3243
        %4186 = vmatpush.bf16.msra.mxu0 %v3242
        %4187 = vmatpush.bf16.msra.mxu0 %v3241
        %4188 = vmatpush.bf16.msra.mxu0 %v3240
        %4189 = vmatmul.bf16.gmra.mxu0 %v1263
        %v4190 = vpop.f32.mrf.mxu0
        %v4191 = vadd.f32 %v4178, %v4190
        %v4192 = vpop.f32.mrf.mxu0
        %4193 = vdwg.mxu0
        %4194 = vmatpush.bf16.msra.mxu0 %v3255
        %4195 = vmatpush.bf16.msra.mxu0 %v3254
        %4196 = vmatpush.bf16.msra.mxu0 %v3253
        %4197 = vmatpush.bf16.msra.mxu0 %v3252
        %4198 = vmatpush.bf16.msra.mxu0 %v3251
        %4199 = vmatpush.bf16.msra.mxu0 %v3250
        %4200 = vmatpush.bf16.msra.mxu0 %v3249
        %4201 = vmatpush.bf16.msra.mxu0 %v3248
        %4202 = vmatmul.bf16.gmra.mxu0 %v1264
        %v4203 = vpop.f32.mrf.mxu0
        %v4204 = vadd.f32 %v4191, %v4203
        %v4205 = vpop.f32.mrf.mxu0
        %4206 = vdwg.mxu0
        %4207 = vmatpush.bf16.msra.mxu0 %v3263
        %4208 = vmatpush.bf16.msra.mxu0 %v3262
        %4209 = vmatpush.bf16.msra.mxu0 %v3261
        %4210 = vmatpush.bf16.msra.mxu0 %v3260
        %4211 = vmatpush.bf16.msra.mxu0 %v3259
        %4212 = vmatpush.bf16.msra.mxu0 %v3258
        %4213 = vmatpush.bf16.msra.mxu0 %v3257
        %4214 = vmatpush.bf16.msra.mxu0 %v3256
        %4215 = vmatmul.bf16.gmra.mxu0 %v1265
        %v4216 = vpop.f32.mrf.mxu0
        %v4217 = vadd.f32 %v4204, %v4216
        %v4218 = vpop.f32.mrf.mxu0
        %4219 = vdwg.mxu0
        %4220 = vmatpush.bf16.msra.mxu0 %v3271
        %4221 = vmatpush.bf16.msra.mxu0 %v3270
        %4222 = vmatpush.bf16.msra.mxu0 %v3269
        %4223 = vmatpush.bf16.msra.mxu0 %v3268
        %4224 = vmatpush.bf16.msra.mxu0 %v3267
        %4225 = vmatpush.bf16.msra.mxu0 %v3266
        %4226 = vmatpush.bf16.msra.mxu0 %v3265
        %4227 = vmatpush.bf16.msra.mxu0 %v3264
        %4228 = vmatmul.bf16.gmra.mxu0 %v1266
        %v4229 = vpop.f32.mrf.mxu0
        %v4230 = vadd.f32 %v4217, %v4229
        %v4231 = vpop.f32.mrf.mxu0
        %4232 = vdwg.mxu0
        %4233 = vmatpush.bf16.msra.mxu0 %v3279
        %4234 = vmatpush.bf16.msra.mxu0 %v3278
        %4235 = vmatpush.bf16.msra.mxu0 %v3277
        %4236 = vmatpush.bf16.msra.mxu0 %v3276
        %4237 = vmatpush.bf16.msra.mxu0 %v3275
        %4238 = vmatpush.bf16.msra.mxu0 %v3274
        %4239 = vmatpush.bf16.msra.mxu0 %v3273
        %4240 = vmatpush.bf16.msra.mxu0 %v3272
        %4241 = vmatmul.bf16.gmra.mxu0 %v1267
        %v4242 = vpop.f32.mrf.mxu0
        %v4243 = vadd.f32 %v4230, %v4242
        %v4244 = vpop.f32.mrf.mxu0
        %4245 = vdwg.mxu0
        %4246 = vmatpush.bf16.msra.mxu0 %v3287
        %4247 = vmatpush.bf16.msra.mxu0 %v3286
        %4248 = vmatpush.bf16.msra.mxu0 %v3285
        %4249 = vmatpush.bf16.msra.mxu0 %v3284
        %4250 = vmatpush.bf16.msra.mxu0 %v3283
        %4251 = vmatpush.bf16.msra.mxu0 %v3282
        %4252 = vmatpush.bf16.msra.mxu0 %v3281
        %4253 = vmatpush.bf16.msra.mxu0 %v3280
        %4254 = vmatmul.bf16.gmra.mxu0 %v1268
        %v4255 = vpop.f32.mrf.mxu0
        %v4256 = vadd.f32 %v4243, %v4255
        %v4257 = vpop.f32.mrf.mxu0
        %4258 = vdwg.mxu0
        %4259 = vmatpush.bf16.msra.mxu0 %v3295
        %4260 = vmatpush.bf16.msra.mxu0 %v3294
        %4261 = vmatpush.bf16.msra.mxu0 %v3293
        %4262 = vmatpush.bf16.msra.mxu0 %v3292
        %4263 = vmatpush.bf16.msra.mxu0 %v3291
        %4264 = vmatpush.bf16.msra.mxu0 %v3290
        %4265 = vmatpush.bf16.msra.mxu0 %v3289
        %4266 = vmatpush.bf16.msra.mxu0 %v3288
        %4267 = vmatmul.bf16.gmra.mxu0 %v1269
        %v4268 = vpop.f32.mrf.mxu0
        %v4269 = vadd.f32 %v4256, %v4268
        %v4270 = vpop.f32.mrf.mxu0
        %4271 = vdwg.mxu0
        %4272 = vmatpush.bf16.msra.mxu0 %v3303
        %4273 = vmatpush.bf16.msra.mxu0 %v3302
        %4274 = vmatpush.bf16.msra.mxu0 %v3301
        %4275 = vmatpush.bf16.msra.mxu0 %v3300
        %4276 = vmatpush.bf16.msra.mxu0 %v3299
        %4277 = vmatpush.bf16.msra.mxu0 %v3298
        %4278 = vmatpush.bf16.msra.mxu0 %v3297
        %4279 = vmatpush.bf16.msra.mxu0 %v3296
        %4280 = vmatmul.bf16.gmra.mxu0 %v1272
        %v4281 = vpop.f32.mrf.mxu0
        %v4282 = vadd.f32 %v4269, %v4281
        %v4283 = vpop.f32.mrf.mxu0
        %4284 = vdwg.mxu0
        %4285 = vmatpush.bf16.msra.mxu0 %v3311
        %4286 = vmatpush.bf16.msra.mxu0 %v3310
        %4287 = vmatpush.bf16.msra.mxu0 %v3309
        %4288 = vmatpush.bf16.msra.mxu0 %v3308
        %4289 = vmatpush.bf16.msra.mxu0 %v3307
        %4290 = vmatpush.bf16.msra.mxu0 %v3306
        %4291 = vmatpush.bf16.msra.mxu0 %v3305
        %4292 = vmatpush.bf16.msra.mxu0 %v3304
        %4293 = vmatmul.bf16.gmra.mxu0 %v1273
        %v4294 = vpop.f32.mrf.mxu0
        %v4295 = vadd.f32 %v4282, %v4294
        %v4296 = vpop.f32.mrf.mxu0
        %4297 = vdwg.mxu0
        %4298 = vmatpush.bf16.msra.mxu0 %v3319
        %4299 = vmatpush.bf16.msra.mxu0 %v3318
        %4300 = vmatpush.bf16.msra.mxu0 %v3317
        %4301 = vmatpush.bf16.msra.mxu0 %v3316
        %4302 = vmatpush.bf16.msra.mxu0 %v3315
        %4303 = vmatpush.bf16.msra.mxu0 %v3314
        %4304 = vmatpush.bf16.msra.mxu0 %v3313
        %4305 = vmatpush.bf16.msra.mxu0 %v3312
        %4306 = vmatmul.bf16.gmra.mxu0 %v1274
        %v4307 = vpop.f32.mrf.mxu0
        %v4308 = vadd.f32 %v4295, %v4307
        %v4309 = vpop.f32.mrf.mxu0
        %4310 = vdwg.mxu0
        %4311 = vmatpush.bf16.msra.mxu0 %v3327
        %4312 = vmatpush.bf16.msra.mxu0 %v3326
        %4313 = vmatpush.bf16.msra.mxu0 %v3325
        %4314 = vmatpush.bf16.msra.mxu0 %v3324
        %4315 = vmatpush.bf16.msra.mxu0 %v3323
        %4316 = vmatpush.bf16.msra.mxu0 %v3322
        %4317 = vmatpush.bf16.msra.mxu0 %v3321
        %4318 = vmatpush.bf16.msra.mxu0 %v3320
        %4319 = vmatmul.bf16.gmra.mxu0 %v1275
        %v4320 = vpop.f32.mrf.mxu0
        %v4321 = vadd.f32 %v4308, %v4320
        %v4322 = vpop.f32.mrf.mxu0
        %4323 = vdwg.mxu0
        %4324 = vmatpush.bf16.msra.mxu0 %v3335
        %4325 = vmatpush.bf16.msra.mxu0 %v3334
        %4326 = vmatpush.bf16.msra.mxu0 %v3333
        %4327 = vmatpush.bf16.msra.mxu0 %v3332
        %4328 = vmatpush.bf16.msra.mxu0 %v3331
        %4329 = vmatpush.bf16.msra.mxu0 %v3330
        %4330 = vmatpush.bf16.msra.mxu0 %v3329
        %4331 = vmatpush.bf16.msra.mxu0 %v3328
        %4332 = vmatmul.bf16.gmra.mxu0 %v1276
        %v4333 = vpop.f32.mrf.mxu0
        %v4334 = vadd.f32 %v4321, %v4333
        %v4335 = vpop.f32.mrf.mxu0
        %4336 = vdwg.mxu0
        %4337 = vmatpush.bf16.msra.mxu0 %v3343
        %4338 = vmatpush.bf16.msra.mxu0 %v3342
        %4339 = vmatpush.bf16.msra.mxu0 %v3341
        %4340 = vmatpush.bf16.msra.mxu0 %v3340
        %4341 = vmatpush.bf16.msra.mxu0 %v3339
        %4342 = vmatpush.bf16.msra.mxu0 %v3338
        %4343 = vmatpush.bf16.msra.mxu0 %v3337
        %4344 = vmatpush.bf16.msra.mxu0 %v3336
        %4345 = vmatmul.bf16.gmra.mxu0 %v1277
        %v4346 = vpop.f32.mrf.mxu0
        %v4347 = vadd.f32 %v4334, %v4346
        %v4348 = vpop.f32.mrf.mxu0
        %4349 = vdwg.mxu0
        %4350 = vmatpush.bf16.msra.mxu0 %v3351
        %4351 = vmatpush.bf16.msra.mxu0 %v3350
        %4352 = vmatpush.bf16.msra.mxu0 %v3349
        %4353 = vmatpush.bf16.msra.mxu0 %v3348
        %4354 = vmatpush.bf16.msra.mxu0 %v3347
        %4355 = vmatpush.bf16.msra.mxu0 %v3346
        %4356 = vmatpush.bf16.msra.mxu0 %v3345
        %4357 = vmatpush.bf16.msra.mxu0 %v3344
        %4358 = vmatmul.bf16.gmra.mxu0 %v1278
        %v4359 = vpop.f32.mrf.mxu0
        %v4360 = vadd.f32 %v4347, %v4359
        %v4361 = vpop.f32.mrf.mxu0
        %4362 = vdwg.mxu0
        %4363 = vmatpush.bf16.msra.mxu0 %v3359
        %4364 = vmatpush.bf16.msra.mxu0 %v3358
        %4365 = vmatpush.bf16.msra.mxu0 %v3357
        %4366 = vmatpush.bf16.msra.mxu0 %v3356
        %4367 = vmatpush.bf16.msra.mxu0 %v3355
        %4368 = vmatpush.bf16.msra.mxu0 %v3354
        %4369 = vmatpush.bf16.msra.mxu0 %v3353
        %4370 = vmatpush.bf16.msra.mxu0 %v3352
        %4371 = vmatmul.bf16.gmra.mxu0 %v1279
        %v4372 = vpop.f32.mrf.mxu0
        %v4373 = vadd.f32 %v4360, %v4372
        %v4374 = vpop.f32.mrf.mxu0
        %4375 = vdwg.mxu0
        %4376 = vmatpush.bf16.msra.mxu0 %v3367
        %4377 = vmatpush.bf16.msra.mxu0 %v3366
        %4378 = vmatpush.bf16.msra.mxu0 %v3365
        %4379 = vmatpush.bf16.msra.mxu0 %v3364
        %4380 = vmatpush.bf16.msra.mxu0 %v3363
        %4381 = vmatpush.bf16.msra.mxu0 %v3362
        %4382 = vmatpush.bf16.msra.mxu0 %v3361
        %4383 = vmatpush.bf16.msra.mxu0 %v3360
        %4384 = vmatmul.bf16.gmra.mxu0 %v1282
        %v4385 = vpop.f32.mrf.mxu0
        %v4386 = vadd.f32 %v4373, %v4385
        %v4387 = vpop.f32.mrf.mxu0
        %4388 = vdwg.mxu0
        %4389 = vmatpush.bf16.msra.mxu0 %v3375
        %4390 = vmatpush.bf16.msra.mxu0 %v3374
        %4391 = vmatpush.bf16.msra.mxu0 %v3373
        %4392 = vmatpush.bf16.msra.mxu0 %v3372
        %4393 = vmatpush.bf16.msra.mxu0 %v3371
        %4394 = vmatpush.bf16.msra.mxu0 %v3370
        %4395 = vmatpush.bf16.msra.mxu0 %v3369
        %4396 = vmatpush.bf16.msra.mxu0 %v3368
        %4397 = vmatmul.bf16.gmra.mxu0 %v1283
        %v4398 = vpop.f32.mrf.mxu0
        %v4399 = vadd.f32 %v4386, %v4398
        %v4400 = vpop.f32.mrf.mxu0
        %4401 = vdwg.mxu0
        %4402 = vmatpush.bf16.msra.mxu0 %v3383
        %4403 = vmatpush.bf16.msra.mxu0 %v3382
        %4404 = vmatpush.bf16.msra.mxu0 %v3381
        %4405 = vmatpush.bf16.msra.mxu0 %v3380
        %4406 = vmatpush.bf16.msra.mxu0 %v3379
        %4407 = vmatpush.bf16.msra.mxu0 %v3378
        %4408 = vmatpush.bf16.msra.mxu0 %v3377
        %4409 = vmatpush.bf16.msra.mxu0 %v3376
        %4410 = vmatmul.bf16.gmra.mxu0 %v1284
        %v4411 = vpop.f32.mrf.mxu0
        %v4412 = vadd.f32 %v4399, %v4411
        %v4413 = vpop.f32.mrf.mxu0
        %4414 = vdwg.mxu0
        %4415 = vmatpush.bf16.msra.mxu0 %v3391
        %4416 = vmatpush.bf16.msra.mxu0 %v3390
        %4417 = vmatpush.bf16.msra.mxu0 %v3389
        %4418 = vmatpush.bf16.msra.mxu0 %v3388
        %4419 = vmatpush.bf16.msra.mxu0 %v3387
        %4420 = vmatpush.bf16.msra.mxu0 %v3386
        %4421 = vmatpush.bf16.msra.mxu0 %v3385
        %4422 = vmatpush.bf16.msra.mxu0 %v3384
        %4423 = vmatmul.bf16.gmra.mxu0 %v1285
        %v4424 = vpop.f32.mrf.mxu0
        %v4425 = vadd.f32 %v4412, %v4424
        %v4426 = vpop.f32.mrf.mxu0
        %4427 = vdwg.mxu0
        %4428 = vmatpush.bf16.msra.mxu0 %v3399
        %4429 = vmatpush.bf16.msra.mxu0 %v3398
        %4430 = vmatpush.bf16.msra.mxu0 %v3397
        %4431 = vmatpush.bf16.msra.mxu0 %v3396
        %4432 = vmatpush.bf16.msra.mxu0 %v3395
        %4433 = vmatpush.bf16.msra.mxu0 %v3394
        %4434 = vmatpush.bf16.msra.mxu0 %v3393
        %4435 = vmatpush.bf16.msra.mxu0 %v3392
        %4436 = vmatmul.bf16.gmra.mxu0 %v1286
        %v4437 = vpop.f32.mrf.mxu0
        %v4438 = vadd.f32 %v4425, %v4437
        %v4439 = vpop.f32.mrf.mxu0
        %4440 = vdwg.mxu0
        %4441 = vmatpush.bf16.msra.mxu0 %v3407
        %4442 = vmatpush.bf16.msra.mxu0 %v3406
        %4443 = vmatpush.bf16.msra.mxu0 %v3405
        %4444 = vmatpush.bf16.msra.mxu0 %v3404
        %4445 = vmatpush.bf16.msra.mxu0 %v3403
        %4446 = vmatpush.bf16.msra.mxu0 %v3402
        %4447 = vmatpush.bf16.msra.mxu0 %v3401
        %4448 = vmatpush.bf16.msra.mxu0 %v3400
        %4449 = vmatmul.bf16.gmra.mxu0 %v1287
        %v4450 = vpop.f32.mrf.mxu0
        %v4451 = vadd.f32 %v4438, %v4450
        %v4452 = vpop.f32.mrf.mxu0
        %4453 = vdwg.mxu0
        %4454 = vmatpush.bf16.msra.mxu0 %v3415
        %4455 = vmatpush.bf16.msra.mxu0 %v3414
        %4456 = vmatpush.bf16.msra.mxu0 %v3413
        %4457 = vmatpush.bf16.msra.mxu0 %v3412
        %4458 = vmatpush.bf16.msra.mxu0 %v3411
        %4459 = vmatpush.bf16.msra.mxu0 %v3410
        %4460 = vmatpush.bf16.msra.mxu0 %v3409
        %4461 = vmatpush.bf16.msra.mxu0 %v3408
        %4462 = vmatmul.bf16.gmra.mxu0 %v1288
        %v4463 = vpop.f32.mrf.mxu0
        %v4464 = vadd.f32 %v4451, %v4463
        %v4465 = vpop.f32.mrf.mxu0
        %4466 = vdwg.mxu0
        %4467 = vmatpush.bf16.msra.mxu0 %v3423
        %4468 = vmatpush.bf16.msra.mxu0 %v3422
        %4469 = vmatpush.bf16.msra.mxu0 %v3421
        %4470 = vmatpush.bf16.msra.mxu0 %v3420
        %4471 = vmatpush.bf16.msra.mxu0 %v3419
        %4472 = vmatpush.bf16.msra.mxu0 %v3418
        %4473 = vmatpush.bf16.msra.mxu0 %v3417
        %4474 = vmatpush.bf16.msra.mxu0 %v3416
        %4475 = vmatmul.bf16.gmra.mxu0 %v1289
        %v4476 = vpop.f32.mrf.mxu0
        %v4477 = vadd.f32 %v4464, %v4476
        %v4478 = vpop.f32.mrf.mxu0
        %4479 = vdwg.mxu0
        %4480 = vmatpush.bf16.msra.mxu0 %v3431
        %4481 = vmatpush.bf16.msra.mxu0 %v3430
        %4482 = vmatpush.bf16.msra.mxu0 %v3429
        %4483 = vmatpush.bf16.msra.mxu0 %v3428
        %4484 = vmatpush.bf16.msra.mxu0 %v3427
        %4485 = vmatpush.bf16.msra.mxu0 %v3426
        %4486 = vmatpush.bf16.msra.mxu0 %v3425
        %4487 = vmatpush.bf16.msra.mxu0 %v3424
        %4488 = vmatmul.bf16.gmra.mxu0 %v1292
        %v4489 = vpop.f32.mrf.mxu0
        %v4490 = vadd.f32 %v4477, %v4489
        %v4491 = vpop.f32.mrf.mxu0
        %4492 = vdwg.mxu0
        %4493 = vmatpush.bf16.msra.mxu0 %v3439
        %4494 = vmatpush.bf16.msra.mxu0 %v3438
        %4495 = vmatpush.bf16.msra.mxu0 %v3437
        %4496 = vmatpush.bf16.msra.mxu0 %v3436
        %4497 = vmatpush.bf16.msra.mxu0 %v3435
        %4498 = vmatpush.bf16.msra.mxu0 %v3434
        %4499 = vmatpush.bf16.msra.mxu0 %v3433
        %4500 = vmatpush.bf16.msra.mxu0 %v3432
        %4501 = vmatmul.bf16.gmra.mxu0 %v1293
        %v4502 = vpop.f32.mrf.mxu0
        %v4503 = vadd.f32 %v4490, %v4502
        %v4504 = vpop.f32.mrf.mxu0
        %4505 = vdwg.mxu0
        %4506 = vmatpush.bf16.msra.mxu0 %v3447
        %4507 = vmatpush.bf16.msra.mxu0 %v3446
        %4508 = vmatpush.bf16.msra.mxu0 %v3445
        %4509 = vmatpush.bf16.msra.mxu0 %v3444
        %4510 = vmatpush.bf16.msra.mxu0 %v3443
        %4511 = vmatpush.bf16.msra.mxu0 %v3442
        %4512 = vmatpush.bf16.msra.mxu0 %v3441
        %4513 = vmatpush.bf16.msra.mxu0 %v3440
        %4514 = vmatmul.bf16.gmra.mxu0 %v1294
        %v4515 = vpop.f32.mrf.mxu0
        %v4516 = vadd.f32 %v4503, %v4515
        %v4517 = vpop.f32.mrf.mxu0
        %4518 = vdwg.mxu0
        %4519 = vmatpush.bf16.msra.mxu0 %v3455
        %4520 = vmatpush.bf16.msra.mxu0 %v3454
        %4521 = vmatpush.bf16.msra.mxu0 %v3453
        %4522 = vmatpush.bf16.msra.mxu0 %v3452
        %4523 = vmatpush.bf16.msra.mxu0 %v3451
        %4524 = vmatpush.bf16.msra.mxu0 %v3450
        %4525 = vmatpush.bf16.msra.mxu0 %v3449
        %4526 = vmatpush.bf16.msra.mxu0 %v3448
        %4527 = vmatmul.bf16.gmra.mxu0 %v1295
        %v4528 = vpop.f32.mrf.mxu0
        %v4529 = vadd.f32 %v4516, %v4528
        %v4530 = vpop.f32.mrf.mxu0
        %4531 = vdwg.mxu0
        %4532 = vmatpush.bf16.msra.mxu0 %v3463
        %4533 = vmatpush.bf16.msra.mxu0 %v3462
        %4534 = vmatpush.bf16.msra.mxu0 %v3461
        %4535 = vmatpush.bf16.msra.mxu0 %v3460
        %4536 = vmatpush.bf16.msra.mxu0 %v3459
        %4537 = vmatpush.bf16.msra.mxu0 %v3458
        %4538 = vmatpush.bf16.msra.mxu0 %v3457
        %4539 = vmatpush.bf16.msra.mxu0 %v3456
        %4540 = vmatmul.bf16.gmra.mxu0 %v1296
        %v4541 = vpop.f32.mrf.mxu0
        %v4542 = vadd.f32 %v4529, %v4541
        %v4543 = vpop.f32.mrf.mxu0
        %4544 = vdwg.mxu0
        %4545 = vmatpush.bf16.msra.mxu0 %v3471
        %4546 = vmatpush.bf16.msra.mxu0 %v3470
        %4547 = vmatpush.bf16.msra.mxu0 %v3469
        %4548 = vmatpush.bf16.msra.mxu0 %v3468
        %4549 = vmatpush.bf16.msra.mxu0 %v3467
        %4550 = vmatpush.bf16.msra.mxu0 %v3466
        %4551 = vmatpush.bf16.msra.mxu0 %v3465
        %4552 = vmatpush.bf16.msra.mxu0 %v3464
        %4553 = vmatmul.bf16.gmra.mxu0 %v1297
        %v4554 = vpop.f32.mrf.mxu0
        %v4555 = vadd.f32 %v4542, %v4554
        %v4556 = vpop.f32.mrf.mxu0
        %4557 = vdwg.mxu0
        %4558 = vmatpush.bf16.msra.mxu0 %v3479
        %4559 = vmatpush.bf16.msra.mxu0 %v3478
        %4560 = vmatpush.bf16.msra.mxu0 %v3477
        %4561 = vmatpush.bf16.msra.mxu0 %v3476
        %4562 = vmatpush.bf16.msra.mxu0 %v3475
        %4563 = vmatpush.bf16.msra.mxu0 %v3474
        %4564 = vmatpush.bf16.msra.mxu0 %v3473
        %4565 = vmatpush.bf16.msra.mxu0 %v3472
        %4566 = vmatmul.bf16.gmra.mxu0 %v1298
        %v4567 = vpop.f32.mrf.mxu0
        %v4568 = vadd.f32 %v4555, %v4567
        %v4569 = vpop.f32.mrf.mxu0
        %4570 = vdwg.mxu0
        %4571 = vmatpush.bf16.msra.mxu0 %v3487
        %4572 = vmatpush.bf16.msra.mxu0 %v3486
        %4573 = vmatpush.bf16.msra.mxu0 %v3485
        %4574 = vmatpush.bf16.msra.mxu0 %v3484
        %4575 = vmatpush.bf16.msra.mxu0 %v3483
        %4576 = vmatpush.bf16.msra.mxu0 %v3482
        %4577 = vmatpush.bf16.msra.mxu0 %v3481
        %4578 = vmatpush.bf16.msra.mxu0 %v3480
        %4579 = vmatmul.bf16.gmra.mxu0 %v1299
        %v4580 = vpop.f32.mrf.mxu0
        %v4581 = vadd.f32 %v4568, %v4580
        %v4582 = vpop.f32.mrf.mxu0
        %4583 = vdwg.mxu0
        %4584 = vmatpush.bf16.msra.mxu0 %v3495
        %4585 = vmatpush.bf16.msra.mxu0 %v3494
        %4586 = vmatpush.bf16.msra.mxu0 %v3493
        %4587 = vmatpush.bf16.msra.mxu0 %v3492
        %4588 = vmatpush.bf16.msra.mxu0 %v3491
        %4589 = vmatpush.bf16.msra.mxu0 %v3490
        %4590 = vmatpush.bf16.msra.mxu0 %v3489
        %4591 = vmatpush.bf16.msra.mxu0 %v3488
        %4592 = vmatmul.bf16.gmra.mxu0 %v1302
        %v4593 = vpop.f32.mrf.mxu0
        %v4594 = vadd.f32 %v4581, %v4593
        %v4595 = vpop.f32.mrf.mxu0
        %4596 = vdwg.mxu0
        %4597 = vmatpush.bf16.msra.mxu0 %v3503
        %4598 = vmatpush.bf16.msra.mxu0 %v3502
        %4599 = vmatpush.bf16.msra.mxu0 %v3501
        %4600 = vmatpush.bf16.msra.mxu0 %v3500
        %4601 = vmatpush.bf16.msra.mxu0 %v3499
        %4602 = vmatpush.bf16.msra.mxu0 %v3498
        %4603 = vmatpush.bf16.msra.mxu0 %v3497
        %4604 = vmatpush.bf16.msra.mxu0 %v3496
        %4605 = vmatmul.bf16.gmra.mxu0 %v1303
        %v4606 = vpop.f32.mrf.mxu0
        %v4607 = vadd.f32 %v4594, %v4606
        %v4608 = vpop.f32.mrf.mxu0
        %4609 = vdwg.mxu0
        %4610 = vmatpush.bf16.msra.mxu0 %v3511
        %4611 = vmatpush.bf16.msra.mxu0 %v3510
        %4612 = vmatpush.bf16.msra.mxu0 %v3509
        %4613 = vmatpush.bf16.msra.mxu0 %v3508
        %4614 = vmatpush.bf16.msra.mxu0 %v3507
        %4615 = vmatpush.bf16.msra.mxu0 %v3506
        %4616 = vmatpush.bf16.msra.mxu0 %v3505
        %4617 = vmatpush.bf16.msra.mxu0 %v3504
        %4618 = vmatmul.bf16.gmra.mxu0 %v1304
        %v4619 = vpop.f32.mrf.mxu0
        %v4620 = vadd.f32 %v4607, %v4619
        %v4621 = vpop.f32.mrf.mxu0
        %4622 = vdwg.mxu0
        %4623 = vmatpush.bf16.msra.mxu0 %v3519
        %4624 = vmatpush.bf16.msra.mxu0 %v3518
        %4625 = vmatpush.bf16.msra.mxu0 %v3517
        %4626 = vmatpush.bf16.msra.mxu0 %v3516
        %4627 = vmatpush.bf16.msra.mxu0 %v3515
        %4628 = vmatpush.bf16.msra.mxu0 %v3514
        %4629 = vmatpush.bf16.msra.mxu0 %v3513
        %4630 = vmatpush.bf16.msra.mxu0 %v3512
        %4631 = vmatmul.bf16.gmra.mxu0 %v1305
        %v4632 = vpop.f32.mrf.mxu0
        %v4633 = vadd.f32 %v4620, %v4632
        %v4634 = vpop.f32.mrf.mxu0
        %4635 = vdwg.mxu0
        %4636 = vmatpush.bf16.msra.mxu0 %v3527
        %4637 = vmatpush.bf16.msra.mxu0 %v3526
        %4638 = vmatpush.bf16.msra.mxu0 %v3525
        %4639 = vmatpush.bf16.msra.mxu0 %v3524
        %4640 = vmatpush.bf16.msra.mxu0 %v3523
        %4641 = vmatpush.bf16.msra.mxu0 %v3522
        %4642 = vmatpush.bf16.msra.mxu0 %v3521
        %4643 = vmatpush.bf16.msra.mxu0 %v3520
        %4644 = vmatmul.bf16.gmra.mxu0 %v1306
        %v4645 = vpop.f32.mrf.mxu0
        %v4646 = vadd.f32 %v4633, %v4645
        %v4647 = vpop.f32.mrf.mxu0
        %4648 = vdwg.mxu0
        %4649 = vmatpush.bf16.msra.mxu0 %v3535
        %4650 = vmatpush.bf16.msra.mxu0 %v3534
        %4651 = vmatpush.bf16.msra.mxu0 %v3533
        %4652 = vmatpush.bf16.msra.mxu0 %v3532
        %4653 = vmatpush.bf16.msra.mxu0 %v3531
        %4654 = vmatpush.bf16.msra.mxu0 %v3530
        %4655 = vmatpush.bf16.msra.mxu0 %v3529
        %4656 = vmatpush.bf16.msra.mxu0 %v3528
        %4657 = vmatmul.bf16.gmra.mxu0 %v1307
        %v4658 = vpop.f32.mrf.mxu0
        %v4659 = vadd.f32 %v4646, %v4658
        %v4660 = vpop.f32.mrf.mxu0
        %4661 = vdwg.mxu0
        %4662 = vmatpush.bf16.msra.mxu0 %v3543
        %4663 = vmatpush.bf16.msra.mxu0 %v3542
        %4664 = vmatpush.bf16.msra.mxu0 %v3541
        %4665 = vmatpush.bf16.msra.mxu0 %v3540
        %4666 = vmatpush.bf16.msra.mxu0 %v3539
        %4667 = vmatpush.bf16.msra.mxu0 %v3538
        %4668 = vmatpush.bf16.msra.mxu0 %v3537
        %4669 = vmatpush.bf16.msra.mxu0 %v3536
        %4670 = vmatmul.bf16.gmra.mxu0 %v1308
        %v4671 = vpop.f32.mrf.mxu0
        %v4672 = vadd.f32 %v4659, %v4671
        %v4673 = vpop.f32.mrf.mxu0
        %4674 = vdwg.mxu0
        %4675 = vmatpush.bf16.msra.mxu0 %v3551
        %4676 = vmatpush.bf16.msra.mxu0 %v3550
        %4677 = vmatpush.bf16.msra.mxu0 %v3549
        %4678 = vmatpush.bf16.msra.mxu0 %v3548
        %4679 = vmatpush.bf16.msra.mxu0 %v3547
        %4680 = vmatpush.bf16.msra.mxu0 %v3546
        %4681 = vmatpush.bf16.msra.mxu0 %v3545
        %4682 = vmatpush.bf16.msra.mxu0 %v3544
        %4683 = vmatmul.bf16.gmra.mxu0 %v1309
        %v4684 = vpop.f32.mrf.mxu0
        %v4685 = vadd.f32 %v4672, %v4684
        %v4686 = vpop.f32.mrf.mxu0
        %4687 = vdwg.mxu0
        %4688 = vmatpush.bf16.msra.mxu0 %v3559
        %4689 = vmatpush.bf16.msra.mxu0 %v3558
        %4690 = vmatpush.bf16.msra.mxu0 %v3557
        %4691 = vmatpush.bf16.msra.mxu0 %v3556
        %4692 = vmatpush.bf16.msra.mxu0 %v3555
        %4693 = vmatpush.bf16.msra.mxu0 %v3554
        %4694 = vmatpush.bf16.msra.mxu0 %v3553
        %4695 = vmatpush.bf16.msra.mxu0 %v3552
        %4696 = vmatmul.bf16.gmra.mxu0 %v1312
        %v4697 = vpop.f32.mrf.mxu0
        %v4698 = vadd.f32 %v4685, %v4697
        %v4699 = vpop.f32.mrf.mxu0
        %4700 = vdwg.mxu0
        %4701 = vmatpush.bf16.msra.mxu0 %v3567
        %4702 = vmatpush.bf16.msra.mxu0 %v3566
        %4703 = vmatpush.bf16.msra.mxu0 %v3565
        %4704 = vmatpush.bf16.msra.mxu0 %v3564
        %4705 = vmatpush.bf16.msra.mxu0 %v3563
        %4706 = vmatpush.bf16.msra.mxu0 %v3562
        %4707 = vmatpush.bf16.msra.mxu0 %v3561
        %4708 = vmatpush.bf16.msra.mxu0 %v3560
        %4709 = vmatmul.bf16.gmra.mxu0 %v1313
        %v4710 = vpop.f32.mrf.mxu0
        %v4711 = vadd.f32 %v4698, %v4710
        %v4712 = vpop.f32.mrf.mxu0
        %4713 = vdwg.mxu0
        %4714 = vmatpush.bf16.msra.mxu0 %v3575
        %4715 = vmatpush.bf16.msra.mxu0 %v3574
        %4716 = vmatpush.bf16.msra.mxu0 %v3573
        %4717 = vmatpush.bf16.msra.mxu0 %v3572
        %4718 = vmatpush.bf16.msra.mxu0 %v3571
        %4719 = vmatpush.bf16.msra.mxu0 %v3570
        %4720 = vmatpush.bf16.msra.mxu0 %v3569
        %4721 = vmatpush.bf16.msra.mxu0 %v3568
        %4722 = vmatmul.bf16.gmra.mxu0 %v1314
        %v4723 = vpop.f32.mrf.mxu0
        %v4724 = vadd.f32 %v4711, %v4723
        %v4725 = vpop.f32.mrf.mxu0
        %4726 = vdwg.mxu0
        %4727 = vmatpush.bf16.msra.mxu0 %v3583
        %4728 = vmatpush.bf16.msra.mxu0 %v3582
        %4729 = vmatpush.bf16.msra.mxu0 %v3581
        %4730 = vmatpush.bf16.msra.mxu0 %v3580
        %4731 = vmatpush.bf16.msra.mxu0 %v3579
        %4732 = vmatpush.bf16.msra.mxu0 %v3578
        %4733 = vmatpush.bf16.msra.mxu0 %v3577
        %4734 = vmatpush.bf16.msra.mxu0 %v3576
        %4735 = vmatmul.bf16.gmra.mxu0 %v1315
        %v4736 = vpop.f32.mrf.mxu0
        %v4737 = vadd.f32 %v4724, %v4736
        %v4738 = vpop.f32.mrf.mxu0
        %4739 = vdwg.mxu0
        %4740 = vmatpush.bf16.msra.mxu0 %v3591
        %4741 = vmatpush.bf16.msra.mxu0 %v3590
        %4742 = vmatpush.bf16.msra.mxu0 %v3589
        %4743 = vmatpush.bf16.msra.mxu0 %v3588
        %4744 = vmatpush.bf16.msra.mxu0 %v3587
        %4745 = vmatpush.bf16.msra.mxu0 %v3586
        %4746 = vmatpush.bf16.msra.mxu0 %v3585
        %4747 = vmatpush.bf16.msra.mxu0 %v3584
        %4748 = vmatmul.bf16.gmra.mxu0 %v1316
        %v4749 = vpop.f32.mrf.mxu0
        %v4750 = vadd.f32 %v4737, %v4749
        %v4751 = vpop.f32.mrf.mxu0
        %4752 = vdwg.mxu0
        %4753 = vmatpush.bf16.msra.mxu0 %v3599
        %4754 = vmatpush.bf16.msra.mxu0 %v3598
        %4755 = vmatpush.bf16.msra.mxu0 %v3597
        %4756 = vmatpush.bf16.msra.mxu0 %v3596
        %4757 = vmatpush.bf16.msra.mxu0 %v3595
        %4758 = vmatpush.bf16.msra.mxu0 %v3594
        %4759 = vmatpush.bf16.msra.mxu0 %v3593
        %4760 = vmatpush.bf16.msra.mxu0 %v3592
        %4761 = vmatmul.bf16.gmra.mxu0 %v1317
        %v4762 = vpop.f32.mrf.mxu0
        %v4763 = vadd.f32 %v4750, %v4762
        %v4764 = vpop.f32.mrf.mxu0
        %4765 = vdwg.mxu0
        %4766 = vmatpush.bf16.msra.mxu0 %v3607
        %4767 = vmatpush.bf16.msra.mxu0 %v3606
        %4768 = vmatpush.bf16.msra.mxu0 %v3605
        %4769 = vmatpush.bf16.msra.mxu0 %v3604
        %4770 = vmatpush.bf16.msra.mxu0 %v3603
        %4771 = vmatpush.bf16.msra.mxu0 %v3602
        %4772 = vmatpush.bf16.msra.mxu0 %v3601
        %4773 = vmatpush.bf16.msra.mxu0 %v3600
        %4774 = vmatmul.bf16.gmra.mxu0 %v1318
        %v4775 = vpop.f32.mrf.mxu0
        %v4776 = vadd.f32 %v4763, %v4775
        %v4777 = vpop.f32.mrf.mxu0
        %4778 = vdwg.mxu0
        %4779 = vmatpush.bf16.msra.mxu0 %v3615
        %4780 = vmatpush.bf16.msra.mxu0 %v3614
        %4781 = vmatpush.bf16.msra.mxu0 %v3613
        %4782 = vmatpush.bf16.msra.mxu0 %v3612
        %4783 = vmatpush.bf16.msra.mxu0 %v3611
        %4784 = vmatpush.bf16.msra.mxu0 %v3610
        %4785 = vmatpush.bf16.msra.mxu0 %v3609
        %4786 = vmatpush.bf16.msra.mxu0 %v3608
        %4787 = vmatmul.bf16.gmra.mxu0 %v1319
        %v4788 = vpop.f32.mrf.mxu0
        %v4789 = vadd.f32 %v4776, %v4788
        %v4790 = vpop.f32.mrf.mxu0
        %4791 = vdwg.mxu0
        %v4792 = vadd.f32 %v346, %v4789
        %vm4793 = vcmask 517120
        %4794 = vst.msk [vmem:[#allocation2] sm:$0x3] %vm4793, %v4792
        %p4795 = scmp.eq.s32.totalorder %s21, 1
        // Predicated region
        $region61: #{dqn_forward.5} parent=55 // pred_check
          %p4796 = pneg %p4795
        $region62: #{dqn_forward.5} parent=55 // pred_check_branch
          %4798 = sbr.rel (%p4796) target = $region64
        $region63: #{dqn_forward.5} parent=55 // pred_region
          %v4799 = vld [vmem:[#allocation2] sm:$0x3]
          %v4800 = vld [vmem:[%s2] sm:$0x1]
          %v4801 = vld [vmem:[%s3] sm:$0x1]
          %v4802 = vsel %vm4793, %v4799, 0.0
          %v4803 = vrot.slane %v4802, 4
          %v4804 = vadd.f32 %v4802, %v4803
          %v4805 = vrot.slane %v4804, 2
          %v4806 = vadd.f32 %v4804, %v4805
          %v4807 = vrot.slane %v4806, 1
          %v4808 = vadd.f32 %v4806, %v4807
          %v4809 = vrcp.pop 2.0
          %v4810 = vmul.f32 2.0, %v4809
          %v4811 = vsub.f32 1.0, %v4810
          %v4812 = vmul.f32 %v4809, %v4811
          %v4813 = vadd.f32 %v4809, %v4812
          %vm4814 = vweird.f32 %v4809
          %v4815 = vsel %vm4814, %v4809, %v4813
          %v4816 = vmul.f32 %v4808, %v4815
          %v4817 = vsub.f32 %v4799, %v4816
          %v4818 = vmul.f32 %v4817, %v4817
          %v4819 = vsel %vm4793, %v4818, 0.0
          %v4820 = vrot.slane %v4819, 4
          %v4821 = vadd.f32 %v4819, %v4820
          %v4822 = vrot.slane %v4821, 2
          %v4823 = vadd.f32 %v4821, %v4822
          %v4824 = vrot.slane %v4823, 1
          %v4825 = vadd.f32 %v4823, %v4824
          %v4826 = vmul.f32 %v4825, %v4815
          %v4827 = vadd.f32 %v4826, 1e-05
          %v4828 = vrsqrt.pop %v4827
          %v4829 = vmul.f32 %v4828, %v4827
          %v4830 = vmul.f32 %v4829, %v4828
          %v4831 = vmul.f32 0.5, %v4830
          %v4832 = vsub.f32 1.5, %v4831
          %v4833 = vmul.f32 %v4828, %v4832
          %vm4834 = vweird.f32 %v4827
          %vm4835 = vweird.f32 %v4828
          %vm4836 = vmor %vm4834, %vm4835
          %v4837 = vsel %vm4836, %v4828, %v4833
          %v4838 = vmul.f32 %v4817, %v4837
          %v4840 = vperm.slane %v4800, 0
          %v4842 = vmul.f32 %v4838, %v4840
          %v4844 = vperm.slane %v4801, 0
          %v4846 = vadd.f32 %v4842, %v4844
          %v4847 = vmax.f32 %v4846, 0.0
          %v4848 = vld [vmem:[%s4] sm:$0xff]
          %v4849 = vld [vmem:[%s4 + $0x8] sm:$0xff]
          %v4850 = vld [vmem:[%s4 + $0x10] sm:$0xff]
          %v4851 = vld [vmem:[%s4 + $0x18] sm:$0xff]
          %v4852 = vld [vmem:[%s4 + $0x20] sm:$0xff]
          %v4853 = vld [vmem:[%s4 + $0x28] sm:$0xff]
          %v4854 = vld [vmem:[%s4 + $0x30] sm:$0xff]
          %v4855 = vld [vmem:[%s4 + $0x38] sm:$0xff]
          %vm4856 = vcmask 523264
          %v4858 = vsel %vm4856, %v4847, 0
          %4860 = vmatpush.msra.mxu0 0.0
          %4861 = vmatpush.msra.mxu0 0.0
          %4862 = vmatpush.msra.mxu0 0.0
          %4863 = vmatpush.msra.mxu0 0.0
          %4864 = vmatpush.msra.mxu0 0.0
          %4865 = vmatpush.msra.mxu0 0.0
          %4866 = vmatpush.msra.mxu0 0.0
          %4867 = vmatpush.msra.mxu0 0.0
          %4868 = vmatpush.msra.mxu0 %v4855
          %4869 = vmatpush.msra.mxu0 %v4854
          %4870 = vmatpush.msra.mxu0 %v4853
          %4871 = vmatpush.msra.mxu0 %v4852
          %4872 = vmatpush.msra.mxu0 %v4851
          %4873 = vmatpush.msra.mxu0 %v4850
          %4874 = vmatpush.msra.mxu0 %v4849
          %4875 = vmatpush.msra.mxu0 %v4848
          %4876 = vmatmul.f32.gmra.mxu0 %v4858
          %v4877 = vpop.f32.mrf.mxu0
          %v4878 = vadd.f32 0.0, %v4877
          %4879 = vdwg.mxu0
          %v4880 = vld [vmem:[%s5] sm:$0x1]
          %v4881 = vld [vmem:[%s6] sm:$0x1]
          %v4882 = vsel %vm4793, %v4878, 0.0
          %v4883 = vrot.slane %v4882, 4
          %v4884 = vadd.f32 %v4882, %v4883
          %v4885 = vrot.slane %v4884, 2
          %v4886 = vadd.f32 %v4884, %v4885
          %v4887 = vrot.slane %v4886, 1
          %v4888 = vadd.f32 %v4886, %v4887
          %v4889 = vmul.f32 %v4888, %v4815
          %v4890 = vsub.f32 %v4878, %v4889
          %v4891 = vmul.f32 %v4890, %v4890
          %v4892 = vsel %vm4793, %v4891, 0.0
          %v4893 = vrot.slane %v4892, 4
          %v4894 = vadd.f32 %v4892, %v4893
          %v4895 = vrot.slane %v4894, 2
          %v4896 = vadd.f32 %v4894, %v4895
          %v4897 = vrot.slane %v4896, 1
          %v4898 = vadd.f32 %v4896, %v4897
          %v4899 = vmul.f32 %v4898, %v4815
          %v4900 = vadd.f32 %v4899, 1e-05
          %v4901 = vrsqrt.pop %v4900
          %v4902 = vmul.f32 %v4901, %v4900
          %v4903 = vmul.f32 %v4902, %v4901
          %v4904 = vmul.f32 0.5, %v4903
          %v4905 = vsub.f32 1.5, %v4904
          %v4906 = vmul.f32 %v4901, %v4905
          %vm4907 = vweird.f32 %v4900
          %vm4908 = vweird.f32 %v4901
          %vm4909 = vmor %vm4907, %vm4908
          %v4910 = vsel %vm4909, %v4901, %v4906
          %v4911 = vmul.f32 %v4890, %v4910
          %v4913 = vperm.slane %v4880, 0
          %v4915 = vmul.f32 %v4911, %v4913
          %v4917 = vperm.slane %v4881, 0
          %v4919 = vadd.f32 %v4915, %v4917
          %v4920 = vmax.f32 %v4919, 0.0
          %v4921 = vld [vmem:[%s7] sm:$0xff]
          %v4922 = vld [vmem:[%s7 + $0x8] sm:$0xff]
          %v4923 = vld [vmem:[%s7 + $0x10] sm:$0xff]
          %v4924 = vld [vmem:[%s7 + $0x18] sm:$0xff]
          %v4925 = vld [vmem:[%s7 + $0x20] sm:$0xff]
          %v4926 = vld [vmem:[%s7 + $0x28] sm:$0xff]
          %v4927 = vld [vmem:[%s7 + $0x30] sm:$0xff]
          %v4928 = vld [vmem:[%s7 + $0x38] sm:$0xff]
          %v4929 = vld [vmem:[%s8] sm:$0x1]
          %v4931 = vperm.slane %v4929, 0
          %v4934 = vsel %vm4856, %v4920, 0
          %4936 = vmatpush.msra.mxu0 0.0
          %4937 = vmatpush.msra.mxu0 0.0
          %4938 = vmatpush.msra.mxu0 0.0
          %4939 = vmatpush.msra.mxu0 0.0
          %4940 = vmatpush.msra.mxu0 0.0
          %4941 = vmatpush.msra.mxu0 0.0
          %4942 = vmatpush.msra.mxu0 0.0
          %4943 = vmatpush.msra.mxu0 0.0
          %4944 = vmatpush.msra.mxu0 %v4928
          %4945 = vmatpush.msra.mxu0 %v4927
          %4946 = vmatpush.msra.mxu0 %v4926
          %4947 = vmatpush.msra.mxu0 %v4925
          %4948 = vmatpush.msra.mxu0 %v4924
          %4949 = vmatpush.msra.mxu0 %v4923
          %4950 = vmatpush.msra.mxu0 %v4922
          %4951 = vmatpush.msra.mxu0 %v4921
          %4952 = vmatmul.f32.gmra.mxu0 %v4934
          %v4953 = vpop.f32.mrf.mxu0
          %v4954 = vadd.f32 %v4931, %v4953
          %4955 = vdwg.mxu0
          %vm4956 = vcmask 25600
          %4957 = vst.msk [vmem:[#allocation3] sm:$0x3] %vm4956, %v4954
        $region64: #{dqn_forward.5} parent=55 // pred_fallthru
          _
        // Predicated region
        $region65: #{dqn_forward.5} parent=55 // pred_check
          %p4958 = pneg %p233
        $region66: #{dqn_forward.5} parent=55 // pred_check_branch
          %4960 = sbr.rel (%p4958) target = $region68
        $region67: #{dqn_forward.5} parent=55 // pred_region
          %4962 = vsyncadd [#allocation4], 0
          %s4964 = sshll.u32 [#allocation3], 4
          %s4965 = int_to_ptr.vmem [resolvable:$true] %s4964
          %s4966 = sshll.u32 %s9, 4
          %s4967 = int_to_ptr.hbm [resolvable:$true] %s4966
          %4969 = dma.vmem_to_hbm [thread:$0]  %s4965, 32, %s4967, [#allocation4]
        $region68: #{dqn_forward.5} parent=55 // pred_fallthru
          _
        // Predicated region
        $region69: #{dqn_forward.5} parent=55 // pred_check
          %p4970 = pneg %p233
        $region70: #{dqn_forward.5} parent=55 // pred_check_branch
          %4972 = sbr.rel (%p4970) target = $region72
        $region71: #{dqn_forward.5} parent=55 // pred_region
          %4974 = dma.done [#allocation4], 32
        $region72: #{dqn_forward.5} parent=55 // pred_fallthru
          _
      $region56: #{dqn_forward.5} parent=5 // pred_fallthru
        _
      %p4975 = scmp.le.s32.totalorder 2, %s16
      // Predicated region
      $region73: #{dqn_forward.5} parent=5 // pred_check
        %p4976 = pneg %p4975
      $region74: #{dqn_forward.5} parent=5 // pred_check_branch
        %4978 = sbr.rel (%p4976) target = $region76
      $region75: #{dqn_forward.5} parent=5 // pred_region
        %s4979 = ssub.s32 %s16, 2
      $region76: #{dqn_forward.5} parent=5 // pred_fallthru
        _
    $region6: #{dqn_forward.5} parent=1 // loop_footer
      %s20 = sadd.s32 1, %s16
    $region7: #{dqn_forward.5} parent=1 // loop_footer_branch
      %15 = sbr.rel target = $region3
    $region8: #{dqn_forward.5} parent=1 // loop_exit
      _
    %4980 = vsyncpa [#allocation4], 1
    %s4981 = scalar_lea.sflag [#allocation4], 1
    %4982 = vsyncpa %s4981, 1

</llo_original>
